<compile_context>
chip_gen: v6e
topology: v6e:2x2x1
jax: 0.10.0
libtpu: 0.0.40
codegen_flags: <defaults>
</compile_context>

<pallas_src>
from functools import partial

import jax
import jax.numpy as jnp
from jax import lax
from jax.experimental import pallas as pl
from jax.experimental.pallas import tpu as pltpu

# Small, shape-consistent stand-ins for the module defaults (200 -> 2000).
IN_WEIGHT_SIZE = 16
OUT_WEIGHT_SIZE = 32          # K even -> exercises the asymmetric 'same' padding
INSTR_INIT_WEIGHT_SCALE = 0.01


def _interp(x, xp, fp):
    """torch-style 1-D piecewise linear interpolation (matches InterpolatedConv._interp)."""
    m = (fp[1:] - fp[:-1]) / (xp[1:] - xp[:-1])
    b = fp[:-1] - m * xp[:-1]
    idx = jnp.sum((x[:, None] >= xp[None, :]).astype(jnp.int32), axis=1) - 1
    idx = jnp.clip(idx, 0, m.shape[0] - 1)
    return m[idx] * x + b[idx]


def _band_matrix(w, tl, halo):
    """Banded Toeplitz matrix B, shape (tl+halo, tl): B[r, c] = w[r-c] if 0<=r-c<K else 0."""
    K = w.shape[0]
    r = lax.broadcasted_iota(jnp.int32, (tl + halo, tl), 0)
    c = lax.broadcasted_iota(jnp.int32, (tl + halo, tl), 1)
    d = r - c
    vals = jnp.take(w, jnp.clip(d, 0, K - 1), axis=0)
    return jnp.where((d >= 0) & (d < K), vals, 0.0).astype(jnp.float32)


def _conv_band_kernel(a_ref, h_ref, b_ref, o_ref):
    # a_ref: (TN, TL)      current signal tile (zero-padded signal)
    # h_ref: (TN, HALO)    right halo (next HALO columns of the padded signal)
    # b_ref: (TL+HALO, TL) banded filter matrix, resident (constant block index)
    # o_ref: (TN, TL)      lane-dense output tile
    tl = o_ref.shape[-1]
    halo = h_ref.shape[-1]
    main = jnp.dot(a_ref[...], b_ref[pl.ds(0, tl), :],
                   preferred_element_type=jnp.float32,
                   precision=lax.Precision.HIGHEST)
    tail = jnp.dot(h_ref[...], b_ref[pl.ds(tl, halo), :],
                   preferred_element_type=jnp.float32,
                   precision=lax.Precision.HIGHEST)
    o_ref[...] = (main + tail).astype(o_ref.dtype)


@partial(jax.jit, static_argnames=("out_weight_size", "tn", "tl"))
def interpolated_conv_forward(x, weight, out_weight_size=OUT_WEIGHT_SIZE,
                              *, tn=8, tl=512):
    """x: (N, 1, L) float32 (NCL, single channel); weight: (in_weight_size,) float32."""
    in_weight_size = weight.shape[0]
    K = out_weight_size

    # --- parameter setup (glue): interpolate the learned weight to length K ---
    xp = jnp.linspace(0.0, 1.0, in_weight_size)
    xf = jnp.linspace(0.0, 1.0, K)
    w_int = _interp(xf, xp, weight.reshape(-1).astype(jnp.float32))     # (K,)

    N, C, L = x.shape
    assert C == 1, "InterpolatedConv uses a (1,1,K) filter: single in/out channel"

    # --- tile sizing ---
    halo = max(128, ((K - 1 + 127) // 128) * 128)   # multiple of 128, >= K-1
    tl = max(tl, halo)
    tl = ((tl + halo - 1) // halo) * halo           # TL multiple of HALO (and 128)
    assert tl % 128 == 0 and tl % halo == 0 and tn % 8 == 0

    nN = pl.cdiv(N, tn)
    nL = pl.cdiv(L, tl)
    Np = nN * tn
    Lp_in = (nL + 1) * tl                           # divisible by both TL and HALO

    # PyTorch padding='same': left = (K-1)//2 zeros before the signal; the right
    # side (>= K-1-left zeros) is covered by rounding up to the tiled length.
    left = (K - 1) // 2
    x2d = x.reshape(N, L).astype(jnp.float32)
    xpad = jnp.pad(x2d, ((0, Np - N), (left, Lp_in - left - L)))   # (Np, Lp_in)

    B = _band_matrix(w_int, tl, halo)               # (TL+HALO, TL)

    out = pl.pallas_call(
        _conv_band_kernel,
        out_shape=jax.ShapeDtypeStruct((Np, nL * tl), jnp.float32),
        grid_spec=pltpu.PrefetchScalarGridSpec(
            num_scalar_prefetch=0,
            grid=(nN, nL),
            in_specs=[
                # main signal tile
                pl.BlockSpec((tn, tl), lambda n, l: (n, l)),
                # right halo: next HALO columns of the same padded signal
                pl.BlockSpec((tn, halo),
                             lambda n, l: (n, (l + 1) * (tl // halo))),
                # banded filter matrix, same block every step -> fetched once
                pl.BlockSpec((tl + halo, tl), lambda n, l: (0, 0)),
            ],
            out_specs=pl.BlockSpec((tn, tl), lambda n, l: (n, l)),
        ),
        compiler_params=pltpu.CompilerParams(
            dimension_semantics=("parallel", "parallel"),
            vmem_limit_bytes=32 * 1024 * 1024,
        ),
    )(xpad, xpad, B)

    return out[:N, :L].reshape(N, 1, L)


if __name__ == "__main__":
    key = jax.random.PRNGKey(0)
    kw, kx = jax.random.split(key)

    # Parameter init: torch.randn(in_weight_size) * INSTR_INIT_WEIGHT_SCALE
    weight = (jax.random.normal(kw, (IN_WEIGHT_SIZE,), dtype=jnp.float32)
              * INSTR_INIT_WEIGHT_SCALE)
    # Input consistent with conv1d(x, (1,1,K)-filter): (batch=16, channels=1, length=1024)
    # -> grid (2 batch-tiles x 2 length-tiles) so the tiling path is exercised.
    x = jax.random.normal(kx, (16, 1, 1024), dtype=jnp.float32)

    out = jax.block_until_ready(interpolated_conv_forward(x, weight))
    assert out.shape == x.shape and out.dtype == jnp.float32

    # Sanity check against a plain-JAX reference of the exact same math.
    K = OUT_WEIGHT_SIZE
    xp = jnp.linspace(0.0, 1.0, IN_WEIGHT_SIZE)
    xf = jnp.linspace(0.0, 1.0, K)
    w_int = _interp(xf, xp, weight)
    left = (K - 1) // 2
    right = (K - 1) - left
    xpad = jnp.pad(x[:, 0, :], ((0, 0), (left, right)))
    L = x.shape[2]
    ref = jnp.zeros((x.shape[0], L), jnp.float32)
    for k in range(K):
        ref = ref + w_int[k] * xpad[:, k:k + L]
    err = float(jnp.max(jnp.abs(out[:, 0, :] - ref)))
    assert err < 1e-4, f"mismatch vs reference: {err}"

    print("KERNEL_OK")
</pallas_src>

<mosaic_0001>
module attributes {stable_mosaic.version = 11 : i64} {
  func.func @_conv_band_kernel(%arg0: i32, %arg1: i32, %arg2: memref<8x512xf32, #tpu.memory_space<vmem>>, %arg3: memref<8x128xf32, #tpu.memory_space<vmem>>, %arg4: memref<640x512xf32, #tpu.memory_space<vmem>>, %arg5: memref<8x512xf32, #tpu.memory_space<vmem>>) attributes {dimension_semantics = [#tpu.dimension_semantics<parallel>, #tpu.dimension_semantics<parallel>], iteration_bounds = array<i64: 2, 2>, scalar_prefetch = 0 : i64, scratch_operands = 0 : i64, tpu.core_type = #tpu.core_type<tc>, window_params = [{transform_indices = @transform_0, window_bounds = array<i64: 8, 512>}, {transform_indices = @transform_1, window_bounds = array<i64: 8, 128>}, {pipeline_mode = #tpu.pipeline_mode<synchronous>, transform_indices = @transform_2, window_bounds = array<i64: 640, 512>}, {transform_indices = @transform_3, window_bounds = array<i64: 8, 512>}]} {
    %c0 = arith.constant 0 : index
    %c0_0 = arith.constant 0 : index
    %0 = vector.load %arg2[%c0, %c0_0] : memref<8x512xf32, #tpu.memory_space<vmem>>, vector<8x512xf32>
    %c0_1 = arith.constant 0 : index
    %c0_2 = arith.constant 0 : index
    %1 = vector.load %arg4[%c0_1, %c0_2] : memref<640x512xf32, #tpu.memory_space<vmem>>, vector<512x512xf32>
    %cst = arith.constant dense<0.000000e+00> : vector<8x512xf32>
    %2 = tpu.matmul %0, %1, %cst {dimension_numbers = #tpu.dot_dimension_numbers<[1], [0], [0], [1], [0, 0, 1, 1], [], []>, precision = #tpu.contract_precision<fp32>} : vector<8x512xf32>, vector<512x512xf32>, vector<8x512xf32> -> vector<8x512xf32>
    %c0_3 = arith.constant 0 : index
    %c0_4 = arith.constant 0 : index
    %3 = vector.load %arg3[%c0_3, %c0_4] : memref<8x128xf32, #tpu.memory_space<vmem>>, vector<8x128xf32>
    %c512 = arith.constant 512 : index
    %c0_5 = arith.constant 0 : index
    %4 = vector.load %arg4[%c512, %c0_5] : memref<640x512xf32, #tpu.memory_space<vmem>>, vector<128x512xf32>
    %cst_6 = arith.constant dense<0.000000e+00> : vector<8x512xf32>
    %5 = tpu.matmul %3, %4, %cst_6 {dimension_numbers = #tpu.dot_dimension_numbers<[1], [0], [0], [1], [0, 0, 1, 1], [], []>, precision = #tpu.contract_precision<fp32>} : vector<8x128xf32>, vector<128x512xf32>, vector<8x512xf32> -> vector<8x512xf32>
    %6 = arith.addf %2, %5 : vector<8x512xf32>
    %c0_7 = arith.constant 0 : index
    %c0_8 = arith.constant 0 : index
    %7 = vector.load %arg5[%c0_7, %c0_8] : memref<8x512xf32, #tpu.memory_space<vmem>>, vector<8x512xf32>
    tpu.vector_store %arg5[%c0_7, %c0_8], %6 {strides = array<i32>} : memref<8x512xf32, #tpu.memory_space<vmem>>, vector<8x512xf32>,
    return
  }
  func.func @transform_0(%arg0: i32, %arg1: i32) -> (i32, i32) {
    %c0_i32 = arith.constant 0 : i32
    return %arg0, %arg1 : i32, i32
  }
  func.func @transform_1(%arg0: i32, %arg1: i32) -> (i32, i32) {
    %c1_i32 = arith.constant 1 : i32
    %0 = arith.addi %arg1, %c1_i32 : i32
    %c4_i32 = arith.constant 4 : i32
    %1 = arith.muli %0, %c4_i32 : i32
    %c0_i32 = arith.constant 0 : i32
    return %arg0, %1 : i32, i32
  }
  func.func @transform_2(%arg0: i32, %arg1: i32) -> (i32, i32) {
    %c0_i32 = arith.constant 0 : i32
    %c0_i32_0 = arith.constant 0 : i32
    %c0_i32_1 = arith.constant 0 : i32
    return %c0_i32, %c0_i32_0 : i32, i32
  }
  func.func @transform_3(%arg0: i32, %arg1: i32) -> (i32, i32) {
    %c0_i32 = arith.constant 0 : i32
    return %arg0, %arg1 : i32, i32
  }
}

</mosaic_0001>

<llo_original>
// kernel: interpolated_conv_forward.1
$region0: #{interpolated_conv_forward.1}
  #allocation0 [shape = 'u32[]', space=smem, size = 0x4, offset = 0x4, fixed_abs, tag = 'smem constant byte address 0x4 - core index']
  #allocation1 [shape = 'u32[144,128]{1,0:T(1,128)}', space=vmem, size = 0x12000, scoped, tag = 'internal scratch']
  %s0 = inlined_call_operand.vmem [shape: f32[16,1536], index: 0, kind: input, shape index: {}, may-alias: {0,1}]
  %s1 = inlined_call_operand.vmem [shape: f32[16,1536], index: 1, kind: input, shape index: {}, may-alias: {0,1}]
  %s2 = inlined_call_operand.vmem [shape: f32[640,512], index: 2, kind: input, shape index: {}]
  %s3 = inlined_call_operand.vmem [shape: f32[16,1024], index: 3, kind: output, shape index: {}]
  %s4 = sld [smem:[#allocation0]]
  $region45: #{interpolated_conv_forward.1} parent=0
    _
  %s6 = ssub.s32 1, %s4
  %s7 = scalar_select 0, %s6, %s4
  loop: start=0, step=1, limit=6
  $region2: #{interpolated_conv_forward.1} parent=0 // loop_pre_header
    _
  $region3: #{interpolated_conv_forward.1} parent=0 // loop_header
    %s9 = sphi 0, %s13
    %p10 = scmp.ge.s32.totalorder %s9, 6
    %s16 = sphi 0, %s28
    %s17 = sphi 0, %s24
    %s18 = sphi 0, %s16
    %s19 = sphi 0, %s17
    %s20 = sphi 0, %s18
    %s21 = sphi 0, %s19
    %s33 = sphi 0, %s35
    %s36 = sphi 0, %s33
    %s37 = sphi 0, %s36
    %s53 = sphi 0, %s37
    %s65 = sphi 0, %s67
    %s68 = sphi 0, %s65
    %s69 = sphi 0, %s68
    %s85 = sphi 0, %s69
    %s89 = sphi 0, %s89
    %s91 = sphi 0, %s89
    %s92 = sphi 0, %s91
    %s106 = sphi 0, %s92
    %s114 = sphi 0, %s116
    %s117 = sphi 0, %s114
    %s118 = sphi 0, %s117
    %s134 = sphi 0, %s118
  $region4: #{interpolated_conv_forward.1} parent=0 // loop_header_branch
    %12 = sbr.rel (%p10) target = $region8
  $region5: #{interpolated_conv_forward.1} parent=0 // loop_body
    %s14 = ssub.s32 %s9, 1
    %s15 = ssub.s32 %s9, 2
    %s22 = sadd.s32 1, %s17
    %p23 = scmp.ge.s32.totalorder %s22, 2
    %s24 = scalar_select %p23, 0, %s22
    %s25 = sadd.s32 1, %s16
    %s26 = scalar_select %p23, %s25, %s16
    %p27 = scmp.ge.s32.totalorder %s26, 2
    %s28 = scalar_select %p27, 0, %s26
    %s29 = ssub.s32 %s16, %s28
    %s30 = ssub.s32 %s17, %s24
    %s31 = sor.u32 %s29, %s30
    %p32 = scmp.eq.s32.totalorder %s31, 0
    %s34 = sadd.s32 %s33, 1
    %s35 = scalar_select %p32, %s33, %s34
    %p38 = pneg %p32
    %p39 = scmp.eq.s32.totalorder %s9, 3
    %p40 = por %p38, %p39
    %p41 = scmp.ne.s32.totalorder %s33, %s36
    %p42 = scmp.eq.s32.totalorder %s9, 0
    %p43 = por %p41, %p42
    %p44 = scmp.ne.s32.totalorder %s33, %s36
    %p45 = scmp.eq.s32.totalorder %s14, 3
    %p46 = por %p44, %p45
    %p47 = scmp.ne.s32.totalorder %s36, %s37
    %p48 = scmp.eq.s32.totalorder %s14, 0
    %p49 = por %p47, %p48
    %p50 = scmp.ne.s32.totalorder %s36, %s37
    %p51 = scmp.eq.s32.totalorder %s15, 3
    %p52 = por %p50, %p51
    %p54 = scmp.ne.s32.totalorder %s37, %s53
    %p55 = scmp.eq.s32.totalorder %s15, 0
    %p56 = por %p54, %p55
    %s57 = sadd.s32 %s17, 1
    %s58 = smul.u32 %s57, 4
    %s59 = sadd.s32 %s24, 1
    %s60 = smul.u32 %s59, 4
    %s61 = ssub.s32 %s16, %s28
    %s62 = ssub.s32 %s58, %s60
    %s63 = sor.u32 %s61, %s62
    %p64 = scmp.eq.s32.totalorder %s63, 0
    %s66 = sadd.s32 %s65, 1
    %s67 = scalar_select %p64, %s65, %s66
    %p70 = pneg %p64
    %p71 = scmp.eq.s32.totalorder %s9, 3
    %p72 = por %p70, %p71
    %p73 = scmp.ne.s32.totalorder %s65, %s68
    %p74 = scmp.eq.s32.totalorder %s9, 0
    %p75 = por %p73, %p74
    %p76 = scmp.ne.s32.totalorder %s65, %s68
    %p77 = scmp.eq.s32.totalorder %s14, 3
    %p78 = por %p76, %p77
    %p79 = scmp.ne.s32.totalorder %s68, %s69
    %p80 = scmp.eq.s32.totalorder %s14, 0
    %p81 = por %p79, %p80
    %p82 = scmp.ne.s32.totalorder %s68, %s69
    %p83 = scmp.eq.s32.totalorder %s15, 3
    %p84 = por %p82, %p83
    %p86 = scmp.ne.s32.totalorder %s69, %s85
    %p87 = scmp.eq.s32.totalorder %s15, 0
    %p88 = por %p86, %p87
    %s90 = sadd.s32 %s89, 1
    %p93 = scmp.eq.s32.totalorder %s9, 3
    %p94 = scmp.ne.s32.totalorder %s89, %s91
    %p95 = scmp.eq.s32.totalorder %s9, 0
    %p96 = por %p94, %p95
    %p97 = scmp.ne.s32.totalorder %s89, %s91
    %p98 = scmp.eq.s32.totalorder %s14, 3
    %p99 = por %p97, %p98
    %p100 = scmp.ne.s32.totalorder %s91, %s92
    %p101 = scmp.eq.s32.totalorder %s14, 0
    %p102 = por %p100, %p101
    %p103 = scmp.ne.s32.totalorder %s91, %s92
    %p104 = scmp.eq.s32.totalorder %s15, 3
    %p105 = por %p103, %p104
    %p107 = scmp.ne.s32.totalorder %s92, %s106
    %p108 = scmp.eq.s32.totalorder %s15, 0
    %p109 = por %p107, %p108
    %s110 = ssub.s32 %s16, %s28
    %s111 = ssub.s32 %s17, %s24
    %s112 = sor.u32 %s110, %s111
    %p113 = scmp.eq.s32.totalorder %s112, 0
    %s115 = sadd.s32 %s114, 1
    %s116 = scalar_select %p113, %s114, %s115
    %p119 = pneg %p113
    %p120 = scmp.eq.s32.totalorder %s9, 3
    %p121 = por %p119, %p120
    %p122 = scmp.ne.s32.totalorder %s114, %s117
    %p123 = scmp.eq.s32.totalorder %s9, 0
    %p124 = por %p122, %p123
    %p125 = scmp.ne.s32.totalorder %s114, %s117
    %p126 = scmp.eq.s32.totalorder %s14, 3
    %p127 = por %p125, %p126
    %p128 = scmp.ne.s32.totalorder %s117, %s118
    %p129 = scmp.eq.s32.totalorder %s14, 0
    %p130 = por %p128, %p129
    %p131 = scmp.ne.s32.totalorder %s117, %s118
    %p132 = scmp.eq.s32.totalorder %s15, 3
    %p133 = por %p131, %p132
    %p135 = scmp.ne.s32.totalorder %s118, %s134
    %p136 = scmp.eq.s32.totalorder %s15, 0
    %p137 = por %p135, %p136
    %p138 = scmp.le.s32.totalorder 1, %s9
    %p139 = scmp.lt.s32.totalorder %s9, 5
    %p140 = pnand %p138, %p139
    %p141 = pneg %p140
    // Predicated region
    $region9: #{interpolated_conv_forward.1} parent=5 // pred_check
      _
    $region10: #{interpolated_conv_forward.1} parent=5 // pred_check_branch
      %143 = sbr.rel (%p140) target = $region12
    $region11: #{interpolated_conv_forward.1} parent=5 // pred_region
      %s144 = ssub.s32 %s9, 1
      // Predicated region
      $region13: #{interpolated_conv_forward.1} parent=11 // pred_check
        %p145 = pneg %p102
      $region14: #{interpolated_conv_forward.1} parent=11 // pred_check_branch
        %147 = sbr.rel (%p145) target = $region16
      $region15: #{interpolated_conv_forward.1} parent=11 // pred_region
        _
      $region16: #{interpolated_conv_forward.1} parent=11 // pred_fallthru
        _
    $region12: #{interpolated_conv_forward.1} parent=5 // pred_fallthru
      _
    %p148 = scmp.lt.s32.totalorder %s9, 4
    // Predicated region
    $region17: #{interpolated_conv_forward.1} parent=5 // pred_check
      %p149 = pneg %p148
    $region18: #{interpolated_conv_forward.1} parent=5 // pred_check_branch
      %151 = sbr.rel (%p149) target = $region20
    $region19: #{interpolated_conv_forward.1} parent=5 // pred_region
      // Predicated region
      $region21: #{interpolated_conv_forward.1} parent=19 // pred_check
        %p152 = pneg %p43
      $region22: #{interpolated_conv_forward.1} parent=19 // pred_check_branch
        %154 = sbr.rel (%p152) target = $region24
      $region23: #{interpolated_conv_forward.1} parent=19 // pred_region
        %s155 = smul.u32 4, %s17
        %p156 = scmp.lt.s32.totalorder %s16, 1
        %s157 = scalar_select %p156, %s16, 1
        %p158 = scmp.lt.s32.totalorder %s155, 11
        %s159 = scalar_select %p158, %s155, 11
        %s160 = smul.addr %s157, 12
        %s161 = sadd.s32 %s159, %s160
        %s162 = smul.addr %s161, 8
        %s163 = scalar_lea.vmem %s0, %s162
        %s164 = smul.u32 4, %s17
      $region24: #{interpolated_conv_forward.1} parent=19 // pred_fallthru
        _
      // Predicated region
      $region25: #{interpolated_conv_forward.1} parent=19 // pred_check
        %p165 = pneg %p75
      $region26: #{interpolated_conv_forward.1} parent=19 // pred_check_branch
        %167 = sbr.rel (%p165) target = $region28
      $region27: #{interpolated_conv_forward.1} parent=19 // pred_region
        %s168 = sadd.s32 %s17, 1
        %s169 = smul.u32 %s168, 4
        %p170 = scmp.lt.s32.totalorder %s16, 1
        %s171 = scalar_select %p170, %s16, 1
        %p172 = scmp.lt.s32.totalorder %s169, 11
        %s173 = scalar_select %p172, %s169, 11
        %s174 = smul.addr %s171, 12
        %s175 = sadd.s32 %s173, %s174
        %s176 = smul.addr %s175, 8
        %s177 = scalar_lea.vmem %s1, %s176
        %s178 = sadd.s32 %s17, 1
        %s179 = smul.u32 %s178, 4
      $region28: #{interpolated_conv_forward.1} parent=19 // pred_fallthru
        _
    $region20: #{interpolated_conv_forward.1} parent=5 // pred_fallthru
      _
    %p180 = scmp.le.s32.totalorder 1, %s9
    %p181 = scmp.lt.s32.totalorder %s9, 5
    %p182 = pnand %p180, %p181
    %p183 = pneg %p182
    // Predicated region
    $region29: #{interpolated_conv_forward.1} parent=5 // pred_check
      _
    $region30: #{interpolated_conv_forward.1} parent=5 // pred_check_branch
      %185 = sbr.rel (%p182) target = $region32
    $region31: #{interpolated_conv_forward.1} parent=5 // pred_region
      %s186 = ssub.s32 %s9, 1
      %s187 = smul.u32 4, %s19
      %p188 = scmp.lt.s32.totalorder %s18, 1
      %s189 = scalar_select %p188, %s18, 1
      %p190 = scmp.lt.s32.totalorder %s187, 11
      %s191 = scalar_select %p190, %s187, 11
      %s192 = smul.addr %s189, 12
      %s193 = sadd.s32 %s191, %s192
      %s194 = smul.addr %s193, 8
      %s195 = scalar_lea.vmem %s0, %s194
      %p196 = pneg %p49
      %p197 = pneg %p46
      %s198 = sadd.s32 %s19, 1
      %s199 = smul.u32 %s198, 4
      %p200 = scmp.lt.s32.totalorder %s18, 1
      %s201 = scalar_select %p200, %s18, 1
      %p202 = scmp.lt.s32.totalorder %s199, 11
      %s203 = scalar_select %p202, %s199, 11
      %s204 = smul.addr %s201, 12
      %s205 = sadd.s32 %s203, %s204
      %s206 = smul.addr %s205, 8
      %s207 = scalar_lea.vmem %s1, %s206
      %p208 = pneg %p81
      %p209 = pneg %p78
      %p210 = pneg %p102
      %p211 = pneg %p99
      %p212 = pneg %p130
      %p213 = pneg %p127
      %s214 = smul.u32 4, %s19
      %p215 = scmp.lt.s32.totalorder %s18, 1
      %s216 = scalar_select %p215, %s18, 1
      %p217 = scmp.lt.s32.totalorder %s214, 7
      %s218 = scalar_select %p217, %s214, 7
      %s219 = smul.addr %s216, 8
      %s220 = sadd.s32 %s218, %s219
      %s221 = smul.addr %s220, 8
      %s222 = scalar_lea.vmem %s3, %s221
      %s223 = smul.u32 4, %s19
      %p224 = scmp.lt.s32.totalorder %s18, 1
      %s225 = scalar_select %p224, %s18, 1
      %p226 = scmp.lt.s32.totalorder %s223, 11
      %s227 = scalar_select %p226, %s223, 11
      %s228 = smul.addr %s225, 12
      %s229 = sadd.s32 %s227, %s228
      %s230 = smul.addr %s229, 8
      %s231 = scalar_lea.vmem %s0, %s230
      %s232 = smul.u32 4, %s19
      %s233 = sadd.s32 %s19, 1
      %s234 = smul.u32 %s233, 4
      %p235 = scmp.lt.s32.totalorder %s18, 1
      %s236 = scalar_select %p235, %s18, 1
      %p237 = scmp.lt.s32.totalorder %s234, 11
      %s238 = scalar_select %p237, %s234, 11
      %s239 = smul.addr %s236, 12
      %s240 = sadd.s32 %s238, %s239
      %s241 = smul.addr %s240, 8
      %s242 = scalar_lea.vmem %s1, %s241
      %s243 = sadd.s32 %s19, 1
      %s244 = smul.u32 %s243, 4
      %s245 = smul.u32 4, %s19
      %p246 = scmp.lt.s32.totalorder %s18, 1
      %s247 = scalar_select %p246, %s18, 1
      %p248 = scmp.lt.s32.totalorder %s245, 7
      %s249 = scalar_select %p248, %s245, 7
      %s250 = smul.addr %s247, 8
      %s251 = sadd.s32 %s249, %s250
      %s252 = smul.addr %s251, 8
      %s253 = scalar_lea.vmem %s3, %s252
      %s254 = smul.u32 4, %s19
      %v255 = vld [vmem:[%s231] sm:$0xff]
      %v256 = vld [vmem:[%s231 + $0x8] sm:$0xff]
      %v257 = vld [vmem:[%s231 + $0x10] sm:$0xff]
      %v258 = vld [vmem:[%s231 + $0x18] sm:$0xff]
      %v259 = vld [vmem:[%s2] sm:$0xff]
      %v260 = vld [vmem:[%s2 + $0x8] sm:$0xff]
      %v261 = vld [vmem:[%s2 + $0x10] sm:$0xff]
      %v262 = vld [vmem:[%s2 + $0x18] sm:$0xff]
      %v263 = vld [vmem:[%s2 + $0x20] sm:$0xff]
      %v264 = vld [vmem:[%s2 + $0x28] sm:$0xff]
      %v265 = vld [vmem:[%s2 + $0x30] sm:$0xff]
      %v266 = vld [vmem:[%s2 + $0x38] sm:$0xff]
      %v267 = vld [vmem:[%s2 + $0x40] sm:$0xff]
      %v268 = vld [vmem:[%s2 + $0x48] sm:$0xff]
      %v269 = vld [vmem:[%s2 + $0x50] sm:$0xff]
      %v270 = vld [vmem:[%s2 + $0x58] sm:$0xff]
      %v271 = vld [vmem:[%s2 + $0x60] sm:$0xff]
      %v272 = vld [vmem:[%s2 + $0x68] sm:$0xff]
      %v273 = vld [vmem:[%s2 + $0x70] sm:$0xff]
      %v274 = vld [vmem:[%s2 + $0x78] sm:$0xff]
      %v275 = vld [vmem:[%s2 + $0x80] sm:$0xff]
      %v276 = vld [vmem:[%s2 + $0x88] sm:$0xff]
      %v277 = vld [vmem:[%s2 + $0x90] sm:$0xff]
      %v278 = vld [vmem:[%s2 + $0x98] sm:$0xff]
      %v279 = vld [vmem:[%s2 + $0xa0] sm:$0xff]
      %v280 = vld [vmem:[%s2 + $0xa8] sm:$0xff]
      %v281 = vld [vmem:[%s2 + $0xb0] sm:$0xff]
      %v282 = vld [vmem:[%s2 + $0xb8] sm:$0xff]
      %v283 = vld [vmem:[%s2 + $0xc0] sm:$0xff]
      %v284 = vld [vmem:[%s2 + $0xc8] sm:$0xff]
      %v285 = vld [vmem:[%s2 + $0xd0] sm:$0xff]
      %v286 = vld [vmem:[%s2 + $0xd8] sm:$0xff]
      %v287 = vld [vmem:[%s2 + $0xe0] sm:$0xff]
      %v288 = vld [vmem:[%s2 + $0xe8] sm:$0xff]
      %v289 = vld [vmem:[%s2 + $0xf0] sm:$0xff]
      %v290 = vld [vmem:[%s2 + $0xf8] sm:$0xff]
      %v291 = vld [vmem:[%s2 + $0x100] sm:$0xff]
      %v292 = vld [vmem:[%s2 + $0x108] sm:$0xff]
      %v293 = vld [vmem:[%s2 + $0x110] sm:$0xff]
      %v294 = vld [vmem:[%s2 + $0x118] sm:$0xff]
      %v295 = vld [vmem:[%s2 + $0x120] sm:$0xff]
      %v296 = vld [vmem:[%s2 + $0x128] sm:$0xff]
      %v297 = vld [vmem:[%s2 + $0x130] sm:$0xff]
      %v298 = vld [vmem:[%s2 + $0x138] sm:$0xff]
      %v299 = vld [vmem:[%s2 + $0x140] sm:$0xff]
      %v300 = vld [vmem:[%s2 + $0x148] sm:$0xff]
      %v301 = vld [vmem:[%s2 + $0x150] sm:$0xff]
      %v302 = vld [vmem:[%s2 + $0x158] sm:$0xff]
      %v303 = vld [vmem:[%s2 + $0x160] sm:$0xff]
      %v304 = vld [vmem:[%s2 + $0x168] sm:$0xff]
      %v305 = vld [vmem:[%s2 + $0x170] sm:$0xff]
      %v306 = vld [vmem:[%s2 + $0x178] sm:$0xff]
      %v307 = vld [vmem:[%s2 + $0x180] sm:$0xff]
      %v308 = vld [vmem:[%s2 + $0x188] sm:$0xff]
      %v309 = vld [vmem:[%s2 + $0x190] sm:$0xff]
      %v310 = vld [vmem:[%s2 + $0x198] sm:$0xff]
      %v311 = vld [vmem:[%s2 + $0x1a0] sm:$0xff]
      %v312 = vld [vmem:[%s2 + $0x1a8] sm:$0xff]
      %v313 = vld [vmem:[%s2 + $0x1b0] sm:$0xff]
      %v314 = vld [vmem:[%s2 + $0x1b8] sm:$0xff]
      %v315 = vld [vmem:[%s2 + $0x1c0] sm:$0xff]
      %v316 = vld [vmem:[%s2 + $0x1c8] sm:$0xff]
      %v317 = vld [vmem:[%s2 + $0x1d0] sm:$0xff]
      %v318 = vld [vmem:[%s2 + $0x1d8] sm:$0xff]
      %v319 = vld [vmem:[%s2 + $0x1e0] sm:$0xff]
      %v320 = vld [vmem:[%s2 + $0x1e8] sm:$0xff]
      %v321 = vld [vmem:[%s2 + $0x1f0] sm:$0xff]
      %v322 = vld [vmem:[%s2 + $0x1f8] sm:$0xff]
      %v323 = vld [vmem:[%s2 + $0x200] sm:$0xff]
      %v324 = vld [vmem:[%s2 + $0x208] sm:$0xff]
      %v325 = vld [vmem:[%s2 + $0x210] sm:$0xff]
      %v326 = vld [vmem:[%s2 + $0x218] sm:$0xff]
      %v327 = vld [vmem:[%s2 + $0x220] sm:$0xff]
      %v328 = vld [vmem:[%s2 + $0x228] sm:$0xff]
      %v329 = vld [vmem:[%s2 + $0x230] sm:$0xff]
      %v330 = vld [vmem:[%s2 + $0x238] sm:$0xff]
      %v331 = vld [vmem:[%s2 + $0x240] sm:$0xff]
      %v332 = vld [vmem:[%s2 + $0x248] sm:$0xff]
      %v333 = vld [vmem:[%s2 + $0x250] sm:$0xff]
      %v334 = vld [vmem:[%s2 + $0x258] sm:$0xff]
      %v335 = vld [vmem:[%s2 + $0x260] sm:$0xff]
      %v336 = vld [vmem:[%s2 + $0x268] sm:$0xff]
      %v337 = vld [vmem:[%s2 + $0x270] sm:$0xff]
      %v338 = vld [vmem:[%s2 + $0x278] sm:$0xff]
      %v339 = vld [vmem:[%s2 + $0x280] sm:$0xff]
      %v340 = vld [vmem:[%s2 + $0x288] sm:$0xff]
      %v341 = vld [vmem:[%s2 + $0x290] sm:$0xff]
      %v342 = vld [vmem:[%s2 + $0x298] sm:$0xff]
      %v343 = vld [vmem:[%s2 + $0x2a0] sm:$0xff]
      %v344 = vld [vmem:[%s2 + $0x2a8] sm:$0xff]
      %v345 = vld [vmem:[%s2 + $0x2b0] sm:$0xff]
      %v346 = vld [vmem:[%s2 + $0x2b8] sm:$0xff]
      %v347 = vld [vmem:[%s2 + $0x2c0] sm:$0xff]
      %v348 = vld [vmem:[%s2 + $0x2c8] sm:$0xff]
      %v349 = vld [vmem:[%s2 + $0x2d0] sm:$0xff]
      %v350 = vld [vmem:[%s2 + $0x2d8] sm:$0xff]
      %v351 = vld [vmem:[%s2 + $0x2e0] sm:$0xff]
      %v352 = vld [vmem:[%s2 + $0x2e8] sm:$0xff]
      %v353 = vld [vmem:[%s2 + $0x2f0] sm:$0xff]
      %v354 = vld [vmem:[%s2 + $0x2f8] sm:$0xff]
      %v355 = vld [vmem:[%s2 + $0x300] sm:$0xff]
      %v356 = vld [vmem:[%s2 + $0x308] sm:$0xff]
      %v357 = vld [vmem:[%s2 + $0x310] sm:$0xff]
      %v358 = vld [vmem:[%s2 + $0x318] sm:$0xff]
      %v359 = vld [vmem:[%s2 + $0x320] sm:$0xff]
      %v360 = vld [vmem:[%s2 + $0x328] sm:$0xff]
      %v361 = vld [vmem:[%s2 + $0x330] sm:$0xff]
      %v362 = vld [vmem:[%s2 + $0x338] sm:$0xff]
      %v363 = vld [vmem:[%s2 + $0x340] sm:$0xff]
      %v364 = vld [vmem:[%s2 + $0x348] sm:$0xff]
      %v365 = vld [vmem:[%s2 + $0x350] sm:$0xff]
      %v366 = vld [vmem:[%s2 + $0x358] sm:$0xff]
      %v367 = vld [vmem:[%s2 + $0x360] sm:$0xff]
      %v368 = vld [vmem:[%s2 + $0x368] sm:$0xff]
      %v369 = vld [vmem:[%s2 + $0x370] sm:$0xff]
      %v370 = vld [vmem:[%s2 + $0x378] sm:$0xff]
      %v371 = vld [vmem:[%s2 + $0x380] sm:$0xff]
      %v372 = vld [vmem:[%s2 + $0x388] sm:$0xff]
      %v373 = vld [vmem:[%s2 + $0x390] sm:$0xff]
      %v374 = vld [vmem:[%s2 + $0x398] sm:$0xff]
      %v375 = vld [vmem:[%s2 + $0x3a0] sm:$0xff]
      %v376 = vld [vmem:[%s2 + $0x3a8] sm:$0xff]
      %v377 = vld [vmem:[%s2 + $0x3b0] sm:$0xff]
      %v378 = vld [vmem:[%s2 + $0x3b8] sm:$0xff]
      %v379 = vld [vmem:[%s2 + $0x3c0] sm:$0xff]
      %v380 = vld [vmem:[%s2 + $0x3c8] sm:$0xff]
      %v381 = vld [vmem:[%s2 + $0x3d0] sm:$0xff]
      %v382 = vld [vmem:[%s2 + $0x3d8] sm:$0xff]
      %v383 = vld [vmem:[%s2 + $0x3e0] sm:$0xff]
      %v384 = vld [vmem:[%s2 + $0x3e8] sm:$0xff]
      %v385 = vld [vmem:[%s2 + $0x3f0] sm:$0xff]
      %v386 = vld [vmem:[%s2 + $0x3f8] sm:$0xff]
      %v387 = vld [vmem:[%s2 + $0x400] sm:$0xff]
      %v388 = vld [vmem:[%s2 + $0x408] sm:$0xff]
      %v389 = vld [vmem:[%s2 + $0x410] sm:$0xff]
      %v390 = vld [vmem:[%s2 + $0x418] sm:$0xff]
      %v391 = vld [vmem:[%s2 + $0x420] sm:$0xff]
      %v392 = vld [vmem:[%s2 + $0x428] sm:$0xff]
      %v393 = vld [vmem:[%s2 + $0x430] sm:$0xff]
      %v394 = vld [vmem:[%s2 + $0x438] sm:$0xff]
      %v395 = vld [vmem:[%s2 + $0x440] sm:$0xff]
      %v396 = vld [vmem:[%s2 + $0x448] sm:$0xff]
      %v397 = vld [vmem:[%s2 + $0x450] sm:$0xff]
      %v398 = vld [vmem:[%s2 + $0x458] sm:$0xff]
      %v399 = vld [vmem:[%s2 + $0x460] sm:$0xff]
      %v400 = vld [vmem:[%s2 + $0x468] sm:$0xff]
      %v401 = vld [vmem:[%s2 + $0x470] sm:$0xff]
      %v402 = vld [vmem:[%s2 + $0x478] sm:$0xff]
      %v403 = vld [vmem:[%s2 + $0x480] sm:$0xff]
      %v404 = vld [vmem:[%s2 + $0x488] sm:$0xff]
      %v405 = vld [vmem:[%s2 + $0x490] sm:$0xff]
      %v406 = vld [vmem:[%s2 + $0x498] sm:$0xff]
      %v407 = vld [vmem:[%s2 + $0x4a0] sm:$0xff]
      %v408 = vld [vmem:[%s2 + $0x4a8] sm:$0xff]
      %v409 = vld [vmem:[%s2 + $0x4b0] sm:$0xff]
      %v410 = vld [vmem:[%s2 + $0x4b8] sm:$0xff]
      %v411 = vld [vmem:[%s2 + $0x4c0] sm:$0xff]
      %v412 = vld [vmem:[%s2 + $0x4c8] sm:$0xff]
      %v413 = vld [vmem:[%s2 + $0x4d0] sm:$0xff]
      %v414 = vld [vmem:[%s2 + $0x4d8] sm:$0xff]
      %v415 = vld [vmem:[%s2 + $0x4e0] sm:$0xff]
      %v416 = vld [vmem:[%s2 + $0x4e8] sm:$0xff]
      %v417 = vld [vmem:[%s2 + $0x4f0] sm:$0xff]
      %v418 = vld [vmem:[%s2 + $0x4f8] sm:$0xff]
      %v419 = vld [vmem:[%s2 + $0x500] sm:$0xff]
      %v420 = vld [vmem:[%s2 + $0x508] sm:$0xff]
      %v421 = vld [vmem:[%s2 + $0x510] sm:$0xff]
      %v422 = vld [vmem:[%s2 + $0x518] sm:$0xff]
      %v423 = vld [vmem:[%s2 + $0x520] sm:$0xff]
      %v424 = vld [vmem:[%s2 + $0x528] sm:$0xff]
      %v425 = vld [vmem:[%s2 + $0x530] sm:$0xff]
      %v426 = vld [vmem:[%s2 + $0x538] sm:$0xff]
      %v427 = vld [vmem:[%s2 + $0x540] sm:$0xff]
      %v428 = vld [vmem:[%s2 + $0x548] sm:$0xff]
      %v429 = vld [vmem:[%s2 + $0x550] sm:$0xff]
      %v430 = vld [vmem:[%s2 + $0x558] sm:$0xff]
      %v431 = vld [vmem:[%s2 + $0x560] sm:$0xff]
      %v432 = vld [vmem:[%s2 + $0x568] sm:$0xff]
      %v433 = vld [vmem:[%s2 + $0x570] sm:$0xff]
      %v434 = vld [vmem:[%s2 + $0x578] sm:$0xff]
      %v435 = vld [vmem:[%s2 + $0x580] sm:$0xff]
      %v436 = vld [vmem:[%s2 + $0x588] sm:$0xff]
      %v437 = vld [vmem:[%s2 + $0x590] sm:$0xff]
      %v438 = vld [vmem:[%s2 + $0x598] sm:$0xff]
      %v439 = vld [vmem:[%s2 + $0x5a0] sm:$0xff]
      %v440 = vld [vmem:[%s2 + $0x5a8] sm:$0xff]
      %v441 = vld [vmem:[%s2 + $0x5b0] sm:$0xff]
      %v442 = vld [vmem:[%s2 + $0x5b8] sm:$0xff]
      %v443 = vld [vmem:[%s2 + $0x5c0] sm:$0xff]
      %v444 = vld [vmem:[%s2 + $0x5c8] sm:$0xff]
      %v445 = vld [vmem:[%s2 + $0x5d0] sm:$0xff]
      %v446 = vld [vmem:[%s2 + $0x5d8] sm:$0xff]
      %v447 = vld [vmem:[%s2 + $0x5e0] sm:$0xff]
      %v448 = vld [vmem:[%s2 + $0x5e8] sm:$0xff]
      %v449 = vld [vmem:[%s2 + $0x5f0] sm:$0xff]
      %v450 = vld [vmem:[%s2 + $0x5f8] sm:$0xff]
      %v451 = vld [vmem:[%s2 + $0x600] sm:$0xff]
      %v452 = vld [vmem:[%s2 + $0x608] sm:$0xff]
      %v453 = vld [vmem:[%s2 + $0x610] sm:$0xff]
      %v454 = vld [vmem:[%s2 + $0x618] sm:$0xff]
      %v455 = vld [vmem:[%s2 + $0x620] sm:$0xff]
      %v456 = vld [vmem:[%s2 + $0x628] sm:$0xff]
      %v457 = vld [vmem:[%s2 + $0x630] sm:$0xff]
      %v458 = vld [vmem:[%s2 + $0x638] sm:$0xff]
      %v459 = vld [vmem:[%s2 + $0x640] sm:$0xff]
      %v460 = vld [vmem:[%s2 + $0x648] sm:$0xff]
      %v461 = vld [vmem:[%s2 + $0x650] sm:$0xff]
      %v462 = vld [vmem:[%s2 + $0x658] sm:$0xff]
      %v463 = vld [vmem:[%s2 + $0x660] sm:$0xff]
      %v464 = vld [vmem:[%s2 + $0x668] sm:$0xff]
      %v465 = vld [vmem:[%s2 + $0x670] sm:$0xff]
      %v466 = vld [vmem:[%s2 + $0x678] sm:$0xff]
      %v467 = vld [vmem:[%s2 + $0x680] sm:$0xff]
      %v468 = vld [vmem:[%s2 + $0x688] sm:$0xff]
      %v469 = vld [vmem:[%s2 + $0x690] sm:$0xff]
      %v470 = vld [vmem:[%s2 + $0x698] sm:$0xff]
      %v471 = vld [vmem:[%s2 + $0x6a0] sm:$0xff]
      %v472 = vld [vmem:[%s2 + $0x6a8] sm:$0xff]
      %v473 = vld [vmem:[%s2 + $0x6b0] sm:$0xff]
      %v474 = vld [vmem:[%s2 + $0x6b8] sm:$0xff]
      %v475 = vld [vmem:[%s2 + $0x6c0] sm:$0xff]
      %v476 = vld [vmem:[%s2 + $0x6c8] sm:$0xff]
      %v477 = vld [vmem:[%s2 + $0x6d0] sm:$0xff]
      %v478 = vld [vmem:[%s2 + $0x6d8] sm:$0xff]
      %v479 = vld [vmem:[%s2 + $0x6e0] sm:$0xff]
      %v480 = vld [vmem:[%s2 + $0x6e8] sm:$0xff]
      %v481 = vld [vmem:[%s2 + $0x6f0] sm:$0xff]
      %v482 = vld [vmem:[%s2 + $0x6f8] sm:$0xff]
      %v483 = vld [vmem:[%s2 + $0x700] sm:$0xff]
      %v484 = vld [vmem:[%s2 + $0x708] sm:$0xff]
      %v485 = vld [vmem:[%s2 + $0x710] sm:$0xff]
      %v486 = vld [vmem:[%s2 + $0x718] sm:$0xff]
      %v487 = vld [vmem:[%s2 + $0x720] sm:$0xff]
      %v488 = vld [vmem:[%s2 + $0x728] sm:$0xff]
      %v489 = vld [vmem:[%s2 + $0x730] sm:$0xff]
      %v490 = vld [vmem:[%s2 + $0x738] sm:$0xff]
      %v491 = vld [vmem:[%s2 + $0x740] sm:$0xff]
      %v492 = vld [vmem:[%s2 + $0x748] sm:$0xff]
      %v493 = vld [vmem:[%s2 + $0x750] sm:$0xff]
      %v494 = vld [vmem:[%s2 + $0x758] sm:$0xff]
      %v495 = vld [vmem:[%s2 + $0x760] sm:$0xff]
      %v496 = vld [vmem:[%s2 + $0x768] sm:$0xff]
      %v497 = vld [vmem:[%s2 + $0x770] sm:$0xff]
      %v498 = vld [vmem:[%s2 + $0x778] sm:$0xff]
      %v499 = vld [vmem:[%s2 + $0x780] sm:$0xff]
      %v500 = vld [vmem:[%s2 + $0x788] sm:$0xff]
      %v501 = vld [vmem:[%s2 + $0x790] sm:$0xff]
      %v502 = vld [vmem:[%s2 + $0x798] sm:$0xff]
      %v503 = vld [vmem:[%s2 + $0x7a0] sm:$0xff]
      %v504 = vld [vmem:[%s2 + $0x7a8] sm:$0xff]
      %v505 = vld [vmem:[%s2 + $0x7b0] sm:$0xff]
      %v506 = vld [vmem:[%s2 + $0x7b8] sm:$0xff]
      %v507 = vld [vmem:[%s2 + $0x7c0] sm:$0xff]
      %v508 = vld [vmem:[%s2 + $0x7c8] sm:$0xff]
      %v509 = vld [vmem:[%s2 + $0x7d0] sm:$0xff]
      %v510 = vld [vmem:[%s2 + $0x7d8] sm:$0xff]
      %v511 = vld [vmem:[%s2 + $0x7e0] sm:$0xff]
      %v512 = vld [vmem:[%s2 + $0x7e8] sm:$0xff]
      %v513 = vld [vmem:[%s2 + $0x7f0] sm:$0xff]
      %v514 = vld [vmem:[%s2 + $0x7f8] sm:$0xff]
      %v515 = vld [vmem:[%s242] sm:$0xff]
      %v516 = vld [vmem:[%s2 + $0x800] sm:$0xff]
      %v517 = vld [vmem:[%s2 + $0x808] sm:$0xff]
      %v518 = vld [vmem:[%s2 + $0x810] sm:$0xff]
      %v519 = vld [vmem:[%s2 + $0x818] sm:$0xff]
      %v520 = vld [vmem:[%s2 + $0x820] sm:$0xff]
      %v521 = vld [vmem:[%s2 + $0x828] sm:$0xff]
      %v522 = vld [vmem:[%s2 + $0x830] sm:$0xff]
      %v523 = vld [vmem:[%s2 + $0x838] sm:$0xff]
      %v524 = vld [vmem:[%s2 + $0x840] sm:$0xff]
      %v525 = vld [vmem:[%s2 + $0x848] sm:$0xff]
      %v526 = vld [vmem:[%s2 + $0x850] sm:$0xff]
      %v527 = vld [vmem:[%s2 + $0x858] sm:$0xff]
      %v528 = vld [vmem:[%s2 + $0x860] sm:$0xff]
      %v529 = vld [vmem:[%s2 + $0x868] sm:$0xff]
      %v530 = vld [vmem:[%s2 + $0x870] sm:$0xff]
      %v531 = vld [vmem:[%s2 + $0x878] sm:$0xff]
      %v532 = vld [vmem:[%s2 + $0x880] sm:$0xff]
      %v533 = vld [vmem:[%s2 + $0x888] sm:$0xff]
      %v534 = vld [vmem:[%s2 + $0x890] sm:$0xff]
      %v535 = vld [vmem:[%s2 + $0x898] sm:$0xff]
      %v536 = vld [vmem:[%s2 + $0x8a0] sm:$0xff]
      %v537 = vld [vmem:[%s2 + $0x8a8] sm:$0xff]
      %v538 = vld [vmem:[%s2 + $0x8b0] sm:$0xff]
      %v539 = vld [vmem:[%s2 + $0x8b8] sm:$0xff]
      %v540 = vld [vmem:[%s2 + $0x8c0] sm:$0xff]
      %v541 = vld [vmem:[%s2 + $0x8c8] sm:$0xff]
      %v542 = vld [vmem:[%s2 + $0x8d0] sm:$0xff]
      %v543 = vld [vmem:[%s2 + $0x8d8] sm:$0xff]
      %v544 = vld [vmem:[%s2 + $0x8e0] sm:$0xff]
      %v545 = vld [vmem:[%s2 + $0x8e8] sm:$0xff]
      %v546 = vld [vmem:[%s2 + $0x8f0] sm:$0xff]
      %v547 = vld [vmem:[%s2 + $0x8f8] sm:$0xff]
      %v548 = vld [vmem:[%s2 + $0x900] sm:$0xff]
      %v549 = vld [vmem:[%s2 + $0x908] sm:$0xff]
      %v550 = vld [vmem:[%s2 + $0x910] sm:$0xff]
      %v551 = vld [vmem:[%s2 + $0x918] sm:$0xff]
      %v552 = vld [vmem:[%s2 + $0x920] sm:$0xff]
      %v553 = vld [vmem:[%s2 + $0x928] sm:$0xff]
      %v554 = vld [vmem:[%s2 + $0x930] sm:$0xff]
      %v555 = vld [vmem:[%s2 + $0x938] sm:$0xff]
      %v556 = vld [vmem:[%s2 + $0x940] sm:$0xff]
      %v557 = vld [vmem:[%s2 + $0x948] sm:$0xff]
      %v558 = vld [vmem:[%s2 + $0x950] sm:$0xff]
      %v559 = vld [vmem:[%s2 + $0x958] sm:$0xff]
      %v560 = vld [vmem:[%s2 + $0x960] sm:$0xff]
      %v561 = vld [vmem:[%s2 + $0x968] sm:$0xff]
      %v562 = vld [vmem:[%s2 + $0x970] sm:$0xff]
      %v563 = vld [vmem:[%s2 + $0x978] sm:$0xff]
      %v564 = vld [vmem:[%s2 + $0x980] sm:$0xff]
      %v565 = vld [vmem:[%s2 + $0x988] sm:$0xff]
      %v566 = vld [vmem:[%s2 + $0x990] sm:$0xff]
      %v567 = vld [vmem:[%s2 + $0x998] sm:$0xff]
      %v568 = vld [vmem:[%s2 + $0x9a0] sm:$0xff]
      %v569 = vld [vmem:[%s2 + $0x9a8] sm:$0xff]
      %v570 = vld [vmem:[%s2 + $0x9b0] sm:$0xff]
      %v571 = vld [vmem:[%s2 + $0x9b8] sm:$0xff]
      %v572 = vld [vmem:[%s2 + $0x9c0] sm:$0xff]
      %v573 = vld [vmem:[%s2 + $0x9c8] sm:$0xff]
      %v574 = vld [vmem:[%s2 + $0x9d0] sm:$0xff]
      %v575 = vld [vmem:[%s2 + $0x9d8] sm:$0xff]
      %v576 = vld [vmem:[%s2 + $0x9e0] sm:$0xff]
      %v577 = vld [vmem:[%s2 + $0x9e8] sm:$0xff]
      %v578 = vld [vmem:[%s2 + $0x9f0] sm:$0xff]
      %v579 = vld [vmem:[%s2 + $0x9f8] sm:$0xff]
      %v580 = vand.u32 %v577, 4294901760
      %581 = vmatprep.subr.mxu0 %v580
      %v582 = vand.u32 %v576, 4294901760
      %583 = vmatpush1.msra.mxu0 %v582
      %v584 = vand.u32 %v573, 4294901760
      %585 = vmatprep.subr.mxu0 %v584
      %v586 = vand.u32 %v572, 4294901760
      %587 = vmatpush1.msra.mxu0 %v586
      %v588 = vand.u32 %v569, 4294901760
      %589 = vmatprep.subr.mxu0 %v588
      %v590 = vand.u32 %v568, 4294901760
      %591 = vmatpush1.msra.mxu0 %v590
      %v592 = vand.u32 %v565, 4294901760
      %593 = vmatprep.subr.mxu0 %v592
      %v594 = vand.u32 %v564, 4294901760
      %595 = vmatpush1.msra.mxu0 %v594
      %v596 = vand.u32 %v561, 4294901760
      %597 = vmatprep.subr.mxu0 %v596
      %v598 = vand.u32 %v560, 4294901760
      %599 = vmatpush1.msra.mxu0 %v598
      %v600 = vand.u32 %v557, 4294901760
      %601 = vmatprep.subr.mxu0 %v600
      %v602 = vand.u32 %v556, 4294901760
      %603 = vmatpush1.msra.mxu0 %v602
      %v604 = vand.u32 %v553, 4294901760
      %605 = vmatprep.subr.mxu0 %v604
      %v606 = vand.u32 %v552, 4294901760
      %607 = vmatpush1.msra.mxu0 %v606
      %v608 = vand.u32 %v549, 4294901760
      %609 = vmatprep.subr.mxu0 %v608
      %v610 = vand.u32 %v548, 4294901760
      %611 = vmatpush1.msra.mxu0 %v610
      %v612 = vand.u32 %v545, 4294901760
      %613 = vmatprep.subr.mxu0 %v612
      %v614 = vand.u32 %v544, 4294901760
      %615 = vmatpush1.msra.mxu0 %v614
      %v616 = vand.u32 %v541, 4294901760
      %617 = vmatprep.subr.mxu0 %v616
      %v618 = vand.u32 %v540, 4294901760
      %619 = vmatpush1.msra.mxu0 %v618
      %v620 = vand.u32 %v537, 4294901760
      %621 = vmatprep.subr.mxu0 %v620
      %v622 = vand.u32 %v536, 4294901760
      %623 = vmatpush1.msra.mxu0 %v622
      %v624 = vand.u32 %v533, 4294901760
      %625 = vmatprep.subr.mxu0 %v624
      %v626 = vand.u32 %v532, 4294901760
      %627 = vmatpush1.msra.mxu0 %v626
      %v628 = vand.u32 %v529, 4294901760
      %629 = vmatprep.subr.mxu0 %v628
      %v630 = vand.u32 %v528, 4294901760
      %631 = vmatpush1.msra.mxu0 %v630
      %v632 = vand.u32 %v525, 4294901760
      %633 = vmatprep.subr.mxu0 %v632
      %v634 = vand.u32 %v524, 4294901760
      %635 = vmatpush1.msra.mxu0 %v634
      %v636 = vand.u32 %v521, 4294901760
      %637 = vmatprep.subr.mxu0 %v636
      %v638 = vand.u32 %v520, 4294901760
      %639 = vmatpush1.msra.mxu0 %v638
      %v640 = vand.u32 %v517, 4294901760
      %641 = vmatprep.subr.mxu0 %v640
      %v642 = vand.u32 %v516, 4294901760
      %643 = vmatpush1.msra.mxu0 %v642
      %644 = vmatprep.subr.mxu0 0.0
      %645 = vmatpush2.msra.mxu0 0.0
      %646 = vmatprep.subr.mxu0 0.0
      %647 = vmatpush2.msra.mxu0 0.0
      %648 = vmatprep.subr.mxu0 0.0
      %649 = vmatpush2.msra.mxu0 0.0
      %650 = vmatprep.subr.mxu0 0.0
      %651 = vmatpush2.msra.mxu0 0.0
      %652 = vmatprep.subr.mxu0 0.0
      %653 = vmatpush2.msra.mxu0 0.0
      %654 = vmatprep.subr.mxu0 0.0
      %655 = vmatpush2.msra.mxu0 0.0
      %656 = vmatprep.subr.mxu0 0.0
      %657 = vmatpush2.msra.mxu0 0.0
      %658 = vmatprep.subr.mxu0 0.0
      %659 = vmatpush2.msra.mxu0 0.0
      %660 = vmatprep.subr.mxu0 0.0
      %661 = vmatpush2.msra.mxu0 0.0
      %662 = vmatprep.subr.mxu0 0.0
      %663 = vmatpush2.msra.mxu0 0.0
      %664 = vmatprep.subr.mxu0 0.0
      %665 = vmatpush2.msra.mxu0 0.0
      %666 = vmatprep.subr.mxu0 0.0
      %667 = vmatpush2.msra.mxu0 0.0
      %668 = vmatprep.subr.mxu0 0.0
      %669 = vmatpush2.msra.mxu0 0.0
      %670 = vmatprep.subr.mxu0 0.0
      %671 = vmatpush2.msra.mxu0 0.0
      %672 = vmatprep.subr.mxu0 0.0
      %673 = vmatpush2.msra.mxu0 0.0
      %674 = vmatprep.subr.mxu0 0.0
      %675 = vmatpush2.msra.mxu0 0.0
      %676 = vmatprep.mubr.f32.mxu0 0.0
      %v677 = vand.u32 %v515, 4294901760
      %v678 = vsub.f32 %v515, %v677
      %v679 = vand.u32 %v678, 4294901760
      %v680 = vsub.f32 %v678, %v679
      %v681 = vand.u32 %v680, 4294901760
      %682 = vmatmul.mubr.f32.gmra.mxu0 %v681
      %v683 = vpop.f32.mrf.mxu0
      %v684 = vadd.f32 0.0, %v683
      %v685 = vpop.f32.mrf.mxu0
      %v686 = vadd.f32 0.0, %v685
      %687 = vdwg.mxu0
      %v688 = vand.u32 %v577, 4294901760
      %v689 = vsub.f32 %v577, %v688
      %v690 = vand.u32 %v689, 4294901760
      %v691 = vsub.f32 %v689, %v690
      %v692 = vand.u32 %v691, 4294901760
      %693 = vmatprep.subr.mxu0 %v692
      %v694 = vand.u32 %v576, 4294901760
      %v695 = vsub.f32 %v576, %v694
      %v696 = vand.u32 %v695, 4294901760
      %v697 = vsub.f32 %v695, %v696
      %v698 = vand.u32 %v697, 4294901760
      %699 = vmatpush1.msra.mxu0 %v698
      %v700 = vand.u32 %v573, 4294901760
      %v701 = vsub.f32 %v573, %v700
      %v702 = vand.u32 %v701, 4294901760
      %v703 = vsub.f32 %v701, %v702
      %v704 = vand.u32 %v703, 4294901760
      %705 = vmatprep.subr.mxu0 %v704
      %v706 = vand.u32 %v572, 4294901760
      %v707 = vsub.f32 %v572, %v706
      %v708 = vand.u32 %v707, 4294901760
      %v709 = vsub.f32 %v707, %v708
      %v710 = vand.u32 %v709, 4294901760
      %711 = vmatpush1.msra.mxu0 %v710
      %v712 = vand.u32 %v569, 4294901760
      %v713 = vsub.f32 %v569, %v712
      %v714 = vand.u32 %v713, 4294901760
      %v715 = vsub.f32 %v713, %v714
      %v716 = vand.u32 %v715, 4294901760
      %717 = vmatprep.subr.mxu0 %v716
      %v718 = vand.u32 %v568, 4294901760
      %v719 = vsub.f32 %v568, %v718
      %v720 = vand.u32 %v719, 4294901760
      %v721 = vsub.f32 %v719, %v720
      %v722 = vand.u32 %v721, 4294901760
      %723 = vmatpush1.msra.mxu0 %v722
      %v724 = vand.u32 %v565, 4294901760
      %v725 = vsub.f32 %v565, %v724
      %v726 = vand.u32 %v725, 4294901760
      %v727 = vsub.f32 %v725, %v726
      %v728 = vand.u32 %v727, 4294901760
      %729 = vmatprep.subr.mxu0 %v728
      %v730 = vand.u32 %v564, 4294901760
      %v731 = vsub.f32 %v564, %v730
      %v732 = vand.u32 %v731, 4294901760
      %v733 = vsub.f32 %v731, %v732
      %v734 = vand.u32 %v733, 4294901760
      %735 = vmatpush1.msra.mxu0 %v734
      %v736 = vand.u32 %v561, 4294901760
      %v737 = vsub.f32 %v561, %v736
      %v738 = vand.u32 %v737, 4294901760
      %v739 = vsub.f32 %v737, %v738
      %v740 = vand.u32 %v739, 4294901760
      %741 = vmatprep.subr.mxu0 %v740
      %v742 = vand.u32 %v560, 4294901760
      %v743 = vsub.f32 %v560, %v742
      %v744 = vand.u32 %v743, 4294901760
      %v745 = vsub.f32 %v743, %v744
      %v746 = vand.u32 %v745, 4294901760
      %747 = vmatpush1.msra.mxu0 %v746
      %v748 = vand.u32 %v557, 4294901760
      %v749 = vsub.f32 %v557, %v748
      %v750 = vand.u32 %v749, 4294901760
      %v751 = vsub.f32 %v749, %v750
      %v752 = vand.u32 %v751, 4294901760
      %753 = vmatprep.subr.mxu0 %v752
      %v754 = vand.u32 %v556, 4294901760
      %v755 = vsub.f32 %v556, %v754
      %v756 = vand.u32 %v755, 4294901760
      %v757 = vsub.f32 %v755, %v756
      %v758 = vand.u32 %v757, 4294901760
      %759 = vmatpush1.msra.mxu0 %v758
      %v760 = vand.u32 %v553, 4294901760
      %v761 = vsub.f32 %v553, %v760
      %v762 = vand.u32 %v761, 4294901760
      %v763 = vsub.f32 %v761, %v762
      %v764 = vand.u32 %v763, 4294901760
      %765 = vmatprep.subr.mxu0 %v764
      %v766 = vand.u32 %v552, 4294901760
      %v767 = vsub.f32 %v552, %v766
      %v768 = vand.u32 %v767, 4294901760
      %v769 = vsub.f32 %v767, %v768
      %v770 = vand.u32 %v769, 4294901760
      %771 = vmatpush1.msra.mxu0 %v770
      %v772 = vand.u32 %v549, 4294901760
      %v773 = vsub.f32 %v549, %v772
      %v774 = vand.u32 %v773, 4294901760
      %v775 = vsub.f32 %v773, %v774
      %v776 = vand.u32 %v775, 4294901760
      %777 = vmatprep.subr.mxu0 %v776
      %v778 = vand.u32 %v548, 4294901760
      %v779 = vsub.f32 %v548, %v778
      %v780 = vand.u32 %v779, 4294901760
      %v781 = vsub.f32 %v779, %v780
      %v782 = vand.u32 %v781, 4294901760
      %783 = vmatpush1.msra.mxu0 %v782
      %v784 = vand.u32 %v545, 4294901760
      %v785 = vsub.f32 %v545, %v784
      %v786 = vand.u32 %v785, 4294901760
      %v787 = vsub.f32 %v785, %v786
      %v788 = vand.u32 %v787, 4294901760
      %789 = vmatprep.subr.mxu0 %v788
      %v790 = vand.u32 %v544, 4294901760
      %v791 = vsub.f32 %v544, %v790
      %v792 = vand.u32 %v791, 4294901760
      %v793 = vsub.f32 %v791, %v792
      %v794 = vand.u32 %v793, 4294901760
      %795 = vmatpush1.msra.mxu0 %v794
      %v796 = vand.u32 %v541, 4294901760
      %v797 = vsub.f32 %v541, %v796
      %v798 = vand.u32 %v797, 4294901760
      %v799 = vsub.f32 %v797, %v798
      %v800 = vand.u32 %v799, 4294901760
      %801 = vmatprep.subr.mxu0 %v800
      %v802 = vand.u32 %v540, 4294901760
      %v803 = vsub.f32 %v540, %v802
      %v804 = vand.u32 %v803, 4294901760
      %v805 = vsub.f32 %v803, %v804
      %v806 = vand.u32 %v805, 4294901760
      %807 = vmatpush1.msra.mxu0 %v806
      %v808 = vand.u32 %v537, 4294901760
      %v809 = vsub.f32 %v537, %v808
      %v810 = vand.u32 %v809, 4294901760
      %v811 = vsub.f32 %v809, %v810
      %v812 = vand.u32 %v811, 4294901760
      %813 = vmatprep.subr.mxu0 %v812
      %v814 = vand.u32 %v536, 4294901760
      %v815 = vsub.f32 %v536, %v814
      %v816 = vand.u32 %v815, 4294901760
      %v817 = vsub.f32 %v815, %v816
      %v818 = vand.u32 %v817, 4294901760
      %819 = vmatpush1.msra.mxu0 %v818
      %v820 = vand.u32 %v533, 4294901760
      %v821 = vsub.f32 %v533, %v820
      %v822 = vand.u32 %v821, 4294901760
      %v823 = vsub.f32 %v821, %v822
      %v824 = vand.u32 %v823, 4294901760
      %825 = vmatprep.subr.mxu0 %v824
      %v826 = vand.u32 %v532, 4294901760
      %v827 = vsub.f32 %v532, %v826
      %v828 = vand.u32 %v827, 4294901760
      %v829 = vsub.f32 %v827, %v828
      %v830 = vand.u32 %v829, 4294901760
      %831 = vmatpush1.msra.mxu0 %v830
      %v832 = vand.u32 %v529, 4294901760
      %v833 = vsub.f32 %v529, %v832
      %v834 = vand.u32 %v833, 4294901760
      %v835 = vsub.f32 %v833, %v834
      %v836 = vand.u32 %v835, 4294901760
      %837 = vmatprep.subr.mxu0 %v836
      %v838 = vand.u32 %v528, 4294901760
      %v839 = vsub.f32 %v528, %v838
      %v840 = vand.u32 %v839, 4294901760
      %v841 = vsub.f32 %v839, %v840
      %v842 = vand.u32 %v841, 4294901760
      %843 = vmatpush1.msra.mxu0 %v842
      %v844 = vand.u32 %v525, 4294901760
      %v845 = vsub.f32 %v525, %v844
      %v846 = vand.u32 %v845, 4294901760
      %v847 = vsub.f32 %v845, %v846
      %v848 = vand.u32 %v847, 4294901760
      %849 = vmatprep.subr.mxu0 %v848
      %v850 = vand.u32 %v524, 4294901760
      %v851 = vsub.f32 %v524, %v850
      %v852 = vand.u32 %v851, 4294901760
      %v853 = vsub.f32 %v851, %v852
      %v854 = vand.u32 %v853, 4294901760
      %855 = vmatpush1.msra.mxu0 %v854
      %v856 = vand.u32 %v521, 4294901760
      %v857 = vsub.f32 %v521, %v856
      %v858 = vand.u32 %v857, 4294901760
      %v859 = vsub.f32 %v857, %v858
      %v860 = vand.u32 %v859, 4294901760
      %861 = vmatprep.subr.mxu0 %v860
      %v862 = vand.u32 %v520, 4294901760
      %v863 = vsub.f32 %v520, %v862
      %v864 = vand.u32 %v863, 4294901760
      %v865 = vsub.f32 %v863, %v864
      %v866 = vand.u32 %v865, 4294901760
      %867 = vmatpush1.msra.mxu0 %v866
      %v868 = vand.u32 %v517, 4294901760
      %v869 = vsub.f32 %v517, %v868
      %v870 = vand.u32 %v869, 4294901760
      %v871 = vsub.f32 %v869, %v870
      %v872 = vand.u32 %v871, 4294901760
      %873 = vmatprep.subr.mxu0 %v872
      %v874 = vand.u32 %v516, 4294901760
      %v875 = vsub.f32 %v516, %v874
      %v876 = vand.u32 %v875, 4294901760
      %v877 = vsub.f32 %v875, %v876
      %v878 = vand.u32 %v877, 4294901760
      %879 = vmatpush1.msra.mxu0 %v878
      %880 = vmatprep.subr.mxu0 0.0
      %881 = vmatpush2.msra.mxu0 0.0
      %882 = vmatprep.subr.mxu0 0.0
      %883 = vmatpush2.msra.mxu0 0.0
      %884 = vmatprep.subr.mxu0 0.0
      %885 = vmatpush2.msra.mxu0 0.0
      %886 = vmatprep.subr.mxu0 0.0
      %887 = vmatpush2.msra.mxu0 0.0
      %888 = vmatprep.subr.mxu0 0.0
      %889 = vmatpush2.msra.mxu0 0.0
      %890 = vmatprep.subr.mxu0 0.0
      %891 = vmatpush2.msra.mxu0 0.0
      %892 = vmatprep.subr.mxu0 0.0
      %893 = vmatpush2.msra.mxu0 0.0
      %894 = vmatprep.subr.mxu0 0.0
      %895 = vmatpush2.msra.mxu0 0.0
      %896 = vmatprep.subr.mxu0 0.0
      %897 = vmatpush2.msra.mxu0 0.0
      %898 = vmatprep.subr.mxu0 0.0
      %899 = vmatpush2.msra.mxu0 0.0
      %900 = vmatprep.subr.mxu0 0.0
      %901 = vmatpush2.msra.mxu0 0.0
      %902 = vmatprep.subr.mxu0 0.0
      %903 = vmatpush2.msra.mxu0 0.0
      %904 = vmatprep.subr.mxu0 0.0
      %905 = vmatpush2.msra.mxu0 0.0
      %906 = vmatprep.subr.mxu0 0.0
      %907 = vmatpush2.msra.mxu0 0.0
      %908 = vmatprep.subr.mxu0 0.0
      %909 = vmatpush2.msra.mxu0 0.0
      %910 = vmatprep.subr.mxu0 0.0
      %911 = vmatpush2.msra.mxu0 0.0
      %912 = vmatprep.mubr.f32.mxu0 0.0
      %v913 = vand.u32 %v515, 4294901760
      %914 = vmatmul.mubr.f32.gmra.mxu0 %v913
      %v915 = vpop.f32.mrf.mxu0
      %v916 = vadd.f32 %v684, %v915
      %v917 = vpop.f32.mrf.mxu0
      %v918 = vadd.f32 %v686, %v917
      %919 = vdwg.mxu0
      %v920 = vand.u32 %v577, 4294901760
      %v921 = vsub.f32 %v577, %v920
      %922 = vmatprep.subr.mxu0 %v921
      %v923 = vand.u32 %v576, 4294901760
      %v924 = vsub.f32 %v576, %v923
      %925 = vmatpush1.msra.mxu0 %v924
      %v926 = vand.u32 %v573, 4294901760
      %v927 = vsub.f32 %v573, %v926
      %928 = vmatprep.subr.mxu0 %v927
      %v929 = vand.u32 %v572, 4294901760
      %v930 = vsub.f32 %v572, %v929
      %931 = vmatpush1.msra.mxu0 %v930
      %v932 = vand.u32 %v569, 4294901760
      %v933 = vsub.f32 %v569, %v932
      %934 = vmatprep.subr.mxu0 %v933
      %v935 = vand.u32 %v568, 4294901760
      %v936 = vsub.f32 %v568, %v935
      %937 = vmatpush1.msra.mxu0 %v936
      %v938 = vand.u32 %v565, 4294901760
      %v939 = vsub.f32 %v565, %v938
      %940 = vmatprep.subr.mxu0 %v939
      %v941 = vand.u32 %v564, 4294901760
      %v942 = vsub.f32 %v564, %v941
      %943 = vmatpush1.msra.mxu0 %v942
      %v944 = vand.u32 %v561, 4294901760
      %v945 = vsub.f32 %v561, %v944
      %946 = vmatprep.subr.mxu0 %v945
      %v947 = vand.u32 %v560, 4294901760
      %v948 = vsub.f32 %v560, %v947
      %949 = vmatpush1.msra.mxu0 %v948
      %v950 = vand.u32 %v557, 4294901760
      %v951 = vsub.f32 %v557, %v950
      %952 = vmatprep.subr.mxu0 %v951
      %v953 = vand.u32 %v556, 4294901760
      %v954 = vsub.f32 %v556, %v953
      %955 = vmatpush1.msra.mxu0 %v954
      %v956 = vand.u32 %v553, 4294901760
      %v957 = vsub.f32 %v553, %v956
      %958 = vmatprep.subr.mxu0 %v957
      %v959 = vand.u32 %v552, 4294901760
      %v960 = vsub.f32 %v552, %v959
      %961 = vmatpush1.msra.mxu0 %v960
      %v962 = vand.u32 %v549, 4294901760
      %v963 = vsub.f32 %v549, %v962
      %964 = vmatprep.subr.mxu0 %v963
      %v965 = vand.u32 %v548, 4294901760
      %v966 = vsub.f32 %v548, %v965
      %967 = vmatpush1.msra.mxu0 %v966
      %v968 = vand.u32 %v545, 4294901760
      %v969 = vsub.f32 %v545, %v968
      %970 = vmatprep.subr.mxu0 %v969
      %v971 = vand.u32 %v544, 4294901760
      %v972 = vsub.f32 %v544, %v971
      %973 = vmatpush1.msra.mxu0 %v972
      %v974 = vand.u32 %v541, 4294901760
      %v975 = vsub.f32 %v541, %v974
      %976 = vmatprep.subr.mxu0 %v975
      %v977 = vand.u32 %v540, 4294901760
      %v978 = vsub.f32 %v540, %v977
      %979 = vmatpush1.msra.mxu0 %v978
      %v980 = vand.u32 %v537, 4294901760
      %v981 = vsub.f32 %v537, %v980
      %982 = vmatprep.subr.mxu0 %v981
      %v983 = vand.u32 %v536, 4294901760
      %v984 = vsub.f32 %v536, %v983
      %985 = vmatpush1.msra.mxu0 %v984
      %v986 = vand.u32 %v533, 4294901760
      %v987 = vsub.f32 %v533, %v986
      %988 = vmatprep.subr.mxu0 %v987
      %v989 = vand.u32 %v532, 4294901760
      %v990 = vsub.f32 %v532, %v989
      %991 = vmatpush1.msra.mxu0 %v990
      %v992 = vand.u32 %v529, 4294901760
      %v993 = vsub.f32 %v529, %v992
      %994 = vmatprep.subr.mxu0 %v993
      %v995 = vand.u32 %v528, 4294901760
      %v996 = vsub.f32 %v528, %v995
      %997 = vmatpush1.msra.mxu0 %v996
      %v998 = vand.u32 %v525, 4294901760
      %v999 = vsub.f32 %v525, %v998
      %1000 = vmatprep.subr.mxu0 %v999
      %v1001 = vand.u32 %v524, 4294901760
      %v1002 = vsub.f32 %v524, %v1001
      %1003 = vmatpush1.msra.mxu0 %v1002
      %v1004 = vand.u32 %v521, 4294901760
      %v1005 = vsub.f32 %v521, %v1004
      %1006 = vmatprep.subr.mxu0 %v1005
      %v1007 = vand.u32 %v520, 4294901760
      %v1008 = vsub.f32 %v520, %v1007
      %1009 = vmatpush1.msra.mxu0 %v1008
      %v1010 = vand.u32 %v517, 4294901760
      %v1011 = vsub.f32 %v517, %v1010
      %1012 = vmatprep.subr.mxu0 %v1011
      %v1013 = vand.u32 %v516, 4294901760
      %v1014 = vsub.f32 %v516, %v1013
      %1015 = vmatpush1.msra.mxu0 %v1014
      %1016 = vmatprep.subr.mxu0 0.0
      %1017 = vmatpush2.msra.mxu0 0.0
      %1018 = vmatprep.subr.mxu0 0.0
      %1019 = vmatpush2.msra.mxu0 0.0
      %1020 = vmatprep.subr.mxu0 0.0
      %1021 = vmatpush2.msra.mxu0 0.0
      %1022 = vmatprep.subr.mxu0 0.0
      %1023 = vmatpush2.msra.mxu0 0.0
      %1024 = vmatprep.subr.mxu0 0.0
      %1025 = vmatpush2.msra.mxu0 0.0
      %1026 = vmatprep.subr.mxu0 0.0
      %1027 = vmatpush2.msra.mxu0 0.0
      %1028 = vmatprep.subr.mxu0 0.0
      %1029 = vmatpush2.msra.mxu0 0.0
      %1030 = vmatprep.subr.mxu0 0.0
      %1031 = vmatpush2.msra.mxu0 0.0
      %1032 = vmatprep.subr.mxu0 0.0
      %1033 = vmatpush2.msra.mxu0 0.0
      %1034 = vmatprep.subr.mxu0 0.0
      %1035 = vmatpush2.msra.mxu0 0.0
      %1036 = vmatprep.subr.mxu0 0.0
      %1037 = vmatpush2.msra.mxu0 0.0
      %1038 = vmatprep.subr.mxu0 0.0
      %1039 = vmatpush2.msra.mxu0 0.0
      %1040 = vmatprep.subr.mxu0 0.0
      %1041 = vmatpush2.msra.mxu0 0.0
      %1042 = vmatprep.subr.mxu0 0.0
      %1043 = vmatpush2.msra.mxu0 0.0
      %1044 = vmatprep.subr.mxu0 0.0
      %1045 = vmatpush2.msra.mxu0 0.0
      %1046 = vmatprep.subr.mxu0 0.0
      %1047 = vmatpush2.msra.mxu0 0.0
      %1048 = vmatprep.mubr.f32.mxu0 0.0
      %v1049 = vand.u32 %v515, 4294901760
      %v1050 = vsub.f32 %v515, %v1049
      %1051 = vmatmul.mubr.f32.gmra.mxu0 %v1050
      %v1052 = vpop.f32.mrf.mxu0
      %v1053 = vadd.f32 %v916, %v1052
      %v1054 = vpop.f32.mrf.mxu0
      %v1055 = vadd.f32 %v918, %v1054
      %1056 = vdwg.mxu0
      %v1057 = vand.u32 %v577, 4294901760
      %1058 = vmatprep.subr.mxu0 %v1057
      %v1059 = vand.u32 %v576, 4294901760
      %1060 = vmatpush1.msra.mxu0 %v1059
      %v1061 = vand.u32 %v573, 4294901760
      %1062 = vmatprep.subr.mxu0 %v1061
      %v1063 = vand.u32 %v572, 4294901760
      %1064 = vmatpush1.msra.mxu0 %v1063
      %v1065 = vand.u32 %v569, 4294901760
      %1066 = vmatprep.subr.mxu0 %v1065
      %v1067 = vand.u32 %v568, 4294901760
      %1068 = vmatpush1.msra.mxu0 %v1067
      %v1069 = vand.u32 %v565, 4294901760
      %1070 = vmatprep.subr.mxu0 %v1069
      %v1071 = vand.u32 %v564, 4294901760
      %1072 = vmatpush1.msra.mxu0 %v1071
      %v1073 = vand.u32 %v561, 4294901760
      %1074 = vmatprep.subr.mxu0 %v1073
      %v1075 = vand.u32 %v560, 4294901760
      %1076 = vmatpush1.msra.mxu0 %v1075
      %v1077 = vand.u32 %v557, 4294901760
      %1078 = vmatprep.subr.mxu0 %v1077
      %v1079 = vand.u32 %v556, 4294901760
      %1080 = vmatpush1.msra.mxu0 %v1079
      %v1081 = vand.u32 %v553, 4294901760
      %1082 = vmatprep.subr.mxu0 %v1081
      %v1083 = vand.u32 %v552, 4294901760
      %1084 = vmatpush1.msra.mxu0 %v1083
      %v1085 = vand.u32 %v549, 4294901760
      %1086 = vmatprep.subr.mxu0 %v1085
      %v1087 = vand.u32 %v548, 4294901760
      %1088 = vmatpush1.msra.mxu0 %v1087
      %v1089 = vand.u32 %v545, 4294901760
      %1090 = vmatprep.subr.mxu0 %v1089
      %v1091 = vand.u32 %v544, 4294901760
      %1092 = vmatpush1.msra.mxu0 %v1091
      %v1093 = vand.u32 %v541, 4294901760
      %1094 = vmatprep.subr.mxu0 %v1093
      %v1095 = vand.u32 %v540, 4294901760
      %1096 = vmatpush1.msra.mxu0 %v1095
      %v1097 = vand.u32 %v537, 4294901760
      %1098 = vmatprep.subr.mxu0 %v1097
      %v1099 = vand.u32 %v536, 4294901760
      %1100 = vmatpush1.msra.mxu0 %v1099
      %v1101 = vand.u32 %v533, 4294901760
      %1102 = vmatprep.subr.mxu0 %v1101
      %v1103 = vand.u32 %v532, 4294901760
      %1104 = vmatpush1.msra.mxu0 %v1103
      %v1105 = vand.u32 %v529, 4294901760
      %1106 = vmatprep.subr.mxu0 %v1105
      %v1107 = vand.u32 %v528, 4294901760
      %1108 = vmatpush1.msra.mxu0 %v1107
      %v1109 = vand.u32 %v525, 4294901760
      %1110 = vmatprep.subr.mxu0 %v1109
      %v1111 = vand.u32 %v524, 4294901760
      %1112 = vmatpush1.msra.mxu0 %v1111
      %v1113 = vand.u32 %v521, 4294901760
      %1114 = vmatprep.subr.mxu0 %v1113
      %v1115 = vand.u32 %v520, 4294901760
      %1116 = vmatpush1.msra.mxu0 %v1115
      %v1117 = vand.u32 %v517, 4294901760
      %1118 = vmatprep.subr.mxu0 %v1117
      %v1119 = vand.u32 %v516, 4294901760
      %1120 = vmatpush1.msra.mxu0 %v1119
      %1121 = vmatprep.subr.mxu0 0.0
      %1122 = vmatpush2.msra.mxu0 0.0
      %1123 = vmatprep.subr.mxu0 0.0
      %1124 = vmatpush2.msra.mxu0 0.0
      %1125 = vmatprep.subr.mxu0 0.0
      %1126 = vmatpush2.msra.mxu0 0.0
      %1127 = vmatprep.subr.mxu0 0.0
      %1128 = vmatpush2.msra.mxu0 0.0
      %1129 = vmatprep.subr.mxu0 0.0
      %1130 = vmatpush2.msra.mxu0 0.0
      %1131 = vmatprep.subr.mxu0 0.0
      %1132 = vmatpush2.msra.mxu0 0.0
      %1133 = vmatprep.subr.mxu0 0.0
      %1134 = vmatpush2.msra.mxu0 0.0
      %1135 = vmatprep.subr.mxu0 0.0
      %1136 = vmatpush2.msra.mxu0 0.0
      %1137 = vmatprep.subr.mxu0 0.0
      %1138 = vmatpush2.msra.mxu0 0.0
      %1139 = vmatprep.subr.mxu0 0.0
      %1140 = vmatpush2.msra.mxu0 0.0
      %1141 = vmatprep.subr.mxu0 0.0
      %1142 = vmatpush2.msra.mxu0 0.0
      %1143 = vmatprep.subr.mxu0 0.0
      %1144 = vmatpush2.msra.mxu0 0.0
      %1145 = vmatprep.subr.mxu0 0.0
      %1146 = vmatpush2.msra.mxu0 0.0
      %1147 = vmatprep.subr.mxu0 0.0
      %1148 = vmatpush2.msra.mxu0 0.0
      %1149 = vmatprep.subr.mxu0 0.0
      %1150 = vmatpush2.msra.mxu0 0.0
      %1151 = vmatprep.subr.mxu0 0.0
      %1152 = vmatpush2.msra.mxu0 0.0
      %1153 = vmatprep.mubr.f32.mxu0 0.0
      %v1154 = vand.u32 %v515, 4294901760
      %v1155 = vsub.f32 %v515, %v1154
      %v1156 = vand.u32 %v1155, 4294901760
      %1157 = vmatmul.mubr.f32.gmra.mxu0 %v1156
      %v1158 = vpop.f32.mrf.mxu0
      %v1159 = vadd.f32 %v1053, %v1158
      %v1160 = vpop.f32.mrf.mxu0
      %v1161 = vadd.f32 %v1055, %v1160
      %1162 = vdwg.mxu0
      %v1163 = vand.u32 %v577, 4294901760
      %v1164 = vsub.f32 %v577, %v1163
      %v1165 = vand.u32 %v1164, 4294901760
      %1166 = vmatprep.subr.mxu0 %v1165
      %v1167 = vand.u32 %v576, 4294901760
      %v1168 = vsub.f32 %v576, %v1167
      %v1169 = vand.u32 %v1168, 4294901760
      %1170 = vmatpush1.msra.mxu0 %v1169
      %v1171 = vand.u32 %v573, 4294901760
      %v1172 = vsub.f32 %v573, %v1171
      %v1173 = vand.u32 %v1172, 4294901760
      %1174 = vmatprep.subr.mxu0 %v1173
      %v1175 = vand.u32 %v572, 4294901760
      %v1176 = vsub.f32 %v572, %v1175
      %v1177 = vand.u32 %v1176, 4294901760
      %1178 = vmatpush1.msra.mxu0 %v1177
      %v1179 = vand.u32 %v569, 4294901760
      %v1180 = vsub.f32 %v569, %v1179
      %v1181 = vand.u32 %v1180, 4294901760
      %1182 = vmatprep.subr.mxu0 %v1181
      %v1183 = vand.u32 %v568, 4294901760
      %v1184 = vsub.f32 %v568, %v1183
      %v1185 = vand.u32 %v1184, 4294901760
      %1186 = vmatpush1.msra.mxu0 %v1185
      %v1187 = vand.u32 %v565, 4294901760
      %v1188 = vsub.f32 %v565, %v1187
      %v1189 = vand.u32 %v1188, 4294901760
      %1190 = vmatprep.subr.mxu0 %v1189
      %v1191 = vand.u32 %v564, 4294901760
      %v1192 = vsub.f32 %v564, %v1191
      %v1193 = vand.u32 %v1192, 4294901760
      %1194 = vmatpush1.msra.mxu0 %v1193
      %v1195 = vand.u32 %v561, 4294901760
      %v1196 = vsub.f32 %v561, %v1195
      %v1197 = vand.u32 %v1196, 4294901760
      %1198 = vmatprep.subr.mxu0 %v1197
      %v1199 = vand.u32 %v560, 4294901760
      %v1200 = vsub.f32 %v560, %v1199
      %v1201 = vand.u32 %v1200, 4294901760
      %1202 = vmatpush1.msra.mxu0 %v1201
      %v1203 = vand.u32 %v557, 4294901760
      %v1204 = vsub.f32 %v557, %v1203
      %v1205 = vand.u32 %v1204, 4294901760
      %1206 = vmatprep.subr.mxu0 %v1205
      %v1207 = vand.u32 %v556, 4294901760
      %v1208 = vsub.f32 %v556, %v1207
      %v1209 = vand.u32 %v1208, 4294901760
      %1210 = vmatpush1.msra.mxu0 %v1209
      %v1211 = vand.u32 %v553, 4294901760
      %v1212 = vsub.f32 %v553, %v1211
      %v1213 = vand.u32 %v1212, 4294901760
      %1214 = vmatprep.subr.mxu0 %v1213
      %v1215 = vand.u32 %v552, 4294901760
      %v1216 = vsub.f32 %v552, %v1215
      %v1217 = vand.u32 %v1216, 4294901760
      %1218 = vmatpush1.msra.mxu0 %v1217
      %v1219 = vand.u32 %v549, 4294901760
      %v1220 = vsub.f32 %v549, %v1219
      %v1221 = vand.u32 %v1220, 4294901760
      %1222 = vmatprep.subr.mxu0 %v1221
      %v1223 = vand.u32 %v548, 4294901760
      %v1224 = vsub.f32 %v548, %v1223
      %v1225 = vand.u32 %v1224, 4294901760
      %1226 = vmatpush1.msra.mxu0 %v1225
      %v1227 = vand.u32 %v545, 4294901760
      %v1228 = vsub.f32 %v545, %v1227
      %v1229 = vand.u32 %v1228, 4294901760
      %1230 = vmatprep.subr.mxu0 %v1229
      %v1231 = vand.u32 %v544, 4294901760
      %v1232 = vsub.f32 %v544, %v1231
      %v1233 = vand.u32 %v1232, 4294901760
      %1234 = vmatpush1.msra.mxu0 %v1233
      %v1235 = vand.u32 %v541, 4294901760
      %v1236 = vsub.f32 %v541, %v1235
      %v1237 = vand.u32 %v1236, 4294901760
      %1238 = vmatprep.subr.mxu0 %v1237
      %v1239 = vand.u32 %v540, 4294901760
      %v1240 = vsub.f32 %v540, %v1239
      %v1241 = vand.u32 %v1240, 4294901760
      %1242 = vmatpush1.msra.mxu0 %v1241
      %v1243 = vand.u32 %v537, 4294901760
      %v1244 = vsub.f32 %v537, %v1243
      %v1245 = vand.u32 %v1244, 4294901760
      %1246 = vmatprep.subr.mxu0 %v1245
      %v1247 = vand.u32 %v536, 4294901760
      %v1248 = vsub.f32 %v536, %v1247
      %v1249 = vand.u32 %v1248, 4294901760
      %1250 = vmatpush1.msra.mxu0 %v1249
      %v1251 = vand.u32 %v533, 4294901760
      %v1252 = vsub.f32 %v533, %v1251
      %v1253 = vand.u32 %v1252, 4294901760
      %1254 = vmatprep.subr.mxu0 %v1253
      %v1255 = vand.u32 %v532, 4294901760
      %v1256 = vsub.f32 %v532, %v1255
      %v1257 = vand.u32 %v1256, 4294901760
      %1258 = vmatpush1.msra.mxu0 %v1257
      %v1259 = vand.u32 %v529, 4294901760
      %v1260 = vsub.f32 %v529, %v1259
      %v1261 = vand.u32 %v1260, 4294901760
      %1262 = vmatprep.subr.mxu0 %v1261
      %v1263 = vand.u32 %v528, 4294901760
      %v1264 = vsub.f32 %v528, %v1263
      %v1265 = vand.u32 %v1264, 4294901760
      %1266 = vmatpush1.msra.mxu0 %v1265
      %v1267 = vand.u32 %v525, 4294901760
      %v1268 = vsub.f32 %v525, %v1267
      %v1269 = vand.u32 %v1268, 4294901760
      %1270 = vmatprep.subr.mxu0 %v1269
      %v1271 = vand.u32 %v524, 4294901760
      %v1272 = vsub.f32 %v524, %v1271
      %v1273 = vand.u32 %v1272, 4294901760
      %1274 = vmatpush1.msra.mxu0 %v1273
      %v1275 = vand.u32 %v521, 4294901760
      %v1276 = vsub.f32 %v521, %v1275
      %v1277 = vand.u32 %v1276, 4294901760
      %1278 = vmatprep.subr.mxu0 %v1277
      %v1279 = vand.u32 %v520, 4294901760
      %v1280 = vsub.f32 %v520, %v1279
      %v1281 = vand.u32 %v1280, 4294901760
      %1282 = vmatpush1.msra.mxu0 %v1281
      %v1283 = vand.u32 %v517, 4294901760
      %v1284 = vsub.f32 %v517, %v1283
      %v1285 = vand.u32 %v1284, 4294901760
      %1286 = vmatprep.subr.mxu0 %v1285
      %v1287 = vand.u32 %v516, 4294901760
      %v1288 = vsub.f32 %v516, %v1287
      %v1289 = vand.u32 %v1288, 4294901760
      %1290 = vmatpush1.msra.mxu0 %v1289
      %1291 = vmatprep.subr.mxu0 0.0
      %1292 = vmatpush2.msra.mxu0 0.0
      %1293 = vmatprep.subr.mxu0 0.0
      %1294 = vmatpush2.msra.mxu0 0.0
      %1295 = vmatprep.subr.mxu0 0.0
      %1296 = vmatpush2.msra.mxu0 0.0
      %1297 = vmatprep.subr.mxu0 0.0
      %1298 = vmatpush2.msra.mxu0 0.0
      %1299 = vmatprep.subr.mxu0 0.0
      %1300 = vmatpush2.msra.mxu0 0.0
      %1301 = vmatprep.subr.mxu0 0.0
      %1302 = vmatpush2.msra.mxu0 0.0
      %1303 = vmatprep.subr.mxu0 0.0
      %1304 = vmatpush2.msra.mxu0 0.0
      %1305 = vmatprep.subr.mxu0 0.0
      %1306 = vmatpush2.msra.mxu0 0.0
      %1307 = vmatprep.subr.mxu0 0.0
      %1308 = vmatpush2.msra.mxu0 0.0
      %1309 = vmatprep.subr.mxu0 0.0
      %1310 = vmatpush2.msra.mxu0 0.0
      %1311 = vmatprep.subr.mxu0 0.0
      %1312 = vmatpush2.msra.mxu0 0.0
      %1313 = vmatprep.subr.mxu0 0.0
      %1314 = vmatpush2.msra.mxu0 0.0
      %1315 = vmatprep.subr.mxu0 0.0
      %1316 = vmatpush2.msra.mxu0 0.0
      %1317 = vmatprep.subr.mxu0 0.0
      %1318 = vmatpush2.msra.mxu0 0.0
      %1319 = vmatprep.subr.mxu0 0.0
      %1320 = vmatpush2.msra.mxu0 0.0
      %1321 = vmatprep.subr.mxu0 0.0
      %1322 = vmatpush2.msra.mxu0 0.0
      %1323 = vmatprep.mubr.f32.mxu0 0.0
      %v1324 = vand.u32 %v515, 4294901760
      %1325 = vmatmul.mubr.f32.gmra.mxu0 %v1324
      %v1326 = vpop.f32.mrf.mxu0
      %v1327 = vadd.f32 %v1159, %v1326
      %v1328 = vpop.f32.mrf.mxu0
      %v1329 = vadd.f32 %v1161, %v1328
      %1330 = vdwg.mxu0
      %v1331 = vand.u32 %v577, 4294901760
      %1332 = vmatprep.subr.mxu0 %v1331
      %v1333 = vand.u32 %v576, 4294901760
      %1334 = vmatpush1.msra.mxu0 %v1333
      %v1335 = vand.u32 %v573, 4294901760
      %1336 = vmatprep.subr.mxu0 %v1335
      %v1337 = vand.u32 %v572, 4294901760
      %1338 = vmatpush1.msra.mxu0 %v1337
      %v1339 = vand.u32 %v569, 4294901760
      %1340 = vmatprep.subr.mxu0 %v1339
      %v1341 = vand.u32 %v568, 4294901760
      %1342 = vmatpush1.msra.mxu0 %v1341
      %v1343 = vand.u32 %v565, 4294901760
      %1344 = vmatprep.subr.mxu0 %v1343
      %v1345 = vand.u32 %v564, 4294901760
      %1346 = vmatpush1.msra.mxu0 %v1345
      %v1347 = vand.u32 %v561, 4294901760
      %1348 = vmatprep.subr.mxu0 %v1347
      %v1349 = vand.u32 %v560, 4294901760
      %1350 = vmatpush1.msra.mxu0 %v1349
      %v1351 = vand.u32 %v557, 4294901760
      %1352 = vmatprep.subr.mxu0 %v1351
      %v1353 = vand.u32 %v556, 4294901760
      %1354 = vmatpush1.msra.mxu0 %v1353
      %v1355 = vand.u32 %v553, 4294901760
      %1356 = vmatprep.subr.mxu0 %v1355
      %v1357 = vand.u32 %v552, 4294901760
      %1358 = vmatpush1.msra.mxu0 %v1357
      %v1359 = vand.u32 %v549, 4294901760
      %1360 = vmatprep.subr.mxu0 %v1359
      %v1361 = vand.u32 %v548, 4294901760
      %1362 = vmatpush1.msra.mxu0 %v1361
      %v1363 = vand.u32 %v545, 4294901760
      %1364 = vmatprep.subr.mxu0 %v1363
      %v1365 = vand.u32 %v544, 4294901760
      %1366 = vmatpush1.msra.mxu0 %v1365
      %v1367 = vand.u32 %v541, 4294901760
      %1368 = vmatprep.subr.mxu0 %v1367
      %v1369 = vand.u32 %v540, 4294901760
      %1370 = vmatpush1.msra.mxu0 %v1369
      %v1371 = vand.u32 %v537, 4294901760
      %1372 = vmatprep.subr.mxu0 %v1371
      %v1373 = vand.u32 %v536, 4294901760
      %1374 = vmatpush1.msra.mxu0 %v1373
      %v1375 = vand.u32 %v533, 4294901760
      %1376 = vmatprep.subr.mxu0 %v1375
      %v1377 = vand.u32 %v532, 4294901760
      %1378 = vmatpush1.msra.mxu0 %v1377
      %v1379 = vand.u32 %v529, 4294901760
      %1380 = vmatprep.subr.mxu0 %v1379
      %v1381 = vand.u32 %v528, 4294901760
      %1382 = vmatpush1.msra.mxu0 %v1381
      %v1383 = vand.u32 %v525, 4294901760
      %1384 = vmatprep.subr.mxu0 %v1383
      %v1385 = vand.u32 %v524, 4294901760
      %1386 = vmatpush1.msra.mxu0 %v1385
      %v1387 = vand.u32 %v521, 4294901760
      %1388 = vmatprep.subr.mxu0 %v1387
      %v1389 = vand.u32 %v520, 4294901760
      %1390 = vmatpush1.msra.mxu0 %v1389
      %v1391 = vand.u32 %v517, 4294901760
      %1392 = vmatprep.subr.mxu0 %v1391
      %v1393 = vand.u32 %v516, 4294901760
      %1394 = vmatpush1.msra.mxu0 %v1393
      %1395 = vmatprep.subr.mxu0 0.0
      %1396 = vmatpush2.msra.mxu0 0.0
      %1397 = vmatprep.subr.mxu0 0.0
      %1398 = vmatpush2.msra.mxu0 0.0
      %1399 = vmatprep.subr.mxu0 0.0
      %1400 = vmatpush2.msra.mxu0 0.0
      %1401 = vmatprep.subr.mxu0 0.0
      %1402 = vmatpush2.msra.mxu0 0.0
      %1403 = vmatprep.subr.mxu0 0.0
      %1404 = vmatpush2.msra.mxu0 0.0
      %1405 = vmatprep.subr.mxu0 0.0
      %1406 = vmatpush2.msra.mxu0 0.0
      %1407 = vmatprep.subr.mxu0 0.0
      %1408 = vmatpush2.msra.mxu0 0.0
      %1409 = vmatprep.subr.mxu0 0.0
      %1410 = vmatpush2.msra.mxu0 0.0
      %1411 = vmatprep.subr.mxu0 0.0
      %1412 = vmatpush2.msra.mxu0 0.0
      %1413 = vmatprep.subr.mxu0 0.0
      %1414 = vmatpush2.msra.mxu0 0.0
      %1415 = vmatprep.subr.mxu0 0.0
      %1416 = vmatpush2.msra.mxu0 0.0
      %1417 = vmatprep.subr.mxu0 0.0
      %1418 = vmatpush2.msra.mxu0 0.0
      %1419 = vmatprep.subr.mxu0 0.0
      %1420 = vmatpush2.msra.mxu0 0.0
      %1421 = vmatprep.subr.mxu0 0.0
      %1422 = vmatpush2.msra.mxu0 0.0
      %1423 = vmatprep.subr.mxu0 0.0
      %1424 = vmatpush2.msra.mxu0 0.0
      %1425 = vmatprep.subr.mxu0 0.0
      %1426 = vmatpush2.msra.mxu0 0.0
      %1427 = vmatprep.mubr.f32.mxu0 0.0
      %v1428 = vand.u32 %v515, 4294901760
      %1429 = vmatmul.mubr.f32.gmra.mxu0 %v1428
      %v1430 = vpop.f32.mrf.mxu0
      %v1431 = vadd.f32 %v1327, %v1430
      %v1432 = vpop.f32.mrf.mxu0
      %v1433 = vadd.f32 %v1329, %v1432
      %1434 = vdwg.mxu0
      %v1435 = vand.u32 %v579, 4294901760
      %1436 = vmatprep.subr.mxu0 %v1435
      %v1437 = vand.u32 %v578, 4294901760
      %1438 = vmatpush1.msra.mxu0 %v1437
      %v1439 = vand.u32 %v575, 4294901760
      %1440 = vmatprep.subr.mxu0 %v1439
      %v1441 = vand.u32 %v574, 4294901760
      %1442 = vmatpush1.msra.mxu0 %v1441
      %v1443 = vand.u32 %v571, 4294901760
      %1444 = vmatprep.subr.mxu0 %v1443
      %v1445 = vand.u32 %v570, 4294901760
      %1446 = vmatpush1.msra.mxu0 %v1445
      %v1447 = vand.u32 %v567, 4294901760
      %1448 = vmatprep.subr.mxu0 %v1447
      %v1449 = vand.u32 %v566, 4294901760
      %1450 = vmatpush1.msra.mxu0 %v1449
      %v1451 = vand.u32 %v563, 4294901760
      %1452 = vmatprep.subr.mxu0 %v1451
      %v1453 = vand.u32 %v562, 4294901760
      %1454 = vmatpush1.msra.mxu0 %v1453
      %v1455 = vand.u32 %v559, 4294901760
      %1456 = vmatprep.subr.mxu0 %v1455
      %v1457 = vand.u32 %v558, 4294901760
      %1458 = vmatpush1.msra.mxu0 %v1457
      %v1459 = vand.u32 %v555, 4294901760
      %1460 = vmatprep.subr.mxu0 %v1459
      %v1461 = vand.u32 %v554, 4294901760
      %1462 = vmatpush1.msra.mxu0 %v1461
      %v1463 = vand.u32 %v551, 4294901760
      %1464 = vmatprep.subr.mxu0 %v1463
      %v1465 = vand.u32 %v550, 4294901760
      %1466 = vmatpush1.msra.mxu0 %v1465
      %v1467 = vand.u32 %v547, 4294901760
      %1468 = vmatprep.subr.mxu0 %v1467
      %v1469 = vand.u32 %v546, 4294901760
      %1470 = vmatpush1.msra.mxu0 %v1469
      %v1471 = vand.u32 %v543, 4294901760
      %1472 = vmatprep.subr.mxu0 %v1471
      %v1473 = vand.u32 %v542, 4294901760
      %1474 = vmatpush1.msra.mxu0 %v1473
      %v1475 = vand.u32 %v539, 4294901760
      %1476 = vmatprep.subr.mxu0 %v1475
      %v1477 = vand.u32 %v538, 4294901760
      %1478 = vmatpush1.msra.mxu0 %v1477
      %v1479 = vand.u32 %v535, 4294901760
      %1480 = vmatprep.subr.mxu0 %v1479
      %v1481 = vand.u32 %v534, 4294901760
      %1482 = vmatpush1.msra.mxu0 %v1481
      %v1483 = vand.u32 %v531, 4294901760
      %1484 = vmatprep.subr.mxu0 %v1483
      %v1485 = vand.u32 %v530, 4294901760
      %1486 = vmatpush1.msra.mxu0 %v1485
      %v1487 = vand.u32 %v527, 4294901760
      %1488 = vmatprep.subr.mxu0 %v1487
      %v1489 = vand.u32 %v526, 4294901760
      %1490 = vmatpush1.msra.mxu0 %v1489
      %v1491 = vand.u32 %v523, 4294901760
      %1492 = vmatprep.subr.mxu0 %v1491
      %v1493 = vand.u32 %v522, 4294901760
      %1494 = vmatpush1.msra.mxu0 %v1493
      %v1495 = vand.u32 %v519, 4294901760
      %1496 = vmatprep.subr.mxu0 %v1495
      %v1497 = vand.u32 %v518, 4294901760
      %1498 = vmatpush1.msra.mxu0 %v1497
      %1499 = vmatprep.subr.mxu0 0.0
      %1500 = vmatpush2.msra.mxu0 0.0
      %1501 = vmatprep.subr.mxu0 0.0
      %1502 = vmatpush2.msra.mxu0 0.0
      %1503 = vmatprep.subr.mxu0 0.0
      %1504 = vmatpush2.msra.mxu0 0.0
      %1505 = vmatprep.subr.mxu0 0.0
      %1506 = vmatpush2.msra.mxu0 0.0
      %1507 = vmatprep.subr.mxu0 0.0
      %1508 = vmatpush2.msra.mxu0 0.0
      %1509 = vmatprep.subr.mxu0 0.0
      %1510 = vmatpush2.msra.mxu0 0.0
      %1511 = vmatprep.subr.mxu0 0.0
      %1512 = vmatpush2.msra.mxu0 0.0
      %1513 = vmatprep.subr.mxu0 0.0
      %1514 = vmatpush2.msra.mxu0 0.0
      %1515 = vmatprep.subr.mxu0 0.0
      %1516 = vmatpush2.msra.mxu0 0.0
      %1517 = vmatprep.subr.mxu0 0.0
      %1518 = vmatpush2.msra.mxu0 0.0
      %1519 = vmatprep.subr.mxu0 0.0
      %1520 = vmatpush2.msra.mxu0 0.0
      %1521 = vmatprep.subr.mxu0 0.0
      %1522 = vmatpush2.msra.mxu0 0.0
      %1523 = vmatprep.subr.mxu0 0.0
      %1524 = vmatpush2.msra.mxu0 0.0
      %1525 = vmatprep.subr.mxu0 0.0
      %1526 = vmatpush2.msra.mxu0 0.0
      %1527 = vmatprep.subr.mxu0 0.0
      %1528 = vmatpush2.msra.mxu0 0.0
      %1529 = vmatprep.subr.mxu0 0.0
      %1530 = vmatpush2.msra.mxu0 0.0
      %1531 = vmatprep.mubr.f32.mxu0 0.0
      %v1532 = vand.u32 %v515, 4294901760
      %v1533 = vsub.f32 %v515, %v1532
      %v1534 = vand.u32 %v1533, 4294901760
      %v1535 = vsub.f32 %v1533, %v1534
      %v1536 = vand.u32 %v1535, 4294901760
      %1537 = vmatmul.mubr.f32.gmra.mxu0 %v1536
      %v1538 = vpop.f32.mrf.mxu0
      %v1539 = vadd.f32 0.0, %v1538
      %v1540 = vpop.f32.mrf.mxu0
      %v1541 = vadd.f32 0.0, %v1540
      %1542 = vdwg.mxu0
      %v1543 = vand.u32 %v579, 4294901760
      %v1544 = vsub.f32 %v579, %v1543
      %v1545 = vand.u32 %v1544, 4294901760
      %v1546 = vsub.f32 %v1544, %v1545
      %v1547 = vand.u32 %v1546, 4294901760
      %1548 = vmatprep.subr.mxu0 %v1547
      %v1549 = vand.u32 %v578, 4294901760
      %v1550 = vsub.f32 %v578, %v1549
      %v1551 = vand.u32 %v1550, 4294901760
      %v1552 = vsub.f32 %v1550, %v1551
      %v1553 = vand.u32 %v1552, 4294901760
      %1554 = vmatpush1.msra.mxu0 %v1553
      %v1555 = vand.u32 %v575, 4294901760
      %v1556 = vsub.f32 %v575, %v1555
      %v1557 = vand.u32 %v1556, 4294901760
      %v1558 = vsub.f32 %v1556, %v1557
      %v1559 = vand.u32 %v1558, 4294901760
      %1560 = vmatprep.subr.mxu0 %v1559
      %v1561 = vand.u32 %v574, 4294901760
      %v1562 = vsub.f32 %v574, %v1561
      %v1563 = vand.u32 %v1562, 4294901760
      %v1564 = vsub.f32 %v1562, %v1563
      %v1565 = vand.u32 %v1564, 4294901760
      %1566 = vmatpush1.msra.mxu0 %v1565
      %v1567 = vand.u32 %v571, 4294901760
      %v1568 = vsub.f32 %v571, %v1567
      %v1569 = vand.u32 %v1568, 4294901760
      %v1570 = vsub.f32 %v1568, %v1569
      %v1571 = vand.u32 %v1570, 4294901760
      %1572 = vmatprep.subr.mxu0 %v1571
      %v1573 = vand.u32 %v570, 4294901760
      %v1574 = vsub.f32 %v570, %v1573
      %v1575 = vand.u32 %v1574, 4294901760
      %v1576 = vsub.f32 %v1574, %v1575
      %v1577 = vand.u32 %v1576, 4294901760
      %1578 = vmatpush1.msra.mxu0 %v1577
      %v1579 = vand.u32 %v567, 4294901760
      %v1580 = vsub.f32 %v567, %v1579
      %v1581 = vand.u32 %v1580, 4294901760
      %v1582 = vsub.f32 %v1580, %v1581
      %v1583 = vand.u32 %v1582, 4294901760
      %1584 = vmatprep.subr.mxu0 %v1583
      %v1585 = vand.u32 %v566, 4294901760
      %v1586 = vsub.f32 %v566, %v1585
      %v1587 = vand.u32 %v1586, 4294901760
      %v1588 = vsub.f32 %v1586, %v1587
      %v1589 = vand.u32 %v1588, 4294901760
      %1590 = vmatpush1.msra.mxu0 %v1589
      %v1591 = vand.u32 %v563, 4294901760
      %v1592 = vsub.f32 %v563, %v1591
      %v1593 = vand.u32 %v1592, 4294901760
      %v1594 = vsub.f32 %v1592, %v1593
      %v1595 = vand.u32 %v1594, 4294901760
      %1596 = vmatprep.subr.mxu0 %v1595
      %v1597 = vand.u32 %v562, 4294901760
      %v1598 = vsub.f32 %v562, %v1597
      %v1599 = vand.u32 %v1598, 4294901760
      %v1600 = vsub.f32 %v1598, %v1599
      %v1601 = vand.u32 %v1600, 4294901760
      %1602 = vmatpush1.msra.mxu0 %v1601
      %v1603 = vand.u32 %v559, 4294901760
      %v1604 = vsub.f32 %v559, %v1603
      %v1605 = vand.u32 %v1604, 4294901760
      %v1606 = vsub.f32 %v1604, %v1605
      %v1607 = vand.u32 %v1606, 4294901760
      %1608 = vmatprep.subr.mxu0 %v1607
      %v1609 = vand.u32 %v558, 4294901760
      %v1610 = vsub.f32 %v558, %v1609
      %v1611 = vand.u32 %v1610, 4294901760
      %v1612 = vsub.f32 %v1610, %v1611
      %v1613 = vand.u32 %v1612, 4294901760
      %1614 = vmatpush1.msra.mxu0 %v1613
      %v1615 = vand.u32 %v555, 4294901760
      %v1616 = vsub.f32 %v555, %v1615
      %v1617 = vand.u32 %v1616, 4294901760
      %v1618 = vsub.f32 %v1616, %v1617
      %v1619 = vand.u32 %v1618, 4294901760
      %1620 = vmatprep.subr.mxu0 %v1619
      %v1621 = vand.u32 %v554, 4294901760
      %v1622 = vsub.f32 %v554, %v1621
      %v1623 = vand.u32 %v1622, 4294901760
      %v1624 = vsub.f32 %v1622, %v1623
      %v1625 = vand.u32 %v1624, 4294901760
      %1626 = vmatpush1.msra.mxu0 %v1625
      %v1627 = vand.u32 %v551, 4294901760
      %v1628 = vsub.f32 %v551, %v1627
      %v1629 = vand.u32 %v1628, 4294901760
      %v1630 = vsub.f32 %v1628, %v1629
      %v1631 = vand.u32 %v1630, 4294901760
      %1632 = vmatprep.subr.mxu0 %v1631
      %v1633 = vand.u32 %v550, 4294901760
      %v1634 = vsub.f32 %v550, %v1633
      %v1635 = vand.u32 %v1634, 4294901760
      %v1636 = vsub.f32 %v1634, %v1635
      %v1637 = vand.u32 %v1636, 4294901760
      %1638 = vmatpush1.msra.mxu0 %v1637
      %v1639 = vand.u32 %v547, 4294901760
      %v1640 = vsub.f32 %v547, %v1639
      %v1641 = vand.u32 %v1640, 4294901760
      %v1642 = vsub.f32 %v1640, %v1641
      %v1643 = vand.u32 %v1642, 4294901760
      %1644 = vmatprep.subr.mxu0 %v1643
      %v1645 = vand.u32 %v546, 4294901760
      %v1646 = vsub.f32 %v546, %v1645
      %v1647 = vand.u32 %v1646, 4294901760
      %v1648 = vsub.f32 %v1646, %v1647
      %v1649 = vand.u32 %v1648, 4294901760
      %1650 = vmatpush1.msra.mxu0 %v1649
      %v1651 = vand.u32 %v543, 4294901760
      %v1652 = vsub.f32 %v543, %v1651
      %v1653 = vand.u32 %v1652, 4294901760
      %v1654 = vsub.f32 %v1652, %v1653
      %v1655 = vand.u32 %v1654, 4294901760
      %1656 = vmatprep.subr.mxu0 %v1655
      %v1657 = vand.u32 %v542, 4294901760
      %v1658 = vsub.f32 %v542, %v1657
      %v1659 = vand.u32 %v1658, 4294901760
      %v1660 = vsub.f32 %v1658, %v1659
      %v1661 = vand.u32 %v1660, 4294901760
      %1662 = vmatpush1.msra.mxu0 %v1661
      %v1663 = vand.u32 %v539, 4294901760
      %v1664 = vsub.f32 %v539, %v1663
      %v1665 = vand.u32 %v1664, 4294901760
      %v1666 = vsub.f32 %v1664, %v1665
      %v1667 = vand.u32 %v1666, 4294901760
      %1668 = vmatprep.subr.mxu0 %v1667
      %v1669 = vand.u32 %v538, 4294901760
      %v1670 = vsub.f32 %v538, %v1669
      %v1671 = vand.u32 %v1670, 4294901760
      %v1672 = vsub.f32 %v1670, %v1671
      %v1673 = vand.u32 %v1672, 4294901760
      %1674 = vmatpush1.msra.mxu0 %v1673
      %v1675 = vand.u32 %v535, 4294901760
      %v1676 = vsub.f32 %v535, %v1675
      %v1677 = vand.u32 %v1676, 4294901760
      %v1678 = vsub.f32 %v1676, %v1677
      %v1679 = vand.u32 %v1678, 4294901760
      %1680 = vmatprep.subr.mxu0 %v1679
      %v1681 = vand.u32 %v534, 4294901760
      %v1682 = vsub.f32 %v534, %v1681
      %v1683 = vand.u32 %v1682, 4294901760
      %v1684 = vsub.f32 %v1682, %v1683
      %v1685 = vand.u32 %v1684, 4294901760
      %1686 = vmatpush1.msra.mxu0 %v1685
      %v1687 = vand.u32 %v531, 4294901760
      %v1688 = vsub.f32 %v531, %v1687
      %v1689 = vand.u32 %v1688, 4294901760
      %v1690 = vsub.f32 %v1688, %v1689
      %v1691 = vand.u32 %v1690, 4294901760
      %1692 = vmatprep.subr.mxu0 %v1691
      %v1693 = vand.u32 %v530, 4294901760
      %v1694 = vsub.f32 %v530, %v1693
      %v1695 = vand.u32 %v1694, 4294901760
      %v1696 = vsub.f32 %v1694, %v1695
      %v1697 = vand.u32 %v1696, 4294901760
      %1698 = vmatpush1.msra.mxu0 %v1697
      %v1699 = vand.u32 %v527, 4294901760
      %v1700 = vsub.f32 %v527, %v1699
      %v1701 = vand.u32 %v1700, 4294901760
      %v1702 = vsub.f32 %v1700, %v1701
      %v1703 = vand.u32 %v1702, 4294901760
      %1704 = vmatprep.subr.mxu0 %v1703
      %v1705 = vand.u32 %v526, 4294901760
      %v1706 = vsub.f32 %v526, %v1705
      %v1707 = vand.u32 %v1706, 4294901760
      %v1708 = vsub.f32 %v1706, %v1707
      %v1709 = vand.u32 %v1708, 4294901760
      %1710 = vmatpush1.msra.mxu0 %v1709
      %v1711 = vand.u32 %v523, 4294901760
      %v1712 = vsub.f32 %v523, %v1711
      %v1713 = vand.u32 %v1712, 4294901760
      %v1714 = vsub.f32 %v1712, %v1713
      %v1715 = vand.u32 %v1714, 4294901760
      %1716 = vmatprep.subr.mxu0 %v1715
      %v1717 = vand.u32 %v522, 4294901760
      %v1718 = vsub.f32 %v522, %v1717
      %v1719 = vand.u32 %v1718, 4294901760
      %v1720 = vsub.f32 %v1718, %v1719
      %v1721 = vand.u32 %v1720, 4294901760
      %1722 = vmatpush1.msra.mxu0 %v1721
      %v1723 = vand.u32 %v519, 4294901760
      %v1724 = vsub.f32 %v519, %v1723
      %v1725 = vand.u32 %v1724, 4294901760
      %v1726 = vsub.f32 %v1724, %v1725
      %v1727 = vand.u32 %v1726, 4294901760
      %1728 = vmatprep.subr.mxu0 %v1727
      %v1729 = vand.u32 %v518, 4294901760
      %v1730 = vsub.f32 %v518, %v1729
      %v1731 = vand.u32 %v1730, 4294901760
      %v1732 = vsub.f32 %v1730, %v1731
      %v1733 = vand.u32 %v1732, 4294901760
      %1734 = vmatpush1.msra.mxu0 %v1733
      %1735 = vmatprep.subr.mxu0 0.0
      %1736 = vmatpush2.msra.mxu0 0.0
      %1737 = vmatprep.subr.mxu0 0.0
      %1738 = vmatpush2.msra.mxu0 0.0
      %1739 = vmatprep.subr.mxu0 0.0
      %1740 = vmatpush2.msra.mxu0 0.0
      %1741 = vmatprep.subr.mxu0 0.0
      %1742 = vmatpush2.msra.mxu0 0.0
      %1743 = vmatprep.subr.mxu0 0.0
      %1744 = vmatpush2.msra.mxu0 0.0
      %1745 = vmatprep.subr.mxu0 0.0
      %1746 = vmatpush2.msra.mxu0 0.0
      %1747 = vmatprep.subr.mxu0 0.0
      %1748 = vmatpush2.msra.mxu0 0.0
      %1749 = vmatprep.subr.mxu0 0.0
      %1750 = vmatpush2.msra.mxu0 0.0
      %1751 = vmatprep.subr.mxu0 0.0
      %1752 = vmatpush2.msra.mxu0 0.0
      %1753 = vmatprep.subr.mxu0 0.0
      %1754 = vmatpush2.msra.mxu0 0.0
      %1755 = vmatprep.subr.mxu0 0.0
      %1756 = vmatpush2.msra.mxu0 0.0
      %1757 = vmatprep.subr.mxu0 0.0
      %1758 = vmatpush2.msra.mxu0 0.0
      %1759 = vmatprep.subr.mxu0 0.0
      %1760 = vmatpush2.msra.mxu0 0.0
      %1761 = vmatprep.subr.mxu0 0.0
      %1762 = vmatpush2.msra.mxu0 0.0
      %1763 = vmatprep.subr.mxu0 0.0
      %1764 = vmatpush2.msra.mxu0 0.0
      %1765 = vmatprep.subr.mxu0 0.0
      %1766 = vmatpush2.msra.mxu0 0.0
      %1767 = vmatprep.mubr.f32.mxu0 0.0
      %v1768 = vand.u32 %v515, 4294901760
      %1769 = vmatmul.mubr.f32.gmra.mxu0 %v1768
      %v1770 = vpop.f32.mrf.mxu0
      %v1771 = vadd.f32 %v1539, %v1770
      %v1772 = vpop.f32.mrf.mxu0
      %v1773 = vadd.f32 %v1541, %v1772
      %1774 = vdwg.mxu0
      %v1775 = vand.u32 %v579, 4294901760
      %v1776 = vsub.f32 %v579, %v1775
      %1777 = vmatprep.subr.mxu0 %v1776
      %v1778 = vand.u32 %v578, 4294901760
      %v1779 = vsub.f32 %v578, %v1778
      %1780 = vmatpush1.msra.mxu0 %v1779
      %v1781 = vand.u32 %v575, 4294901760
      %v1782 = vsub.f32 %v575, %v1781
      %1783 = vmatprep.subr.mxu0 %v1782
      %v1784 = vand.u32 %v574, 4294901760
      %v1785 = vsub.f32 %v574, %v1784
      %1786 = vmatpush1.msra.mxu0 %v1785
      %v1787 = vand.u32 %v571, 4294901760
      %v1788 = vsub.f32 %v571, %v1787
      %1789 = vmatprep.subr.mxu0 %v1788
      %v1790 = vand.u32 %v570, 4294901760
      %v1791 = vsub.f32 %v570, %v1790
      %1792 = vmatpush1.msra.mxu0 %v1791
      %v1793 = vand.u32 %v567, 4294901760
      %v1794 = vsub.f32 %v567, %v1793
      %1795 = vmatprep.subr.mxu0 %v1794
      %v1796 = vand.u32 %v566, 4294901760
      %v1797 = vsub.f32 %v566, %v1796
      %1798 = vmatpush1.msra.mxu0 %v1797
      %v1799 = vand.u32 %v563, 4294901760
      %v1800 = vsub.f32 %v563, %v1799
      %1801 = vmatprep.subr.mxu0 %v1800
      %v1802 = vand.u32 %v562, 4294901760
      %v1803 = vsub.f32 %v562, %v1802
      %1804 = vmatpush1.msra.mxu0 %v1803
      %v1805 = vand.u32 %v559, 4294901760
      %v1806 = vsub.f32 %v559, %v1805
      %1807 = vmatprep.subr.mxu0 %v1806
      %v1808 = vand.u32 %v558, 4294901760
      %v1809 = vsub.f32 %v558, %v1808
      %1810 = vmatpush1.msra.mxu0 %v1809
      %v1811 = vand.u32 %v555, 4294901760
      %v1812 = vsub.f32 %v555, %v1811
      %1813 = vmatprep.subr.mxu0 %v1812
      %v1814 = vand.u32 %v554, 4294901760
      %v1815 = vsub.f32 %v554, %v1814
      %1816 = vmatpush1.msra.mxu0 %v1815
      %v1817 = vand.u32 %v551, 4294901760
      %v1818 = vsub.f32 %v551, %v1817
      %1819 = vmatprep.subr.mxu0 %v1818
      %v1820 = vand.u32 %v550, 4294901760
      %v1821 = vsub.f32 %v550, %v1820
      %1822 = vmatpush1.msra.mxu0 %v1821
      %v1823 = vand.u32 %v547, 4294901760
      %v1824 = vsub.f32 %v547, %v1823
      %1825 = vmatprep.subr.mxu0 %v1824
      %v1826 = vand.u32 %v546, 4294901760
      %v1827 = vsub.f32 %v546, %v1826
      %1828 = vmatpush1.msra.mxu0 %v1827
      %v1829 = vand.u32 %v543, 4294901760
      %v1830 = vsub.f32 %v543, %v1829
      %1831 = vmatprep.subr.mxu0 %v1830
      %v1832 = vand.u32 %v542, 4294901760
      %v1833 = vsub.f32 %v542, %v1832
      %1834 = vmatpush1.msra.mxu0 %v1833
      %v1835 = vand.u32 %v539, 4294901760
      %v1836 = vsub.f32 %v539, %v1835
      %1837 = vmatprep.subr.mxu0 %v1836
      %v1838 = vand.u32 %v538, 4294901760
      %v1839 = vsub.f32 %v538, %v1838
      %1840 = vmatpush1.msra.mxu0 %v1839
      %v1841 = vand.u32 %v535, 4294901760
      %v1842 = vsub.f32 %v535, %v1841
      %1843 = vmatprep.subr.mxu0 %v1842
      %v1844 = vand.u32 %v534, 4294901760
      %v1845 = vsub.f32 %v534, %v1844
      %1846 = vmatpush1.msra.mxu0 %v1845
      %v1847 = vand.u32 %v531, 4294901760
      %v1848 = vsub.f32 %v531, %v1847
      %1849 = vmatprep.subr.mxu0 %v1848
      %v1850 = vand.u32 %v530, 4294901760
      %v1851 = vsub.f32 %v530, %v1850
      %1852 = vmatpush1.msra.mxu0 %v1851
      %v1853 = vand.u32 %v527, 4294901760
      %v1854 = vsub.f32 %v527, %v1853
      %1855 = vmatprep.subr.mxu0 %v1854
      %v1856 = vand.u32 %v526, 4294901760
      %v1857 = vsub.f32 %v526, %v1856
      %1858 = vmatpush1.msra.mxu0 %v1857
      %v1859 = vand.u32 %v523, 4294901760
      %v1860 = vsub.f32 %v523, %v1859
      %1861 = vmatprep.subr.mxu0 %v1860
      %v1862 = vand.u32 %v522, 4294901760
      %v1863 = vsub.f32 %v522, %v1862
      %1864 = vmatpush1.msra.mxu0 %v1863
      %v1865 = vand.u32 %v519, 4294901760
      %v1866 = vsub.f32 %v519, %v1865
      %1867 = vmatprep.subr.mxu0 %v1866
      %v1868 = vand.u32 %v518, 4294901760
      %v1869 = vsub.f32 %v518, %v1868
      %1870 = vmatpush1.msra.mxu0 %v1869
      %1871 = vmatprep.subr.mxu0 0.0
      %1872 = vmatpush2.msra.mxu0 0.0
      %1873 = vmatprep.subr.mxu0 0.0
      %1874 = vmatpush2.msra.mxu0 0.0
      %1875 = vmatprep.subr.mxu0 0.0
      %1876 = vmatpush2.msra.mxu0 0.0
      %1877 = vmatprep.subr.mxu0 0.0
      %1878 = vmatpush2.msra.mxu0 0.0
      %1879 = vmatprep.subr.mxu0 0.0
      %1880 = vmatpush2.msra.mxu0 0.0
      %1881 = vmatprep.subr.mxu0 0.0
      %1882 = vmatpush2.msra.mxu0 0.0
      %1883 = vmatprep.subr.mxu0 0.0
      %1884 = vmatpush2.msra.mxu0 0.0
      %1885 = vmatprep.subr.mxu0 0.0
      %1886 = vmatpush2.msra.mxu0 0.0
      %1887 = vmatprep.subr.mxu0 0.0
      %1888 = vmatpush2.msra.mxu0 0.0
      %1889 = vmatprep.subr.mxu0 0.0
      %1890 = vmatpush2.msra.mxu0 0.0
      %1891 = vmatprep.subr.mxu0 0.0
      %1892 = vmatpush2.msra.mxu0 0.0
      %1893 = vmatprep.subr.mxu0 0.0
      %1894 = vmatpush2.msra.mxu0 0.0
      %1895 = vmatprep.subr.mxu0 0.0
      %1896 = vmatpush2.msra.mxu0 0.0
      %1897 = vmatprep.subr.mxu0 0.0
      %1898 = vmatpush2.msra.mxu0 0.0
      %1899 = vmatprep.subr.mxu0 0.0
      %1900 = vmatpush2.msra.mxu0 0.0
      %1901 = vmatprep.subr.mxu0 0.0
      %1902 = vmatpush2.msra.mxu0 0.0
      %1903 = vmatprep.mubr.f32.mxu0 0.0
      %v1904 = vand.u32 %v515, 4294901760
      %v1905 = vsub.f32 %v515, %v1904
      %1906 = vmatmul.mubr.f32.gmra.mxu0 %v1905
      %v1907 = vpop.f32.mrf.mxu0
      %v1908 = vadd.f32 %v1771, %v1907
      %v1909 = vpop.f32.mrf.mxu0
      %v1910 = vadd.f32 %v1773, %v1909
      %1911 = vdwg.mxu0
      %v1912 = vand.u32 %v579, 4294901760
      %1913 = vmatprep.subr.mxu0 %v1912
      %v1914 = vand.u32 %v578, 4294901760
      %1915 = vmatpush1.msra.mxu0 %v1914
      %v1916 = vand.u32 %v575, 4294901760
      %1917 = vmatprep.subr.mxu0 %v1916
      %v1918 = vand.u32 %v574, 4294901760
      %1919 = vmatpush1.msra.mxu0 %v1918
      %v1920 = vand.u32 %v571, 4294901760
      %1921 = vmatprep.subr.mxu0 %v1920
      %v1922 = vand.u32 %v570, 4294901760
      %1923 = vmatpush1.msra.mxu0 %v1922
      %v1924 = vand.u32 %v567, 4294901760
      %1925 = vmatprep.subr.mxu0 %v1924
      %v1926 = vand.u32 %v566, 4294901760
      %1927 = vmatpush1.msra.mxu0 %v1926
      %v1928 = vand.u32 %v563, 4294901760
      %1929 = vmatprep.subr.mxu0 %v1928
      %v1930 = vand.u32 %v562, 4294901760
      %1931 = vmatpush1.msra.mxu0 %v1930
      %v1932 = vand.u32 %v559, 4294901760
      %1933 = vmatprep.subr.mxu0 %v1932
      %v1934 = vand.u32 %v558, 4294901760
      %1935 = vmatpush1.msra.mxu0 %v1934
      %v1936 = vand.u32 %v555, 4294901760
      %1937 = vmatprep.subr.mxu0 %v1936
      %v1938 = vand.u32 %v554, 4294901760
      %1939 = vmatpush1.msra.mxu0 %v1938
      %v1940 = vand.u32 %v551, 4294901760
      %1941 = vmatprep.subr.mxu0 %v1940
      %v1942 = vand.u32 %v550, 4294901760
      %1943 = vmatpush1.msra.mxu0 %v1942
      %v1944 = vand.u32 %v547, 4294901760
      %1945 = vmatprep.subr.mxu0 %v1944
      %v1946 = vand.u32 %v546, 4294901760
      %1947 = vmatpush1.msra.mxu0 %v1946
      %v1948 = vand.u32 %v543, 4294901760
      %1949 = vmatprep.subr.mxu0 %v1948
      %v1950 = vand.u32 %v542, 4294901760
      %1951 = vmatpush1.msra.mxu0 %v1950
      %v1952 = vand.u32 %v539, 4294901760
      %1953 = vmatprep.subr.mxu0 %v1952
      %v1954 = vand.u32 %v538, 4294901760
      %1955 = vmatpush1.msra.mxu0 %v1954
      %v1956 = vand.u32 %v535, 4294901760
      %1957 = vmatprep.subr.mxu0 %v1956
      %v1958 = vand.u32 %v534, 4294901760
      %1959 = vmatpush1.msra.mxu0 %v1958
      %v1960 = vand.u32 %v531, 4294901760
      %1961 = vmatprep.subr.mxu0 %v1960
      %v1962 = vand.u32 %v530, 4294901760
      %1963 = vmatpush1.msra.mxu0 %v1962
      %v1964 = vand.u32 %v527, 4294901760
      %1965 = vmatprep.subr.mxu0 %v1964
      %v1966 = vand.u32 %v526, 4294901760
      %1967 = vmatpush1.msra.mxu0 %v1966
      %v1968 = vand.u32 %v523, 4294901760
      %1969 = vmatprep.subr.mxu0 %v1968
      %v1970 = vand.u32 %v522, 4294901760
      %1971 = vmatpush1.msra.mxu0 %v1970
      %v1972 = vand.u32 %v519, 4294901760
      %1973 = vmatprep.subr.mxu0 %v1972
      %v1974 = vand.u32 %v518, 4294901760
      %1975 = vmatpush1.msra.mxu0 %v1974
      %1976 = vmatprep.subr.mxu0 0.0
      %1977 = vmatpush2.msra.mxu0 0.0
      %1978 = vmatprep.subr.mxu0 0.0
      %1979 = vmatpush2.msra.mxu0 0.0
      %1980 = vmatprep.subr.mxu0 0.0
      %1981 = vmatpush2.msra.mxu0 0.0
      %1982 = vmatprep.subr.mxu0 0.0
      %1983 = vmatpush2.msra.mxu0 0.0
      %1984 = vmatprep.subr.mxu0 0.0
      %1985 = vmatpush2.msra.mxu0 0.0
      %1986 = vmatprep.subr.mxu0 0.0
      %1987 = vmatpush2.msra.mxu0 0.0
      %1988 = vmatprep.subr.mxu0 0.0
      %1989 = vmatpush2.msra.mxu0 0.0
      %1990 = vmatprep.subr.mxu0 0.0
      %1991 = vmatpush2.msra.mxu0 0.0
      %1992 = vmatprep.subr.mxu0 0.0
      %1993 = vmatpush2.msra.mxu0 0.0
      %1994 = vmatprep.subr.mxu0 0.0
      %1995 = vmatpush2.msra.mxu0 0.0
      %1996 = vmatprep.subr.mxu0 0.0
      %1997 = vmatpush2.msra.mxu0 0.0
      %1998 = vmatprep.subr.mxu0 0.0
      %1999 = vmatpush2.msra.mxu0 0.0
      %2000 = vmatprep.subr.mxu0 0.0
      %2001 = vmatpush2.msra.mxu0 0.0
      %2002 = vmatprep.subr.mxu0 0.0
      %2003 = vmatpush2.msra.mxu0 0.0
      %2004 = vmatprep.subr.mxu0 0.0
      %2005 = vmatpush2.msra.mxu0 0.0
      %2006 = vmatprep.subr.mxu0 0.0
      %2007 = vmatpush2.msra.mxu0 0.0
      %2008 = vmatprep.mubr.f32.mxu0 0.0
      %v2009 = vand.u32 %v515, 4294901760
      %v2010 = vsub.f32 %v515, %v2009
      %v2011 = vand.u32 %v2010, 4294901760
      %2012 = vmatmul.mubr.f32.gmra.mxu0 %v2011
      %v2013 = vpop.f32.mrf.mxu0
      %v2014 = vadd.f32 %v1908, %v2013
      %v2015 = vpop.f32.mrf.mxu0
      %v2016 = vadd.f32 %v1910, %v2015
      %2017 = vdwg.mxu0
      %v2018 = vand.u32 %v579, 4294901760
      %v2019 = vsub.f32 %v579, %v2018
      %v2020 = vand.u32 %v2019, 4294901760
      %2021 = vmatprep.subr.mxu0 %v2020
      %v2022 = vand.u32 %v578, 4294901760
      %v2023 = vsub.f32 %v578, %v2022
      %v2024 = vand.u32 %v2023, 4294901760
      %2025 = vmatpush1.msra.mxu0 %v2024
      %v2026 = vand.u32 %v575, 4294901760
      %v2027 = vsub.f32 %v575, %v2026
      %v2028 = vand.u32 %v2027, 4294901760
      %2029 = vmatprep.subr.mxu0 %v2028
      %v2030 = vand.u32 %v574, 4294901760
      %v2031 = vsub.f32 %v574, %v2030
      %v2032 = vand.u32 %v2031, 4294901760
      %2033 = vmatpush1.msra.mxu0 %v2032
      %v2034 = vand.u32 %v571, 4294901760
      %v2035 = vsub.f32 %v571, %v2034
      %v2036 = vand.u32 %v2035, 4294901760
      %2037 = vmatprep.subr.mxu0 %v2036
      %v2038 = vand.u32 %v570, 4294901760
      %v2039 = vsub.f32 %v570, %v2038
      %v2040 = vand.u32 %v2039, 4294901760
      %2041 = vmatpush1.msra.mxu0 %v2040
      %v2042 = vand.u32 %v567, 4294901760
      %v2043 = vsub.f32 %v567, %v2042
      %v2044 = vand.u32 %v2043, 4294901760
      %2045 = vmatprep.subr.mxu0 %v2044
      %v2046 = vand.u32 %v566, 4294901760
      %v2047 = vsub.f32 %v566, %v2046
      %v2048 = vand.u32 %v2047, 4294901760
      %2049 = vmatpush1.msra.mxu0 %v2048
      %v2050 = vand.u32 %v563, 4294901760
      %v2051 = vsub.f32 %v563, %v2050
      %v2052 = vand.u32 %v2051, 4294901760
      %2053 = vmatprep.subr.mxu0 %v2052
      %v2054 = vand.u32 %v562, 4294901760
      %v2055 = vsub.f32 %v562, %v2054
      %v2056 = vand.u32 %v2055, 4294901760
      %2057 = vmatpush1.msra.mxu0 %v2056
      %v2058 = vand.u32 %v559, 4294901760
      %v2059 = vsub.f32 %v559, %v2058
      %v2060 = vand.u32 %v2059, 4294901760
      %2061 = vmatprep.subr.mxu0 %v2060
      %v2062 = vand.u32 %v558, 4294901760
      %v2063 = vsub.f32 %v558, %v2062
      %v2064 = vand.u32 %v2063, 4294901760
      %2065 = vmatpush1.msra.mxu0 %v2064
      %v2066 = vand.u32 %v555, 4294901760
      %v2067 = vsub.f32 %v555, %v2066
      %v2068 = vand.u32 %v2067, 4294901760
      %2069 = vmatprep.subr.mxu0 %v2068
      %v2070 = vand.u32 %v554, 4294901760
      %v2071 = vsub.f32 %v554, %v2070
      %v2072 = vand.u32 %v2071, 4294901760
      %2073 = vmatpush1.msra.mxu0 %v2072
      %v2074 = vand.u32 %v551, 4294901760
      %v2075 = vsub.f32 %v551, %v2074
      %v2076 = vand.u32 %v2075, 4294901760
      %2077 = vmatprep.subr.mxu0 %v2076
      %v2078 = vand.u32 %v550, 4294901760
      %v2079 = vsub.f32 %v550, %v2078
      %v2080 = vand.u32 %v2079, 4294901760
      %2081 = vmatpush1.msra.mxu0 %v2080
      %v2082 = vand.u32 %v547, 4294901760
      %v2083 = vsub.f32 %v547, %v2082
      %v2084 = vand.u32 %v2083, 4294901760
      %2085 = vmatprep.subr.mxu0 %v2084
      %v2086 = vand.u32 %v546, 4294901760
      %v2087 = vsub.f32 %v546, %v2086
      %v2088 = vand.u32 %v2087, 4294901760
      %2089 = vmatpush1.msra.mxu0 %v2088
      %v2090 = vand.u32 %v543, 4294901760
      %v2091 = vsub.f32 %v543, %v2090
      %v2092 = vand.u32 %v2091, 4294901760
      %2093 = vmatprep.subr.mxu0 %v2092
      %v2094 = vand.u32 %v542, 4294901760
      %v2095 = vsub.f32 %v542, %v2094
      %v2096 = vand.u32 %v2095, 4294901760
      %2097 = vmatpush1.msra.mxu0 %v2096
      %v2098 = vand.u32 %v539, 4294901760
      %v2099 = vsub.f32 %v539, %v2098
      %v2100 = vand.u32 %v2099, 4294901760
      %2101 = vmatprep.subr.mxu0 %v2100
      %v2102 = vand.u32 %v538, 4294901760
      %v2103 = vsub.f32 %v538, %v2102
      %v2104 = vand.u32 %v2103, 4294901760
      %2105 = vmatpush1.msra.mxu0 %v2104
      %v2106 = vand.u32 %v535, 4294901760
      %v2107 = vsub.f32 %v535, %v2106
      %v2108 = vand.u32 %v2107, 4294901760
      %2109 = vmatprep.subr.mxu0 %v2108
      %v2110 = vand.u32 %v534, 4294901760
      %v2111 = vsub.f32 %v534, %v2110
      %v2112 = vand.u32 %v2111, 4294901760
      %2113 = vmatpush1.msra.mxu0 %v2112
      %v2114 = vand.u32 %v531, 4294901760
      %v2115 = vsub.f32 %v531, %v2114
      %v2116 = vand.u32 %v2115, 4294901760
      %2117 = vmatprep.subr.mxu0 %v2116
      %v2118 = vand.u32 %v530, 4294901760
      %v2119 = vsub.f32 %v530, %v2118
      %v2120 = vand.u32 %v2119, 4294901760
      %2121 = vmatpush1.msra.mxu0 %v2120
      %v2122 = vand.u32 %v527, 4294901760
      %v2123 = vsub.f32 %v527, %v2122
      %v2124 = vand.u32 %v2123, 4294901760
      %2125 = vmatprep.subr.mxu0 %v2124
      %v2126 = vand.u32 %v526, 4294901760
      %v2127 = vsub.f32 %v526, %v2126
      %v2128 = vand.u32 %v2127, 4294901760
      %2129 = vmatpush1.msra.mxu0 %v2128
      %v2130 = vand.u32 %v523, 4294901760
      %v2131 = vsub.f32 %v523, %v2130
      %v2132 = vand.u32 %v2131, 4294901760
      %2133 = vmatprep.subr.mxu0 %v2132
      %v2134 = vand.u32 %v522, 4294901760
      %v2135 = vsub.f32 %v522, %v2134
      %v2136 = vand.u32 %v2135, 4294901760
      %2137 = vmatpush1.msra.mxu0 %v2136
      %v2138 = vand.u32 %v519, 4294901760
      %v2139 = vsub.f32 %v519, %v2138
      %v2140 = vand.u32 %v2139, 4294901760
      %2141 = vmatprep.subr.mxu0 %v2140
      %v2142 = vand.u32 %v518, 4294901760
      %v2143 = vsub.f32 %v518, %v2142
      %v2144 = vand.u32 %v2143, 4294901760
      %2145 = vmatpush1.msra.mxu0 %v2144
      %2146 = vmatprep.subr.mxu0 0.0
      %2147 = vmatpush2.msra.mxu0 0.0
      %2148 = vmatprep.subr.mxu0 0.0
      %2149 = vmatpush2.msra.mxu0 0.0
      %2150 = vmatprep.subr.mxu0 0.0
      %2151 = vmatpush2.msra.mxu0 0.0
      %2152 = vmatprep.subr.mxu0 0.0
      %2153 = vmatpush2.msra.mxu0 0.0
      %2154 = vmatprep.subr.mxu0 0.0
      %2155 = vmatpush2.msra.mxu0 0.0
      %2156 = vmatprep.subr.mxu0 0.0
      %2157 = vmatpush2.msra.mxu0 0.0
      %2158 = vmatprep.subr.mxu0 0.0
      %2159 = vmatpush2.msra.mxu0 0.0
      %2160 = vmatprep.subr.mxu0 0.0
      %2161 = vmatpush2.msra.mxu0 0.0
      %2162 = vmatprep.subr.mxu0 0.0
      %2163 = vmatpush2.msra.mxu0 0.0
      %2164 = vmatprep.subr.mxu0 0.0
      %2165 = vmatpush2.msra.mxu0 0.0
      %2166 = vmatprep.subr.mxu0 0.0
      %2167 = vmatpush2.msra.mxu0 0.0
      %2168 = vmatprep.subr.mxu0 0.0
      %2169 = vmatpush2.msra.mxu0 0.0
      %2170 = vmatprep.subr.mxu0 0.0
      %2171 = vmatpush2.msra.mxu0 0.0
      %2172 = vmatprep.subr.mxu0 0.0
      %2173 = vmatpush2.msra.mxu0 0.0
      %2174 = vmatprep.subr.mxu0 0.0
      %2175 = vmatpush2.msra.mxu0 0.0
      %2176 = vmatprep.subr.mxu0 0.0
      %2177 = vmatpush2.msra.mxu0 0.0
      %2178 = vmatprep.mubr.f32.mxu0 0.0
      %v2179 = vand.u32 %v515, 4294901760
      %2180 = vmatmul.mubr.f32.gmra.mxu0 %v2179
      %v2181 = vpop.f32.mrf.mxu0
      %v2182 = vadd.f32 %v2014, %v2181
      %v2183 = vpop.f32.mrf.mxu0
      %v2184 = vadd.f32 %v2016, %v2183
      %2185 = vdwg.mxu0
      %v2186 = vand.u32 %v579, 4294901760
      %2187 = vmatprep.subr.mxu0 %v2186
      %v2188 = vand.u32 %v578, 4294901760
      %2189 = vmatpush1.msra.mxu0 %v2188
      %v2190 = vand.u32 %v575, 4294901760
      %2191 = vmatprep.subr.mxu0 %v2190
      %v2192 = vand.u32 %v574, 4294901760
      %2193 = vmatpush1.msra.mxu0 %v2192
      %v2194 = vand.u32 %v571, 4294901760
      %2195 = vmatprep.subr.mxu0 %v2194
      %v2196 = vand.u32 %v570, 4294901760
      %2197 = vmatpush1.msra.mxu0 %v2196
      %v2198 = vand.u32 %v567, 4294901760
      %2199 = vmatprep.subr.mxu0 %v2198
      %v2200 = vand.u32 %v566, 4294901760
      %2201 = vmatpush1.msra.mxu0 %v2200
      %v2202 = vand.u32 %v563, 4294901760
      %2203 = vmatprep.subr.mxu0 %v2202
      %v2204 = vand.u32 %v562, 4294901760
      %2205 = vmatpush1.msra.mxu0 %v2204
      %v2206 = vand.u32 %v559, 4294901760
      %2207 = vmatprep.subr.mxu0 %v2206
      %v2208 = vand.u32 %v558, 4294901760
      %2209 = vmatpush1.msra.mxu0 %v2208
      %v2210 = vand.u32 %v555, 4294901760
      %2211 = vmatprep.subr.mxu0 %v2210
      %v2212 = vand.u32 %v554, 4294901760
      %2213 = vmatpush1.msra.mxu0 %v2212
      %v2214 = vand.u32 %v551, 4294901760
      %2215 = vmatprep.subr.mxu0 %v2214
      %v2216 = vand.u32 %v550, 4294901760
      %2217 = vmatpush1.msra.mxu0 %v2216
      %v2218 = vand.u32 %v547, 4294901760
      %2219 = vmatprep.subr.mxu0 %v2218
      %v2220 = vand.u32 %v546, 4294901760
      %2221 = vmatpush1.msra.mxu0 %v2220
      %v2222 = vand.u32 %v543, 4294901760
      %2223 = vmatprep.subr.mxu0 %v2222
      %v2224 = vand.u32 %v542, 4294901760
      %2225 = vmatpush1.msra.mxu0 %v2224
      %v2226 = vand.u32 %v539, 4294901760
      %2227 = vmatprep.subr.mxu0 %v2226
      %v2228 = vand.u32 %v538, 4294901760
      %2229 = vmatpush1.msra.mxu0 %v2228
      %v2230 = vand.u32 %v535, 4294901760
      %2231 = vmatprep.subr.mxu0 %v2230
      %v2232 = vand.u32 %v534, 4294901760
      %2233 = vmatpush1.msra.mxu0 %v2232
      %v2234 = vand.u32 %v531, 4294901760
      %2235 = vmatprep.subr.mxu0 %v2234
      %v2236 = vand.u32 %v530, 4294901760
      %2237 = vmatpush1.msra.mxu0 %v2236
      %v2238 = vand.u32 %v527, 4294901760
      %2239 = vmatprep.subr.mxu0 %v2238
      %v2240 = vand.u32 %v526, 4294901760
      %2241 = vmatpush1.msra.mxu0 %v2240
      %v2242 = vand.u32 %v523, 4294901760
      %2243 = vmatprep.subr.mxu0 %v2242
      %v2244 = vand.u32 %v522, 4294901760
      %2245 = vmatpush1.msra.mxu0 %v2244
      %v2246 = vand.u32 %v519, 4294901760
      %2247 = vmatprep.subr.mxu0 %v2246
      %v2248 = vand.u32 %v518, 4294901760
      %2249 = vmatpush1.msra.mxu0 %v2248
      %2250 = vmatprep.subr.mxu0 0.0
      %2251 = vmatpush2.msra.mxu0 0.0
      %2252 = vmatprep.subr.mxu0 0.0
      %2253 = vmatpush2.msra.mxu0 0.0
      %2254 = vmatprep.subr.mxu0 0.0
      %2255 = vmatpush2.msra.mxu0 0.0
      %2256 = vmatprep.subr.mxu0 0.0
      %2257 = vmatpush2.msra.mxu0 0.0
      %2258 = vmatprep.subr.mxu0 0.0
      %2259 = vmatpush2.msra.mxu0 0.0
      %2260 = vmatprep.subr.mxu0 0.0
      %2261 = vmatpush2.msra.mxu0 0.0
      %2262 = vmatprep.subr.mxu0 0.0
      %2263 = vmatpush2.msra.mxu0 0.0
      %2264 = vmatprep.subr.mxu0 0.0
      %2265 = vmatpush2.msra.mxu0 0.0
      %2266 = vmatprep.subr.mxu0 0.0
      %2267 = vmatpush2.msra.mxu0 0.0
      %2268 = vmatprep.subr.mxu0 0.0
      %2269 = vmatpush2.msra.mxu0 0.0
      %2270 = vmatprep.subr.mxu0 0.0
      %2271 = vmatpush2.msra.mxu0 0.0
      %2272 = vmatprep.subr.mxu0 0.0
      %2273 = vmatpush2.msra.mxu0 0.0
      %2274 = vmatprep.subr.mxu0 0.0
      %2275 = vmatpush2.msra.mxu0 0.0
      %2276 = vmatprep.subr.mxu0 0.0
      %2277 = vmatpush2.msra.mxu0 0.0
      %2278 = vmatprep.subr.mxu0 0.0
      %2279 = vmatpush2.msra.mxu0 0.0
      %2280 = vmatprep.subr.mxu0 0.0
      %2281 = vmatpush2.msra.mxu0 0.0
      %2282 = vmatprep.mubr.f32.mxu0 0.0
      %v2283 = vand.u32 %v515, 4294901760
      %2284 = vmatmul.mubr.f32.gmra.mxu0 %v2283
      %v2285 = vpop.f32.mrf.mxu0
      %v2286 = vadd.f32 %v2182, %v2285
      %v2287 = vpop.f32.mrf.mxu0
      %v2288 = vadd.f32 %v2184, %v2287
      %2289 = vdwg.mxu0
      %v2290 = vand.u32 %v320, 4294901760
      %2291 = vmatprep.subr.mxu0 %v2290
      %v2292 = vand.u32 %v319, 4294901760
      %2293 = vmatpush1.msra.mxu0 %v2292
      %v2294 = vand.u32 %v316, 4294901760
      %2295 = vmatprep.subr.mxu0 %v2294
      %v2296 = vand.u32 %v315, 4294901760
      %2297 = vmatpush1.msra.mxu0 %v2296
      %v2298 = vand.u32 %v312, 4294901760
      %2299 = vmatprep.subr.mxu0 %v2298
      %v2300 = vand.u32 %v311, 4294901760
      %2301 = vmatpush1.msra.mxu0 %v2300
      %v2302 = vand.u32 %v308, 4294901760
      %2303 = vmatprep.subr.mxu0 %v2302
      %v2304 = vand.u32 %v307, 4294901760
      %2305 = vmatpush1.msra.mxu0 %v2304
      %v2306 = vand.u32 %v304, 4294901760
      %2307 = vmatprep.subr.mxu0 %v2306
      %v2308 = vand.u32 %v303, 4294901760
      %2309 = vmatpush1.msra.mxu0 %v2308
      %v2310 = vand.u32 %v300, 4294901760
      %2311 = vmatprep.subr.mxu0 %v2310
      %v2312 = vand.u32 %v299, 4294901760
      %2313 = vmatpush1.msra.mxu0 %v2312
      %v2314 = vand.u32 %v296, 4294901760
      %2315 = vmatprep.subr.mxu0 %v2314
      %v2316 = vand.u32 %v295, 4294901760
      %2317 = vmatpush1.msra.mxu0 %v2316
      %v2318 = vand.u32 %v292, 4294901760
      %2319 = vmatprep.subr.mxu0 %v2318
      %v2320 = vand.u32 %v291, 4294901760
      %2321 = vmatpush1.msra.mxu0 %v2320
      %v2322 = vand.u32 %v288, 4294901760
      %2323 = vmatprep.subr.mxu0 %v2322
      %v2324 = vand.u32 %v287, 4294901760
      %2325 = vmatpush1.msra.mxu0 %v2324
      %v2326 = vand.u32 %v284, 4294901760
      %2327 = vmatprep.subr.mxu0 %v2326
      %v2328 = vand.u32 %v283, 4294901760
      %2329 = vmatpush1.msra.mxu0 %v2328
      %v2330 = vand.u32 %v280, 4294901760
      %2331 = vmatprep.subr.mxu0 %v2330
      %v2332 = vand.u32 %v279, 4294901760
      %2333 = vmatpush1.msra.mxu0 %v2332
      %v2334 = vand.u32 %v276, 4294901760
      %2335 = vmatprep.subr.mxu0 %v2334
      %v2336 = vand.u32 %v275, 4294901760
      %2337 = vmatpush1.msra.mxu0 %v2336
      %v2338 = vand.u32 %v272, 4294901760
      %2339 = vmatprep.subr.mxu0 %v2338
      %v2340 = vand.u32 %v271, 4294901760
      %2341 = vmatpush1.msra.mxu0 %v2340
      %v2342 = vand.u32 %v268, 4294901760
      %2343 = vmatprep.subr.mxu0 %v2342
      %v2344 = vand.u32 %v267, 4294901760
      %2345 = vmatpush1.msra.mxu0 %v2344
      %v2346 = vand.u32 %v264, 4294901760
      %2347 = vmatprep.subr.mxu0 %v2346
      %v2348 = vand.u32 %v263, 4294901760
      %2349 = vmatpush1.msra.mxu0 %v2348
      %v2350 = vand.u32 %v260, 4294901760
      %2351 = vmatprep.subr.mxu0 %v2350
      %v2352 = vand.u32 %v259, 4294901760
      %2353 = vmatpush1.msra.mxu0 %v2352
      %v2354 = vand.u32 %v384, 4294901760
      %2355 = vmatprep.subr.mxu0 %v2354
      %v2356 = vand.u32 %v383, 4294901760
      %2357 = vmatpush2.msra.mxu0 %v2356
      %v2358 = vand.u32 %v380, 4294901760
      %2359 = vmatprep.subr.mxu0 %v2358
      %v2360 = vand.u32 %v379, 4294901760
      %2361 = vmatpush2.msra.mxu0 %v2360
      %v2362 = vand.u32 %v376, 4294901760
      %2363 = vmatprep.subr.mxu0 %v2362
      %v2364 = vand.u32 %v375, 4294901760
      %2365 = vmatpush2.msra.mxu0 %v2364
      %v2366 = vand.u32 %v372, 4294901760
      %2367 = vmatprep.subr.mxu0 %v2366
      %v2368 = vand.u32 %v371, 4294901760
      %2369 = vmatpush2.msra.mxu0 %v2368
      %v2370 = vand.u32 %v368, 4294901760
      %2371 = vmatprep.subr.mxu0 %v2370
      %v2372 = vand.u32 %v367, 4294901760
      %2373 = vmatpush2.msra.mxu0 %v2372
      %v2374 = vand.u32 %v364, 4294901760
      %2375 = vmatprep.subr.mxu0 %v2374
      %v2376 = vand.u32 %v363, 4294901760
      %2377 = vmatpush2.msra.mxu0 %v2376
      %v2378 = vand.u32 %v360, 4294901760
      %2379 = vmatprep.subr.mxu0 %v2378
      %v2380 = vand.u32 %v359, 4294901760
      %2381 = vmatpush2.msra.mxu0 %v2380
      %v2382 = vand.u32 %v356, 4294901760
      %2383 = vmatprep.subr.mxu0 %v2382
      %v2384 = vand.u32 %v355, 4294901760
      %2385 = vmatpush2.msra.mxu0 %v2384
      %v2386 = vand.u32 %v352, 4294901760
      %2387 = vmatprep.subr.mxu0 %v2386
      %v2388 = vand.u32 %v351, 4294901760
      %2389 = vmatpush2.msra.mxu0 %v2388
      %v2390 = vand.u32 %v348, 4294901760
      %2391 = vmatprep.subr.mxu0 %v2390
      %v2392 = vand.u32 %v347, 4294901760
      %2393 = vmatpush2.msra.mxu0 %v2392
      %v2394 = vand.u32 %v344, 4294901760
      %2395 = vmatprep.subr.mxu0 %v2394
      %v2396 = vand.u32 %v343, 4294901760
      %2397 = vmatpush2.msra.mxu0 %v2396
      %v2398 = vand.u32 %v340, 4294901760
      %2399 = vmatprep.subr.mxu0 %v2398
      %v2400 = vand.u32 %v339, 4294901760
      %2401 = vmatpush2.msra.mxu0 %v2400
      %v2402 = vand.u32 %v336, 4294901760
      %2403 = vmatprep.subr.mxu0 %v2402
      %v2404 = vand.u32 %v335, 4294901760
      %2405 = vmatpush2.msra.mxu0 %v2404
      %v2406 = vand.u32 %v332, 4294901760
      %2407 = vmatprep.subr.mxu0 %v2406
      %v2408 = vand.u32 %v331, 4294901760
      %2409 = vmatpush2.msra.mxu0 %v2408
      %v2410 = vand.u32 %v328, 4294901760
      %2411 = vmatprep.subr.mxu0 %v2410
      %v2412 = vand.u32 %v327, 4294901760
      %2413 = vmatpush2.msra.mxu0 %v2412
      %v2414 = vand.u32 %v324, 4294901760
      %2415 = vmatprep.subr.mxu0 %v2414
      %v2416 = vand.u32 %v323, 4294901760
      %2417 = vmatpush2.msra.mxu0 %v2416
      %v2418 = vand.u32 %v256, 4294901760
      %v2419 = vsub.f32 %v256, %v2418
      %v2420 = vand.u32 %v2419, 4294901760
      %v2421 = vsub.f32 %v2419, %v2420
      %v2422 = vand.u32 %v2421, 4294901760
      %2423 = vmatprep.mubr.f32.mxu0 %v2422
      %v2424 = vand.u32 %v255, 4294901760
      %v2425 = vsub.f32 %v255, %v2424
      %v2426 = vand.u32 %v2425, 4294901760
      %v2427 = vsub.f32 %v2425, %v2426
      %v2428 = vand.u32 %v2427, 4294901760
      %2429 = vmatmul.mubr.f32.gmra.mxu0 %v2428
      %v2430 = vpop.f32.mrf.mxu0
      %v2431 = vadd.f32 %v1431, %v2430
      %v2432 = vpop.f32.mrf.mxu0
      %v2433 = vadd.f32 %v1433, %v2432
      %2434 = vdwg.mxu0
      %v2435 = vand.u32 %v320, 4294901760
      %v2436 = vsub.f32 %v320, %v2435
      %v2437 = vand.u32 %v2436, 4294901760
      %v2438 = vsub.f32 %v2436, %v2437
      %v2439 = vand.u32 %v2438, 4294901760
      %2440 = vmatprep.subr.mxu0 %v2439
      %v2441 = vand.u32 %v319, 4294901760
      %v2442 = vsub.f32 %v319, %v2441
      %v2443 = vand.u32 %v2442, 4294901760
      %v2444 = vsub.f32 %v2442, %v2443
      %v2445 = vand.u32 %v2444, 4294901760
      %2446 = vmatpush1.msra.mxu0 %v2445
      %v2447 = vand.u32 %v316, 4294901760
      %v2448 = vsub.f32 %v316, %v2447
      %v2449 = vand.u32 %v2448, 4294901760
      %v2450 = vsub.f32 %v2448, %v2449
      %v2451 = vand.u32 %v2450, 4294901760
      %2452 = vmatprep.subr.mxu0 %v2451
      %v2453 = vand.u32 %v315, 4294901760
      %v2454 = vsub.f32 %v315, %v2453
      %v2455 = vand.u32 %v2454, 4294901760
      %v2456 = vsub.f32 %v2454, %v2455
      %v2457 = vand.u32 %v2456, 4294901760
      %2458 = vmatpush1.msra.mxu0 %v2457
      %v2459 = vand.u32 %v312, 4294901760
      %v2460 = vsub.f32 %v312, %v2459
      %v2461 = vand.u32 %v2460, 4294901760
      %v2462 = vsub.f32 %v2460, %v2461
      %v2463 = vand.u32 %v2462, 4294901760
      %2464 = vmatprep.subr.mxu0 %v2463
      %v2465 = vand.u32 %v311, 4294901760
      %v2466 = vsub.f32 %v311, %v2465
      %v2467 = vand.u32 %v2466, 4294901760
      %v2468 = vsub.f32 %v2466, %v2467
      %v2469 = vand.u32 %v2468, 4294901760
      %2470 = vmatpush1.msra.mxu0 %v2469
      %v2471 = vand.u32 %v308, 4294901760
      %v2472 = vsub.f32 %v308, %v2471
      %v2473 = vand.u32 %v2472, 4294901760
      %v2474 = vsub.f32 %v2472, %v2473
      %v2475 = vand.u32 %v2474, 4294901760
      %2476 = vmatprep.subr.mxu0 %v2475
      %v2477 = vand.u32 %v307, 4294901760
      %v2478 = vsub.f32 %v307, %v2477
      %v2479 = vand.u32 %v2478, 4294901760
      %v2480 = vsub.f32 %v2478, %v2479
      %v2481 = vand.u32 %v2480, 4294901760
      %2482 = vmatpush1.msra.mxu0 %v2481
      %v2483 = vand.u32 %v304, 4294901760
      %v2484 = vsub.f32 %v304, %v2483
      %v2485 = vand.u32 %v2484, 4294901760
      %v2486 = vsub.f32 %v2484, %v2485
      %v2487 = vand.u32 %v2486, 4294901760
      %2488 = vmatprep.subr.mxu0 %v2487
      %v2489 = vand.u32 %v303, 4294901760
      %v2490 = vsub.f32 %v303, %v2489
      %v2491 = vand.u32 %v2490, 4294901760
      %v2492 = vsub.f32 %v2490, %v2491
      %v2493 = vand.u32 %v2492, 4294901760
      %2494 = vmatpush1.msra.mxu0 %v2493
      %v2495 = vand.u32 %v300, 4294901760
      %v2496 = vsub.f32 %v300, %v2495
      %v2497 = vand.u32 %v2496, 4294901760
      %v2498 = vsub.f32 %v2496, %v2497
      %v2499 = vand.u32 %v2498, 4294901760
      %2500 = vmatprep.subr.mxu0 %v2499
      %v2501 = vand.u32 %v299, 4294901760
      %v2502 = vsub.f32 %v299, %v2501
      %v2503 = vand.u32 %v2502, 4294901760
      %v2504 = vsub.f32 %v2502, %v2503
      %v2505 = vand.u32 %v2504, 4294901760
      %2506 = vmatpush1.msra.mxu0 %v2505
      %v2507 = vand.u32 %v296, 4294901760
      %v2508 = vsub.f32 %v296, %v2507
      %v2509 = vand.u32 %v2508, 4294901760
      %v2510 = vsub.f32 %v2508, %v2509
      %v2511 = vand.u32 %v2510, 4294901760
      %2512 = vmatprep.subr.mxu0 %v2511
      %v2513 = vand.u32 %v295, 4294901760
      %v2514 = vsub.f32 %v295, %v2513
      %v2515 = vand.u32 %v2514, 4294901760
      %v2516 = vsub.f32 %v2514, %v2515
      %v2517 = vand.u32 %v2516, 4294901760
      %2518 = vmatpush1.msra.mxu0 %v2517
      %v2519 = vand.u32 %v292, 4294901760
      %v2520 = vsub.f32 %v292, %v2519
      %v2521 = vand.u32 %v2520, 4294901760
      %v2522 = vsub.f32 %v2520, %v2521
      %v2523 = vand.u32 %v2522, 4294901760
      %2524 = vmatprep.subr.mxu0 %v2523
      %v2525 = vand.u32 %v291, 4294901760
      %v2526 = vsub.f32 %v291, %v2525
      %v2527 = vand.u32 %v2526, 4294901760
      %v2528 = vsub.f32 %v2526, %v2527
      %v2529 = vand.u32 %v2528, 4294901760
      %2530 = vmatpush1.msra.mxu0 %v2529
      %v2531 = vand.u32 %v288, 4294901760
      %v2532 = vsub.f32 %v288, %v2531
      %v2533 = vand.u32 %v2532, 4294901760
      %v2534 = vsub.f32 %v2532, %v2533
      %v2535 = vand.u32 %v2534, 4294901760
      %2536 = vmatprep.subr.mxu0 %v2535
      %v2537 = vand.u32 %v287, 4294901760
      %v2538 = vsub.f32 %v287, %v2537
      %v2539 = vand.u32 %v2538, 4294901760
      %v2540 = vsub.f32 %v2538, %v2539
      %v2541 = vand.u32 %v2540, 4294901760
      %2542 = vmatpush1.msra.mxu0 %v2541
      %v2543 = vand.u32 %v284, 4294901760
      %v2544 = vsub.f32 %v284, %v2543
      %v2545 = vand.u32 %v2544, 4294901760
      %v2546 = vsub.f32 %v2544, %v2545
      %v2547 = vand.u32 %v2546, 4294901760
      %2548 = vmatprep.subr.mxu0 %v2547
      %v2549 = vand.u32 %v283, 4294901760
      %v2550 = vsub.f32 %v283, %v2549
      %v2551 = vand.u32 %v2550, 4294901760
      %v2552 = vsub.f32 %v2550, %v2551
      %v2553 = vand.u32 %v2552, 4294901760
      %2554 = vmatpush1.msra.mxu0 %v2553
      %v2555 = vand.u32 %v280, 4294901760
      %v2556 = vsub.f32 %v280, %v2555
      %v2557 = vand.u32 %v2556, 4294901760
      %v2558 = vsub.f32 %v2556, %v2557
      %v2559 = vand.u32 %v2558, 4294901760
      %2560 = vmatprep.subr.mxu0 %v2559
      %v2561 = vand.u32 %v279, 4294901760
      %v2562 = vsub.f32 %v279, %v2561
      %v2563 = vand.u32 %v2562, 4294901760
      %v2564 = vsub.f32 %v2562, %v2563
      %v2565 = vand.u32 %v2564, 4294901760
      %2566 = vmatpush1.msra.mxu0 %v2565
      %v2567 = vand.u32 %v276, 4294901760
      %v2568 = vsub.f32 %v276, %v2567
      %v2569 = vand.u32 %v2568, 4294901760
      %v2570 = vsub.f32 %v2568, %v2569
      %v2571 = vand.u32 %v2570, 4294901760
      %2572 = vmatprep.subr.mxu0 %v2571
      %v2573 = vand.u32 %v275, 4294901760
      %v2574 = vsub.f32 %v275, %v2573
      %v2575 = vand.u32 %v2574, 4294901760
      %v2576 = vsub.f32 %v2574, %v2575
      %v2577 = vand.u32 %v2576, 4294901760
      %2578 = vmatpush1.msra.mxu0 %v2577
      %v2579 = vand.u32 %v272, 4294901760
      %v2580 = vsub.f32 %v272, %v2579
      %v2581 = vand.u32 %v2580, 4294901760
      %v2582 = vsub.f32 %v2580, %v2581
      %v2583 = vand.u32 %v2582, 4294901760
      %2584 = vmatprep.subr.mxu0 %v2583
      %v2585 = vand.u32 %v271, 4294901760
      %v2586 = vsub.f32 %v271, %v2585
      %v2587 = vand.u32 %v2586, 4294901760
      %v2588 = vsub.f32 %v2586, %v2587
      %v2589 = vand.u32 %v2588, 4294901760
      %2590 = vmatpush1.msra.mxu0 %v2589
      %v2591 = vand.u32 %v268, 4294901760
      %v2592 = vsub.f32 %v268, %v2591
      %v2593 = vand.u32 %v2592, 4294901760
      %v2594 = vsub.f32 %v2592, %v2593
      %v2595 = vand.u32 %v2594, 4294901760
      %2596 = vmatprep.subr.mxu0 %v2595
      %v2597 = vand.u32 %v267, 4294901760
      %v2598 = vsub.f32 %v267, %v2597
      %v2599 = vand.u32 %v2598, 4294901760
      %v2600 = vsub.f32 %v2598, %v2599
      %v2601 = vand.u32 %v2600, 4294901760
      %2602 = vmatpush1.msra.mxu0 %v2601
      %v2603 = vand.u32 %v264, 4294901760
      %v2604 = vsub.f32 %v264, %v2603
      %v2605 = vand.u32 %v2604, 4294901760
      %v2606 = vsub.f32 %v2604, %v2605
      %v2607 = vand.u32 %v2606, 4294901760
      %2608 = vmatprep.subr.mxu0 %v2607
      %v2609 = vand.u32 %v263, 4294901760
      %v2610 = vsub.f32 %v263, %v2609
      %v2611 = vand.u32 %v2610, 4294901760
      %v2612 = vsub.f32 %v2610, %v2611
      %v2613 = vand.u32 %v2612, 4294901760
      %2614 = vmatpush1.msra.mxu0 %v2613
      %v2615 = vand.u32 %v260, 4294901760
      %v2616 = vsub.f32 %v260, %v2615
      %v2617 = vand.u32 %v2616, 4294901760
      %v2618 = vsub.f32 %v2616, %v2617
      %v2619 = vand.u32 %v2618, 4294901760
      %2620 = vmatprep.subr.mxu0 %v2619
      %v2621 = vand.u32 %v259, 4294901760
      %v2622 = vsub.f32 %v259, %v2621
      %v2623 = vand.u32 %v2622, 4294901760
      %v2624 = vsub.f32 %v2622, %v2623
      %v2625 = vand.u32 %v2624, 4294901760
      %2626 = vmatpush1.msra.mxu0 %v2625
      %v2627 = vand.u32 %v384, 4294901760
      %v2628 = vsub.f32 %v384, %v2627
      %v2629 = vand.u32 %v2628, 4294901760
      %v2630 = vsub.f32 %v2628, %v2629
      %v2631 = vand.u32 %v2630, 4294901760
      %2632 = vmatprep.subr.mxu0 %v2631
      %v2633 = vand.u32 %v383, 4294901760
      %v2634 = vsub.f32 %v383, %v2633
      %v2635 = vand.u32 %v2634, 4294901760
      %v2636 = vsub.f32 %v2634, %v2635
      %v2637 = vand.u32 %v2636, 4294901760
      %2638 = vmatpush2.msra.mxu0 %v2637
      %v2639 = vand.u32 %v380, 4294901760
      %v2640 = vsub.f32 %v380, %v2639
      %v2641 = vand.u32 %v2640, 4294901760
      %v2642 = vsub.f32 %v2640, %v2641
      %v2643 = vand.u32 %v2642, 4294901760
      %2644 = vmatprep.subr.mxu0 %v2643
      %v2645 = vand.u32 %v379, 4294901760
      %v2646 = vsub.f32 %v379, %v2645
      %v2647 = vand.u32 %v2646, 4294901760
      %v2648 = vsub.f32 %v2646, %v2647
      %v2649 = vand.u32 %v2648, 4294901760
      %2650 = vmatpush2.msra.mxu0 %v2649
      %v2651 = vand.u32 %v376, 4294901760
      %v2652 = vsub.f32 %v376, %v2651
      %v2653 = vand.u32 %v2652, 4294901760
      %v2654 = vsub.f32 %v2652, %v2653
      %v2655 = vand.u32 %v2654, 4294901760
      %2656 = vmatprep.subr.mxu0 %v2655
      %v2657 = vand.u32 %v375, 4294901760
      %v2658 = vsub.f32 %v375, %v2657
      %v2659 = vand.u32 %v2658, 4294901760
      %v2660 = vsub.f32 %v2658, %v2659
      %v2661 = vand.u32 %v2660, 4294901760
      %2662 = vmatpush2.msra.mxu0 %v2661
      %v2663 = vand.u32 %v372, 4294901760
      %v2664 = vsub.f32 %v372, %v2663
      %v2665 = vand.u32 %v2664, 4294901760
      %v2666 = vsub.f32 %v2664, %v2665
      %v2667 = vand.u32 %v2666, 4294901760
      %2668 = vmatprep.subr.mxu0 %v2667
      %v2669 = vand.u32 %v371, 4294901760
      %v2670 = vsub.f32 %v371, %v2669
      %v2671 = vand.u32 %v2670, 4294901760
      %v2672 = vsub.f32 %v2670, %v2671
      %v2673 = vand.u32 %v2672, 4294901760
      %2674 = vmatpush2.msra.mxu0 %v2673
      %v2675 = vand.u32 %v368, 4294901760
      %v2676 = vsub.f32 %v368, %v2675
      %v2677 = vand.u32 %v2676, 4294901760
      %v2678 = vsub.f32 %v2676, %v2677
      %v2679 = vand.u32 %v2678, 4294901760
      %2680 = vmatprep.subr.mxu0 %v2679
      %v2681 = vand.u32 %v367, 4294901760
      %v2682 = vsub.f32 %v367, %v2681
      %v2683 = vand.u32 %v2682, 4294901760
      %v2684 = vsub.f32 %v2682, %v2683
      %v2685 = vand.u32 %v2684, 4294901760
      %2686 = vmatpush2.msra.mxu0 %v2685
      %v2687 = vand.u32 %v364, 4294901760
      %v2688 = vsub.f32 %v364, %v2687
      %v2689 = vand.u32 %v2688, 4294901760
      %v2690 = vsub.f32 %v2688, %v2689
      %v2691 = vand.u32 %v2690, 4294901760
      %2692 = vmatprep.subr.mxu0 %v2691
      %v2693 = vand.u32 %v363, 4294901760
      %v2694 = vsub.f32 %v363, %v2693
      %v2695 = vand.u32 %v2694, 4294901760
      %v2696 = vsub.f32 %v2694, %v2695
      %v2697 = vand.u32 %v2696, 4294901760
      %2698 = vmatpush2.msra.mxu0 %v2697
      %v2699 = vand.u32 %v360, 4294901760
      %v2700 = vsub.f32 %v360, %v2699
      %v2701 = vand.u32 %v2700, 4294901760
      %v2702 = vsub.f32 %v2700, %v2701
      %v2703 = vand.u32 %v2702, 4294901760
      %2704 = vmatprep.subr.mxu0 %v2703
      %v2705 = vand.u32 %v359, 4294901760
      %v2706 = vsub.f32 %v359, %v2705
      %v2707 = vand.u32 %v2706, 4294901760
      %v2708 = vsub.f32 %v2706, %v2707
      %v2709 = vand.u32 %v2708, 4294901760
      %2710 = vmatpush2.msra.mxu0 %v2709
      %v2711 = vand.u32 %v356, 4294901760
      %v2712 = vsub.f32 %v356, %v2711
      %v2713 = vand.u32 %v2712, 4294901760
      %v2714 = vsub.f32 %v2712, %v2713
      %v2715 = vand.u32 %v2714, 4294901760
      %2716 = vmatprep.subr.mxu0 %v2715
      %v2717 = vand.u32 %v355, 4294901760
      %v2718 = vsub.f32 %v355, %v2717
      %v2719 = vand.u32 %v2718, 4294901760
      %v2720 = vsub.f32 %v2718, %v2719
      %v2721 = vand.u32 %v2720, 4294901760
      %2722 = vmatpush2.msra.mxu0 %v2721
      %v2723 = vand.u32 %v352, 4294901760
      %v2724 = vsub.f32 %v352, %v2723
      %v2725 = vand.u32 %v2724, 4294901760
      %v2726 = vsub.f32 %v2724, %v2725
      %v2727 = vand.u32 %v2726, 4294901760
      %2728 = vmatprep.subr.mxu0 %v2727
      %v2729 = vand.u32 %v351, 4294901760
      %v2730 = vsub.f32 %v351, %v2729
      %v2731 = vand.u32 %v2730, 4294901760
      %v2732 = vsub.f32 %v2730, %v2731
      %v2733 = vand.u32 %v2732, 4294901760
      %2734 = vmatpush2.msra.mxu0 %v2733
      %v2735 = vand.u32 %v348, 4294901760
      %v2736 = vsub.f32 %v348, %v2735
      %v2737 = vand.u32 %v2736, 4294901760
      %v2738 = vsub.f32 %v2736, %v2737
      %v2739 = vand.u32 %v2738, 4294901760
      %2740 = vmatprep.subr.mxu0 %v2739
      %v2741 = vand.u32 %v347, 4294901760
      %v2742 = vsub.f32 %v347, %v2741
      %v2743 = vand.u32 %v2742, 4294901760
      %v2744 = vsub.f32 %v2742, %v2743
      %v2745 = vand.u32 %v2744, 4294901760
      %2746 = vmatpush2.msra.mxu0 %v2745
      %v2747 = vand.u32 %v344, 4294901760
      %v2748 = vsub.f32 %v344, %v2747
      %v2749 = vand.u32 %v2748, 4294901760
      %v2750 = vsub.f32 %v2748, %v2749
      %v2751 = vand.u32 %v2750, 4294901760
      %2752 = vmatprep.subr.mxu0 %v2751
      %v2753 = vand.u32 %v343, 4294901760
      %v2754 = vsub.f32 %v343, %v2753
      %v2755 = vand.u32 %v2754, 4294901760
      %v2756 = vsub.f32 %v2754, %v2755
      %v2757 = vand.u32 %v2756, 4294901760
      %2758 = vmatpush2.msra.mxu0 %v2757
      %v2759 = vand.u32 %v340, 4294901760
      %v2760 = vsub.f32 %v340, %v2759
      %v2761 = vand.u32 %v2760, 4294901760
      %v2762 = vsub.f32 %v2760, %v2761
      %v2763 = vand.u32 %v2762, 4294901760
      %2764 = vmatprep.subr.mxu0 %v2763
      %v2765 = vand.u32 %v339, 4294901760
      %v2766 = vsub.f32 %v339, %v2765
      %v2767 = vand.u32 %v2766, 4294901760
      %v2768 = vsub.f32 %v2766, %v2767
      %v2769 = vand.u32 %v2768, 4294901760
      %2770 = vmatpush2.msra.mxu0 %v2769
      %v2771 = vand.u32 %v336, 4294901760
      %v2772 = vsub.f32 %v336, %v2771
      %v2773 = vand.u32 %v2772, 4294901760
      %v2774 = vsub.f32 %v2772, %v2773
      %v2775 = vand.u32 %v2774, 4294901760
      %2776 = vmatprep.subr.mxu0 %v2775
      %v2777 = vand.u32 %v335, 4294901760
      %v2778 = vsub.f32 %v335, %v2777
      %v2779 = vand.u32 %v2778, 4294901760
      %v2780 = vsub.f32 %v2778, %v2779
      %v2781 = vand.u32 %v2780, 4294901760
      %2782 = vmatpush2.msra.mxu0 %v2781
      %v2783 = vand.u32 %v332, 4294901760
      %v2784 = vsub.f32 %v332, %v2783
      %v2785 = vand.u32 %v2784, 4294901760
      %v2786 = vsub.f32 %v2784, %v2785
      %v2787 = vand.u32 %v2786, 4294901760
      %2788 = vmatprep.subr.mxu0 %v2787
      %v2789 = vand.u32 %v331, 4294901760
      %v2790 = vsub.f32 %v331, %v2789
      %v2791 = vand.u32 %v2790, 4294901760
      %v2792 = vsub.f32 %v2790, %v2791
      %v2793 = vand.u32 %v2792, 4294901760
      %2794 = vmatpush2.msra.mxu0 %v2793
      %v2795 = vand.u32 %v328, 4294901760
      %v2796 = vsub.f32 %v328, %v2795
      %v2797 = vand.u32 %v2796, 4294901760
      %v2798 = vsub.f32 %v2796, %v2797
      %v2799 = vand.u32 %v2798, 4294901760
      %2800 = vmatprep.subr.mxu0 %v2799
      %v2801 = vand.u32 %v327, 4294901760
      %v2802 = vsub.f32 %v327, %v2801
      %v2803 = vand.u32 %v2802, 4294901760
      %v2804 = vsub.f32 %v2802, %v2803
      %v2805 = vand.u32 %v2804, 4294901760
      %2806 = vmatpush2.msra.mxu0 %v2805
      %v2807 = vand.u32 %v324, 4294901760
      %v2808 = vsub.f32 %v324, %v2807
      %v2809 = vand.u32 %v2808, 4294901760
      %v2810 = vsub.f32 %v2808, %v2809
      %v2811 = vand.u32 %v2810, 4294901760
      %2812 = vmatprep.subr.mxu0 %v2811
      %v2813 = vand.u32 %v323, 4294901760
      %v2814 = vsub.f32 %v323, %v2813
      %v2815 = vand.u32 %v2814, 4294901760
      %v2816 = vsub.f32 %v2814, %v2815
      %v2817 = vand.u32 %v2816, 4294901760
      %2818 = vmatpush2.msra.mxu0 %v2817
      %v2819 = vand.u32 %v256, 4294901760
      %2820 = vmatprep.mubr.f32.mxu0 %v2819
      %v2821 = vand.u32 %v255, 4294901760
      %2822 = vmatmul.mubr.f32.gmra.mxu0 %v2821
      %v2823 = vpop.f32.mrf.mxu0
      %v2824 = vadd.f32 %v2431, %v2823
      %v2825 = vpop.f32.mrf.mxu0
      %v2826 = vadd.f32 %v2433, %v2825
      %2827 = vdwg.mxu0
      %v2828 = vand.u32 %v320, 4294901760
      %v2829 = vsub.f32 %v320, %v2828
      %2830 = vmatprep.subr.mxu0 %v2829
      %v2831 = vand.u32 %v319, 4294901760
      %v2832 = vsub.f32 %v319, %v2831
      %2833 = vmatpush1.msra.mxu0 %v2832
      %v2834 = vand.u32 %v316, 4294901760
      %v2835 = vsub.f32 %v316, %v2834
      %2836 = vmatprep.subr.mxu0 %v2835
      %v2837 = vand.u32 %v315, 4294901760
      %v2838 = vsub.f32 %v315, %v2837
      %2839 = vmatpush1.msra.mxu0 %v2838
      %v2840 = vand.u32 %v312, 4294901760
      %v2841 = vsub.f32 %v312, %v2840
      %2842 = vmatprep.subr.mxu0 %v2841
      %v2843 = vand.u32 %v311, 4294901760
      %v2844 = vsub.f32 %v311, %v2843
      %2845 = vmatpush1.msra.mxu0 %v2844
      %v2846 = vand.u32 %v308, 4294901760
      %v2847 = vsub.f32 %v308, %v2846
      %2848 = vmatprep.subr.mxu0 %v2847
      %v2849 = vand.u32 %v307, 4294901760
      %v2850 = vsub.f32 %v307, %v2849
      %2851 = vmatpush1.msra.mxu0 %v2850
      %v2852 = vand.u32 %v304, 4294901760
      %v2853 = vsub.f32 %v304, %v2852
      %2854 = vmatprep.subr.mxu0 %v2853
      %v2855 = vand.u32 %v303, 4294901760
      %v2856 = vsub.f32 %v303, %v2855
      %2857 = vmatpush1.msra.mxu0 %v2856
      %v2858 = vand.u32 %v300, 4294901760
      %v2859 = vsub.f32 %v300, %v2858
      %2860 = vmatprep.subr.mxu0 %v2859
      %v2861 = vand.u32 %v299, 4294901760
      %v2862 = vsub.f32 %v299, %v2861
      %2863 = vmatpush1.msra.mxu0 %v2862
      %v2864 = vand.u32 %v296, 4294901760
      %v2865 = vsub.f32 %v296, %v2864
      %2866 = vmatprep.subr.mxu0 %v2865
      %v2867 = vand.u32 %v295, 4294901760
      %v2868 = vsub.f32 %v295, %v2867
      %2869 = vmatpush1.msra.mxu0 %v2868
      %v2870 = vand.u32 %v292, 4294901760
      %v2871 = vsub.f32 %v292, %v2870
      %2872 = vmatprep.subr.mxu0 %v2871
      %v2873 = vand.u32 %v291, 4294901760
      %v2874 = vsub.f32 %v291, %v2873
      %2875 = vmatpush1.msra.mxu0 %v2874
      %v2876 = vand.u32 %v288, 4294901760
      %v2877 = vsub.f32 %v288, %v2876
      %2878 = vmatprep.subr.mxu0 %v2877
      %v2879 = vand.u32 %v287, 4294901760
      %v2880 = vsub.f32 %v287, %v2879
      %2881 = vmatpush1.msra.mxu0 %v2880
      %v2882 = vand.u32 %v284, 4294901760
      %v2883 = vsub.f32 %v284, %v2882
      %2884 = vmatprep.subr.mxu0 %v2883
      %v2885 = vand.u32 %v283, 4294901760
      %v2886 = vsub.f32 %v283, %v2885
      %2887 = vmatpush1.msra.mxu0 %v2886
      %v2888 = vand.u32 %v280, 4294901760
      %v2889 = vsub.f32 %v280, %v2888
      %2890 = vmatprep.subr.mxu0 %v2889
      %v2891 = vand.u32 %v279, 4294901760
      %v2892 = vsub.f32 %v279, %v2891
      %2893 = vmatpush1.msra.mxu0 %v2892
      %v2894 = vand.u32 %v276, 4294901760
      %v2895 = vsub.f32 %v276, %v2894
      %2896 = vmatprep.subr.mxu0 %v2895
      %v2897 = vand.u32 %v275, 4294901760
      %v2898 = vsub.f32 %v275, %v2897
      %2899 = vmatpush1.msra.mxu0 %v2898
      %v2900 = vand.u32 %v272, 4294901760
      %v2901 = vsub.f32 %v272, %v2900
      %2902 = vmatprep.subr.mxu0 %v2901
      %v2903 = vand.u32 %v271, 4294901760
      %v2904 = vsub.f32 %v271, %v2903
      %2905 = vmatpush1.msra.mxu0 %v2904
      %v2906 = vand.u32 %v268, 4294901760
      %v2907 = vsub.f32 %v268, %v2906
      %2908 = vmatprep.subr.mxu0 %v2907
      %v2909 = vand.u32 %v267, 4294901760
      %v2910 = vsub.f32 %v267, %v2909
      %2911 = vmatpush1.msra.mxu0 %v2910
      %v2912 = vand.u32 %v264, 4294901760
      %v2913 = vsub.f32 %v264, %v2912
      %2914 = vmatprep.subr.mxu0 %v2913
      %v2915 = vand.u32 %v263, 4294901760
      %v2916 = vsub.f32 %v263, %v2915
      %2917 = vmatpush1.msra.mxu0 %v2916
      %v2918 = vand.u32 %v260, 4294901760
      %v2919 = vsub.f32 %v260, %v2918
      %2920 = vmatprep.subr.mxu0 %v2919
      %v2921 = vand.u32 %v259, 4294901760
      %v2922 = vsub.f32 %v259, %v2921
      %2923 = vmatpush1.msra.mxu0 %v2922
      %v2924 = vand.u32 %v384, 4294901760
      %v2925 = vsub.f32 %v384, %v2924
      %2926 = vmatprep.subr.mxu0 %v2925
      %v2927 = vand.u32 %v383, 4294901760
      %v2928 = vsub.f32 %v383, %v2927
      %2929 = vmatpush2.msra.mxu0 %v2928
      %v2930 = vand.u32 %v380, 4294901760
      %v2931 = vsub.f32 %v380, %v2930
      %2932 = vmatprep.subr.mxu0 %v2931
      %v2933 = vand.u32 %v379, 4294901760
      %v2934 = vsub.f32 %v379, %v2933
      %2935 = vmatpush2.msra.mxu0 %v2934
      %v2936 = vand.u32 %v376, 4294901760
      %v2937 = vsub.f32 %v376, %v2936
      %2938 = vmatprep.subr.mxu0 %v2937
      %v2939 = vand.u32 %v375, 4294901760
      %v2940 = vsub.f32 %v375, %v2939
      %2941 = vmatpush2.msra.mxu0 %v2940
      %v2942 = vand.u32 %v372, 4294901760
      %v2943 = vsub.f32 %v372, %v2942
      %2944 = vmatprep.subr.mxu0 %v2943
      %v2945 = vand.u32 %v371, 4294901760
      %v2946 = vsub.f32 %v371, %v2945
      %2947 = vmatpush2.msra.mxu0 %v2946
      %v2948 = vand.u32 %v368, 4294901760
      %v2949 = vsub.f32 %v368, %v2948
      %2950 = vmatprep.subr.mxu0 %v2949
      %v2951 = vand.u32 %v367, 4294901760
      %v2952 = vsub.f32 %v367, %v2951
      %2953 = vmatpush2.msra.mxu0 %v2952
      %v2954 = vand.u32 %v364, 4294901760
      %v2955 = vsub.f32 %v364, %v2954
      %2956 = vmatprep.subr.mxu0 %v2955
      %v2957 = vand.u32 %v363, 4294901760
      %v2958 = vsub.f32 %v363, %v2957
      %2959 = vmatpush2.msra.mxu0 %v2958
      %v2960 = vand.u32 %v360, 4294901760
      %v2961 = vsub.f32 %v360, %v2960
      %2962 = vmatprep.subr.mxu0 %v2961
      %v2963 = vand.u32 %v359, 4294901760
      %v2964 = vsub.f32 %v359, %v2963
      %2965 = vmatpush2.msra.mxu0 %v2964
      %v2966 = vand.u32 %v356, 4294901760
      %v2967 = vsub.f32 %v356, %v2966
      %2968 = vmatprep.subr.mxu0 %v2967
      %v2969 = vand.u32 %v355, 4294901760
      %v2970 = vsub.f32 %v355, %v2969
      %2971 = vmatpush2.msra.mxu0 %v2970
      %v2972 = vand.u32 %v352, 4294901760
      %v2973 = vsub.f32 %v352, %v2972
      %2974 = vmatprep.subr.mxu0 %v2973
      %v2975 = vand.u32 %v351, 4294901760
      %v2976 = vsub.f32 %v351, %v2975
      %2977 = vmatpush2.msra.mxu0 %v2976
      %v2978 = vand.u32 %v348, 4294901760
      %v2979 = vsub.f32 %v348, %v2978
      %2980 = vmatprep.subr.mxu0 %v2979
      %v2981 = vand.u32 %v347, 4294901760
      %v2982 = vsub.f32 %v347, %v2981
      %2983 = vmatpush2.msra.mxu0 %v2982
      %v2984 = vand.u32 %v344, 4294901760
      %v2985 = vsub.f32 %v344, %v2984
      %2986 = vmatprep.subr.mxu0 %v2985
      %v2987 = vand.u32 %v343, 4294901760
      %v2988 = vsub.f32 %v343, %v2987
      %2989 = vmatpush2.msra.mxu0 %v2988
      %v2990 = vand.u32 %v340, 4294901760
      %v2991 = vsub.f32 %v340, %v2990
      %2992 = vmatprep.subr.mxu0 %v2991
      %v2993 = vand.u32 %v339, 4294901760
      %v2994 = vsub.f32 %v339, %v2993
      %2995 = vmatpush2.msra.mxu0 %v2994
      %v2996 = vand.u32 %v336, 4294901760
      %v2997 = vsub.f32 %v336, %v2996
      %2998 = vmatprep.subr.mxu0 %v2997
      %v2999 = vand.u32 %v335, 4294901760
      %v3000 = vsub.f32 %v335, %v2999
      %3001 = vmatpush2.msra.mxu0 %v3000
      %v3002 = vand.u32 %v332, 4294901760
      %v3003 = vsub.f32 %v332, %v3002
      %3004 = vmatprep.subr.mxu0 %v3003
      %v3005 = vand.u32 %v331, 4294901760
      %v3006 = vsub.f32 %v331, %v3005
      %3007 = vmatpush2.msra.mxu0 %v3006
      %v3008 = vand.u32 %v328, 4294901760
      %v3009 = vsub.f32 %v328, %v3008
      %3010 = vmatprep.subr.mxu0 %v3009
      %v3011 = vand.u32 %v327, 4294901760
      %v3012 = vsub.f32 %v327, %v3011
      %3013 = vmatpush2.msra.mxu0 %v3012
      %v3014 = vand.u32 %v324, 4294901760
      %v3015 = vsub.f32 %v324, %v3014
      %3016 = vmatprep.subr.mxu0 %v3015
      %v3017 = vand.u32 %v323, 4294901760
      %v3018 = vsub.f32 %v323, %v3017
      %3019 = vmatpush2.msra.mxu0 %v3018
      %v3020 = vand.u32 %v256, 4294901760
      %v3021 = vsub.f32 %v256, %v3020
      %3022 = vmatprep.mubr.f32.mxu0 %v3021
      %v3023 = vand.u32 %v255, 4294901760
      %v3024 = vsub.f32 %v255, %v3023
      %3025 = vmatmul.mubr.f32.gmra.mxu0 %v3024
      %v3026 = vpop.f32.mrf.mxu0
      %v3027 = vadd.f32 %v2824, %v3026
      %v3028 = vpop.f32.mrf.mxu0
      %v3029 = vadd.f32 %v2826, %v3028
      %3030 = vdwg.mxu0
      %v3031 = vand.u32 %v320, 4294901760
      %3032 = vmatprep.subr.mxu0 %v3031
      %v3033 = vand.u32 %v319, 4294901760
      %3034 = vmatpush1.msra.mxu0 %v3033
      %v3035 = vand.u32 %v316, 4294901760
      %3036 = vmatprep.subr.mxu0 %v3035
      %v3037 = vand.u32 %v315, 4294901760
      %3038 = vmatpush1.msra.mxu0 %v3037
      %v3039 = vand.u32 %v312, 4294901760
      %3040 = vmatprep.subr.mxu0 %v3039
      %v3041 = vand.u32 %v311, 4294901760
      %3042 = vmatpush1.msra.mxu0 %v3041
      %v3043 = vand.u32 %v308, 4294901760
      %3044 = vmatprep.subr.mxu0 %v3043
      %v3045 = vand.u32 %v307, 4294901760
      %3046 = vmatpush1.msra.mxu0 %v3045
      %v3047 = vand.u32 %v304, 4294901760
      %3048 = vmatprep.subr.mxu0 %v3047
      %v3049 = vand.u32 %v303, 4294901760
      %3050 = vmatpush1.msra.mxu0 %v3049
      %v3051 = vand.u32 %v300, 4294901760
      %3052 = vmatprep.subr.mxu0 %v3051
      %v3053 = vand.u32 %v299, 4294901760
      %3054 = vmatpush1.msra.mxu0 %v3053
      %v3055 = vand.u32 %v296, 4294901760
      %3056 = vmatprep.subr.mxu0 %v3055
      %v3057 = vand.u32 %v295, 4294901760
      %3058 = vmatpush1.msra.mxu0 %v3057
      %v3059 = vand.u32 %v292, 4294901760
      %3060 = vmatprep.subr.mxu0 %v3059
      %v3061 = vand.u32 %v291, 4294901760
      %3062 = vmatpush1.msra.mxu0 %v3061
      %v3063 = vand.u32 %v288, 4294901760
      %3064 = vmatprep.subr.mxu0 %v3063
      %v3065 = vand.u32 %v287, 4294901760
      %3066 = vmatpush1.msra.mxu0 %v3065
      %v3067 = vand.u32 %v284, 4294901760
      %3068 = vmatprep.subr.mxu0 %v3067
      %v3069 = vand.u32 %v283, 4294901760
      %3070 = vmatpush1.msra.mxu0 %v3069
      %v3071 = vand.u32 %v280, 4294901760
      %3072 = vmatprep.subr.mxu0 %v3071
      %v3073 = vand.u32 %v279, 4294901760
      %3074 = vmatpush1.msra.mxu0 %v3073
      %v3075 = vand.u32 %v276, 4294901760
      %3076 = vmatprep.subr.mxu0 %v3075
      %v3077 = vand.u32 %v275, 4294901760
      %3078 = vmatpush1.msra.mxu0 %v3077
      %v3079 = vand.u32 %v272, 4294901760
      %3080 = vmatprep.subr.mxu0 %v3079
      %v3081 = vand.u32 %v271, 4294901760
      %3082 = vmatpush1.msra.mxu0 %v3081
      %v3083 = vand.u32 %v268, 4294901760
      %3084 = vmatprep.subr.mxu0 %v3083
      %v3085 = vand.u32 %v267, 4294901760
      %3086 = vmatpush1.msra.mxu0 %v3085
      %v3087 = vand.u32 %v264, 4294901760
      %3088 = vmatprep.subr.mxu0 %v3087
      %v3089 = vand.u32 %v263, 4294901760
      %3090 = vmatpush1.msra.mxu0 %v3089
      %v3091 = vand.u32 %v260, 4294901760
      %3092 = vmatprep.subr.mxu0 %v3091
      %v3093 = vand.u32 %v259, 4294901760
      %3094 = vmatpush1.msra.mxu0 %v3093
      %v3095 = vand.u32 %v384, 4294901760
      %3096 = vmatprep.subr.mxu0 %v3095
      %v3097 = vand.u32 %v383, 4294901760
      %3098 = vmatpush2.msra.mxu0 %v3097
      %v3099 = vand.u32 %v380, 4294901760
      %3100 = vmatprep.subr.mxu0 %v3099
      %v3101 = vand.u32 %v379, 4294901760
      %3102 = vmatpush2.msra.mxu0 %v3101
      %v3103 = vand.u32 %v376, 4294901760
      %3104 = vmatprep.subr.mxu0 %v3103
      %v3105 = vand.u32 %v375, 4294901760
      %3106 = vmatpush2.msra.mxu0 %v3105
      %v3107 = vand.u32 %v372, 4294901760
      %3108 = vmatprep.subr.mxu0 %v3107
      %v3109 = vand.u32 %v371, 4294901760
      %3110 = vmatpush2.msra.mxu0 %v3109
      %v3111 = vand.u32 %v368, 4294901760
      %3112 = vmatprep.subr.mxu0 %v3111
      %v3113 = vand.u32 %v367, 4294901760
      %3114 = vmatpush2.msra.mxu0 %v3113
      %v3115 = vand.u32 %v364, 4294901760
      %3116 = vmatprep.subr.mxu0 %v3115
      %v3117 = vand.u32 %v363, 4294901760
      %3118 = vmatpush2.msra.mxu0 %v3117
      %v3119 = vand.u32 %v360, 4294901760
      %3120 = vmatprep.subr.mxu0 %v3119
      %v3121 = vand.u32 %v359, 4294901760
      %3122 = vmatpush2.msra.mxu0 %v3121
      %v3123 = vand.u32 %v356, 4294901760
      %3124 = vmatprep.subr.mxu0 %v3123
      %v3125 = vand.u32 %v355, 4294901760
      %3126 = vmatpush2.msra.mxu0 %v3125
      %v3127 = vand.u32 %v352, 4294901760
      %3128 = vmatprep.subr.mxu0 %v3127
      %v3129 = vand.u32 %v351, 4294901760
      %3130 = vmatpush2.msra.mxu0 %v3129
      %v3131 = vand.u32 %v348, 4294901760
      %3132 = vmatprep.subr.mxu0 %v3131
      %v3133 = vand.u32 %v347, 4294901760
      %3134 = vmatpush2.msra.mxu0 %v3133
      %v3135 = vand.u32 %v344, 4294901760
      %3136 = vmatprep.subr.mxu0 %v3135
      %v3137 = vand.u32 %v343, 4294901760
      %3138 = vmatpush2.msra.mxu0 %v3137
      %v3139 = vand.u32 %v340, 4294901760
      %3140 = vmatprep.subr.mxu0 %v3139
      %v3141 = vand.u32 %v339, 4294901760
      %3142 = vmatpush2.msra.mxu0 %v3141
      %v3143 = vand.u32 %v336, 4294901760
      %3144 = vmatprep.subr.mxu0 %v3143
      %v3145 = vand.u32 %v335, 4294901760
      %3146 = vmatpush2.msra.mxu0 %v3145
      %v3147 = vand.u32 %v332, 4294901760
      %3148 = vmatprep.subr.mxu0 %v3147
      %v3149 = vand.u32 %v331, 4294901760
      %3150 = vmatpush2.msra.mxu0 %v3149
      %v3151 = vand.u32 %v328, 4294901760
      %3152 = vmatprep.subr.mxu0 %v3151
      %v3153 = vand.u32 %v327, 4294901760
      %3154 = vmatpush2.msra.mxu0 %v3153
      %v3155 = vand.u32 %v324, 4294901760
      %3156 = vmatprep.subr.mxu0 %v3155
      %v3157 = vand.u32 %v323, 4294901760
      %3158 = vmatpush2.msra.mxu0 %v3157
      %v3159 = vand.u32 %v256, 4294901760
      %v3160 = vsub.f32 %v256, %v3159
      %v3161 = vand.u32 %v3160, 4294901760
      %3162 = vmatprep.mubr.f32.mxu0 %v3161
      %v3163 = vand.u32 %v255, 4294901760
      %v3164 = vsub.f32 %v255, %v3163
      %v3165 = vand.u32 %v3164, 4294901760
      %3166 = vmatmul.mubr.f32.gmra.mxu0 %v3165
      %v3167 = vpop.f32.mrf.mxu0
      %v3168 = vadd.f32 %v3027, %v3167
      %v3169 = vpop.f32.mrf.mxu0
      %v3170 = vadd.f32 %v3029, %v3169
      %3171 = vdwg.mxu0
      %v3172 = vand.u32 %v320, 4294901760
      %v3173 = vsub.f32 %v320, %v3172
      %v3174 = vand.u32 %v3173, 4294901760
      %3175 = vmatprep.subr.mxu0 %v3174
      %v3176 = vand.u32 %v319, 4294901760
      %v3177 = vsub.f32 %v319, %v3176
      %v3178 = vand.u32 %v3177, 4294901760
      %3179 = vmatpush1.msra.mxu0 %v3178
      %v3180 = vand.u32 %v316, 4294901760
      %v3181 = vsub.f32 %v316, %v3180
      %v3182 = vand.u32 %v3181, 4294901760
      %3183 = vmatprep.subr.mxu0 %v3182
      %v3184 = vand.u32 %v315, 4294901760
      %v3185 = vsub.f32 %v315, %v3184
      %v3186 = vand.u32 %v3185, 4294901760
      %3187 = vmatpush1.msra.mxu0 %v3186
      %v3188 = vand.u32 %v312, 4294901760
      %v3189 = vsub.f32 %v312, %v3188
      %v3190 = vand.u32 %v3189, 4294901760
      %3191 = vmatprep.subr.mxu0 %v3190
      %v3192 = vand.u32 %v311, 4294901760
      %v3193 = vsub.f32 %v311, %v3192
      %v3194 = vand.u32 %v3193, 4294901760
      %3195 = vmatpush1.msra.mxu0 %v3194
      %v3196 = vand.u32 %v308, 4294901760
      %v3197 = vsub.f32 %v308, %v3196
      %v3198 = vand.u32 %v3197, 4294901760
      %3199 = vmatprep.subr.mxu0 %v3198
      %v3200 = vand.u32 %v307, 4294901760
      %v3201 = vsub.f32 %v307, %v3200
      %v3202 = vand.u32 %v3201, 4294901760
      %3203 = vmatpush1.msra.mxu0 %v3202
      %v3204 = vand.u32 %v304, 4294901760
      %v3205 = vsub.f32 %v304, %v3204
      %v3206 = vand.u32 %v3205, 4294901760
      %3207 = vmatprep.subr.mxu0 %v3206
      %v3208 = vand.u32 %v303, 4294901760
      %v3209 = vsub.f32 %v303, %v3208
      %v3210 = vand.u32 %v3209, 4294901760
      %3211 = vmatpush1.msra.mxu0 %v3210
      %v3212 = vand.u32 %v300, 4294901760
      %v3213 = vsub.f32 %v300, %v3212
      %v3214 = vand.u32 %v3213, 4294901760
      %3215 = vmatprep.subr.mxu0 %v3214
      %v3216 = vand.u32 %v299, 4294901760
      %v3217 = vsub.f32 %v299, %v3216
      %v3218 = vand.u32 %v3217, 4294901760
      %3219 = vmatpush1.msra.mxu0 %v3218
      %v3220 = vand.u32 %v296, 4294901760
      %v3221 = vsub.f32 %v296, %v3220
      %v3222 = vand.u32 %v3221, 4294901760
      %3223 = vmatprep.subr.mxu0 %v3222
      %v3224 = vand.u32 %v295, 4294901760
      %v3225 = vsub.f32 %v295, %v3224
      %v3226 = vand.u32 %v3225, 4294901760
      %3227 = vmatpush1.msra.mxu0 %v3226
      %v3228 = vand.u32 %v292, 4294901760
      %v3229 = vsub.f32 %v292, %v3228
      %v3230 = vand.u32 %v3229, 4294901760
      %3231 = vmatprep.subr.mxu0 %v3230
      %v3232 = vand.u32 %v291, 4294901760
      %v3233 = vsub.f32 %v291, %v3232
      %v3234 = vand.u32 %v3233, 4294901760
      %3235 = vmatpush1.msra.mxu0 %v3234
      %v3236 = vand.u32 %v288, 4294901760
      %v3237 = vsub.f32 %v288, %v3236
      %v3238 = vand.u32 %v3237, 4294901760
      %3239 = vmatprep.subr.mxu0 %v3238
      %v3240 = vand.u32 %v287, 4294901760
      %v3241 = vsub.f32 %v287, %v3240
      %v3242 = vand.u32 %v3241, 4294901760
      %3243 = vmatpush1.msra.mxu0 %v3242
      %v3244 = vand.u32 %v284, 4294901760
      %v3245 = vsub.f32 %v284, %v3244
      %v3246 = vand.u32 %v3245, 4294901760
      %3247 = vmatprep.subr.mxu0 %v3246
      %v3248 = vand.u32 %v283, 4294901760
      %v3249 = vsub.f32 %v283, %v3248
      %v3250 = vand.u32 %v3249, 4294901760
      %3251 = vmatpush1.msra.mxu0 %v3250
      %v3252 = vand.u32 %v280, 4294901760
      %v3253 = vsub.f32 %v280, %v3252
      %v3254 = vand.u32 %v3253, 4294901760
      %3255 = vmatprep.subr.mxu0 %v3254
      %v3256 = vand.u32 %v279, 4294901760
      %v3257 = vsub.f32 %v279, %v3256
      %v3258 = vand.u32 %v3257, 4294901760
      %3259 = vmatpush1.msra.mxu0 %v3258
      %v3260 = vand.u32 %v276, 4294901760
      %v3261 = vsub.f32 %v276, %v3260
      %v3262 = vand.u32 %v3261, 4294901760
      %3263 = vmatprep.subr.mxu0 %v3262
      %v3264 = vand.u32 %v275, 4294901760
      %v3265 = vsub.f32 %v275, %v3264
      %v3266 = vand.u32 %v3265, 4294901760
      %3267 = vmatpush1.msra.mxu0 %v3266
      %v3268 = vand.u32 %v272, 4294901760
      %v3269 = vsub.f32 %v272, %v3268
      %v3270 = vand.u32 %v3269, 4294901760
      %3271 = vmatprep.subr.mxu0 %v3270
      %v3272 = vand.u32 %v271, 4294901760
      %v3273 = vsub.f32 %v271, %v3272
      %v3274 = vand.u32 %v3273, 4294901760
      %3275 = vmatpush1.msra.mxu0 %v3274
      %v3276 = vand.u32 %v268, 4294901760
      %v3277 = vsub.f32 %v268, %v3276
      %v3278 = vand.u32 %v3277, 4294901760
      %3279 = vmatprep.subr.mxu0 %v3278
      %v3280 = vand.u32 %v267, 4294901760
      %v3281 = vsub.f32 %v267, %v3280
      %v3282 = vand.u32 %v3281, 4294901760
      %3283 = vmatpush1.msra.mxu0 %v3282
      %v3284 = vand.u32 %v264, 4294901760
      %v3285 = vsub.f32 %v264, %v3284
      %v3286 = vand.u32 %v3285, 4294901760
      %3287 = vmatprep.subr.mxu0 %v3286
      %v3288 = vand.u32 %v263, 4294901760
      %v3289 = vsub.f32 %v263, %v3288
      %v3290 = vand.u32 %v3289, 4294901760
      %3291 = vmatpush1.msra.mxu0 %v3290
      %v3292 = vand.u32 %v260, 4294901760
      %v3293 = vsub.f32 %v260, %v3292
      %v3294 = vand.u32 %v3293, 4294901760
      %3295 = vmatprep.subr.mxu0 %v3294
      %v3296 = vand.u32 %v259, 4294901760
      %v3297 = vsub.f32 %v259, %v3296
      %v3298 = vand.u32 %v3297, 4294901760
      %3299 = vmatpush1.msra.mxu0 %v3298
      %v3300 = vand.u32 %v384, 4294901760
      %v3301 = vsub.f32 %v384, %v3300
      %v3302 = vand.u32 %v3301, 4294901760
      %3303 = vmatprep.subr.mxu0 %v3302
      %v3304 = vand.u32 %v383, 4294901760
      %v3305 = vsub.f32 %v383, %v3304
      %v3306 = vand.u32 %v3305, 4294901760
      %3307 = vmatpush2.msra.mxu0 %v3306
      %v3308 = vand.u32 %v380, 4294901760
      %v3309 = vsub.f32 %v380, %v3308
      %v3310 = vand.u32 %v3309, 4294901760
      %3311 = vmatprep.subr.mxu0 %v3310
      %v3312 = vand.u32 %v379, 4294901760
      %v3313 = vsub.f32 %v379, %v3312
      %v3314 = vand.u32 %v3313, 4294901760
      %3315 = vmatpush2.msra.mxu0 %v3314
      %v3316 = vand.u32 %v376, 4294901760
      %v3317 = vsub.f32 %v376, %v3316
      %v3318 = vand.u32 %v3317, 4294901760
      %3319 = vmatprep.subr.mxu0 %v3318
      %v3320 = vand.u32 %v375, 4294901760
      %v3321 = vsub.f32 %v375, %v3320
      %v3322 = vand.u32 %v3321, 4294901760
      %3323 = vmatpush2.msra.mxu0 %v3322
      %v3324 = vand.u32 %v372, 4294901760
      %v3325 = vsub.f32 %v372, %v3324
      %v3326 = vand.u32 %v3325, 4294901760
      %3327 = vmatprep.subr.mxu0 %v3326
      %v3328 = vand.u32 %v371, 4294901760
      %v3329 = vsub.f32 %v371, %v3328
      %v3330 = vand.u32 %v3329, 4294901760
      %3331 = vmatpush2.msra.mxu0 %v3330
      %v3332 = vand.u32 %v368, 4294901760
      %v3333 = vsub.f32 %v368, %v3332
      %v3334 = vand.u32 %v3333, 4294901760
      %3335 = vmatprep.subr.mxu0 %v3334
      %v3336 = vand.u32 %v367, 4294901760
      %v3337 = vsub.f32 %v367, %v3336
      %v3338 = vand.u32 %v3337, 4294901760
      %3339 = vmatpush2.msra.mxu0 %v3338
      %v3340 = vand.u32 %v364, 4294901760
      %v3341 = vsub.f32 %v364, %v3340
      %v3342 = vand.u32 %v3341, 4294901760
      %3343 = vmatprep.subr.mxu0 %v3342
      %v3344 = vand.u32 %v363, 4294901760
      %v3345 = vsub.f32 %v363, %v3344
      %v3346 = vand.u32 %v3345, 4294901760
      %3347 = vmatpush2.msra.mxu0 %v3346
      %v3348 = vand.u32 %v360, 4294901760
      %v3349 = vsub.f32 %v360, %v3348
      %v3350 = vand.u32 %v3349, 4294901760
      %3351 = vmatprep.subr.mxu0 %v3350
      %v3352 = vand.u32 %v359, 4294901760
      %v3353 = vsub.f32 %v359, %v3352
      %v3354 = vand.u32 %v3353, 4294901760
      %3355 = vmatpush2.msra.mxu0 %v3354
      %v3356 = vand.u32 %v356, 4294901760
      %v3357 = vsub.f32 %v356, %v3356
      %v3358 = vand.u32 %v3357, 4294901760
      %3359 = vmatprep.subr.mxu0 %v3358
      %v3360 = vand.u32 %v355, 4294901760
      %v3361 = vsub.f32 %v355, %v3360
      %v3362 = vand.u32 %v3361, 4294901760
      %3363 = vmatpush2.msra.mxu0 %v3362
      %v3364 = vand.u32 %v352, 4294901760
      %v3365 = vsub.f32 %v352, %v3364
      %v3366 = vand.u32 %v3365, 4294901760
      %3367 = vmatprep.subr.mxu0 %v3366
      %v3368 = vand.u32 %v351, 4294901760
      %v3369 = vsub.f32 %v351, %v3368
      %v3370 = vand.u32 %v3369, 4294901760
      %3371 = vmatpush2.msra.mxu0 %v3370
      %v3372 = vand.u32 %v348, 4294901760
      %v3373 = vsub.f32 %v348, %v3372
      %v3374 = vand.u32 %v3373, 4294901760
      %3375 = vmatprep.subr.mxu0 %v3374
      %v3376 = vand.u32 %v347, 4294901760
      %v3377 = vsub.f32 %v347, %v3376
      %v3378 = vand.u32 %v3377, 4294901760
      %3379 = vmatpush2.msra.mxu0 %v3378
      %v3380 = vand.u32 %v344, 4294901760
      %v3381 = vsub.f32 %v344, %v3380
      %v3382 = vand.u32 %v3381, 4294901760
      %3383 = vmatprep.subr.mxu0 %v3382
      %v3384 = vand.u32 %v343, 4294901760
      %v3385 = vsub.f32 %v343, %v3384
      %v3386 = vand.u32 %v3385, 4294901760
      %3387 = vmatpush2.msra.mxu0 %v3386
      %v3388 = vand.u32 %v340, 4294901760
      %v3389 = vsub.f32 %v340, %v3388
      %v3390 = vand.u32 %v3389, 4294901760
      %3391 = vmatprep.subr.mxu0 %v3390
      %v3392 = vand.u32 %v339, 4294901760
      %v3393 = vsub.f32 %v339, %v3392
      %v3394 = vand.u32 %v3393, 4294901760
      %3395 = vmatpush2.msra.mxu0 %v3394
      %v3396 = vand.u32 %v336, 4294901760
      %v3397 = vsub.f32 %v336, %v3396
      %v3398 = vand.u32 %v3397, 4294901760
      %3399 = vmatprep.subr.mxu0 %v3398
      %v3400 = vand.u32 %v335, 4294901760
      %v3401 = vsub.f32 %v335, %v3400
      %v3402 = vand.u32 %v3401, 4294901760
      %3403 = vmatpush2.msra.mxu0 %v3402
      %v3404 = vand.u32 %v332, 4294901760
      %v3405 = vsub.f32 %v332, %v3404
      %v3406 = vand.u32 %v3405, 4294901760
      %3407 = vmatprep.subr.mxu0 %v3406
      %v3408 = vand.u32 %v331, 4294901760
      %v3409 = vsub.f32 %v331, %v3408
      %v3410 = vand.u32 %v3409, 4294901760
      %3411 = vmatpush2.msra.mxu0 %v3410
      %v3412 = vand.u32 %v328, 4294901760
      %v3413 = vsub.f32 %v328, %v3412
      %v3414 = vand.u32 %v3413, 4294901760
      %3415 = vmatprep.subr.mxu0 %v3414
      %v3416 = vand.u32 %v327, 4294901760
      %v3417 = vsub.f32 %v327, %v3416
      %v3418 = vand.u32 %v3417, 4294901760
      %3419 = vmatpush2.msra.mxu0 %v3418
      %v3420 = vand.u32 %v324, 4294901760
      %v3421 = vsub.f32 %v324, %v3420
      %v3422 = vand.u32 %v3421, 4294901760
      %3423 = vmatprep.subr.mxu0 %v3422
      %v3424 = vand.u32 %v323, 4294901760
      %v3425 = vsub.f32 %v323, %v3424
      %v3426 = vand.u32 %v3425, 4294901760
      %3427 = vmatpush2.msra.mxu0 %v3426
      %v3428 = vand.u32 %v256, 4294901760
      %3429 = vmatprep.mubr.f32.mxu0 %v3428
      %v3430 = vand.u32 %v255, 4294901760
      %3431 = vmatmul.mubr.f32.gmra.mxu0 %v3430
      %v3432 = vpop.f32.mrf.mxu0
      %v3433 = vadd.f32 %v3168, %v3432
      %v3434 = vpop.f32.mrf.mxu0
      %v3435 = vadd.f32 %v3170, %v3434
      %3436 = vdwg.mxu0
      %v3437 = vand.u32 %v320, 4294901760
      %3438 = vmatprep.subr.mxu0 %v3437
      %v3439 = vand.u32 %v319, 4294901760
      %3440 = vmatpush1.msra.mxu0 %v3439
      %v3441 = vand.u32 %v316, 4294901760
      %3442 = vmatprep.subr.mxu0 %v3441
      %v3443 = vand.u32 %v315, 4294901760
      %3444 = vmatpush1.msra.mxu0 %v3443
      %v3445 = vand.u32 %v312, 4294901760
      %3446 = vmatprep.subr.mxu0 %v3445
      %v3447 = vand.u32 %v311, 4294901760
      %3448 = vmatpush1.msra.mxu0 %v3447
      %v3449 = vand.u32 %v308, 4294901760
      %3450 = vmatprep.subr.mxu0 %v3449
      %v3451 = vand.u32 %v307, 4294901760
      %3452 = vmatpush1.msra.mxu0 %v3451
      %v3453 = vand.u32 %v304, 4294901760
      %3454 = vmatprep.subr.mxu0 %v3453
      %v3455 = vand.u32 %v303, 4294901760
      %3456 = vmatpush1.msra.mxu0 %v3455
      %v3457 = vand.u32 %v300, 4294901760
      %3458 = vmatprep.subr.mxu0 %v3457
      %v3459 = vand.u32 %v299, 4294901760
      %3460 = vmatpush1.msra.mxu0 %v3459
      %v3461 = vand.u32 %v296, 4294901760
      %3462 = vmatprep.subr.mxu0 %v3461
      %v3463 = vand.u32 %v295, 4294901760
      %3464 = vmatpush1.msra.mxu0 %v3463
      %v3465 = vand.u32 %v292, 4294901760
      %3466 = vmatprep.subr.mxu0 %v3465
      %v3467 = vand.u32 %v291, 4294901760
      %3468 = vmatpush1.msra.mxu0 %v3467
      %v3469 = vand.u32 %v288, 4294901760
      %3470 = vmatprep.subr.mxu0 %v3469
      %v3471 = vand.u32 %v287, 4294901760
      %3472 = vmatpush1.msra.mxu0 %v3471
      %v3473 = vand.u32 %v284, 4294901760
      %3474 = vmatprep.subr.mxu0 %v3473
      %v3475 = vand.u32 %v283, 4294901760
      %3476 = vmatpush1.msra.mxu0 %v3475
      %v3477 = vand.u32 %v280, 4294901760
      %3478 = vmatprep.subr.mxu0 %v3477
      %v3479 = vand.u32 %v279, 4294901760
      %3480 = vmatpush1.msra.mxu0 %v3479
      %v3481 = vand.u32 %v276, 4294901760
      %3482 = vmatprep.subr.mxu0 %v3481
      %v3483 = vand.u32 %v275, 4294901760
      %3484 = vmatpush1.msra.mxu0 %v3483
      %v3485 = vand.u32 %v272, 4294901760
      %3486 = vmatprep.subr.mxu0 %v3485
      %v3487 = vand.u32 %v271, 4294901760
      %3488 = vmatpush1.msra.mxu0 %v3487
      %v3489 = vand.u32 %v268, 4294901760
      %3490 = vmatprep.subr.mxu0 %v3489
      %v3491 = vand.u32 %v267, 4294901760
      %3492 = vmatpush1.msra.mxu0 %v3491
      %v3493 = vand.u32 %v264, 4294901760
      %3494 = vmatprep.subr.mxu0 %v3493
      %v3495 = vand.u32 %v263, 4294901760
      %3496 = vmatpush1.msra.mxu0 %v3495
      %v3497 = vand.u32 %v260, 4294901760
      %3498 = vmatprep.subr.mxu0 %v3497
      %v3499 = vand.u32 %v259, 4294901760
      %3500 = vmatpush1.msra.mxu0 %v3499
      %v3501 = vand.u32 %v384, 4294901760
      %3502 = vmatprep.subr.mxu0 %v3501
      %v3503 = vand.u32 %v383, 4294901760
      %3504 = vmatpush2.msra.mxu0 %v3503
      %v3505 = vand.u32 %v380, 4294901760
      %3506 = vmatprep.subr.mxu0 %v3505
      %v3507 = vand.u32 %v379, 4294901760
      %3508 = vmatpush2.msra.mxu0 %v3507
      %v3509 = vand.u32 %v376, 4294901760
      %3510 = vmatprep.subr.mxu0 %v3509
      %v3511 = vand.u32 %v375, 4294901760
      %3512 = vmatpush2.msra.mxu0 %v3511
      %v3513 = vand.u32 %v372, 4294901760
      %3514 = vmatprep.subr.mxu0 %v3513
      %v3515 = vand.u32 %v371, 4294901760
      %3516 = vmatpush2.msra.mxu0 %v3515
      %v3517 = vand.u32 %v368, 4294901760
      %3518 = vmatprep.subr.mxu0 %v3517
      %v3519 = vand.u32 %v367, 4294901760
      %3520 = vmatpush2.msra.mxu0 %v3519
      %v3521 = vand.u32 %v364, 4294901760
      %3522 = vmatprep.subr.mxu0 %v3521
      %v3523 = vand.u32 %v363, 4294901760
      %3524 = vmatpush2.msra.mxu0 %v3523
      %v3525 = vand.u32 %v360, 4294901760
      %3526 = vmatprep.subr.mxu0 %v3525
      %v3527 = vand.u32 %v359, 4294901760
      %3528 = vmatpush2.msra.mxu0 %v3527
      %v3529 = vand.u32 %v356, 4294901760
      %3530 = vmatprep.subr.mxu0 %v3529
      %v3531 = vand.u32 %v355, 4294901760
      %3532 = vmatpush2.msra.mxu0 %v3531
      %v3533 = vand.u32 %v352, 4294901760
      %3534 = vmatprep.subr.mxu0 %v3533
      %v3535 = vand.u32 %v351, 4294901760
      %3536 = vmatpush2.msra.mxu0 %v3535
      %v3537 = vand.u32 %v348, 4294901760
      %3538 = vmatprep.subr.mxu0 %v3537
      %v3539 = vand.u32 %v347, 4294901760
      %3540 = vmatpush2.msra.mxu0 %v3539
      %v3541 = vand.u32 %v344, 4294901760
      %3542 = vmatprep.subr.mxu0 %v3541
      %v3543 = vand.u32 %v343, 4294901760
      %3544 = vmatpush2.msra.mxu0 %v3543
      %v3545 = vand.u32 %v340, 4294901760
      %3546 = vmatprep.subr.mxu0 %v3545
      %v3547 = vand.u32 %v339, 4294901760
      %3548 = vmatpush2.msra.mxu0 %v3547
      %v3549 = vand.u32 %v336, 4294901760
      %3550 = vmatprep.subr.mxu0 %v3549
      %v3551 = vand.u32 %v335, 4294901760
      %3552 = vmatpush2.msra.mxu0 %v3551
      %v3553 = vand.u32 %v332, 4294901760
      %3554 = vmatprep.subr.mxu0 %v3553
      %v3555 = vand.u32 %v331, 4294901760
      %3556 = vmatpush2.msra.mxu0 %v3555
      %v3557 = vand.u32 %v328, 4294901760
      %3558 = vmatprep.subr.mxu0 %v3557
      %v3559 = vand.u32 %v327, 4294901760
      %3560 = vmatpush2.msra.mxu0 %v3559
      %v3561 = vand.u32 %v324, 4294901760
      %3562 = vmatprep.subr.mxu0 %v3561
      %v3563 = vand.u32 %v323, 4294901760
      %3564 = vmatpush2.msra.mxu0 %v3563
      %v3565 = vand.u32 %v256, 4294901760
      %3566 = vmatprep.mubr.f32.mxu0 %v3565
      %v3567 = vand.u32 %v255, 4294901760
      %3568 = vmatmul.mubr.f32.gmra.mxu0 %v3567
      %v3569 = vpop.f32.mrf.mxu0
      %v3570 = vadd.f32 %v3433, %v3569
      %v3571 = vpop.f32.mrf.mxu0
      %v3572 = vadd.f32 %v3435, %v3571
      %3573 = vdwg.mxu0
      %v3574 = vand.u32 %v448, 4294901760
      %3575 = vmatprep.subr.mxu0 %v3574
      %v3576 = vand.u32 %v447, 4294901760
      %3577 = vmatpush1.msra.mxu0 %v3576
      %v3578 = vand.u32 %v444, 4294901760
      %3579 = vmatprep.subr.mxu0 %v3578
      %v3580 = vand.u32 %v443, 4294901760
      %3581 = vmatpush1.msra.mxu0 %v3580
      %v3582 = vand.u32 %v440, 4294901760
      %3583 = vmatprep.subr.mxu0 %v3582
      %v3584 = vand.u32 %v439, 4294901760
      %3585 = vmatpush1.msra.mxu0 %v3584
      %v3586 = vand.u32 %v436, 4294901760
      %3587 = vmatprep.subr.mxu0 %v3586
      %v3588 = vand.u32 %v435, 4294901760
      %3589 = vmatpush1.msra.mxu0 %v3588
      %v3590 = vand.u32 %v432, 4294901760
      %3591 = vmatprep.subr.mxu0 %v3590
      %v3592 = vand.u32 %v431, 4294901760
      %3593 = vmatpush1.msra.mxu0 %v3592
      %v3594 = vand.u32 %v428, 4294901760
      %3595 = vmatprep.subr.mxu0 %v3594
      %v3596 = vand.u32 %v427, 4294901760
      %3597 = vmatpush1.msra.mxu0 %v3596
      %v3598 = vand.u32 %v424, 4294901760
      %3599 = vmatprep.subr.mxu0 %v3598
      %v3600 = vand.u32 %v423, 4294901760
      %3601 = vmatpush1.msra.mxu0 %v3600
      %v3602 = vand.u32 %v420, 4294901760
      %3603 = vmatprep.subr.mxu0 %v3602
      %v3604 = vand.u32 %v419, 4294901760
      %3605 = vmatpush1.msra.mxu0 %v3604
      %v3606 = vand.u32 %v416, 4294901760
      %3607 = vmatprep.subr.mxu0 %v3606
      %v3608 = vand.u32 %v415, 4294901760
      %3609 = vmatpush1.msra.mxu0 %v3608
      %v3610 = vand.u32 %v412, 4294901760
      %3611 = vmatprep.subr.mxu0 %v3610
      %v3612 = vand.u32 %v411, 4294901760
      %3613 = vmatpush1.msra.mxu0 %v3612
      %v3614 = vand.u32 %v408, 4294901760
      %3615 = vmatprep.subr.mxu0 %v3614
      %v3616 = vand.u32 %v407, 4294901760
      %3617 = vmatpush1.msra.mxu0 %v3616
      %v3618 = vand.u32 %v404, 4294901760
      %3619 = vmatprep.subr.mxu0 %v3618
      %v3620 = vand.u32 %v403, 4294901760
      %3621 = vmatpush1.msra.mxu0 %v3620
      %v3622 = vand.u32 %v400, 4294901760
      %3623 = vmatprep.subr.mxu0 %v3622
      %v3624 = vand.u32 %v399, 4294901760
      %3625 = vmatpush1.msra.mxu0 %v3624
      %v3626 = vand.u32 %v396, 4294901760
      %3627 = vmatprep.subr.mxu0 %v3626
      %v3628 = vand.u32 %v395, 4294901760
      %3629 = vmatpush1.msra.mxu0 %v3628
      %v3630 = vand.u32 %v392, 4294901760
      %3631 = vmatprep.subr.mxu0 %v3630
      %v3632 = vand.u32 %v391, 4294901760
      %3633 = vmatpush1.msra.mxu0 %v3632
      %v3634 = vand.u32 %v388, 4294901760
      %3635 = vmatprep.subr.mxu0 %v3634
      %v3636 = vand.u32 %v387, 4294901760
      %3637 = vmatpush1.msra.mxu0 %v3636
      %v3638 = vand.u32 %v512, 4294901760
      %3639 = vmatprep.subr.mxu0 %v3638
      %v3640 = vand.u32 %v511, 4294901760
      %3641 = vmatpush2.msra.mxu0 %v3640
      %v3642 = vand.u32 %v508, 4294901760
      %3643 = vmatprep.subr.mxu0 %v3642
      %v3644 = vand.u32 %v507, 4294901760
      %3645 = vmatpush2.msra.mxu0 %v3644
      %v3646 = vand.u32 %v504, 4294901760
      %3647 = vmatprep.subr.mxu0 %v3646
      %v3648 = vand.u32 %v503, 4294901760
      %3649 = vmatpush2.msra.mxu0 %v3648
      %v3650 = vand.u32 %v500, 4294901760
      %3651 = vmatprep.subr.mxu0 %v3650
      %v3652 = vand.u32 %v499, 4294901760
      %3653 = vmatpush2.msra.mxu0 %v3652
      %v3654 = vand.u32 %v496, 4294901760
      %3655 = vmatprep.subr.mxu0 %v3654
      %v3656 = vand.u32 %v495, 4294901760
      %3657 = vmatpush2.msra.mxu0 %v3656
      %v3658 = vand.u32 %v492, 4294901760
      %3659 = vmatprep.subr.mxu0 %v3658
      %v3660 = vand.u32 %v491, 4294901760
      %3661 = vmatpush2.msra.mxu0 %v3660
      %v3662 = vand.u32 %v488, 4294901760
      %3663 = vmatprep.subr.mxu0 %v3662
      %v3664 = vand.u32 %v487, 4294901760
      %3665 = vmatpush2.msra.mxu0 %v3664
      %v3666 = vand.u32 %v484, 4294901760
      %3667 = vmatprep.subr.mxu0 %v3666
      %v3668 = vand.u32 %v483, 4294901760
      %3669 = vmatpush2.msra.mxu0 %v3668
      %v3670 = vand.u32 %v480, 4294901760
      %3671 = vmatprep.subr.mxu0 %v3670
      %v3672 = vand.u32 %v479, 4294901760
      %3673 = vmatpush2.msra.mxu0 %v3672
      %v3674 = vand.u32 %v476, 4294901760
      %3675 = vmatprep.subr.mxu0 %v3674
      %v3676 = vand.u32 %v475, 4294901760
      %3677 = vmatpush2.msra.mxu0 %v3676
      %v3678 = vand.u32 %v472, 4294901760
      %3679 = vmatprep.subr.mxu0 %v3678
      %v3680 = vand.u32 %v471, 4294901760
      %3681 = vmatpush2.msra.mxu0 %v3680
      %v3682 = vand.u32 %v468, 4294901760
      %3683 = vmatprep.subr.mxu0 %v3682
      %v3684 = vand.u32 %v467, 4294901760
      %3685 = vmatpush2.msra.mxu0 %v3684
      %v3686 = vand.u32 %v464, 4294901760
      %3687 = vmatprep.subr.mxu0 %v3686
      %v3688 = vand.u32 %v463, 4294901760
      %3689 = vmatpush2.msra.mxu0 %v3688
      %v3690 = vand.u32 %v460, 4294901760
      %3691 = vmatprep.subr.mxu0 %v3690
      %v3692 = vand.u32 %v459, 4294901760
      %3693 = vmatpush2.msra.mxu0 %v3692
      %v3694 = vand.u32 %v456, 4294901760
      %3695 = vmatprep.subr.mxu0 %v3694
      %v3696 = vand.u32 %v455, 4294901760
      %3697 = vmatpush2.msra.mxu0 %v3696
      %v3698 = vand.u32 %v452, 4294901760
      %3699 = vmatprep.subr.mxu0 %v3698
      %v3700 = vand.u32 %v451, 4294901760
      %3701 = vmatpush2.msra.mxu0 %v3700
      %v3702 = vand.u32 %v258, 4294901760
      %v3703 = vsub.f32 %v258, %v3702
      %v3704 = vand.u32 %v3703, 4294901760
      %v3705 = vsub.f32 %v3703, %v3704
      %v3706 = vand.u32 %v3705, 4294901760
      %3707 = vmatprep.mubr.f32.mxu0 %v3706
      %v3708 = vand.u32 %v257, 4294901760
      %v3709 = vsub.f32 %v257, %v3708
      %v3710 = vand.u32 %v3709, 4294901760
      %v3711 = vsub.f32 %v3709, %v3710
      %v3712 = vand.u32 %v3711, 4294901760
      %3713 = vmatmul.mubr.f32.gmra.mxu0 %v3712
      %v3714 = vpop.f32.mrf.mxu0
      %v3715 = vadd.f32 %v3570, %v3714
      %v3716 = vpop.f32.mrf.mxu0
      %v3717 = vadd.f32 %v3572, %v3716
      %3718 = vdwg.mxu0
      %v3719 = vand.u32 %v448, 4294901760
      %v3720 = vsub.f32 %v448, %v3719
      %v3721 = vand.u32 %v3720, 4294901760
      %v3722 = vsub.f32 %v3720, %v3721
      %v3723 = vand.u32 %v3722, 4294901760
      %3724 = vmatprep.subr.mxu0 %v3723
      %v3725 = vand.u32 %v447, 4294901760
      %v3726 = vsub.f32 %v447, %v3725
      %v3727 = vand.u32 %v3726, 4294901760
      %v3728 = vsub.f32 %v3726, %v3727
      %v3729 = vand.u32 %v3728, 4294901760
      %3730 = vmatpush1.msra.mxu0 %v3729
      %v3731 = vand.u32 %v444, 4294901760
      %v3732 = vsub.f32 %v444, %v3731
      %v3733 = vand.u32 %v3732, 4294901760
      %v3734 = vsub.f32 %v3732, %v3733
      %v3735 = vand.u32 %v3734, 4294901760
      %3736 = vmatprep.subr.mxu0 %v3735
      %v3737 = vand.u32 %v443, 4294901760
      %v3738 = vsub.f32 %v443, %v3737
      %v3739 = vand.u32 %v3738, 4294901760
      %v3740 = vsub.f32 %v3738, %v3739
      %v3741 = vand.u32 %v3740, 4294901760
      %3742 = vmatpush1.msra.mxu0 %v3741
      %v3743 = vand.u32 %v440, 4294901760
      %v3744 = vsub.f32 %v440, %v3743
      %v3745 = vand.u32 %v3744, 4294901760
      %v3746 = vsub.f32 %v3744, %v3745
      %v3747 = vand.u32 %v3746, 4294901760
      %3748 = vmatprep.subr.mxu0 %v3747
      %v3749 = vand.u32 %v439, 4294901760
      %v3750 = vsub.f32 %v439, %v3749
      %v3751 = vand.u32 %v3750, 4294901760
      %v3752 = vsub.f32 %v3750, %v3751
      %v3753 = vand.u32 %v3752, 4294901760
      %3754 = vmatpush1.msra.mxu0 %v3753
      %v3755 = vand.u32 %v436, 4294901760
      %v3756 = vsub.f32 %v436, %v3755
      %v3757 = vand.u32 %v3756, 4294901760
      %v3758 = vsub.f32 %v3756, %v3757
      %v3759 = vand.u32 %v3758, 4294901760
      %3760 = vmatprep.subr.mxu0 %v3759
      %v3761 = vand.u32 %v435, 4294901760
      %v3762 = vsub.f32 %v435, %v3761
      %v3763 = vand.u32 %v3762, 4294901760
      %v3764 = vsub.f32 %v3762, %v3763
      %v3765 = vand.u32 %v3764, 4294901760
      %3766 = vmatpush1.msra.mxu0 %v3765
      %v3767 = vand.u32 %v432, 4294901760
      %v3768 = vsub.f32 %v432, %v3767
      %v3769 = vand.u32 %v3768, 4294901760
      %v3770 = vsub.f32 %v3768, %v3769
      %v3771 = vand.u32 %v3770, 4294901760
      %3772 = vmatprep.subr.mxu0 %v3771
      %v3773 = vand.u32 %v431, 4294901760
      %v3774 = vsub.f32 %v431, %v3773
      %v3775 = vand.u32 %v3774, 4294901760
      %v3776 = vsub.f32 %v3774, %v3775
      %v3777 = vand.u32 %v3776, 4294901760
      %3778 = vmatpush1.msra.mxu0 %v3777
      %v3779 = vand.u32 %v428, 4294901760
      %v3780 = vsub.f32 %v428, %v3779
      %v3781 = vand.u32 %v3780, 4294901760
      %v3782 = vsub.f32 %v3780, %v3781
      %v3783 = vand.u32 %v3782, 4294901760
      %3784 = vmatprep.subr.mxu0 %v3783
      %v3785 = vand.u32 %v427, 4294901760
      %v3786 = vsub.f32 %v427, %v3785
      %v3787 = vand.u32 %v3786, 4294901760
      %v3788 = vsub.f32 %v3786, %v3787
      %v3789 = vand.u32 %v3788, 4294901760
      %3790 = vmatpush1.msra.mxu0 %v3789
      %v3791 = vand.u32 %v424, 4294901760
      %v3792 = vsub.f32 %v424, %v3791
      %v3793 = vand.u32 %v3792, 4294901760
      %v3794 = vsub.f32 %v3792, %v3793
      %v3795 = vand.u32 %v3794, 4294901760
      %3796 = vmatprep.subr.mxu0 %v3795
      %v3797 = vand.u32 %v423, 4294901760
      %v3798 = vsub.f32 %v423, %v3797
      %v3799 = vand.u32 %v3798, 4294901760
      %v3800 = vsub.f32 %v3798, %v3799
      %v3801 = vand.u32 %v3800, 4294901760
      %3802 = vmatpush1.msra.mxu0 %v3801
      %v3803 = vand.u32 %v420, 4294901760
      %v3804 = vsub.f32 %v420, %v3803
      %v3805 = vand.u32 %v3804, 4294901760
      %v3806 = vsub.f32 %v3804, %v3805
      %v3807 = vand.u32 %v3806, 4294901760
      %3808 = vmatprep.subr.mxu0 %v3807
      %v3809 = vand.u32 %v419, 4294901760
      %v3810 = vsub.f32 %v419, %v3809
      %v3811 = vand.u32 %v3810, 4294901760
      %v3812 = vsub.f32 %v3810, %v3811
      %v3813 = vand.u32 %v3812, 4294901760
      %3814 = vmatpush1.msra.mxu0 %v3813
      %v3815 = vand.u32 %v416, 4294901760
      %v3816 = vsub.f32 %v416, %v3815
      %v3817 = vand.u32 %v3816, 4294901760
      %v3818 = vsub.f32 %v3816, %v3817
      %v3819 = vand.u32 %v3818, 4294901760
      %3820 = vmatprep.subr.mxu0 %v3819
      %v3821 = vand.u32 %v415, 4294901760
      %v3822 = vsub.f32 %v415, %v3821
      %v3823 = vand.u32 %v3822, 4294901760
      %v3824 = vsub.f32 %v3822, %v3823
      %v3825 = vand.u32 %v3824, 4294901760
      %3826 = vmatpush1.msra.mxu0 %v3825
      %v3827 = vand.u32 %v412, 4294901760
      %v3828 = vsub.f32 %v412, %v3827
      %v3829 = vand.u32 %v3828, 4294901760
      %v3830 = vsub.f32 %v3828, %v3829
      %v3831 = vand.u32 %v3830, 4294901760
      %3832 = vmatprep.subr.mxu0 %v3831
      %v3833 = vand.u32 %v411, 4294901760
      %v3834 = vsub.f32 %v411, %v3833
      %v3835 = vand.u32 %v3834, 4294901760
      %v3836 = vsub.f32 %v3834, %v3835
      %v3837 = vand.u32 %v3836, 4294901760
      %3838 = vmatpush1.msra.mxu0 %v3837
      %v3839 = vand.u32 %v408, 4294901760
      %v3840 = vsub.f32 %v408, %v3839
      %v3841 = vand.u32 %v3840, 4294901760
      %v3842 = vsub.f32 %v3840, %v3841
      %v3843 = vand.u32 %v3842, 4294901760
      %3844 = vmatprep.subr.mxu0 %v3843
      %v3845 = vand.u32 %v407, 4294901760
      %v3846 = vsub.f32 %v407, %v3845
      %v3847 = vand.u32 %v3846, 4294901760
      %v3848 = vsub.f32 %v3846, %v3847
      %v3849 = vand.u32 %v3848, 4294901760
      %3850 = vmatpush1.msra.mxu0 %v3849
      %v3851 = vand.u32 %v404, 4294901760
      %v3852 = vsub.f32 %v404, %v3851
      %v3853 = vand.u32 %v3852, 4294901760
      %v3854 = vsub.f32 %v3852, %v3853
      %v3855 = vand.u32 %v3854, 4294901760
      %3856 = vmatprep.subr.mxu0 %v3855
      %v3857 = vand.u32 %v403, 4294901760
      %v3858 = vsub.f32 %v403, %v3857
      %v3859 = vand.u32 %v3858, 4294901760
      %v3860 = vsub.f32 %v3858, %v3859
      %v3861 = vand.u32 %v3860, 4294901760
      %3862 = vmatpush1.msra.mxu0 %v3861
      %v3863 = vand.u32 %v400, 4294901760
      %v3864 = vsub.f32 %v400, %v3863
      %v3865 = vand.u32 %v3864, 4294901760
      %v3866 = vsub.f32 %v3864, %v3865
      %v3867 = vand.u32 %v3866, 4294901760
      %3868 = vmatprep.subr.mxu0 %v3867
      %v3869 = vand.u32 %v399, 4294901760
      %v3870 = vsub.f32 %v399, %v3869
      %v3871 = vand.u32 %v3870, 4294901760
      %v3872 = vsub.f32 %v3870, %v3871
      %v3873 = vand.u32 %v3872, 4294901760
      %3874 = vmatpush1.msra.mxu0 %v3873
      %v3875 = vand.u32 %v396, 4294901760
      %v3876 = vsub.f32 %v396, %v3875
      %v3877 = vand.u32 %v3876, 4294901760
      %v3878 = vsub.f32 %v3876, %v3877
      %v3879 = vand.u32 %v3878, 4294901760
      %3880 = vmatprep.subr.mxu0 %v3879
      %v3881 = vand.u32 %v395, 4294901760
      %v3882 = vsub.f32 %v395, %v3881
      %v3883 = vand.u32 %v3882, 4294901760
      %v3884 = vsub.f32 %v3882, %v3883
      %v3885 = vand.u32 %v3884, 4294901760
      %3886 = vmatpush1.msra.mxu0 %v3885
      %v3887 = vand.u32 %v392, 4294901760
      %v3888 = vsub.f32 %v392, %v3887
      %v3889 = vand.u32 %v3888, 4294901760
      %v3890 = vsub.f32 %v3888, %v3889
      %v3891 = vand.u32 %v3890, 4294901760
      %3892 = vmatprep.subr.mxu0 %v3891
      %v3893 = vand.u32 %v391, 4294901760
      %v3894 = vsub.f32 %v391, %v3893
      %v3895 = vand.u32 %v3894, 4294901760
      %v3896 = vsub.f32 %v3894, %v3895
      %v3897 = vand.u32 %v3896, 4294901760
      %3898 = vmatpush1.msra.mxu0 %v3897
      %v3899 = vand.u32 %v388, 4294901760
      %v3900 = vsub.f32 %v388, %v3899
      %v3901 = vand.u32 %v3900, 4294901760
      %v3902 = vsub.f32 %v3900, %v3901
      %v3903 = vand.u32 %v3902, 4294901760
      %3904 = vmatprep.subr.mxu0 %v3903
      %v3905 = vand.u32 %v387, 4294901760
      %v3906 = vsub.f32 %v387, %v3905
      %v3907 = vand.u32 %v3906, 4294901760
      %v3908 = vsub.f32 %v3906, %v3907
      %v3909 = vand.u32 %v3908, 4294901760
      %3910 = vmatpush1.msra.mxu0 %v3909
      %v3911 = vand.u32 %v512, 4294901760
      %v3912 = vsub.f32 %v512, %v3911
      %v3913 = vand.u32 %v3912, 4294901760
      %v3914 = vsub.f32 %v3912, %v3913
      %v3915 = vand.u32 %v3914, 4294901760
      %3916 = vmatprep.subr.mxu0 %v3915
      %v3917 = vand.u32 %v511, 4294901760
      %v3918 = vsub.f32 %v511, %v3917
      %v3919 = vand.u32 %v3918, 4294901760
      %v3920 = vsub.f32 %v3918, %v3919
      %v3921 = vand.u32 %v3920, 4294901760
      %3922 = vmatpush2.msra.mxu0 %v3921
      %v3923 = vand.u32 %v508, 4294901760
      %v3924 = vsub.f32 %v508, %v3923
      %v3925 = vand.u32 %v3924, 4294901760
      %v3926 = vsub.f32 %v3924, %v3925
      %v3927 = vand.u32 %v3926, 4294901760
      %3928 = vmatprep.subr.mxu0 %v3927
      %v3929 = vand.u32 %v507, 4294901760
      %v3930 = vsub.f32 %v507, %v3929
      %v3931 = vand.u32 %v3930, 4294901760
      %v3932 = vsub.f32 %v3930, %v3931
      %v3933 = vand.u32 %v3932, 4294901760
      %3934 = vmatpush2.msra.mxu0 %v3933
      %v3935 = vand.u32 %v504, 4294901760
      %v3936 = vsub.f32 %v504, %v3935
      %v3937 = vand.u32 %v3936, 4294901760
      %v3938 = vsub.f32 %v3936, %v3937
      %v3939 = vand.u32 %v3938, 4294901760
      %3940 = vmatprep.subr.mxu0 %v3939
      %v3941 = vand.u32 %v503, 4294901760
      %v3942 = vsub.f32 %v503, %v3941
      %v3943 = vand.u32 %v3942, 4294901760
      %v3944 = vsub.f32 %v3942, %v3943
      %v3945 = vand.u32 %v3944, 4294901760
      %3946 = vmatpush2.msra.mxu0 %v3945
      %v3947 = vand.u32 %v500, 4294901760
      %v3948 = vsub.f32 %v500, %v3947
      %v3949 = vand.u32 %v3948, 4294901760
      %v3950 = vsub.f32 %v3948, %v3949
      %v3951 = vand.u32 %v3950, 4294901760
      %3952 = vmatprep.subr.mxu0 %v3951
      %v3953 = vand.u32 %v499, 4294901760
      %v3954 = vsub.f32 %v499, %v3953
      %v3955 = vand.u32 %v3954, 4294901760
      %v3956 = vsub.f32 %v3954, %v3955
      %v3957 = vand.u32 %v3956, 4294901760
      %3958 = vmatpush2.msra.mxu0 %v3957
      %v3959 = vand.u32 %v496, 4294901760
      %v3960 = vsub.f32 %v496, %v3959
      %v3961 = vand.u32 %v3960, 4294901760
      %v3962 = vsub.f32 %v3960, %v3961
      %v3963 = vand.u32 %v3962, 4294901760
      %3964 = vmatprep.subr.mxu0 %v3963
      %v3965 = vand.u32 %v495, 4294901760
      %v3966 = vsub.f32 %v495, %v3965
      %v3967 = vand.u32 %v3966, 4294901760
      %v3968 = vsub.f32 %v3966, %v3967
      %v3969 = vand.u32 %v3968, 4294901760
      %3970 = vmatpush2.msra.mxu0 %v3969
      %v3971 = vand.u32 %v492, 4294901760
      %v3972 = vsub.f32 %v492, %v3971
      %v3973 = vand.u32 %v3972, 4294901760
      %v3974 = vsub.f32 %v3972, %v3973
      %v3975 = vand.u32 %v3974, 4294901760
      %3976 = vmatprep.subr.mxu0 %v3975
      %v3977 = vand.u32 %v491, 4294901760
      %v3978 = vsub.f32 %v491, %v3977
      %v3979 = vand.u32 %v3978, 4294901760
      %v3980 = vsub.f32 %v3978, %v3979
      %v3981 = vand.u32 %v3980, 4294901760
      %3982 = vmatpush2.msra.mxu0 %v3981
      %v3983 = vand.u32 %v488, 4294901760
      %v3984 = vsub.f32 %v488, %v3983
      %v3985 = vand.u32 %v3984, 4294901760
      %v3986 = vsub.f32 %v3984, %v3985
      %v3987 = vand.u32 %v3986, 4294901760
      %3988 = vmatprep.subr.mxu0 %v3987
      %v3989 = vand.u32 %v487, 4294901760
      %v3990 = vsub.f32 %v487, %v3989
      %v3991 = vand.u32 %v3990, 4294901760
      %v3992 = vsub.f32 %v3990, %v3991
      %v3993 = vand.u32 %v3992, 4294901760
      %3994 = vmatpush2.msra.mxu0 %v3993
      %v3995 = vand.u32 %v484, 4294901760
      %v3996 = vsub.f32 %v484, %v3995
      %v3997 = vand.u32 %v3996, 4294901760
      %v3998 = vsub.f32 %v3996, %v3997
      %v3999 = vand.u32 %v3998, 4294901760
      %4000 = vmatprep.subr.mxu0 %v3999
      %v4001 = vand.u32 %v483, 4294901760
      %v4002 = vsub.f32 %v483, %v4001
      %v4003 = vand.u32 %v4002, 4294901760
      %v4004 = vsub.f32 %v4002, %v4003
      %v4005 = vand.u32 %v4004, 4294901760
      %4006 = vmatpush2.msra.mxu0 %v4005
      %v4007 = vand.u32 %v480, 4294901760
      %v4008 = vsub.f32 %v480, %v4007
      %v4009 = vand.u32 %v4008, 4294901760
      %v4010 = vsub.f32 %v4008, %v4009
      %v4011 = vand.u32 %v4010, 4294901760
      %4012 = vmatprep.subr.mxu0 %v4011
      %v4013 = vand.u32 %v479, 4294901760
      %v4014 = vsub.f32 %v479, %v4013
      %v4015 = vand.u32 %v4014, 4294901760
      %v4016 = vsub.f32 %v4014, %v4015
      %v4017 = vand.u32 %v4016, 4294901760
      %4018 = vmatpush2.msra.mxu0 %v4017
      %v4019 = vand.u32 %v476, 4294901760
      %v4020 = vsub.f32 %v476, %v4019
      %v4021 = vand.u32 %v4020, 4294901760
      %v4022 = vsub.f32 %v4020, %v4021
      %v4023 = vand.u32 %v4022, 4294901760
      %4024 = vmatprep.subr.mxu0 %v4023
      %v4025 = vand.u32 %v475, 4294901760
      %v4026 = vsub.f32 %v475, %v4025
      %v4027 = vand.u32 %v4026, 4294901760
      %v4028 = vsub.f32 %v4026, %v4027
      %v4029 = vand.u32 %v4028, 4294901760
      %4030 = vmatpush2.msra.mxu0 %v4029
      %v4031 = vand.u32 %v472, 4294901760
      %v4032 = vsub.f32 %v472, %v4031
      %v4033 = vand.u32 %v4032, 4294901760
      %v4034 = vsub.f32 %v4032, %v4033
      %v4035 = vand.u32 %v4034, 4294901760
      %4036 = vmatprep.subr.mxu0 %v4035
      %v4037 = vand.u32 %v471, 4294901760
      %v4038 = vsub.f32 %v471, %v4037
      %v4039 = vand.u32 %v4038, 4294901760
      %v4040 = vsub.f32 %v4038, %v4039
      %v4041 = vand.u32 %v4040, 4294901760
      %4042 = vmatpush2.msra.mxu0 %v4041
      %v4043 = vand.u32 %v468, 4294901760
      %v4044 = vsub.f32 %v468, %v4043
      %v4045 = vand.u32 %v4044, 4294901760
      %v4046 = vsub.f32 %v4044, %v4045
      %v4047 = vand.u32 %v4046, 4294901760
      %4048 = vmatprep.subr.mxu0 %v4047
      %v4049 = vand.u32 %v467, 4294901760
      %v4050 = vsub.f32 %v467, %v4049
      %v4051 = vand.u32 %v4050, 4294901760
      %v4052 = vsub.f32 %v4050, %v4051
      %v4053 = vand.u32 %v4052, 4294901760
      %4054 = vmatpush2.msra.mxu0 %v4053
      %v4055 = vand.u32 %v464, 4294901760
      %v4056 = vsub.f32 %v464, %v4055
      %v4057 = vand.u32 %v4056, 4294901760
      %v4058 = vsub.f32 %v4056, %v4057
      %v4059 = vand.u32 %v4058, 4294901760
      %4060 = vmatprep.subr.mxu0 %v4059
      %v4061 = vand.u32 %v463, 4294901760
      %v4062 = vsub.f32 %v463, %v4061
      %v4063 = vand.u32 %v4062, 4294901760
      %v4064 = vsub.f32 %v4062, %v4063
      %v4065 = vand.u32 %v4064, 4294901760
      %4066 = vmatpush2.msra.mxu0 %v4065
      %v4067 = vand.u32 %v460, 4294901760
      %v4068 = vsub.f32 %v460, %v4067
      %v4069 = vand.u32 %v4068, 4294901760
      %v4070 = vsub.f32 %v4068, %v4069
      %v4071 = vand.u32 %v4070, 4294901760
      %4072 = vmatprep.subr.mxu0 %v4071
      %v4073 = vand.u32 %v459, 4294901760
      %v4074 = vsub.f32 %v459, %v4073
      %v4075 = vand.u32 %v4074, 4294901760
      %v4076 = vsub.f32 %v4074, %v4075
      %v4077 = vand.u32 %v4076, 4294901760
      %4078 = vmatpush2.msra.mxu0 %v4077
      %v4079 = vand.u32 %v456, 4294901760
      %v4080 = vsub.f32 %v456, %v4079
      %v4081 = vand.u32 %v4080, 4294901760
      %v4082 = vsub.f32 %v4080, %v4081
      %v4083 = vand.u32 %v4082, 4294901760
      %4084 = vmatprep.subr.mxu0 %v4083
      %v4085 = vand.u32 %v455, 4294901760
      %v4086 = vsub.f32 %v455, %v4085
      %v4087 = vand.u32 %v4086, 4294901760
      %v4088 = vsub.f32 %v4086, %v4087
      %v4089 = vand.u32 %v4088, 4294901760
      %4090 = vmatpush2.msra.mxu0 %v4089
      %v4091 = vand.u32 %v452, 4294901760
      %v4092 = vsub.f32 %v452, %v4091
      %v4093 = vand.u32 %v4092, 4294901760
      %v4094 = vsub.f32 %v4092, %v4093
      %v4095 = vand.u32 %v4094, 4294901760
      %4096 = vmatprep.subr.mxu0 %v4095
      %v4097 = vand.u32 %v451, 4294901760
      %v4098 = vsub.f32 %v451, %v4097
      %v4099 = vand.u32 %v4098, 4294901760
      %v4100 = vsub.f32 %v4098, %v4099
      %v4101 = vand.u32 %v4100, 4294901760
      %4102 = vmatpush2.msra.mxu0 %v4101
      %v4103 = vand.u32 %v258, 4294901760
      %4104 = vmatprep.mubr.f32.mxu0 %v4103
      %v4105 = vand.u32 %v257, 4294901760
      %4106 = vmatmul.mubr.f32.gmra.mxu0 %v4105
      %v4107 = vpop.f32.mrf.mxu0
      %v4108 = vadd.f32 %v3715, %v4107
      %v4109 = vpop.f32.mrf.mxu0
      %v4110 = vadd.f32 %v3717, %v4109
      %4111 = vdwg.mxu0
      %v4112 = vand.u32 %v448, 4294901760
      %v4113 = vsub.f32 %v448, %v4112
      %4114 = vmatprep.subr.mxu0 %v4113
      %v4115 = vand.u32 %v447, 4294901760
      %v4116 = vsub.f32 %v447, %v4115
      %4117 = vmatpush1.msra.mxu0 %v4116
      %v4118 = vand.u32 %v444, 4294901760
      %v4119 = vsub.f32 %v444, %v4118
      %4120 = vmatprep.subr.mxu0 %v4119
      %v4121 = vand.u32 %v443, 4294901760
      %v4122 = vsub.f32 %v443, %v4121
      %4123 = vmatpush1.msra.mxu0 %v4122
      %v4124 = vand.u32 %v440, 4294901760
      %v4125 = vsub.f32 %v440, %v4124
      %4126 = vmatprep.subr.mxu0 %v4125
      %v4127 = vand.u32 %v439, 4294901760
      %v4128 = vsub.f32 %v439, %v4127
      %4129 = vmatpush1.msra.mxu0 %v4128
      %v4130 = vand.u32 %v436, 4294901760
      %v4131 = vsub.f32 %v436, %v4130
      %4132 = vmatprep.subr.mxu0 %v4131
      %v4133 = vand.u32 %v435, 4294901760
      %v4134 = vsub.f32 %v435, %v4133
      %4135 = vmatpush1.msra.mxu0 %v4134
      %v4136 = vand.u32 %v432, 4294901760
      %v4137 = vsub.f32 %v432, %v4136
      %4138 = vmatprep.subr.mxu0 %v4137
      %v4139 = vand.u32 %v431, 4294901760
      %v4140 = vsub.f32 %v431, %v4139
      %4141 = vmatpush1.msra.mxu0 %v4140
      %v4142 = vand.u32 %v428, 4294901760
      %v4143 = vsub.f32 %v428, %v4142
      %4144 = vmatprep.subr.mxu0 %v4143
      %v4145 = vand.u32 %v427, 4294901760
      %v4146 = vsub.f32 %v427, %v4145
      %4147 = vmatpush1.msra.mxu0 %v4146
      %v4148 = vand.u32 %v424, 4294901760
      %v4149 = vsub.f32 %v424, %v4148
      %4150 = vmatprep.subr.mxu0 %v4149
      %v4151 = vand.u32 %v423, 4294901760
      %v4152 = vsub.f32 %v423, %v4151
      %4153 = vmatpush1.msra.mxu0 %v4152
      %v4154 = vand.u32 %v420, 4294901760
      %v4155 = vsub.f32 %v420, %v4154
      %4156 = vmatprep.subr.mxu0 %v4155
      %v4157 = vand.u32 %v419, 4294901760
      %v4158 = vsub.f32 %v419, %v4157
      %4159 = vmatpush1.msra.mxu0 %v4158
      %v4160 = vand.u32 %v416, 4294901760
      %v4161 = vsub.f32 %v416, %v4160
      %4162 = vmatprep.subr.mxu0 %v4161
      %v4163 = vand.u32 %v415, 4294901760
      %v4164 = vsub.f32 %v415, %v4163
      %4165 = vmatpush1.msra.mxu0 %v4164
      %v4166 = vand.u32 %v412, 4294901760
      %v4167 = vsub.f32 %v412, %v4166
      %4168 = vmatprep.subr.mxu0 %v4167
      %v4169 = vand.u32 %v411, 4294901760
      %v4170 = vsub.f32 %v411, %v4169
      %4171 = vmatpush1.msra.mxu0 %v4170
      %v4172 = vand.u32 %v408, 4294901760
      %v4173 = vsub.f32 %v408, %v4172
      %4174 = vmatprep.subr.mxu0 %v4173
      %v4175 = vand.u32 %v407, 4294901760
      %v4176 = vsub.f32 %v407, %v4175
      %4177 = vmatpush1.msra.mxu0 %v4176
      %v4178 = vand.u32 %v404, 4294901760
      %v4179 = vsub.f32 %v404, %v4178
      %4180 = vmatprep.subr.mxu0 %v4179
      %v4181 = vand.u32 %v403, 4294901760
      %v4182 = vsub.f32 %v403, %v4181
      %4183 = vmatpush1.msra.mxu0 %v4182
      %v4184 = vand.u32 %v400, 4294901760
      %v4185 = vsub.f32 %v400, %v4184
      %4186 = vmatprep.subr.mxu0 %v4185
      %v4187 = vand.u32 %v399, 4294901760
      %v4188 = vsub.f32 %v399, %v4187
      %4189 = vmatpush1.msra.mxu0 %v4188
      %v4190 = vand.u32 %v396, 4294901760
      %v4191 = vsub.f32 %v396, %v4190
      %4192 = vmatprep.subr.mxu0 %v4191
      %v4193 = vand.u32 %v395, 4294901760
      %v4194 = vsub.f32 %v395, %v4193
      %4195 = vmatpush1.msra.mxu0 %v4194
      %v4196 = vand.u32 %v392, 4294901760
      %v4197 = vsub.f32 %v392, %v4196
      %4198 = vmatprep.subr.mxu0 %v4197
      %v4199 = vand.u32 %v391, 4294901760
      %v4200 = vsub.f32 %v391, %v4199
      %4201 = vmatpush1.msra.mxu0 %v4200
      %v4202 = vand.u32 %v388, 4294901760
      %v4203 = vsub.f32 %v388, %v4202
      %4204 = vmatprep.subr.mxu0 %v4203
      %v4205 = vand.u32 %v387, 4294901760
      %v4206 = vsub.f32 %v387, %v4205
      %4207 = vmatpush1.msra.mxu0 %v4206
      %v4208 = vand.u32 %v512, 4294901760
      %v4209 = vsub.f32 %v512, %v4208
      %4210 = vmatprep.subr.mxu0 %v4209
      %v4211 = vand.u32 %v511, 4294901760
      %v4212 = vsub.f32 %v511, %v4211
      %4213 = vmatpush2.msra.mxu0 %v4212
      %v4214 = vand.u32 %v508, 4294901760
      %v4215 = vsub.f32 %v508, %v4214
      %4216 = vmatprep.subr.mxu0 %v4215
      %v4217 = vand.u32 %v507, 4294901760
      %v4218 = vsub.f32 %v507, %v4217
      %4219 = vmatpush2.msra.mxu0 %v4218
      %v4220 = vand.u32 %v504, 4294901760
      %v4221 = vsub.f32 %v504, %v4220
      %4222 = vmatprep.subr.mxu0 %v4221
      %v4223 = vand.u32 %v503, 4294901760
      %v4224 = vsub.f32 %v503, %v4223
      %4225 = vmatpush2.msra.mxu0 %v4224
      %v4226 = vand.u32 %v500, 4294901760
      %v4227 = vsub.f32 %v500, %v4226
      %4228 = vmatprep.subr.mxu0 %v4227
      %v4229 = vand.u32 %v499, 4294901760
      %v4230 = vsub.f32 %v499, %v4229
      %4231 = vmatpush2.msra.mxu0 %v4230
      %v4232 = vand.u32 %v496, 4294901760
      %v4233 = vsub.f32 %v496, %v4232
      %4234 = vmatprep.subr.mxu0 %v4233
      %v4235 = vand.u32 %v495, 4294901760
      %v4236 = vsub.f32 %v495, %v4235
      %4237 = vmatpush2.msra.mxu0 %v4236
      %v4238 = vand.u32 %v492, 4294901760
      %v4239 = vsub.f32 %v492, %v4238
      %4240 = vmatprep.subr.mxu0 %v4239
      %v4241 = vand.u32 %v491, 4294901760
      %v4242 = vsub.f32 %v491, %v4241
      %4243 = vmatpush2.msra.mxu0 %v4242
      %v4244 = vand.u32 %v488, 4294901760
      %v4245 = vsub.f32 %v488, %v4244
      %4246 = vmatprep.subr.mxu0 %v4245
      %v4247 = vand.u32 %v487, 4294901760
      %v4248 = vsub.f32 %v487, %v4247
      %4249 = vmatpush2.msra.mxu0 %v4248
      %v4250 = vand.u32 %v484, 4294901760
      %v4251 = vsub.f32 %v484, %v4250
      %4252 = vmatprep.subr.mxu0 %v4251
      %v4253 = vand.u32 %v483, 4294901760
      %v4254 = vsub.f32 %v483, %v4253
      %4255 = vmatpush2.msra.mxu0 %v4254
      %v4256 = vand.u32 %v480, 4294901760
      %v4257 = vsub.f32 %v480, %v4256
      %4258 = vmatprep.subr.mxu0 %v4257
      %v4259 = vand.u32 %v479, 4294901760
      %v4260 = vsub.f32 %v479, %v4259
      %4261 = vmatpush2.msra.mxu0 %v4260
      %v4262 = vand.u32 %v476, 4294901760
      %v4263 = vsub.f32 %v476, %v4262
      %4264 = vmatprep.subr.mxu0 %v4263
      %v4265 = vand.u32 %v475, 4294901760
      %v4266 = vsub.f32 %v475, %v4265
      %4267 = vmatpush2.msra.mxu0 %v4266
      %v4268 = vand.u32 %v472, 4294901760
      %v4269 = vsub.f32 %v472, %v4268
      %4270 = vmatprep.subr.mxu0 %v4269
      %v4271 = vand.u32 %v471, 4294901760
      %v4272 = vsub.f32 %v471, %v4271
      %4273 = vmatpush2.msra.mxu0 %v4272
      %v4274 = vand.u32 %v468, 4294901760
      %v4275 = vsub.f32 %v468, %v4274
      %4276 = vmatprep.subr.mxu0 %v4275
      %v4277 = vand.u32 %v467, 4294901760
      %v4278 = vsub.f32 %v467, %v4277
      %4279 = vmatpush2.msra.mxu0 %v4278
      %v4280 = vand.u32 %v464, 4294901760
      %v4281 = vsub.f32 %v464, %v4280
      %4282 = vmatprep.subr.mxu0 %v4281
      %v4283 = vand.u32 %v463, 4294901760
      %v4284 = vsub.f32 %v463, %v4283
      %4285 = vmatpush2.msra.mxu0 %v4284
      %v4286 = vand.u32 %v460, 4294901760
      %v4287 = vsub.f32 %v460, %v4286
      %4288 = vmatprep.subr.mxu0 %v4287
      %v4289 = vand.u32 %v459, 4294901760
      %v4290 = vsub.f32 %v459, %v4289
      %4291 = vmatpush2.msra.mxu0 %v4290
      %v4292 = vand.u32 %v456, 4294901760
      %v4293 = vsub.f32 %v456, %v4292
      %4294 = vmatprep.subr.mxu0 %v4293
      %v4295 = vand.u32 %v455, 4294901760
      %v4296 = vsub.f32 %v455, %v4295
      %4297 = vmatpush2.msra.mxu0 %v4296
      %v4298 = vand.u32 %v452, 4294901760
      %v4299 = vsub.f32 %v452, %v4298
      %4300 = vmatprep.subr.mxu0 %v4299
      %v4301 = vand.u32 %v451, 4294901760
      %v4302 = vsub.f32 %v451, %v4301
      %4303 = vmatpush2.msra.mxu0 %v4302
      %v4304 = vand.u32 %v258, 4294901760
      %v4305 = vsub.f32 %v258, %v4304
      %4306 = vmatprep.mubr.f32.mxu0 %v4305
      %v4307 = vand.u32 %v257, 4294901760
      %v4308 = vsub.f32 %v257, %v4307
      %4309 = vmatmul.mubr.f32.gmra.mxu0 %v4308
      %v4310 = vpop.f32.mrf.mxu0
      %v4311 = vadd.f32 %v4108, %v4310
      %v4312 = vpop.f32.mrf.mxu0
      %v4313 = vadd.f32 %v4110, %v4312
      %4314 = vdwg.mxu0
      %v4315 = vand.u32 %v448, 4294901760
      %4316 = vmatprep.subr.mxu0 %v4315
      %v4317 = vand.u32 %v447, 4294901760
      %4318 = vmatpush1.msra.mxu0 %v4317
      %v4319 = vand.u32 %v444, 4294901760
      %4320 = vmatprep.subr.mxu0 %v4319
      %v4321 = vand.u32 %v443, 4294901760
      %4322 = vmatpush1.msra.mxu0 %v4321
      %v4323 = vand.u32 %v440, 4294901760
      %4324 = vmatprep.subr.mxu0 %v4323
      %v4325 = vand.u32 %v439, 4294901760
      %4326 = vmatpush1.msra.mxu0 %v4325
      %v4327 = vand.u32 %v436, 4294901760
      %4328 = vmatprep.subr.mxu0 %v4327
      %v4329 = vand.u32 %v435, 4294901760
      %4330 = vmatpush1.msra.mxu0 %v4329
      %v4331 = vand.u32 %v432, 4294901760
      %4332 = vmatprep.subr.mxu0 %v4331
      %v4333 = vand.u32 %v431, 4294901760
      %4334 = vmatpush1.msra.mxu0 %v4333
      %v4335 = vand.u32 %v428, 4294901760
      %4336 = vmatprep.subr.mxu0 %v4335
      %v4337 = vand.u32 %v427, 4294901760
      %4338 = vmatpush1.msra.mxu0 %v4337
      %v4339 = vand.u32 %v424, 4294901760
      %4340 = vmatprep.subr.mxu0 %v4339
      %v4341 = vand.u32 %v423, 4294901760
      %4342 = vmatpush1.msra.mxu0 %v4341
      %v4343 = vand.u32 %v420, 4294901760
      %4344 = vmatprep.subr.mxu0 %v4343
      %v4345 = vand.u32 %v419, 4294901760
      %4346 = vmatpush1.msra.mxu0 %v4345
      %v4347 = vand.u32 %v416, 4294901760
      %4348 = vmatprep.subr.mxu0 %v4347
      %v4349 = vand.u32 %v415, 4294901760
      %4350 = vmatpush1.msra.mxu0 %v4349
      %v4351 = vand.u32 %v412, 4294901760
      %4352 = vmatprep.subr.mxu0 %v4351
      %v4353 = vand.u32 %v411, 4294901760
      %4354 = vmatpush1.msra.mxu0 %v4353
      %v4355 = vand.u32 %v408, 4294901760
      %4356 = vmatprep.subr.mxu0 %v4355
      %v4357 = vand.u32 %v407, 4294901760
      %4358 = vmatpush1.msra.mxu0 %v4357
      %v4359 = vand.u32 %v404, 4294901760
      %4360 = vmatprep.subr.mxu0 %v4359
      %v4361 = vand.u32 %v403, 4294901760
      %4362 = vmatpush1.msra.mxu0 %v4361
      %v4363 = vand.u32 %v400, 4294901760
      %4364 = vmatprep.subr.mxu0 %v4363
      %v4365 = vand.u32 %v399, 4294901760
      %4366 = vmatpush1.msra.mxu0 %v4365
      %v4367 = vand.u32 %v396, 4294901760
      %4368 = vmatprep.subr.mxu0 %v4367
      %v4369 = vand.u32 %v395, 4294901760
      %4370 = vmatpush1.msra.mxu0 %v4369
      %v4371 = vand.u32 %v392, 4294901760
      %4372 = vmatprep.subr.mxu0 %v4371
      %v4373 = vand.u32 %v391, 4294901760
      %4374 = vmatpush1.msra.mxu0 %v4373
      %v4375 = vand.u32 %v388, 4294901760
      %4376 = vmatprep.subr.mxu0 %v4375
      %v4377 = vand.u32 %v387, 4294901760
      %4378 = vmatpush1.msra.mxu0 %v4377
      %v4379 = vand.u32 %v512, 4294901760
      %4380 = vmatprep.subr.mxu0 %v4379
      %v4381 = vand.u32 %v511, 4294901760
      %4382 = vmatpush2.msra.mxu0 %v4381
      %v4383 = vand.u32 %v508, 4294901760
      %4384 = vmatprep.subr.mxu0 %v4383
      %v4385 = vand.u32 %v507, 4294901760
      %4386 = vmatpush2.msra.mxu0 %v4385
      %v4387 = vand.u32 %v504, 4294901760
      %4388 = vmatprep.subr.mxu0 %v4387
      %v4389 = vand.u32 %v503, 4294901760
      %4390 = vmatpush2.msra.mxu0 %v4389
      %v4391 = vand.u32 %v500, 4294901760
      %4392 = vmatprep.subr.mxu0 %v4391
      %v4393 = vand.u32 %v499, 4294901760
      %4394 = vmatpush2.msra.mxu0 %v4393
      %v4395 = vand.u32 %v496, 4294901760
      %4396 = vmatprep.subr.mxu0 %v4395
      %v4397 = vand.u32 %v495, 4294901760
      %4398 = vmatpush2.msra.mxu0 %v4397
      %v4399 = vand.u32 %v492, 4294901760
      %4400 = vmatprep.subr.mxu0 %v4399
      %v4401 = vand.u32 %v491, 4294901760
      %4402 = vmatpush2.msra.mxu0 %v4401
      %v4403 = vand.u32 %v488, 4294901760
      %4404 = vmatprep.subr.mxu0 %v4403
      %v4405 = vand.u32 %v487, 4294901760
      %4406 = vmatpush2.msra.mxu0 %v4405
      %v4407 = vand.u32 %v484, 4294901760
      %4408 = vmatprep.subr.mxu0 %v4407
      %v4409 = vand.u32 %v483, 4294901760
      %4410 = vmatpush2.msra.mxu0 %v4409
      %v4411 = vand.u32 %v480, 4294901760
      %4412 = vmatprep.subr.mxu0 %v4411
      %v4413 = vand.u32 %v479, 4294901760
      %4414 = vmatpush2.msra.mxu0 %v4413
      %v4415 = vand.u32 %v476, 4294901760
      %4416 = vmatprep.subr.mxu0 %v4415
      %v4417 = vand.u32 %v475, 4294901760
      %4418 = vmatpush2.msra.mxu0 %v4417
      %v4419 = vand.u32 %v472, 4294901760
      %4420 = vmatprep.subr.mxu0 %v4419
      %v4421 = vand.u32 %v471, 4294901760
      %4422 = vmatpush2.msra.mxu0 %v4421
      %v4423 = vand.u32 %v468, 4294901760
      %4424 = vmatprep.subr.mxu0 %v4423
      %v4425 = vand.u32 %v467, 4294901760
      %4426 = vmatpush2.msra.mxu0 %v4425
      %v4427 = vand.u32 %v464, 4294901760
      %4428 = vmatprep.subr.mxu0 %v4427
      %v4429 = vand.u32 %v463, 4294901760
      %4430 = vmatpush2.msra.mxu0 %v4429
      %v4431 = vand.u32 %v460, 4294901760
      %4432 = vmatprep.subr.mxu0 %v4431
      %v4433 = vand.u32 %v459, 4294901760
      %4434 = vmatpush2.msra.mxu0 %v4433
      %v4435 = vand.u32 %v456, 4294901760
      %4436 = vmatprep.subr.mxu0 %v4435
      %v4437 = vand.u32 %v455, 4294901760
      %4438 = vmatpush2.msra.mxu0 %v4437
      %v4439 = vand.u32 %v452, 4294901760
      %4440 = vmatprep.subr.mxu0 %v4439
      %v4441 = vand.u32 %v451, 4294901760
      %4442 = vmatpush2.msra.mxu0 %v4441
      %v4443 = vand.u32 %v258, 4294901760
      %v4444 = vsub.f32 %v258, %v4443
      %v4445 = vand.u32 %v4444, 4294901760
      %4446 = vmatprep.mubr.f32.mxu0 %v4445
      %v4447 = vand.u32 %v257, 4294901760
      %v4448 = vsub.f32 %v257, %v4447
      %v4449 = vand.u32 %v4448, 4294901760
      %4450 = vmatmul.mubr.f32.gmra.mxu0 %v4449
      %v4451 = vpop.f32.mrf.mxu0
      %v4452 = vadd.f32 %v4311, %v4451
      %v4453 = vpop.f32.mrf.mxu0
      %v4454 = vadd.f32 %v4313, %v4453
      %4455 = vdwg.mxu0
      %v4456 = vand.u32 %v448, 4294901760
      %v4457 = vsub.f32 %v448, %v4456
      %v4458 = vand.u32 %v4457, 4294901760
      %4459 = vmatprep.subr.mxu0 %v4458
      %v4460 = vand.u32 %v447, 4294901760
      %v4461 = vsub.f32 %v447, %v4460
      %v4462 = vand.u32 %v4461, 4294901760
      %4463 = vmatpush1.msra.mxu0 %v4462
      %v4464 = vand.u32 %v444, 4294901760
      %v4465 = vsub.f32 %v444, %v4464
      %v4466 = vand.u32 %v4465, 4294901760
      %4467 = vmatprep.subr.mxu0 %v4466
      %v4468 = vand.u32 %v443, 4294901760
      %v4469 = vsub.f32 %v443, %v4468
      %v4470 = vand.u32 %v4469, 4294901760
      %4471 = vmatpush1.msra.mxu0 %v4470
      %v4472 = vand.u32 %v440, 4294901760
      %v4473 = vsub.f32 %v440, %v4472
      %v4474 = vand.u32 %v4473, 4294901760
      %4475 = vmatprep.subr.mxu0 %v4474
      %v4476 = vand.u32 %v439, 4294901760
      %v4477 = vsub.f32 %v439, %v4476
      %v4478 = vand.u32 %v4477, 4294901760
      %4479 = vmatpush1.msra.mxu0 %v4478
      %v4480 = vand.u32 %v436, 4294901760
      %v4481 = vsub.f32 %v436, %v4480
      %v4482 = vand.u32 %v4481, 4294901760
      %4483 = vmatprep.subr.mxu0 %v4482
      %v4484 = vand.u32 %v435, 4294901760
      %v4485 = vsub.f32 %v435, %v4484
      %v4486 = vand.u32 %v4485, 4294901760
      %4487 = vmatpush1.msra.mxu0 %v4486
      %v4488 = vand.u32 %v432, 4294901760
      %v4489 = vsub.f32 %v432, %v4488
      %v4490 = vand.u32 %v4489, 4294901760
      %4491 = vmatprep.subr.mxu0 %v4490
      %v4492 = vand.u32 %v431, 4294901760
      %v4493 = vsub.f32 %v431, %v4492
      %v4494 = vand.u32 %v4493, 4294901760
      %4495 = vmatpush1.msra.mxu0 %v4494
      %v4496 = vand.u32 %v428, 4294901760
      %v4497 = vsub.f32 %v428, %v4496
      %v4498 = vand.u32 %v4497, 4294901760
      %4499 = vmatprep.subr.mxu0 %v4498
      %v4500 = vand.u32 %v427, 4294901760
      %v4501 = vsub.f32 %v427, %v4500
      %v4502 = vand.u32 %v4501, 4294901760
      %4503 = vmatpush1.msra.mxu0 %v4502
      %v4504 = vand.u32 %v424, 4294901760
      %v4505 = vsub.f32 %v424, %v4504
      %v4506 = vand.u32 %v4505, 4294901760
      %4507 = vmatprep.subr.mxu0 %v4506
      %v4508 = vand.u32 %v423, 4294901760
      %v4509 = vsub.f32 %v423, %v4508
      %v4510 = vand.u32 %v4509, 4294901760
      %4511 = vmatpush1.msra.mxu0 %v4510
      %v4512 = vand.u32 %v420, 4294901760
      %v4513 = vsub.f32 %v420, %v4512
      %v4514 = vand.u32 %v4513, 4294901760
      %4515 = vmatprep.subr.mxu0 %v4514
      %v4516 = vand.u32 %v419, 4294901760
      %v4517 = vsub.f32 %v419, %v4516
      %v4518 = vand.u32 %v4517, 4294901760
      %4519 = vmatpush1.msra.mxu0 %v4518
      %v4520 = vand.u32 %v416, 4294901760
      %v4521 = vsub.f32 %v416, %v4520
      %v4522 = vand.u32 %v4521, 4294901760
      %4523 = vmatprep.subr.mxu0 %v4522
      %v4524 = vand.u32 %v415, 4294901760
      %v4525 = vsub.f32 %v415, %v4524
      %v4526 = vand.u32 %v4525, 4294901760
      %4527 = vmatpush1.msra.mxu0 %v4526
      %v4528 = vand.u32 %v412, 4294901760
      %v4529 = vsub.f32 %v412, %v4528
      %v4530 = vand.u32 %v4529, 4294901760
      %4531 = vmatprep.subr.mxu0 %v4530
      %v4532 = vand.u32 %v411, 4294901760
      %v4533 = vsub.f32 %v411, %v4532
      %v4534 = vand.u32 %v4533, 4294901760
      %4535 = vmatpush1.msra.mxu0 %v4534
      %v4536 = vand.u32 %v408, 4294901760
      %v4537 = vsub.f32 %v408, %v4536
      %v4538 = vand.u32 %v4537, 4294901760
      %4539 = vmatprep.subr.mxu0 %v4538
      %v4540 = vand.u32 %v407, 4294901760
      %v4541 = vsub.f32 %v407, %v4540
      %v4542 = vand.u32 %v4541, 4294901760
      %4543 = vmatpush1.msra.mxu0 %v4542
      %v4544 = vand.u32 %v404, 4294901760
      %v4545 = vsub.f32 %v404, %v4544
      %v4546 = vand.u32 %v4545, 4294901760
      %4547 = vmatprep.subr.mxu0 %v4546
      %v4548 = vand.u32 %v403, 4294901760
      %v4549 = vsub.f32 %v403, %v4548
      %v4550 = vand.u32 %v4549, 4294901760
      %4551 = vmatpush1.msra.mxu0 %v4550
      %v4552 = vand.u32 %v400, 4294901760
      %v4553 = vsub.f32 %v400, %v4552
      %v4554 = vand.u32 %v4553, 4294901760
      %4555 = vmatprep.subr.mxu0 %v4554
      %v4556 = vand.u32 %v399, 4294901760
      %v4557 = vsub.f32 %v399, %v4556
      %v4558 = vand.u32 %v4557, 4294901760
      %4559 = vmatpush1.msra.mxu0 %v4558
      %v4560 = vand.u32 %v396, 4294901760
      %v4561 = vsub.f32 %v396, %v4560
      %v4562 = vand.u32 %v4561, 4294901760
      %4563 = vmatprep.subr.mxu0 %v4562
      %v4564 = vand.u32 %v395, 4294901760
      %v4565 = vsub.f32 %v395, %v4564
      %v4566 = vand.u32 %v4565, 4294901760
      %4567 = vmatpush1.msra.mxu0 %v4566
      %v4568 = vand.u32 %v392, 4294901760
      %v4569 = vsub.f32 %v392, %v4568
      %v4570 = vand.u32 %v4569, 4294901760
      %4571 = vmatprep.subr.mxu0 %v4570
      %v4572 = vand.u32 %v391, 4294901760
      %v4573 = vsub.f32 %v391, %v4572
      %v4574 = vand.u32 %v4573, 4294901760
      %4575 = vmatpush1.msra.mxu0 %v4574
      %v4576 = vand.u32 %v388, 4294901760
      %v4577 = vsub.f32 %v388, %v4576
      %v4578 = vand.u32 %v4577, 4294901760
      %4579 = vmatprep.subr.mxu0 %v4578
      %v4580 = vand.u32 %v387, 4294901760
      %v4581 = vsub.f32 %v387, %v4580
      %v4582 = vand.u32 %v4581, 4294901760
      %4583 = vmatpush1.msra.mxu0 %v4582
      %v4584 = vand.u32 %v512, 4294901760
      %v4585 = vsub.f32 %v512, %v4584
      %v4586 = vand.u32 %v4585, 4294901760
      %4587 = vmatprep.subr.mxu0 %v4586
      %v4588 = vand.u32 %v511, 4294901760
      %v4589 = vsub.f32 %v511, %v4588
      %v4590 = vand.u32 %v4589, 4294901760
      %4591 = vmatpush2.msra.mxu0 %v4590
      %v4592 = vand.u32 %v508, 4294901760
      %v4593 = vsub.f32 %v508, %v4592
      %v4594 = vand.u32 %v4593, 4294901760
      %4595 = vmatprep.subr.mxu0 %v4594
      %v4596 = vand.u32 %v507, 4294901760
      %v4597 = vsub.f32 %v507, %v4596
      %v4598 = vand.u32 %v4597, 4294901760
      %4599 = vmatpush2.msra.mxu0 %v4598
      %v4600 = vand.u32 %v504, 4294901760
      %v4601 = vsub.f32 %v504, %v4600
      %v4602 = vand.u32 %v4601, 4294901760
      %4603 = vmatprep.subr.mxu0 %v4602
      %v4604 = vand.u32 %v503, 4294901760
      %v4605 = vsub.f32 %v503, %v4604
      %v4606 = vand.u32 %v4605, 4294901760
      %4607 = vmatpush2.msra.mxu0 %v4606
      %v4608 = vand.u32 %v500, 4294901760
      %v4609 = vsub.f32 %v500, %v4608
      %v4610 = vand.u32 %v4609, 4294901760
      %4611 = vmatprep.subr.mxu0 %v4610
      %v4612 = vand.u32 %v499, 4294901760
      %v4613 = vsub.f32 %v499, %v4612
      %v4614 = vand.u32 %v4613, 4294901760
      %4615 = vmatpush2.msra.mxu0 %v4614
      %v4616 = vand.u32 %v496, 4294901760
      %v4617 = vsub.f32 %v496, %v4616
      %v4618 = vand.u32 %v4617, 4294901760
      %4619 = vmatprep.subr.mxu0 %v4618
      %v4620 = vand.u32 %v495, 4294901760
      %v4621 = vsub.f32 %v495, %v4620
      %v4622 = vand.u32 %v4621, 4294901760
      %4623 = vmatpush2.msra.mxu0 %v4622
      %v4624 = vand.u32 %v492, 4294901760
      %v4625 = vsub.f32 %v492, %v4624
      %v4626 = vand.u32 %v4625, 4294901760
      %4627 = vmatprep.subr.mxu0 %v4626
      %v4628 = vand.u32 %v491, 4294901760
      %v4629 = vsub.f32 %v491, %v4628
      %v4630 = vand.u32 %v4629, 4294901760
      %4631 = vmatpush2.msra.mxu0 %v4630
      %v4632 = vand.u32 %v488, 4294901760
      %v4633 = vsub.f32 %v488, %v4632
      %v4634 = vand.u32 %v4633, 4294901760
      %4635 = vmatprep.subr.mxu0 %v4634
      %v4636 = vand.u32 %v487, 4294901760
      %v4637 = vsub.f32 %v487, %v4636
      %v4638 = vand.u32 %v4637, 4294901760
      %4639 = vmatpush2.msra.mxu0 %v4638
      %v4640 = vand.u32 %v484, 4294901760
      %v4641 = vsub.f32 %v484, %v4640
      %v4642 = vand.u32 %v4641, 4294901760
      %4643 = vmatprep.subr.mxu0 %v4642
      %v4644 = vand.u32 %v483, 4294901760
      %v4645 = vsub.f32 %v483, %v4644
      %v4646 = vand.u32 %v4645, 4294901760
      %4647 = vmatpush2.msra.mxu0 %v4646
      %v4648 = vand.u32 %v480, 4294901760
      %v4649 = vsub.f32 %v480, %v4648
      %v4650 = vand.u32 %v4649, 4294901760
      %4651 = vmatprep.subr.mxu0 %v4650
      %v4652 = vand.u32 %v479, 4294901760
      %v4653 = vsub.f32 %v479, %v4652
      %v4654 = vand.u32 %v4653, 4294901760
      %4655 = vmatpush2.msra.mxu0 %v4654
      %v4656 = vand.u32 %v476, 4294901760
      %v4657 = vsub.f32 %v476, %v4656
      %v4658 = vand.u32 %v4657, 4294901760
      %4659 = vmatprep.subr.mxu0 %v4658
      %v4660 = vand.u32 %v475, 4294901760
      %v4661 = vsub.f32 %v475, %v4660
      %v4662 = vand.u32 %v4661, 4294901760
      %4663 = vmatpush2.msra.mxu0 %v4662
      %v4664 = vand.u32 %v472, 4294901760
      %v4665 = vsub.f32 %v472, %v4664
      %v4666 = vand.u32 %v4665, 4294901760
      %4667 = vmatprep.subr.mxu0 %v4666
      %v4668 = vand.u32 %v471, 4294901760
      %v4669 = vsub.f32 %v471, %v4668
      %v4670 = vand.u32 %v4669, 4294901760
      %4671 = vmatpush2.msra.mxu0 %v4670
      %v4672 = vand.u32 %v468, 4294901760
      %v4673 = vsub.f32 %v468, %v4672
      %v4674 = vand.u32 %v4673, 4294901760
      %4675 = vmatprep.subr.mxu0 %v4674
      %v4676 = vand.u32 %v467, 4294901760
      %v4677 = vsub.f32 %v467, %v4676
      %v4678 = vand.u32 %v4677, 4294901760
      %4679 = vmatpush2.msra.mxu0 %v4678
      %v4680 = vand.u32 %v464, 4294901760
      %v4681 = vsub.f32 %v464, %v4680
      %v4682 = vand.u32 %v4681, 4294901760
      %4683 = vmatprep.subr.mxu0 %v4682
      %v4684 = vand.u32 %v463, 4294901760
      %v4685 = vsub.f32 %v463, %v4684
      %v4686 = vand.u32 %v4685, 4294901760
      %4687 = vmatpush2.msra.mxu0 %v4686
      %v4688 = vand.u32 %v460, 4294901760
      %v4689 = vsub.f32 %v460, %v4688
      %v4690 = vand.u32 %v4689, 4294901760
      %4691 = vmatprep.subr.mxu0 %v4690
      %v4692 = vand.u32 %v459, 4294901760
      %v4693 = vsub.f32 %v459, %v4692
      %v4694 = vand.u32 %v4693, 4294901760
      %4695 = vmatpush2.msra.mxu0 %v4694
      %v4696 = vand.u32 %v456, 4294901760
      %v4697 = vsub.f32 %v456, %v4696
      %v4698 = vand.u32 %v4697, 4294901760
      %4699 = vmatprep.subr.mxu0 %v4698
      %v4700 = vand.u32 %v455, 4294901760
      %v4701 = vsub.f32 %v455, %v4700
      %v4702 = vand.u32 %v4701, 4294901760
      %4703 = vmatpush2.msra.mxu0 %v4702
      %v4704 = vand.u32 %v452, 4294901760
      %v4705 = vsub.f32 %v452, %v4704
      %v4706 = vand.u32 %v4705, 4294901760
      %4707 = vmatprep.subr.mxu0 %v4706
      %v4708 = vand.u32 %v451, 4294901760
      %v4709 = vsub.f32 %v451, %v4708
      %v4710 = vand.u32 %v4709, 4294901760
      %4711 = vmatpush2.msra.mxu0 %v4710
      %v4712 = vand.u32 %v258, 4294901760
      %4713 = vmatprep.mubr.f32.mxu0 %v4712
      %v4714 = vand.u32 %v257, 4294901760
      %4715 = vmatmul.mubr.f32.gmra.mxu0 %v4714
      %v4716 = vpop.f32.mrf.mxu0
      %v4717 = vadd.f32 %v4452, %v4716
      %v4718 = vpop.f32.mrf.mxu0
      %v4719 = vadd.f32 %v4454, %v4718
      %4720 = vdwg.mxu0
      %v4721 = vand.u32 %v448, 4294901760
      %4722 = vmatprep.subr.mxu0 %v4721
      %v4723 = vand.u32 %v447, 4294901760
      %4724 = vmatpush1.msra.mxu0 %v4723
      %v4725 = vand.u32 %v444, 4294901760
      %4726 = vmatprep.subr.mxu0 %v4725
      %v4727 = vand.u32 %v443, 4294901760
      %4728 = vmatpush1.msra.mxu0 %v4727
      %v4729 = vand.u32 %v440, 4294901760
      %4730 = vmatprep.subr.mxu0 %v4729
      %v4731 = vand.u32 %v439, 4294901760
      %4732 = vmatpush1.msra.mxu0 %v4731
      %v4733 = vand.u32 %v436, 4294901760
      %4734 = vmatprep.subr.mxu0 %v4733
      %v4735 = vand.u32 %v435, 4294901760
      %4736 = vmatpush1.msra.mxu0 %v4735
      %v4737 = vand.u32 %v432, 4294901760
      %4738 = vmatprep.subr.mxu0 %v4737
      %v4739 = vand.u32 %v431, 4294901760
      %4740 = vmatpush1.msra.mxu0 %v4739
      %v4741 = vand.u32 %v428, 4294901760
      %4742 = vmatprep.subr.mxu0 %v4741
      %v4743 = vand.u32 %v427, 4294901760
      %4744 = vmatpush1.msra.mxu0 %v4743
      %v4745 = vand.u32 %v424, 4294901760
      %4746 = vmatprep.subr.mxu0 %v4745
      %v4747 = vand.u32 %v423, 4294901760
      %4748 = vmatpush1.msra.mxu0 %v4747
      %v4749 = vand.u32 %v420, 4294901760
      %4750 = vmatprep.subr.mxu0 %v4749
      %v4751 = vand.u32 %v419, 4294901760
      %4752 = vmatpush1.msra.mxu0 %v4751
      %v4753 = vand.u32 %v416, 4294901760
      %4754 = vmatprep.subr.mxu0 %v4753
      %v4755 = vand.u32 %v415, 4294901760
      %4756 = vmatpush1.msra.mxu0 %v4755
      %v4757 = vand.u32 %v412, 4294901760
      %4758 = vmatprep.subr.mxu0 %v4757
      %v4759 = vand.u32 %v411, 4294901760
      %4760 = vmatpush1.msra.mxu0 %v4759
      %v4761 = vand.u32 %v408, 4294901760
      %4762 = vmatprep.subr.mxu0 %v4761
      %v4763 = vand.u32 %v407, 4294901760
      %4764 = vmatpush1.msra.mxu0 %v4763
      %v4765 = vand.u32 %v404, 4294901760
      %4766 = vmatprep.subr.mxu0 %v4765
      %v4767 = vand.u32 %v403, 4294901760
      %4768 = vmatpush1.msra.mxu0 %v4767
      %v4769 = vand.u32 %v400, 4294901760
      %4770 = vmatprep.subr.mxu0 %v4769
      %v4771 = vand.u32 %v399, 4294901760
      %4772 = vmatpush1.msra.mxu0 %v4771
      %v4773 = vand.u32 %v396, 4294901760
      %4774 = vmatprep.subr.mxu0 %v4773
      %v4775 = vand.u32 %v395, 4294901760
      %4776 = vmatpush1.msra.mxu0 %v4775
      %v4777 = vand.u32 %v392, 4294901760
      %4778 = vmatprep.subr.mxu0 %v4777
      %v4779 = vand.u32 %v391, 4294901760
      %4780 = vmatpush1.msra.mxu0 %v4779
      %v4781 = vand.u32 %v388, 4294901760
      %4782 = vmatprep.subr.mxu0 %v4781
      %v4783 = vand.u32 %v387, 4294901760
      %4784 = vmatpush1.msra.mxu0 %v4783
      %v4785 = vand.u32 %v512, 4294901760
      %4786 = vmatprep.subr.mxu0 %v4785
      %v4787 = vand.u32 %v511, 4294901760
      %4788 = vmatpush2.msra.mxu0 %v4787
      %v4789 = vand.u32 %v508, 4294901760
      %4790 = vmatprep.subr.mxu0 %v4789
      %v4791 = vand.u32 %v507, 4294901760
      %4792 = vmatpush2.msra.mxu0 %v4791
      %v4793 = vand.u32 %v504, 4294901760
      %4794 = vmatprep.subr.mxu0 %v4793
      %v4795 = vand.u32 %v503, 4294901760
      %4796 = vmatpush2.msra.mxu0 %v4795
      %v4797 = vand.u32 %v500, 4294901760
      %4798 = vmatprep.subr.mxu0 %v4797
      %v4799 = vand.u32 %v499, 4294901760
      %4800 = vmatpush2.msra.mxu0 %v4799
      %v4801 = vand.u32 %v496, 4294901760
      %4802 = vmatprep.subr.mxu0 %v4801
      %v4803 = vand.u32 %v495, 4294901760
      %4804 = vmatpush2.msra.mxu0 %v4803
      %v4805 = vand.u32 %v492, 4294901760
      %4806 = vmatprep.subr.mxu0 %v4805
      %v4807 = vand.u32 %v491, 4294901760
      %4808 = vmatpush2.msra.mxu0 %v4807
      %v4809 = vand.u32 %v488, 4294901760
      %4810 = vmatprep.subr.mxu0 %v4809
      %v4811 = vand.u32 %v487, 4294901760
      %4812 = vmatpush2.msra.mxu0 %v4811
      %v4813 = vand.u32 %v484, 4294901760
      %4814 = vmatprep.subr.mxu0 %v4813
      %v4815 = vand.u32 %v483, 4294901760
      %4816 = vmatpush2.msra.mxu0 %v4815
      %v4817 = vand.u32 %v480, 4294901760
      %4818 = vmatprep.subr.mxu0 %v4817
      %v4819 = vand.u32 %v479, 4294901760
      %4820 = vmatpush2.msra.mxu0 %v4819
      %v4821 = vand.u32 %v476, 4294901760
      %4822 = vmatprep.subr.mxu0 %v4821
      %v4823 = vand.u32 %v475, 4294901760
      %4824 = vmatpush2.msra.mxu0 %v4823
      %v4825 = vand.u32 %v472, 4294901760
      %4826 = vmatprep.subr.mxu0 %v4825
      %v4827 = vand.u32 %v471, 4294901760
      %4828 = vmatpush2.msra.mxu0 %v4827
      %v4829 = vand.u32 %v468, 4294901760
      %4830 = vmatprep.subr.mxu0 %v4829
      %v4831 = vand.u32 %v467, 4294901760
      %4832 = vmatpush2.msra.mxu0 %v4831
      %v4833 = vand.u32 %v464, 4294901760
      %4834 = vmatprep.subr.mxu0 %v4833
      %v4835 = vand.u32 %v463, 4294901760
      %4836 = vmatpush2.msra.mxu0 %v4835
      %v4837 = vand.u32 %v460, 4294901760
      %4838 = vmatprep.subr.mxu0 %v4837
      %v4839 = vand.u32 %v459, 4294901760
      %4840 = vmatpush2.msra.mxu0 %v4839
      %v4841 = vand.u32 %v456, 4294901760
      %4842 = vmatprep.subr.mxu0 %v4841
      %v4843 = vand.u32 %v455, 4294901760
      %4844 = vmatpush2.msra.mxu0 %v4843
      %v4845 = vand.u32 %v452, 4294901760
      %4846 = vmatprep.subr.mxu0 %v4845
      %v4847 = vand.u32 %v451, 4294901760
      %4848 = vmatpush2.msra.mxu0 %v4847
      %v4849 = vand.u32 %v258, 4294901760
      %4850 = vmatprep.mubr.f32.mxu0 %v4849
      %v4851 = vand.u32 %v257, 4294901760
      %4852 = vmatmul.mubr.f32.gmra.mxu0 %v4851
      %v4853 = vpop.f32.mrf.mxu0
      %v4854 = vadd.f32 %v4717, %v4853
      %v4855 = vpop.f32.mrf.mxu0
      %v4856 = vadd.f32 %v4719, %v4855
      %4857 = vdwg.mxu0
      %v4858 = vand.u32 %v322, 4294901760
      %4859 = vmatprep.subr.mxu0 %v4858
      %v4860 = vand.u32 %v321, 4294901760
      %4861 = vmatpush1.msra.mxu0 %v4860
      %v4862 = vand.u32 %v318, 4294901760
      %4863 = vmatprep.subr.mxu0 %v4862
      %v4864 = vand.u32 %v317, 4294901760
      %4865 = vmatpush1.msra.mxu0 %v4864
      %v4866 = vand.u32 %v314, 4294901760
      %4867 = vmatprep.subr.mxu0 %v4866
      %v4868 = vand.u32 %v313, 4294901760
      %4869 = vmatpush1.msra.mxu0 %v4868
      %v4870 = vand.u32 %v310, 4294901760
      %4871 = vmatprep.subr.mxu0 %v4870
      %v4872 = vand.u32 %v309, 4294901760
      %4873 = vmatpush1.msra.mxu0 %v4872
      %v4874 = vand.u32 %v306, 4294901760
      %4875 = vmatprep.subr.mxu0 %v4874
      %v4876 = vand.u32 %v305, 4294901760
      %4877 = vmatpush1.msra.mxu0 %v4876
      %v4878 = vand.u32 %v302, 4294901760
      %4879 = vmatprep.subr.mxu0 %v4878
      %v4880 = vand.u32 %v301, 4294901760
      %4881 = vmatpush1.msra.mxu0 %v4880
      %v4882 = vand.u32 %v298, 4294901760
      %4883 = vmatprep.subr.mxu0 %v4882
      %v4884 = vand.u32 %v297, 4294901760
      %4885 = vmatpush1.msra.mxu0 %v4884
      %v4886 = vand.u32 %v294, 4294901760
      %4887 = vmatprep.subr.mxu0 %v4886
      %v4888 = vand.u32 %v293, 4294901760
      %4889 = vmatpush1.msra.mxu0 %v4888
      %v4890 = vand.u32 %v290, 4294901760
      %4891 = vmatprep.subr.mxu0 %v4890
      %v4892 = vand.u32 %v289, 4294901760
      %4893 = vmatpush1.msra.mxu0 %v4892
      %v4894 = vand.u32 %v286, 4294901760
      %4895 = vmatprep.subr.mxu0 %v4894
      %v4896 = vand.u32 %v285, 4294901760
      %4897 = vmatpush1.msra.mxu0 %v4896
      %v4898 = vand.u32 %v282, 4294901760
      %4899 = vmatprep.subr.mxu0 %v4898
      %v4900 = vand.u32 %v281, 4294901760
      %4901 = vmatpush1.msra.mxu0 %v4900
      %v4902 = vand.u32 %v278, 4294901760
      %4903 = vmatprep.subr.mxu0 %v4902
      %v4904 = vand.u32 %v277, 4294901760
      %4905 = vmatpush1.msra.mxu0 %v4904
      %v4906 = vand.u32 %v274, 4294901760
      %4907 = vmatprep.subr.mxu0 %v4906
      %v4908 = vand.u32 %v273, 4294901760
      %4909 = vmatpush1.msra.mxu0 %v4908
      %v4910 = vand.u32 %v270, 4294901760
      %4911 = vmatprep.subr.mxu0 %v4910
      %v4912 = vand.u32 %v269, 4294901760
      %4913 = vmatpush1.msra.mxu0 %v4912
      %v4914 = vand.u32 %v266, 4294901760
      %4915 = vmatprep.subr.mxu0 %v4914
      %v4916 = vand.u32 %v265, 4294901760
      %4917 = vmatpush1.msra.mxu0 %v4916
      %v4918 = vand.u32 %v262, 4294901760
      %4919 = vmatprep.subr.mxu0 %v4918
      %v4920 = vand.u32 %v261, 4294901760
      %4921 = vmatpush1.msra.mxu0 %v4920
      %v4922 = vand.u32 %v386, 4294901760
      %4923 = vmatprep.subr.mxu0 %v4922
      %v4924 = vand.u32 %v385, 4294901760
      %4925 = vmatpush2.msra.mxu0 %v4924
      %v4926 = vand.u32 %v382, 4294901760
      %4927 = vmatprep.subr.mxu0 %v4926
      %v4928 = vand.u32 %v381, 4294901760
      %4929 = vmatpush2.msra.mxu0 %v4928
      %v4930 = vand.u32 %v378, 4294901760
      %4931 = vmatprep.subr.mxu0 %v4930
      %v4932 = vand.u32 %v377, 4294901760
      %4933 = vmatpush2.msra.mxu0 %v4932
      %v4934 = vand.u32 %v374, 4294901760
      %4935 = vmatprep.subr.mxu0 %v4934
      %v4936 = vand.u32 %v373, 4294901760
      %4937 = vmatpush2.msra.mxu0 %v4936
      %v4938 = vand.u32 %v370, 4294901760
      %4939 = vmatprep.subr.mxu0 %v4938
      %v4940 = vand.u32 %v369, 4294901760
      %4941 = vmatpush2.msra.mxu0 %v4940
      %v4942 = vand.u32 %v366, 4294901760
      %4943 = vmatprep.subr.mxu0 %v4942
      %v4944 = vand.u32 %v365, 4294901760
      %4945 = vmatpush2.msra.mxu0 %v4944
      %v4946 = vand.u32 %v362, 4294901760
      %4947 = vmatprep.subr.mxu0 %v4946
      %v4948 = vand.u32 %v361, 4294901760
      %4949 = vmatpush2.msra.mxu0 %v4948
      %v4950 = vand.u32 %v358, 4294901760
      %4951 = vmatprep.subr.mxu0 %v4950
      %v4952 = vand.u32 %v357, 4294901760
      %4953 = vmatpush2.msra.mxu0 %v4952
      %v4954 = vand.u32 %v354, 4294901760
      %4955 = vmatprep.subr.mxu0 %v4954
      %v4956 = vand.u32 %v353, 4294901760
      %4957 = vmatpush2.msra.mxu0 %v4956
      %v4958 = vand.u32 %v350, 4294901760
      %4959 = vmatprep.subr.mxu0 %v4958
      %v4960 = vand.u32 %v349, 4294901760
      %4961 = vmatpush2.msra.mxu0 %v4960
      %v4962 = vand.u32 %v346, 4294901760
      %4963 = vmatprep.subr.mxu0 %v4962
      %v4964 = vand.u32 %v345, 4294901760
      %4965 = vmatpush2.msra.mxu0 %v4964
      %v4966 = vand.u32 %v342, 4294901760
      %4967 = vmatprep.subr.mxu0 %v4966
      %v4968 = vand.u32 %v341, 4294901760
      %4969 = vmatpush2.msra.mxu0 %v4968
      %v4970 = vand.u32 %v338, 4294901760
      %4971 = vmatprep.subr.mxu0 %v4970
      %v4972 = vand.u32 %v337, 4294901760
      %4973 = vmatpush2.msra.mxu0 %v4972
      %v4974 = vand.u32 %v334, 4294901760
      %4975 = vmatprep.subr.mxu0 %v4974
      %v4976 = vand.u32 %v333, 4294901760
      %4977 = vmatpush2.msra.mxu0 %v4976
      %v4978 = vand.u32 %v330, 4294901760
      %4979 = vmatprep.subr.mxu0 %v4978
      %v4980 = vand.u32 %v329, 4294901760
      %4981 = vmatpush2.msra.mxu0 %v4980
      %v4982 = vand.u32 %v326, 4294901760
      %4983 = vmatprep.subr.mxu0 %v4982
      %v4984 = vand.u32 %v325, 4294901760
      %4985 = vmatpush2.msra.mxu0 %v4984
      %v4986 = vand.u32 %v256, 4294901760
      %v4987 = vsub.f32 %v256, %v4986
      %v4988 = vand.u32 %v4987, 4294901760
      %v4989 = vsub.f32 %v4987, %v4988
      %v4990 = vand.u32 %v4989, 4294901760
      %4991 = vmatprep.mubr.f32.mxu0 %v4990
      %v4992 = vand.u32 %v255, 4294901760
      %v4993 = vsub.f32 %v255, %v4992
      %v4994 = vand.u32 %v4993, 4294901760
      %v4995 = vsub.f32 %v4993, %v4994
      %v4996 = vand.u32 %v4995, 4294901760
      %4997 = vmatmul.mubr.f32.gmra.mxu0 %v4996
      %v4998 = vpop.f32.mrf.mxu0
      %v4999 = vadd.f32 %v2286, %v4998
      %v5000 = vpop.f32.mrf.mxu0
      %v5001 = vadd.f32 %v2288, %v5000
      %5002 = vdwg.mxu0
      %v5003 = vand.u32 %v322, 4294901760
      %v5004 = vsub.f32 %v322, %v5003
      %v5005 = vand.u32 %v5004, 4294901760
      %v5006 = vsub.f32 %v5004, %v5005
      %v5007 = vand.u32 %v5006, 4294901760
      %5008 = vmatprep.subr.mxu0 %v5007
      %v5009 = vand.u32 %v321, 4294901760
      %v5010 = vsub.f32 %v321, %v5009
      %v5011 = vand.u32 %v5010, 4294901760
      %v5012 = vsub.f32 %v5010, %v5011
      %v5013 = vand.u32 %v5012, 4294901760
      %5014 = vmatpush1.msra.mxu0 %v5013
      %v5015 = vand.u32 %v318, 4294901760
      %v5016 = vsub.f32 %v318, %v5015
      %v5017 = vand.u32 %v5016, 4294901760
      %v5018 = vsub.f32 %v5016, %v5017
      %v5019 = vand.u32 %v5018, 4294901760
      %5020 = vmatprep.subr.mxu0 %v5019
      %v5021 = vand.u32 %v317, 4294901760
      %v5022 = vsub.f32 %v317, %v5021
      %v5023 = vand.u32 %v5022, 4294901760
      %v5024 = vsub.f32 %v5022, %v5023
      %v5025 = vand.u32 %v5024, 4294901760
      %5026 = vmatpush1.msra.mxu0 %v5025
      %v5027 = vand.u32 %v314, 4294901760
      %v5028 = vsub.f32 %v314, %v5027
      %v5029 = vand.u32 %v5028, 4294901760
      %v5030 = vsub.f32 %v5028, %v5029
      %v5031 = vand.u32 %v5030, 4294901760
      %5032 = vmatprep.subr.mxu0 %v5031
      %v5033 = vand.u32 %v313, 4294901760
      %v5034 = vsub.f32 %v313, %v5033
      %v5035 = vand.u32 %v5034, 4294901760
      %v5036 = vsub.f32 %v5034, %v5035
      %v5037 = vand.u32 %v5036, 4294901760
      %5038 = vmatpush1.msra.mxu0 %v5037
      %v5039 = vand.u32 %v310, 4294901760
      %v5040 = vsub.f32 %v310, %v5039
      %v5041 = vand.u32 %v5040, 4294901760
      %v5042 = vsub.f32 %v5040, %v5041
      %v5043 = vand.u32 %v5042, 4294901760
      %5044 = vmatprep.subr.mxu0 %v5043
      %v5045 = vand.u32 %v309, 4294901760
      %v5046 = vsub.f32 %v309, %v5045
      %v5047 = vand.u32 %v5046, 4294901760
      %v5048 = vsub.f32 %v5046, %v5047
      %v5049 = vand.u32 %v5048, 4294901760
      %5050 = vmatpush1.msra.mxu0 %v5049
      %v5051 = vand.u32 %v306, 4294901760
      %v5052 = vsub.f32 %v306, %v5051
      %v5053 = vand.u32 %v5052, 4294901760
      %v5054 = vsub.f32 %v5052, %v5053
      %v5055 = vand.u32 %v5054, 4294901760
      %5056 = vmatprep.subr.mxu0 %v5055
      %v5057 = vand.u32 %v305, 4294901760
      %v5058 = vsub.f32 %v305, %v5057
      %v5059 = vand.u32 %v5058, 4294901760
      %v5060 = vsub.f32 %v5058, %v5059
      %v5061 = vand.u32 %v5060, 4294901760
      %5062 = vmatpush1.msra.mxu0 %v5061
      %v5063 = vand.u32 %v302, 4294901760
      %v5064 = vsub.f32 %v302, %v5063
      %v5065 = vand.u32 %v5064, 4294901760
      %v5066 = vsub.f32 %v5064, %v5065
      %v5067 = vand.u32 %v5066, 4294901760
      %5068 = vmatprep.subr.mxu0 %v5067
      %v5069 = vand.u32 %v301, 4294901760
      %v5070 = vsub.f32 %v301, %v5069
      %v5071 = vand.u32 %v5070, 4294901760
      %v5072 = vsub.f32 %v5070, %v5071
      %v5073 = vand.u32 %v5072, 4294901760
      %5074 = vmatpush1.msra.mxu0 %v5073
      %v5075 = vand.u32 %v298, 4294901760
      %v5076 = vsub.f32 %v298, %v5075
      %v5077 = vand.u32 %v5076, 4294901760
      %v5078 = vsub.f32 %v5076, %v5077
      %v5079 = vand.u32 %v5078, 4294901760
      %5080 = vmatprep.subr.mxu0 %v5079
      %v5081 = vand.u32 %v297, 4294901760
      %v5082 = vsub.f32 %v297, %v5081
      %v5083 = vand.u32 %v5082, 4294901760
      %v5084 = vsub.f32 %v5082, %v5083
      %v5085 = vand.u32 %v5084, 4294901760
      %5086 = vmatpush1.msra.mxu0 %v5085
      %v5087 = vand.u32 %v294, 4294901760
      %v5088 = vsub.f32 %v294, %v5087
      %v5089 = vand.u32 %v5088, 4294901760
      %v5090 = vsub.f32 %v5088, %v5089
      %v5091 = vand.u32 %v5090, 4294901760
      %5092 = vmatprep.subr.mxu0 %v5091
      %v5093 = vand.u32 %v293, 4294901760
      %v5094 = vsub.f32 %v293, %v5093
      %v5095 = vand.u32 %v5094, 4294901760
      %v5096 = vsub.f32 %v5094, %v5095
      %v5097 = vand.u32 %v5096, 4294901760
      %5098 = vmatpush1.msra.mxu0 %v5097
      %v5099 = vand.u32 %v290, 4294901760
      %v5100 = vsub.f32 %v290, %v5099
      %v5101 = vand.u32 %v5100, 4294901760
      %v5102 = vsub.f32 %v5100, %v5101
      %v5103 = vand.u32 %v5102, 4294901760
      %5104 = vmatprep.subr.mxu0 %v5103
      %v5105 = vand.u32 %v289, 4294901760
      %v5106 = vsub.f32 %v289, %v5105
      %v5107 = vand.u32 %v5106, 4294901760
      %v5108 = vsub.f32 %v5106, %v5107
      %v5109 = vand.u32 %v5108, 4294901760
      %5110 = vmatpush1.msra.mxu0 %v5109
      %v5111 = vand.u32 %v286, 4294901760
      %v5112 = vsub.f32 %v286, %v5111
      %v5113 = vand.u32 %v5112, 4294901760
      %v5114 = vsub.f32 %v5112, %v5113
      %v5115 = vand.u32 %v5114, 4294901760
      %5116 = vmatprep.subr.mxu0 %v5115
      %v5117 = vand.u32 %v285, 4294901760
      %v5118 = vsub.f32 %v285, %v5117
      %v5119 = vand.u32 %v5118, 4294901760
      %v5120 = vsub.f32 %v5118, %v5119
      %v5121 = vand.u32 %v5120, 4294901760
      %5122 = vmatpush1.msra.mxu0 %v5121
      %v5123 = vand.u32 %v282, 4294901760
      %v5124 = vsub.f32 %v282, %v5123
      %v5125 = vand.u32 %v5124, 4294901760
      %v5126 = vsub.f32 %v5124, %v5125
      %v5127 = vand.u32 %v5126, 4294901760
      %5128 = vmatprep.subr.mxu0 %v5127
      %v5129 = vand.u32 %v281, 4294901760
      %v5130 = vsub.f32 %v281, %v5129
      %v5131 = vand.u32 %v5130, 4294901760
      %v5132 = vsub.f32 %v5130, %v5131
      %v5133 = vand.u32 %v5132, 4294901760
      %5134 = vmatpush1.msra.mxu0 %v5133
      %v5135 = vand.u32 %v278, 4294901760
      %v5136 = vsub.f32 %v278, %v5135
      %v5137 = vand.u32 %v5136, 4294901760
      %v5138 = vsub.f32 %v5136, %v5137
      %v5139 = vand.u32 %v5138, 4294901760
      %5140 = vmatprep.subr.mxu0 %v5139
      %v5141 = vand.u32 %v277, 4294901760
      %v5142 = vsub.f32 %v277, %v5141
      %v5143 = vand.u32 %v5142, 4294901760
      %v5144 = vsub.f32 %v5142, %v5143
      %v5145 = vand.u32 %v5144, 4294901760
      %5146 = vmatpush1.msra.mxu0 %v5145
      %v5147 = vand.u32 %v274, 4294901760
      %v5148 = vsub.f32 %v274, %v5147
      %v5149 = vand.u32 %v5148, 4294901760
      %v5150 = vsub.f32 %v5148, %v5149
      %v5151 = vand.u32 %v5150, 4294901760
      %5152 = vmatprep.subr.mxu0 %v5151
      %v5153 = vand.u32 %v273, 4294901760
      %v5154 = vsub.f32 %v273, %v5153
      %v5155 = vand.u32 %v5154, 4294901760
      %v5156 = vsub.f32 %v5154, %v5155
      %v5157 = vand.u32 %v5156, 4294901760
      %5158 = vmatpush1.msra.mxu0 %v5157
      %v5159 = vand.u32 %v270, 4294901760
      %v5160 = vsub.f32 %v270, %v5159
      %v5161 = vand.u32 %v5160, 4294901760
      %v5162 = vsub.f32 %v5160, %v5161
      %v5163 = vand.u32 %v5162, 4294901760
      %5164 = vmatprep.subr.mxu0 %v5163
      %v5165 = vand.u32 %v269, 4294901760
      %v5166 = vsub.f32 %v269, %v5165
      %v5167 = vand.u32 %v5166, 4294901760
      %v5168 = vsub.f32 %v5166, %v5167
      %v5169 = vand.u32 %v5168, 4294901760
      %5170 = vmatpush1.msra.mxu0 %v5169
      %v5171 = vand.u32 %v266, 4294901760
      %v5172 = vsub.f32 %v266, %v5171
      %v5173 = vand.u32 %v5172, 4294901760
      %v5174 = vsub.f32 %v5172, %v5173
      %v5175 = vand.u32 %v5174, 4294901760
      %5176 = vmatprep.subr.mxu0 %v5175
      %v5177 = vand.u32 %v265, 4294901760
      %v5178 = vsub.f32 %v265, %v5177
      %v5179 = vand.u32 %v5178, 4294901760
      %v5180 = vsub.f32 %v5178, %v5179
      %v5181 = vand.u32 %v5180, 4294901760
      %5182 = vmatpush1.msra.mxu0 %v5181
      %v5183 = vand.u32 %v262, 4294901760
      %v5184 = vsub.f32 %v262, %v5183
      %v5185 = vand.u32 %v5184, 4294901760
      %v5186 = vsub.f32 %v5184, %v5185
      %v5187 = vand.u32 %v5186, 4294901760
      %5188 = vmatprep.subr.mxu0 %v5187
      %v5189 = vand.u32 %v261, 4294901760
      %v5190 = vsub.f32 %v261, %v5189
      %v5191 = vand.u32 %v5190, 4294901760
      %v5192 = vsub.f32 %v5190, %v5191
      %v5193 = vand.u32 %v5192, 4294901760
      %5194 = vmatpush1.msra.mxu0 %v5193
      %v5195 = vand.u32 %v386, 4294901760
      %v5196 = vsub.f32 %v386, %v5195
      %v5197 = vand.u32 %v5196, 4294901760
      %v5198 = vsub.f32 %v5196, %v5197
      %v5199 = vand.u32 %v5198, 4294901760
      %5200 = vmatprep.subr.mxu0 %v5199
      %v5201 = vand.u32 %v385, 4294901760
      %v5202 = vsub.f32 %v385, %v5201
      %v5203 = vand.u32 %v5202, 4294901760
      %v5204 = vsub.f32 %v5202, %v5203
      %v5205 = vand.u32 %v5204, 4294901760
      %5206 = vmatpush2.msra.mxu0 %v5205
      %v5207 = vand.u32 %v382, 4294901760
      %v5208 = vsub.f32 %v382, %v5207
      %v5209 = vand.u32 %v5208, 4294901760
      %v5210 = vsub.f32 %v5208, %v5209
      %v5211 = vand.u32 %v5210, 4294901760
      %5212 = vmatprep.subr.mxu0 %v5211
      %v5213 = vand.u32 %v381, 4294901760
      %v5214 = vsub.f32 %v381, %v5213
      %v5215 = vand.u32 %v5214, 4294901760
      %v5216 = vsub.f32 %v5214, %v5215
      %v5217 = vand.u32 %v5216, 4294901760
      %5218 = vmatpush2.msra.mxu0 %v5217
      %v5219 = vand.u32 %v378, 4294901760
      %v5220 = vsub.f32 %v378, %v5219
      %v5221 = vand.u32 %v5220, 4294901760
      %v5222 = vsub.f32 %v5220, %v5221
      %v5223 = vand.u32 %v5222, 4294901760
      %5224 = vmatprep.subr.mxu0 %v5223
      %v5225 = vand.u32 %v377, 4294901760
      %v5226 = vsub.f32 %v377, %v5225
      %v5227 = vand.u32 %v5226, 4294901760
      %v5228 = vsub.f32 %v5226, %v5227
      %v5229 = vand.u32 %v5228, 4294901760
      %5230 = vmatpush2.msra.mxu0 %v5229
      %v5231 = vand.u32 %v374, 4294901760
      %v5232 = vsub.f32 %v374, %v5231
      %v5233 = vand.u32 %v5232, 4294901760
      %v5234 = vsub.f32 %v5232, %v5233
      %v5235 = vand.u32 %v5234, 4294901760
      %5236 = vmatprep.subr.mxu0 %v5235
      %v5237 = vand.u32 %v373, 4294901760
      %v5238 = vsub.f32 %v373, %v5237
      %v5239 = vand.u32 %v5238, 4294901760
      %v5240 = vsub.f32 %v5238, %v5239
      %v5241 = vand.u32 %v5240, 4294901760
      %5242 = vmatpush2.msra.mxu0 %v5241
      %v5243 = vand.u32 %v370, 4294901760
      %v5244 = vsub.f32 %v370, %v5243
      %v5245 = vand.u32 %v5244, 4294901760
      %v5246 = vsub.f32 %v5244, %v5245
      %v5247 = vand.u32 %v5246, 4294901760
      %5248 = vmatprep.subr.mxu0 %v5247
      %v5249 = vand.u32 %v369, 4294901760
      %v5250 = vsub.f32 %v369, %v5249
      %v5251 = vand.u32 %v5250, 4294901760
      %v5252 = vsub.f32 %v5250, %v5251
      %v5253 = vand.u32 %v5252, 4294901760
      %5254 = vmatpush2.msra.mxu0 %v5253
      %v5255 = vand.u32 %v366, 4294901760
      %v5256 = vsub.f32 %v366, %v5255
      %v5257 = vand.u32 %v5256, 4294901760
      %v5258 = vsub.f32 %v5256, %v5257
      %v5259 = vand.u32 %v5258, 4294901760
      %5260 = vmatprep.subr.mxu0 %v5259
      %v5261 = vand.u32 %v365, 4294901760
      %v5262 = vsub.f32 %v365, %v5261
      %v5263 = vand.u32 %v5262, 4294901760
      %v5264 = vsub.f32 %v5262, %v5263
      %v5265 = vand.u32 %v5264, 4294901760
      %5266 = vmatpush2.msra.mxu0 %v5265
      %v5267 = vand.u32 %v362, 4294901760
      %v5268 = vsub.f32 %v362, %v5267
      %v5269 = vand.u32 %v5268, 4294901760
      %v5270 = vsub.f32 %v5268, %v5269
      %v5271 = vand.u32 %v5270, 4294901760
      %5272 = vmatprep.subr.mxu0 %v5271
      %v5273 = vand.u32 %v361, 4294901760
      %v5274 = vsub.f32 %v361, %v5273
      %v5275 = vand.u32 %v5274, 4294901760
      %v5276 = vsub.f32 %v5274, %v5275
      %v5277 = vand.u32 %v5276, 4294901760
      %5278 = vmatpush2.msra.mxu0 %v5277
      %v5279 = vand.u32 %v358, 4294901760
      %v5280 = vsub.f32 %v358, %v5279
      %v5281 = vand.u32 %v5280, 4294901760
      %v5282 = vsub.f32 %v5280, %v5281
      %v5283 = vand.u32 %v5282, 4294901760
      %5284 = vmatprep.subr.mxu0 %v5283
      %v5285 = vand.u32 %v357, 4294901760
      %v5286 = vsub.f32 %v357, %v5285
      %v5287 = vand.u32 %v5286, 4294901760
      %v5288 = vsub.f32 %v5286, %v5287
      %v5289 = vand.u32 %v5288, 4294901760
      %5290 = vmatpush2.msra.mxu0 %v5289
      %v5291 = vand.u32 %v354, 4294901760
      %v5292 = vsub.f32 %v354, %v5291
      %v5293 = vand.u32 %v5292, 4294901760
      %v5294 = vsub.f32 %v5292, %v5293
      %v5295 = vand.u32 %v5294, 4294901760
      %5296 = vmatprep.subr.mxu0 %v5295
      %v5297 = vand.u32 %v353, 4294901760
      %v5298 = vsub.f32 %v353, %v5297
      %v5299 = vand.u32 %v5298, 4294901760
      %v5300 = vsub.f32 %v5298, %v5299
      %v5301 = vand.u32 %v5300, 4294901760
      %5302 = vmatpush2.msra.mxu0 %v5301
      %v5303 = vand.u32 %v350, 4294901760
      %v5304 = vsub.f32 %v350, %v5303
      %v5305 = vand.u32 %v5304, 4294901760
      %v5306 = vsub.f32 %v5304, %v5305
      %v5307 = vand.u32 %v5306, 4294901760
      %5308 = vmatprep.subr.mxu0 %v5307
      %v5309 = vand.u32 %v349, 4294901760
      %v5310 = vsub.f32 %v349, %v5309
      %v5311 = vand.u32 %v5310, 4294901760
      %v5312 = vsub.f32 %v5310, %v5311
      %v5313 = vand.u32 %v5312, 4294901760
      %5314 = vmatpush2.msra.mxu0 %v5313
      %v5315 = vand.u32 %v346, 4294901760
      %v5316 = vsub.f32 %v346, %v5315
      %v5317 = vand.u32 %v5316, 4294901760
      %v5318 = vsub.f32 %v5316, %v5317
      %v5319 = vand.u32 %v5318, 4294901760
      %5320 = vmatprep.subr.mxu0 %v5319
      %v5321 = vand.u32 %v345, 4294901760
      %v5322 = vsub.f32 %v345, %v5321
      %v5323 = vand.u32 %v5322, 4294901760
      %v5324 = vsub.f32 %v5322, %v5323
      %v5325 = vand.u32 %v5324, 4294901760
      %5326 = vmatpush2.msra.mxu0 %v5325
      %v5327 = vand.u32 %v342, 4294901760
      %v5328 = vsub.f32 %v342, %v5327
      %v5329 = vand.u32 %v5328, 4294901760
      %v5330 = vsub.f32 %v5328, %v5329
      %v5331 = vand.u32 %v5330, 4294901760
      %5332 = vmatprep.subr.mxu0 %v5331
      %v5333 = vand.u32 %v341, 4294901760
      %v5334 = vsub.f32 %v341, %v5333
      %v5335 = vand.u32 %v5334, 4294901760
      %v5336 = vsub.f32 %v5334, %v5335
      %v5337 = vand.u32 %v5336, 4294901760
      %5338 = vmatpush2.msra.mxu0 %v5337
      %v5339 = vand.u32 %v338, 4294901760
      %v5340 = vsub.f32 %v338, %v5339
      %v5341 = vand.u32 %v5340, 4294901760
      %v5342 = vsub.f32 %v5340, %v5341
      %v5343 = vand.u32 %v5342, 4294901760
      %5344 = vmatprep.subr.mxu0 %v5343
      %v5345 = vand.u32 %v337, 4294901760
      %v5346 = vsub.f32 %v337, %v5345
      %v5347 = vand.u32 %v5346, 4294901760
      %v5348 = vsub.f32 %v5346, %v5347
      %v5349 = vand.u32 %v5348, 4294901760
      %5350 = vmatpush2.msra.mxu0 %v5349
      %v5351 = vand.u32 %v334, 4294901760
      %v5352 = vsub.f32 %v334, %v5351
      %v5353 = vand.u32 %v5352, 4294901760
      %v5354 = vsub.f32 %v5352, %v5353
      %v5355 = vand.u32 %v5354, 4294901760
      %5356 = vmatprep.subr.mxu0 %v5355
      %v5357 = vand.u32 %v333, 4294901760
      %v5358 = vsub.f32 %v333, %v5357
      %v5359 = vand.u32 %v5358, 4294901760
      %v5360 = vsub.f32 %v5358, %v5359
      %v5361 = vand.u32 %v5360, 4294901760
      %5362 = vmatpush2.msra.mxu0 %v5361
      %v5363 = vand.u32 %v330, 4294901760
      %v5364 = vsub.f32 %v330, %v5363
      %v5365 = vand.u32 %v5364, 4294901760
      %v5366 = vsub.f32 %v5364, %v5365
      %v5367 = vand.u32 %v5366, 4294901760
      %5368 = vmatprep.subr.mxu0 %v5367
      %v5369 = vand.u32 %v329, 4294901760
      %v5370 = vsub.f32 %v329, %v5369
      %v5371 = vand.u32 %v5370, 4294901760
      %v5372 = vsub.f32 %v5370, %v5371
      %v5373 = vand.u32 %v5372, 4294901760
      %5374 = vmatpush2.msra.mxu0 %v5373
      %v5375 = vand.u32 %v326, 4294901760
      %v5376 = vsub.f32 %v326, %v5375
      %v5377 = vand.u32 %v5376, 4294901760
      %v5378 = vsub.f32 %v5376, %v5377
      %v5379 = vand.u32 %v5378, 4294901760
      %5380 = vmatprep.subr.mxu0 %v5379
      %v5381 = vand.u32 %v325, 4294901760
      %v5382 = vsub.f32 %v325, %v5381
      %v5383 = vand.u32 %v5382, 4294901760
      %v5384 = vsub.f32 %v5382, %v5383
      %v5385 = vand.u32 %v5384, 4294901760
      %5386 = vmatpush2.msra.mxu0 %v5385
      %v5387 = vand.u32 %v256, 4294901760
      %5388 = vmatprep.mubr.f32.mxu0 %v5387
      %v5389 = vand.u32 %v255, 4294901760
      %5390 = vmatmul.mubr.f32.gmra.mxu0 %v5389
      %v5391 = vpop.f32.mrf.mxu0
      %v5392 = vadd.f32 %v4999, %v5391
      %v5393 = vpop.f32.mrf.mxu0
      %v5394 = vadd.f32 %v5001, %v5393
      %5395 = vdwg.mxu0
      %v5396 = vand.u32 %v322, 4294901760
      %v5397 = vsub.f32 %v322, %v5396
      %5398 = vmatprep.subr.mxu0 %v5397
      %v5399 = vand.u32 %v321, 4294901760
      %v5400 = vsub.f32 %v321, %v5399
      %5401 = vmatpush1.msra.mxu0 %v5400
      %v5402 = vand.u32 %v318, 4294901760
      %v5403 = vsub.f32 %v318, %v5402
      %5404 = vmatprep.subr.mxu0 %v5403
      %v5405 = vand.u32 %v317, 4294901760
      %v5406 = vsub.f32 %v317, %v5405
      %5407 = vmatpush1.msra.mxu0 %v5406
      %v5408 = vand.u32 %v314, 4294901760
      %v5409 = vsub.f32 %v314, %v5408
      %5410 = vmatprep.subr.mxu0 %v5409
      %v5411 = vand.u32 %v313, 4294901760
      %v5412 = vsub.f32 %v313, %v5411
      %5413 = vmatpush1.msra.mxu0 %v5412
      %v5414 = vand.u32 %v310, 4294901760
      %v5415 = vsub.f32 %v310, %v5414
      %5416 = vmatprep.subr.mxu0 %v5415
      %v5417 = vand.u32 %v309, 4294901760
      %v5418 = vsub.f32 %v309, %v5417
      %5419 = vmatpush1.msra.mxu0 %v5418
      %v5420 = vand.u32 %v306, 4294901760
      %v5421 = vsub.f32 %v306, %v5420
      %5422 = vmatprep.subr.mxu0 %v5421
      %v5423 = vand.u32 %v305, 4294901760
      %v5424 = vsub.f32 %v305, %v5423
      %5425 = vmatpush1.msra.mxu0 %v5424
      %v5426 = vand.u32 %v302, 4294901760
      %v5427 = vsub.f32 %v302, %v5426
      %5428 = vmatprep.subr.mxu0 %v5427
      %v5429 = vand.u32 %v301, 4294901760
      %v5430 = vsub.f32 %v301, %v5429
      %5431 = vmatpush1.msra.mxu0 %v5430
      %v5432 = vand.u32 %v298, 4294901760
      %v5433 = vsub.f32 %v298, %v5432
      %5434 = vmatprep.subr.mxu0 %v5433
      %v5435 = vand.u32 %v297, 4294901760
      %v5436 = vsub.f32 %v297, %v5435
      %5437 = vmatpush1.msra.mxu0 %v5436
      %v5438 = vand.u32 %v294, 4294901760
      %v5439 = vsub.f32 %v294, %v5438
      %5440 = vmatprep.subr.mxu0 %v5439
      %v5441 = vand.u32 %v293, 4294901760
      %v5442 = vsub.f32 %v293, %v5441
      %5443 = vmatpush1.msra.mxu0 %v5442
      %v5444 = vand.u32 %v290, 4294901760
      %v5445 = vsub.f32 %v290, %v5444
      %5446 = vmatprep.subr.mxu0 %v5445
      %v5447 = vand.u32 %v289, 4294901760
      %v5448 = vsub.f32 %v289, %v5447
      %5449 = vmatpush1.msra.mxu0 %v5448
      %v5450 = vand.u32 %v286, 4294901760
      %v5451 = vsub.f32 %v286, %v5450
      %5452 = vmatprep.subr.mxu0 %v5451
      %v5453 = vand.u32 %v285, 4294901760
      %v5454 = vsub.f32 %v285, %v5453
      %5455 = vmatpush1.msra.mxu0 %v5454
      %v5456 = vand.u32 %v282, 4294901760
      %v5457 = vsub.f32 %v282, %v5456
      %5458 = vmatprep.subr.mxu0 %v5457
      %v5459 = vand.u32 %v281, 4294901760
      %v5460 = vsub.f32 %v281, %v5459
      %5461 = vmatpush1.msra.mxu0 %v5460
      %v5462 = vand.u32 %v278, 4294901760
      %v5463 = vsub.f32 %v278, %v5462
      %5464 = vmatprep.subr.mxu0 %v5463
      %v5465 = vand.u32 %v277, 4294901760
      %v5466 = vsub.f32 %v277, %v5465
      %5467 = vmatpush1.msra.mxu0 %v5466
      %v5468 = vand.u32 %v274, 4294901760
      %v5469 = vsub.f32 %v274, %v5468
      %5470 = vmatprep.subr.mxu0 %v5469
      %v5471 = vand.u32 %v273, 4294901760
      %v5472 = vsub.f32 %v273, %v5471
      %5473 = vmatpush1.msra.mxu0 %v5472
      %v5474 = vand.u32 %v270, 4294901760
      %v5475 = vsub.f32 %v270, %v5474
      %5476 = vmatprep.subr.mxu0 %v5475
      %v5477 = vand.u32 %v269, 4294901760
      %v5478 = vsub.f32 %v269, %v5477
      %5479 = vmatpush1.msra.mxu0 %v5478
      %v5480 = vand.u32 %v266, 4294901760
      %v5481 = vsub.f32 %v266, %v5480
      %5482 = vmatprep.subr.mxu0 %v5481
      %v5483 = vand.u32 %v265, 4294901760
      %v5484 = vsub.f32 %v265, %v5483
      %5485 = vmatpush1.msra.mxu0 %v5484
      %v5486 = vand.u32 %v262, 4294901760
      %v5487 = vsub.f32 %v262, %v5486
      %5488 = vmatprep.subr.mxu0 %v5487
      %v5489 = vand.u32 %v261, 4294901760
      %v5490 = vsub.f32 %v261, %v5489
      %5491 = vmatpush1.msra.mxu0 %v5490
      %v5492 = vand.u32 %v386, 4294901760
      %v5493 = vsub.f32 %v386, %v5492
      %5494 = vmatprep.subr.mxu0 %v5493
      %v5495 = vand.u32 %v385, 4294901760
      %v5496 = vsub.f32 %v385, %v5495
      %5497 = vmatpush2.msra.mxu0 %v5496
      %v5498 = vand.u32 %v382, 4294901760
      %v5499 = vsub.f32 %v382, %v5498
      %5500 = vmatprep.subr.mxu0 %v5499
      %v5501 = vand.u32 %v381, 4294901760
      %v5502 = vsub.f32 %v381, %v5501
      %5503 = vmatpush2.msra.mxu0 %v5502
      %v5504 = vand.u32 %v378, 4294901760
      %v5505 = vsub.f32 %v378, %v5504
      %5506 = vmatprep.subr.mxu0 %v5505
      %v5507 = vand.u32 %v377, 4294901760
      %v5508 = vsub.f32 %v377, %v5507
      %5509 = vmatpush2.msra.mxu0 %v5508
      %v5510 = vand.u32 %v374, 4294901760
      %v5511 = vsub.f32 %v374, %v5510
      %5512 = vmatprep.subr.mxu0 %v5511
      %v5513 = vand.u32 %v373, 4294901760
      %v5514 = vsub.f32 %v373, %v5513
      %5515 = vmatpush2.msra.mxu0 %v5514
      %v5516 = vand.u32 %v370, 4294901760
      %v5517 = vsub.f32 %v370, %v5516
      %5518 = vmatprep.subr.mxu0 %v5517
      %v5519 = vand.u32 %v369, 4294901760
      %v5520 = vsub.f32 %v369, %v5519
      %5521 = vmatpush2.msra.mxu0 %v5520
      %v5522 = vand.u32 %v366, 4294901760
      %v5523 = vsub.f32 %v366, %v5522
      %5524 = vmatprep.subr.mxu0 %v5523
      %v5525 = vand.u32 %v365, 4294901760
      %v5526 = vsub.f32 %v365, %v5525
      %5527 = vmatpush2.msra.mxu0 %v5526
      %v5528 = vand.u32 %v362, 4294901760
      %v5529 = vsub.f32 %v362, %v5528
      %5530 = vmatprep.subr.mxu0 %v5529
      %v5531 = vand.u32 %v361, 4294901760
      %v5532 = vsub.f32 %v361, %v5531
      %5533 = vmatpush2.msra.mxu0 %v5532
      %v5534 = vand.u32 %v358, 4294901760
      %v5535 = vsub.f32 %v358, %v5534
      %5536 = vmatprep.subr.mxu0 %v5535
      %v5537 = vand.u32 %v357, 4294901760
      %v5538 = vsub.f32 %v357, %v5537
      %5539 = vmatpush2.msra.mxu0 %v5538
      %v5540 = vand.u32 %v354, 4294901760
      %v5541 = vsub.f32 %v354, %v5540
      %5542 = vmatprep.subr.mxu0 %v5541
      %v5543 = vand.u32 %v353, 4294901760
      %v5544 = vsub.f32 %v353, %v5543
      %5545 = vmatpush2.msra.mxu0 %v5544
      %v5546 = vand.u32 %v350, 4294901760
      %v5547 = vsub.f32 %v350, %v5546
      %5548 = vmatprep.subr.mxu0 %v5547
      %v5549 = vand.u32 %v349, 4294901760
      %v5550 = vsub.f32 %v349, %v5549
      %5551 = vmatpush2.msra.mxu0 %v5550
      %v5552 = vand.u32 %v346, 4294901760
      %v5553 = vsub.f32 %v346, %v5552
      %5554 = vmatprep.subr.mxu0 %v5553
      %v5555 = vand.u32 %v345, 4294901760
      %v5556 = vsub.f32 %v345, %v5555
      %5557 = vmatpush2.msra.mxu0 %v5556
      %v5558 = vand.u32 %v342, 4294901760
      %v5559 = vsub.f32 %v342, %v5558
      %5560 = vmatprep.subr.mxu0 %v5559
      %v5561 = vand.u32 %v341, 4294901760
      %v5562 = vsub.f32 %v341, %v5561
      %5563 = vmatpush2.msra.mxu0 %v5562
      %v5564 = vand.u32 %v338, 4294901760
      %v5565 = vsub.f32 %v338, %v5564
      %5566 = vmatprep.subr.mxu0 %v5565
      %v5567 = vand.u32 %v337, 4294901760
      %v5568 = vsub.f32 %v337, %v5567
      %5569 = vmatpush2.msra.mxu0 %v5568
      %v5570 = vand.u32 %v334, 4294901760
      %v5571 = vsub.f32 %v334, %v5570
      %5572 = vmatprep.subr.mxu0 %v5571
      %v5573 = vand.u32 %v333, 4294901760
      %v5574 = vsub.f32 %v333, %v5573
      %5575 = vmatpush2.msra.mxu0 %v5574
      %v5576 = vand.u32 %v330, 4294901760
      %v5577 = vsub.f32 %v330, %v5576
      %5578 = vmatprep.subr.mxu0 %v5577
      %v5579 = vand.u32 %v329, 4294901760
      %v5580 = vsub.f32 %v329, %v5579
      %5581 = vmatpush2.msra.mxu0 %v5580
      %v5582 = vand.u32 %v326, 4294901760
      %v5583 = vsub.f32 %v326, %v5582
      %5584 = vmatprep.subr.mxu0 %v5583
      %v5585 = vand.u32 %v325, 4294901760
      %v5586 = vsub.f32 %v325, %v5585
      %5587 = vmatpush2.msra.mxu0 %v5586
      %v5588 = vand.u32 %v256, 4294901760
      %v5589 = vsub.f32 %v256, %v5588
      %5590 = vmatprep.mubr.f32.mxu0 %v5589
      %v5591 = vand.u32 %v255, 4294901760
      %v5592 = vsub.f32 %v255, %v5591
      %5593 = vmatmul.mubr.f32.gmra.mxu0 %v5592
      %v5594 = vpop.f32.mrf.mxu0
      %v5595 = vadd.f32 %v5392, %v5594
      %v5596 = vpop.f32.mrf.mxu0
      %v5597 = vadd.f32 %v5394, %v5596
      %5598 = vdwg.mxu0
      %v5599 = vand.u32 %v322, 4294901760
      %5600 = vmatprep.subr.mxu0 %v5599
      %v5601 = vand.u32 %v321, 4294901760
      %5602 = vmatpush1.msra.mxu0 %v5601
      %v5603 = vand.u32 %v318, 4294901760
      %5604 = vmatprep.subr.mxu0 %v5603
      %v5605 = vand.u32 %v317, 4294901760
      %5606 = vmatpush1.msra.mxu0 %v5605
      %v5607 = vand.u32 %v314, 4294901760
      %5608 = vmatprep.subr.mxu0 %v5607
      %v5609 = vand.u32 %v313, 4294901760
      %5610 = vmatpush1.msra.mxu0 %v5609
      %v5611 = vand.u32 %v310, 4294901760
      %5612 = vmatprep.subr.mxu0 %v5611
      %v5613 = vand.u32 %v309, 4294901760
      %5614 = vmatpush1.msra.mxu0 %v5613
      %v5615 = vand.u32 %v306, 4294901760
      %5616 = vmatprep.subr.mxu0 %v5615
      %v5617 = vand.u32 %v305, 4294901760
      %5618 = vmatpush1.msra.mxu0 %v5617
      %v5619 = vand.u32 %v302, 4294901760
      %5620 = vmatprep.subr.mxu0 %v5619
      %v5621 = vand.u32 %v301, 4294901760
      %5622 = vmatpush1.msra.mxu0 %v5621
      %v5623 = vand.u32 %v298, 4294901760
      %5624 = vmatprep.subr.mxu0 %v5623
      %v5625 = vand.u32 %v297, 4294901760
      %5626 = vmatpush1.msra.mxu0 %v5625
      %v5627 = vand.u32 %v294, 4294901760
      %5628 = vmatprep.subr.mxu0 %v5627
      %v5629 = vand.u32 %v293, 4294901760
      %5630 = vmatpush1.msra.mxu0 %v5629
      %v5631 = vand.u32 %v290, 4294901760
      %5632 = vmatprep.subr.mxu0 %v5631
      %v5633 = vand.u32 %v289, 4294901760
      %5634 = vmatpush1.msra.mxu0 %v5633
      %v5635 = vand.u32 %v286, 4294901760
      %5636 = vmatprep.subr.mxu0 %v5635
      %v5637 = vand.u32 %v285, 4294901760
      %5638 = vmatpush1.msra.mxu0 %v5637
      %v5639 = vand.u32 %v282, 4294901760
      %5640 = vmatprep.subr.mxu0 %v5639
      %v5641 = vand.u32 %v281, 4294901760
      %5642 = vmatpush1.msra.mxu0 %v5641
      %v5643 = vand.u32 %v278, 4294901760
      %5644 = vmatprep.subr.mxu0 %v5643
      %v5645 = vand.u32 %v277, 4294901760
      %5646 = vmatpush1.msra.mxu0 %v5645
      %v5647 = vand.u32 %v274, 4294901760
      %5648 = vmatprep.subr.mxu0 %v5647
      %v5649 = vand.u32 %v273, 4294901760
      %5650 = vmatpush1.msra.mxu0 %v5649
      %v5651 = vand.u32 %v270, 4294901760
      %5652 = vmatprep.subr.mxu0 %v5651
      %v5653 = vand.u32 %v269, 4294901760
      %5654 = vmatpush1.msra.mxu0 %v5653
      %v5655 = vand.u32 %v266, 4294901760
      %5656 = vmatprep.subr.mxu0 %v5655
      %v5657 = vand.u32 %v265, 4294901760
      %5658 = vmatpush1.msra.mxu0 %v5657
      %v5659 = vand.u32 %v262, 4294901760
      %5660 = vmatprep.subr.mxu0 %v5659
      %v5661 = vand.u32 %v261, 4294901760
      %5662 = vmatpush1.msra.mxu0 %v5661
      %v5663 = vand.u32 %v386, 4294901760
      %5664 = vmatprep.subr.mxu0 %v5663
      %v5665 = vand.u32 %v385, 4294901760
      %5666 = vmatpush2.msra.mxu0 %v5665
      %v5667 = vand.u32 %v382, 4294901760
      %5668 = vmatprep.subr.mxu0 %v5667
      %v5669 = vand.u32 %v381, 4294901760
      %5670 = vmatpush2.msra.mxu0 %v5669
      %v5671 = vand.u32 %v378, 4294901760
      %5672 = vmatprep.subr.mxu0 %v5671
      %v5673 = vand.u32 %v377, 4294901760
      %5674 = vmatpush2.msra.mxu0 %v5673
      %v5675 = vand.u32 %v374, 4294901760
      %5676 = vmatprep.subr.mxu0 %v5675
      %v5677 = vand.u32 %v373, 4294901760
      %5678 = vmatpush2.msra.mxu0 %v5677
      %v5679 = vand.u32 %v370, 4294901760
      %5680 = vmatprep.subr.mxu0 %v5679
      %v5681 = vand.u32 %v369, 4294901760
      %5682 = vmatpush2.msra.mxu0 %v5681
      %v5683 = vand.u32 %v366, 4294901760
      %5684 = vmatprep.subr.mxu0 %v5683
      %v5685 = vand.u32 %v365, 4294901760
      %5686 = vmatpush2.msra.mxu0 %v5685
      %v5687 = vand.u32 %v362, 4294901760
      %5688 = vmatprep.subr.mxu0 %v5687
      %v5689 = vand.u32 %v361, 4294901760
      %5690 = vmatpush2.msra.mxu0 %v5689
      %v5691 = vand.u32 %v358, 4294901760
      %5692 = vmatprep.subr.mxu0 %v5691
      %v5693 = vand.u32 %v357, 4294901760
      %5694 = vmatpush2.msra.mxu0 %v5693
      %v5695 = vand.u32 %v354, 4294901760
      %5696 = vmatprep.subr.mxu0 %v5695
      %v5697 = vand.u32 %v353, 4294901760
      %5698 = vmatpush2.msra.mxu0 %v5697
      %v5699 = vand.u32 %v350, 4294901760
      %5700 = vmatprep.subr.mxu0 %v5699
      %v5701 = vand.u32 %v349, 4294901760
      %5702 = vmatpush2.msra.mxu0 %v5701
      %v5703 = vand.u32 %v346, 4294901760
      %5704 = vmatprep.subr.mxu0 %v5703
      %v5705 = vand.u32 %v345, 4294901760
      %5706 = vmatpush2.msra.mxu0 %v5705
      %v5707 = vand.u32 %v342, 4294901760
      %5708 = vmatprep.subr.mxu0 %v5707
      %v5709 = vand.u32 %v341, 4294901760
      %5710 = vmatpush2.msra.mxu0 %v5709
      %v5711 = vand.u32 %v338, 4294901760
      %5712 = vmatprep.subr.mxu0 %v5711
      %v5713 = vand.u32 %v337, 4294901760
      %5714 = vmatpush2.msra.mxu0 %v5713
      %v5715 = vand.u32 %v334, 4294901760
      %5716 = vmatprep.subr.mxu0 %v5715
      %v5717 = vand.u32 %v333, 4294901760
      %5718 = vmatpush2.msra.mxu0 %v5717
      %v5719 = vand.u32 %v330, 4294901760
      %5720 = vmatprep.subr.mxu0 %v5719
      %v5721 = vand.u32 %v329, 4294901760
      %5722 = vmatpush2.msra.mxu0 %v5721
      %v5723 = vand.u32 %v326, 4294901760
      %5724 = vmatprep.subr.mxu0 %v5723
      %v5725 = vand.u32 %v325, 4294901760
      %5726 = vmatpush2.msra.mxu0 %v5725
      %v5727 = vand.u32 %v256, 4294901760
      %v5728 = vsub.f32 %v256, %v5727
      %v5729 = vand.u32 %v5728, 4294901760
      %5730 = vmatprep.mubr.f32.mxu0 %v5729
      %v5731 = vand.u32 %v255, 4294901760
      %v5732 = vsub.f32 %v255, %v5731
      %v5733 = vand.u32 %v5732, 4294901760
      %5734 = vmatmul.mubr.f32.gmra.mxu0 %v5733
      %v5735 = vpop.f32.mrf.mxu0
      %v5736 = vadd.f32 %v5595, %v5735
      %v5737 = vpop.f32.mrf.mxu0
      %v5738 = vadd.f32 %v5597, %v5737
      %5739 = vdwg.mxu0
      %v5740 = vand.u32 %v322, 4294901760
      %v5741 = vsub.f32 %v322, %v5740
      %v5742 = vand.u32 %v5741, 4294901760
      %5743 = vmatprep.subr.mxu0 %v5742
      %v5744 = vand.u32 %v321, 4294901760
      %v5745 = vsub.f32 %v321, %v5744
      %v5746 = vand.u32 %v5745, 4294901760
      %5747 = vmatpush1.msra.mxu0 %v5746
      %v5748 = vand.u32 %v318, 4294901760
      %v5749 = vsub.f32 %v318, %v5748
      %v5750 = vand.u32 %v5749, 4294901760
      %5751 = vmatprep.subr.mxu0 %v5750
      %v5752 = vand.u32 %v317, 4294901760
      %v5753 = vsub.f32 %v317, %v5752
      %v5754 = vand.u32 %v5753, 4294901760
      %5755 = vmatpush1.msra.mxu0 %v5754
      %v5756 = vand.u32 %v314, 4294901760
      %v5757 = vsub.f32 %v314, %v5756
      %v5758 = vand.u32 %v5757, 4294901760
      %5759 = vmatprep.subr.mxu0 %v5758
      %v5760 = vand.u32 %v313, 4294901760
      %v5761 = vsub.f32 %v313, %v5760
      %v5762 = vand.u32 %v5761, 4294901760
      %5763 = vmatpush1.msra.mxu0 %v5762
      %v5764 = vand.u32 %v310, 4294901760
      %v5765 = vsub.f32 %v310, %v5764
      %v5766 = vand.u32 %v5765, 4294901760
      %5767 = vmatprep.subr.mxu0 %v5766
      %v5768 = vand.u32 %v309, 4294901760
      %v5769 = vsub.f32 %v309, %v5768
      %v5770 = vand.u32 %v5769, 4294901760
      %5771 = vmatpush1.msra.mxu0 %v5770
      %v5772 = vand.u32 %v306, 4294901760
      %v5773 = vsub.f32 %v306, %v5772
      %v5774 = vand.u32 %v5773, 4294901760
      %5775 = vmatprep.subr.mxu0 %v5774
      %v5776 = vand.u32 %v305, 4294901760
      %v5777 = vsub.f32 %v305, %v5776
      %v5778 = vand.u32 %v5777, 4294901760
      %5779 = vmatpush1.msra.mxu0 %v5778
      %v5780 = vand.u32 %v302, 4294901760
      %v5781 = vsub.f32 %v302, %v5780
      %v5782 = vand.u32 %v5781, 4294901760
      %5783 = vmatprep.subr.mxu0 %v5782
      %v5784 = vand.u32 %v301, 4294901760
      %v5785 = vsub.f32 %v301, %v5784
      %v5786 = vand.u32 %v5785, 4294901760
      %5787 = vmatpush1.msra.mxu0 %v5786
      %v5788 = vand.u32 %v298, 4294901760
      %v5789 = vsub.f32 %v298, %v5788
      %v5790 = vand.u32 %v5789, 4294901760
      %5791 = vmatprep.subr.mxu0 %v5790
      %v5792 = vand.u32 %v297, 4294901760
      %v5793 = vsub.f32 %v297, %v5792
      %v5794 = vand.u32 %v5793, 4294901760
      %5795 = vmatpush1.msra.mxu0 %v5794
      %v5796 = vand.u32 %v294, 4294901760
      %v5797 = vsub.f32 %v294, %v5796
      %v5798 = vand.u32 %v5797, 4294901760
      %5799 = vmatprep.subr.mxu0 %v5798
      %v5800 = vand.u32 %v293, 4294901760
      %v5801 = vsub.f32 %v293, %v5800
      %v5802 = vand.u32 %v5801, 4294901760
      %5803 = vmatpush1.msra.mxu0 %v5802
      %v5804 = vand.u32 %v290, 4294901760
      %v5805 = vsub.f32 %v290, %v5804
      %v5806 = vand.u32 %v5805, 4294901760
      %5807 = vmatprep.subr.mxu0 %v5806
      %v5808 = vand.u32 %v289, 4294901760
      %v5809 = vsub.f32 %v289, %v5808
      %v5810 = vand.u32 %v5809, 4294901760
      %5811 = vmatpush1.msra.mxu0 %v5810
      %v5812 = vand.u32 %v286, 4294901760
      %v5813 = vsub.f32 %v286, %v5812
      %v5814 = vand.u32 %v5813, 4294901760
      %5815 = vmatprep.subr.mxu0 %v5814
      %v5816 = vand.u32 %v285, 4294901760
      %v5817 = vsub.f32 %v285, %v5816
      %v5818 = vand.u32 %v5817, 4294901760
      %5819 = vmatpush1.msra.mxu0 %v5818
      %v5820 = vand.u32 %v282, 4294901760
      %v5821 = vsub.f32 %v282, %v5820
      %v5822 = vand.u32 %v5821, 4294901760
      %5823 = vmatprep.subr.mxu0 %v5822
      %v5824 = vand.u32 %v281, 4294901760
      %v5825 = vsub.f32 %v281, %v5824
      %v5826 = vand.u32 %v5825, 4294901760
      %5827 = vmatpush1.msra.mxu0 %v5826
      %v5828 = vand.u32 %v278, 4294901760
      %v5829 = vsub.f32 %v278, %v5828
      %v5830 = vand.u32 %v5829, 4294901760
      %5831 = vmatprep.subr.mxu0 %v5830
      %v5832 = vand.u32 %v277, 4294901760
      %v5833 = vsub.f32 %v277, %v5832
      %v5834 = vand.u32 %v5833, 4294901760
      %5835 = vmatpush1.msra.mxu0 %v5834
      %v5836 = vand.u32 %v274, 4294901760
      %v5837 = vsub.f32 %v274, %v5836
      %v5838 = vand.u32 %v5837, 4294901760
      %5839 = vmatprep.subr.mxu0 %v5838
      %v5840 = vand.u32 %v273, 4294901760
      %v5841 = vsub.f32 %v273, %v5840
      %v5842 = vand.u32 %v5841, 4294901760
      %5843 = vmatpush1.msra.mxu0 %v5842
      %v5844 = vand.u32 %v270, 4294901760
      %v5845 = vsub.f32 %v270, %v5844
      %v5846 = vand.u32 %v5845, 4294901760
      %5847 = vmatprep.subr.mxu0 %v5846
      %v5848 = vand.u32 %v269, 4294901760
      %v5849 = vsub.f32 %v269, %v5848
      %v5850 = vand.u32 %v5849, 4294901760
      %5851 = vmatpush1.msra.mxu0 %v5850
      %v5852 = vand.u32 %v266, 4294901760
      %v5853 = vsub.f32 %v266, %v5852
      %v5854 = vand.u32 %v5853, 4294901760
      %5855 = vmatprep.subr.mxu0 %v5854
      %v5856 = vand.u32 %v265, 4294901760
      %v5857 = vsub.f32 %v265, %v5856
      %v5858 = vand.u32 %v5857, 4294901760
      %5859 = vmatpush1.msra.mxu0 %v5858
      %v5860 = vand.u32 %v262, 4294901760
      %v5861 = vsub.f32 %v262, %v5860
      %v5862 = vand.u32 %v5861, 4294901760
      %5863 = vmatprep.subr.mxu0 %v5862
      %v5864 = vand.u32 %v261, 4294901760
      %v5865 = vsub.f32 %v261, %v5864
      %v5866 = vand.u32 %v5865, 4294901760
      %5867 = vmatpush1.msra.mxu0 %v5866
      %v5868 = vand.u32 %v386, 4294901760
      %v5869 = vsub.f32 %v386, %v5868
      %v5870 = vand.u32 %v5869, 4294901760
      %5871 = vmatprep.subr.mxu0 %v5870
      %v5872 = vand.u32 %v385, 4294901760
      %v5873 = vsub.f32 %v385, %v5872
      %v5874 = vand.u32 %v5873, 4294901760
      %5875 = vmatpush2.msra.mxu0 %v5874
      %v5876 = vand.u32 %v382, 4294901760
      %v5877 = vsub.f32 %v382, %v5876
      %v5878 = vand.u32 %v5877, 4294901760
      %5879 = vmatprep.subr.mxu0 %v5878
      %v5880 = vand.u32 %v381, 4294901760
      %v5881 = vsub.f32 %v381, %v5880
      %v5882 = vand.u32 %v5881, 4294901760
      %5883 = vmatpush2.msra.mxu0 %v5882
      %v5884 = vand.u32 %v378, 4294901760
      %v5885 = vsub.f32 %v378, %v5884
      %v5886 = vand.u32 %v5885, 4294901760
      %5887 = vmatprep.subr.mxu0 %v5886
      %v5888 = vand.u32 %v377, 4294901760
      %v5889 = vsub.f32 %v377, %v5888
      %v5890 = vand.u32 %v5889, 4294901760
      %5891 = vmatpush2.msra.mxu0 %v5890
      %v5892 = vand.u32 %v374, 4294901760
      %v5893 = vsub.f32 %v374, %v5892
      %v5894 = vand.u32 %v5893, 4294901760
      %5895 = vmatprep.subr.mxu0 %v5894
      %v5896 = vand.u32 %v373, 4294901760
      %v5897 = vsub.f32 %v373, %v5896
      %v5898 = vand.u32 %v5897, 4294901760
      %5899 = vmatpush2.msra.mxu0 %v5898
      %v5900 = vand.u32 %v370, 4294901760
      %v5901 = vsub.f32 %v370, %v5900
      %v5902 = vand.u32 %v5901, 4294901760
      %5903 = vmatprep.subr.mxu0 %v5902
      %v5904 = vand.u32 %v369, 4294901760
      %v5905 = vsub.f32 %v369, %v5904
      %v5906 = vand.u32 %v5905, 4294901760
      %5907 = vmatpush2.msra.mxu0 %v5906
      %v5908 = vand.u32 %v366, 4294901760
      %v5909 = vsub.f32 %v366, %v5908
      %v5910 = vand.u32 %v5909, 4294901760
      %5911 = vmatprep.subr.mxu0 %v5910
      %v5912 = vand.u32 %v365, 4294901760
      %v5913 = vsub.f32 %v365, %v5912
      %v5914 = vand.u32 %v5913, 4294901760
      %5915 = vmatpush2.msra.mxu0 %v5914
      %v5916 = vand.u32 %v362, 4294901760
      %v5917 = vsub.f32 %v362, %v5916
      %v5918 = vand.u32 %v5917, 4294901760
      %5919 = vmatprep.subr.mxu0 %v5918
      %v5920 = vand.u32 %v361, 4294901760
      %v5921 = vsub.f32 %v361, %v5920
      %v5922 = vand.u32 %v5921, 4294901760
      %5923 = vmatpush2.msra.mxu0 %v5922
      %v5924 = vand.u32 %v358, 4294901760
      %v5925 = vsub.f32 %v358, %v5924
      %v5926 = vand.u32 %v5925, 4294901760
      %5927 = vmatprep.subr.mxu0 %v5926
      %v5928 = vand.u32 %v357, 4294901760
      %v5929 = vsub.f32 %v357, %v5928
      %v5930 = vand.u32 %v5929, 4294901760
      %5931 = vmatpush2.msra.mxu0 %v5930
      %v5932 = vand.u32 %v354, 4294901760
      %v5933 = vsub.f32 %v354, %v5932
      %v5934 = vand.u32 %v5933, 4294901760
      %5935 = vmatprep.subr.mxu0 %v5934
      %v5936 = vand.u32 %v353, 4294901760
      %v5937 = vsub.f32 %v353, %v5936
      %v5938 = vand.u32 %v5937, 4294901760
      %5939 = vmatpush2.msra.mxu0 %v5938
      %v5940 = vand.u32 %v350, 4294901760
      %v5941 = vsub.f32 %v350, %v5940
      %v5942 = vand.u32 %v5941, 4294901760
      %5943 = vmatprep.subr.mxu0 %v5942
      %v5944 = vand.u32 %v349, 4294901760
      %v5945 = vsub.f32 %v349, %v5944
      %v5946 = vand.u32 %v5945, 4294901760
      %5947 = vmatpush2.msra.mxu0 %v5946
      %v5948 = vand.u32 %v346, 4294901760
      %v5949 = vsub.f32 %v346, %v5948
      %v5950 = vand.u32 %v5949, 4294901760
      %5951 = vmatprep.subr.mxu0 %v5950
      %v5952 = vand.u32 %v345, 4294901760
      %v5953 = vsub.f32 %v345, %v5952
      %v5954 = vand.u32 %v5953, 4294901760
      %5955 = vmatpush2.msra.mxu0 %v5954
      %v5956 = vand.u32 %v342, 4294901760
      %v5957 = vsub.f32 %v342, %v5956
      %v5958 = vand.u32 %v5957, 4294901760
      %5959 = vmatprep.subr.mxu0 %v5958
      %v5960 = vand.u32 %v341, 4294901760
      %v5961 = vsub.f32 %v341, %v5960
      %v5962 = vand.u32 %v5961, 4294901760
      %5963 = vmatpush2.msra.mxu0 %v5962
      %v5964 = vand.u32 %v338, 4294901760
      %v5965 = vsub.f32 %v338, %v5964
      %v5966 = vand.u32 %v5965, 4294901760
      %5967 = vmatprep.subr.mxu0 %v5966
      %v5968 = vand.u32 %v337, 4294901760
      %v5969 = vsub.f32 %v337, %v5968
      %v5970 = vand.u32 %v5969, 4294901760
      %5971 = vmatpush2.msra.mxu0 %v5970
      %v5972 = vand.u32 %v334, 4294901760
      %v5973 = vsub.f32 %v334, %v5972
      %v5974 = vand.u32 %v5973, 4294901760
      %5975 = vmatprep.subr.mxu0 %v5974
      %v5976 = vand.u32 %v333, 4294901760
      %v5977 = vsub.f32 %v333, %v5976
      %v5978 = vand.u32 %v5977, 4294901760
      %5979 = vmatpush2.msra.mxu0 %v5978
      %v5980 = vand.u32 %v330, 4294901760
      %v5981 = vsub.f32 %v330, %v5980
      %v5982 = vand.u32 %v5981, 4294901760
      %5983 = vmatprep.subr.mxu0 %v5982
      %v5984 = vand.u32 %v329, 4294901760
      %v5985 = vsub.f32 %v329, %v5984
      %v5986 = vand.u32 %v5985, 4294901760
      %5987 = vmatpush2.msra.mxu0 %v5986
      %v5988 = vand.u32 %v326, 4294901760
      %v5989 = vsub.f32 %v326, %v5988
      %v5990 = vand.u32 %v5989, 4294901760
      %5991 = vmatprep.subr.mxu0 %v5990
      %v5992 = vand.u32 %v325, 4294901760
      %v5993 = vsub.f32 %v325, %v5992
      %v5994 = vand.u32 %v5993, 4294901760
      %5995 = vmatpush2.msra.mxu0 %v5994
      %v5996 = vand.u32 %v256, 4294901760
      %5997 = vmatprep.mubr.f32.mxu0 %v5996
      %v5998 = vand.u32 %v255, 4294901760
      %5999 = vmatmul.mubr.f32.gmra.mxu0 %v5998
      %v6000 = vpop.f32.mrf.mxu0
      %v6001 = vadd.f32 %v5736, %v6000
      %v6002 = vpop.f32.mrf.mxu0
      %v6003 = vadd.f32 %v5738, %v6002
      %6004 = vdwg.mxu0
      %v6005 = vand.u32 %v322, 4294901760
      %6006 = vmatprep.subr.mxu0 %v6005
      %v6007 = vand.u32 %v321, 4294901760
      %6008 = vmatpush1.msra.mxu0 %v6007
      %v6009 = vand.u32 %v318, 4294901760
      %6010 = vmatprep.subr.mxu0 %v6009
      %v6011 = vand.u32 %v317, 4294901760
      %6012 = vmatpush1.msra.mxu0 %v6011
      %v6013 = vand.u32 %v314, 4294901760
      %6014 = vmatprep.subr.mxu0 %v6013
      %v6015 = vand.u32 %v313, 4294901760
      %6016 = vmatpush1.msra.mxu0 %v6015
      %v6017 = vand.u32 %v310, 4294901760
      %6018 = vmatprep.subr.mxu0 %v6017
      %v6019 = vand.u32 %v309, 4294901760
      %6020 = vmatpush1.msra.mxu0 %v6019
      %v6021 = vand.u32 %v306, 4294901760
      %6022 = vmatprep.subr.mxu0 %v6021
      %v6023 = vand.u32 %v305, 4294901760
      %6024 = vmatpush1.msra.mxu0 %v6023
      %v6025 = vand.u32 %v302, 4294901760
      %6026 = vmatprep.subr.mxu0 %v6025
      %v6027 = vand.u32 %v301, 4294901760
      %6028 = vmatpush1.msra.mxu0 %v6027
      %v6029 = vand.u32 %v298, 4294901760
      %6030 = vmatprep.subr.mxu0 %v6029
      %v6031 = vand.u32 %v297, 4294901760
      %6032 = vmatpush1.msra.mxu0 %v6031
      %v6033 = vand.u32 %v294, 4294901760
      %6034 = vmatprep.subr.mxu0 %v6033
      %v6035 = vand.u32 %v293, 4294901760
      %6036 = vmatpush1.msra.mxu0 %v6035
      %v6037 = vand.u32 %v290, 4294901760
      %6038 = vmatprep.subr.mxu0 %v6037
      %v6039 = vand.u32 %v289, 4294901760
      %6040 = vmatpush1.msra.mxu0 %v6039
      %v6041 = vand.u32 %v286, 4294901760
      %6042 = vmatprep.subr.mxu0 %v6041
      %v6043 = vand.u32 %v285, 4294901760
      %6044 = vmatpush1.msra.mxu0 %v6043
      %v6045 = vand.u32 %v282, 4294901760
      %6046 = vmatprep.subr.mxu0 %v6045
      %v6047 = vand.u32 %v281, 4294901760
      %6048 = vmatpush1.msra.mxu0 %v6047
      %v6049 = vand.u32 %v278, 4294901760
      %6050 = vmatprep.subr.mxu0 %v6049
      %v6051 = vand.u32 %v277, 4294901760
      %6052 = vmatpush1.msra.mxu0 %v6051
      %v6053 = vand.u32 %v274, 4294901760
      %6054 = vmatprep.subr.mxu0 %v6053
      %v6055 = vand.u32 %v273, 4294901760
      %6056 = vmatpush1.msra.mxu0 %v6055
      %v6057 = vand.u32 %v270, 4294901760
      %6058 = vmatprep.subr.mxu0 %v6057
      %v6059 = vand.u32 %v269, 4294901760
      %6060 = vmatpush1.msra.mxu0 %v6059
      %v6061 = vand.u32 %v266, 4294901760
      %6062 = vmatprep.subr.mxu0 %v6061
      %v6063 = vand.u32 %v265, 4294901760
      %6064 = vmatpush1.msra.mxu0 %v6063
      %v6065 = vand.u32 %v262, 4294901760
      %6066 = vmatprep.subr.mxu0 %v6065
      %v6067 = vand.u32 %v261, 4294901760
      %6068 = vmatpush1.msra.mxu0 %v6067
      %v6069 = vand.u32 %v386, 4294901760
      %6070 = vmatprep.subr.mxu0 %v6069
      %v6071 = vand.u32 %v385, 4294901760
      %6072 = vmatpush2.msra.mxu0 %v6071
      %v6073 = vand.u32 %v382, 4294901760
      %6074 = vmatprep.subr.mxu0 %v6073
      %v6075 = vand.u32 %v381, 4294901760
      %6076 = vmatpush2.msra.mxu0 %v6075
      %v6077 = vand.u32 %v378, 4294901760
      %6078 = vmatprep.subr.mxu0 %v6077
      %v6079 = vand.u32 %v377, 4294901760
      %6080 = vmatpush2.msra.mxu0 %v6079
      %v6081 = vand.u32 %v374, 4294901760
      %6082 = vmatprep.subr.mxu0 %v6081
      %v6083 = vand.u32 %v373, 4294901760
      %6084 = vmatpush2.msra.mxu0 %v6083
      %v6085 = vand.u32 %v370, 4294901760
      %6086 = vmatprep.subr.mxu0 %v6085
      %v6087 = vand.u32 %v369, 4294901760
      %6088 = vmatpush2.msra.mxu0 %v6087
      %v6089 = vand.u32 %v366, 4294901760
      %6090 = vmatprep.subr.mxu0 %v6089
      %v6091 = vand.u32 %v365, 4294901760
      %6092 = vmatpush2.msra.mxu0 %v6091
      %v6093 = vand.u32 %v362, 4294901760
      %6094 = vmatprep.subr.mxu0 %v6093
      %v6095 = vand.u32 %v361, 4294901760
      %6096 = vmatpush2.msra.mxu0 %v6095
      %v6097 = vand.u32 %v358, 4294901760
      %6098 = vmatprep.subr.mxu0 %v6097
      %v6099 = vand.u32 %v357, 4294901760
      %6100 = vmatpush2.msra.mxu0 %v6099
      %v6101 = vand.u32 %v354, 4294901760
      %6102 = vmatprep.subr.mxu0 %v6101
      %v6103 = vand.u32 %v353, 4294901760
      %6104 = vmatpush2.msra.mxu0 %v6103
      %v6105 = vand.u32 %v350, 4294901760
      %6106 = vmatprep.subr.mxu0 %v6105
      %v6107 = vand.u32 %v349, 4294901760
      %6108 = vmatpush2.msra.mxu0 %v6107
      %v6109 = vand.u32 %v346, 4294901760
      %6110 = vmatprep.subr.mxu0 %v6109
      %v6111 = vand.u32 %v345, 4294901760
      %6112 = vmatpush2.msra.mxu0 %v6111
      %v6113 = vand.u32 %v342, 4294901760
      %6114 = vmatprep.subr.mxu0 %v6113
      %v6115 = vand.u32 %v341, 4294901760
      %6116 = vmatpush2.msra.mxu0 %v6115
      %v6117 = vand.u32 %v338, 4294901760
      %6118 = vmatprep.subr.mxu0 %v6117
      %v6119 = vand.u32 %v337, 4294901760
      %6120 = vmatpush2.msra.mxu0 %v6119
      %v6121 = vand.u32 %v334, 4294901760
      %6122 = vmatprep.subr.mxu0 %v6121
      %v6123 = vand.u32 %v333, 4294901760
      %6124 = vmatpush2.msra.mxu0 %v6123
      %v6125 = vand.u32 %v330, 4294901760
      %6126 = vmatprep.subr.mxu0 %v6125
      %v6127 = vand.u32 %v329, 4294901760
      %6128 = vmatpush2.msra.mxu0 %v6127
      %v6129 = vand.u32 %v326, 4294901760
      %6130 = vmatprep.subr.mxu0 %v6129
      %v6131 = vand.u32 %v325, 4294901760
      %6132 = vmatpush2.msra.mxu0 %v6131
      %v6133 = vand.u32 %v256, 4294901760
      %6134 = vmatprep.mubr.f32.mxu0 %v6133
      %v6135 = vand.u32 %v255, 4294901760
      %6136 = vmatmul.mubr.f32.gmra.mxu0 %v6135
      %v6137 = vpop.f32.mrf.mxu0
      %v6138 = vadd.f32 %v6001, %v6137
      %v6139 = vpop.f32.mrf.mxu0
      %v6140 = vadd.f32 %v6003, %v6139
      %6141 = vdwg.mxu0
      %v6142 = vand.u32 %v450, 4294901760
      %6143 = vmatprep.subr.mxu0 %v6142
      %v6144 = vand.u32 %v449, 4294901760
      %6145 = vmatpush1.msra.mxu0 %v6144
      %v6146 = vand.u32 %v446, 4294901760
      %6147 = vmatprep.subr.mxu0 %v6146
      %v6148 = vand.u32 %v445, 4294901760
      %6149 = vmatpush1.msra.mxu0 %v6148
      %v6150 = vand.u32 %v442, 4294901760
      %6151 = vmatprep.subr.mxu0 %v6150
      %v6152 = vand.u32 %v441, 4294901760
      %6153 = vmatpush1.msra.mxu0 %v6152
      %v6154 = vand.u32 %v438, 4294901760
      %6155 = vmatprep.subr.mxu0 %v6154
      %v6156 = vand.u32 %v437, 4294901760
      %6157 = vmatpush1.msra.mxu0 %v6156
      %v6158 = vand.u32 %v434, 4294901760
      %6159 = vmatprep.subr.mxu0 %v6158
      %v6160 = vand.u32 %v433, 4294901760
      %6161 = vmatpush1.msra.mxu0 %v6160
      %v6162 = vand.u32 %v430, 4294901760
      %6163 = vmatprep.subr.mxu0 %v6162
      %v6164 = vand.u32 %v429, 4294901760
      %6165 = vmatpush1.msra.mxu0 %v6164
      %v6166 = vand.u32 %v426, 4294901760
      %6167 = vmatprep.subr.mxu0 %v6166
      %v6168 = vand.u32 %v425, 4294901760
      %6169 = vmatpush1.msra.mxu0 %v6168
      %v6170 = vand.u32 %v422, 4294901760
      %6171 = vmatprep.subr.mxu0 %v6170
      %v6172 = vand.u32 %v421, 4294901760
      %6173 = vmatpush1.msra.mxu0 %v6172
      %v6174 = vand.u32 %v418, 4294901760
      %6175 = vmatprep.subr.mxu0 %v6174
      %v6176 = vand.u32 %v417, 4294901760
      %6177 = vmatpush1.msra.mxu0 %v6176
      %v6178 = vand.u32 %v414, 4294901760
      %6179 = vmatprep.subr.mxu0 %v6178
      %v6180 = vand.u32 %v413, 4294901760
      %6181 = vmatpush1.msra.mxu0 %v6180
      %v6182 = vand.u32 %v410, 4294901760
      %6183 = vmatprep.subr.mxu0 %v6182
      %v6184 = vand.u32 %v409, 4294901760
      %6185 = vmatpush1.msra.mxu0 %v6184
      %v6186 = vand.u32 %v406, 4294901760
      %6187 = vmatprep.subr.mxu0 %v6186
      %v6188 = vand.u32 %v405, 4294901760
      %6189 = vmatpush1.msra.mxu0 %v6188
      %v6190 = vand.u32 %v402, 4294901760
      %6191 = vmatprep.subr.mxu0 %v6190
      %v6192 = vand.u32 %v401, 4294901760
      %6193 = vmatpush1.msra.mxu0 %v6192
      %v6194 = vand.u32 %v398, 4294901760
      %6195 = vmatprep.subr.mxu0 %v6194
      %v6196 = vand.u32 %v397, 4294901760
      %6197 = vmatpush1.msra.mxu0 %v6196
      %v6198 = vand.u32 %v394, 4294901760
      %6199 = vmatprep.subr.mxu0 %v6198
      %v6200 = vand.u32 %v393, 4294901760
      %6201 = vmatpush1.msra.mxu0 %v6200
      %v6202 = vand.u32 %v390, 4294901760
      %6203 = vmatprep.subr.mxu0 %v6202
      %v6204 = vand.u32 %v389, 4294901760
      %6205 = vmatpush1.msra.mxu0 %v6204
      %v6206 = vand.u32 %v514, 4294901760
      %6207 = vmatprep.subr.mxu0 %v6206
      %v6208 = vand.u32 %v513, 4294901760
      %6209 = vmatpush2.msra.mxu0 %v6208
      %v6210 = vand.u32 %v510, 4294901760
      %6211 = vmatprep.subr.mxu0 %v6210
      %v6212 = vand.u32 %v509, 4294901760
      %6213 = vmatpush2.msra.mxu0 %v6212
      %v6214 = vand.u32 %v506, 4294901760
      %6215 = vmatprep.subr.mxu0 %v6214
      %v6216 = vand.u32 %v505, 4294901760
      %6217 = vmatpush2.msra.mxu0 %v6216
      %v6218 = vand.u32 %v502, 4294901760
      %6219 = vmatprep.subr.mxu0 %v6218
      %v6220 = vand.u32 %v501, 4294901760
      %6221 = vmatpush2.msra.mxu0 %v6220
      %v6222 = vand.u32 %v498, 4294901760
      %6223 = vmatprep.subr.mxu0 %v6222
      %v6224 = vand.u32 %v497, 4294901760
      %6225 = vmatpush2.msra.mxu0 %v6224
      %v6226 = vand.u32 %v494, 4294901760
      %6227 = vmatprep.subr.mxu0 %v6226
      %v6228 = vand.u32 %v493, 4294901760
      %6229 = vmatpush2.msra.mxu0 %v6228
      %v6230 = vand.u32 %v490, 4294901760
      %6231 = vmatprep.subr.mxu0 %v6230
      %v6232 = vand.u32 %v489, 4294901760
      %6233 = vmatpush2.msra.mxu0 %v6232
      %v6234 = vand.u32 %v486, 4294901760
      %6235 = vmatprep.subr.mxu0 %v6234
      %v6236 = vand.u32 %v485, 4294901760
      %6237 = vmatpush2.msra.mxu0 %v6236
      %v6238 = vand.u32 %v482, 4294901760
      %6239 = vmatprep.subr.mxu0 %v6238
      %v6240 = vand.u32 %v481, 4294901760
      %6241 = vmatpush2.msra.mxu0 %v6240
      %v6242 = vand.u32 %v478, 4294901760
      %6243 = vmatprep.subr.mxu0 %v6242
      %v6244 = vand.u32 %v477, 4294901760
      %6245 = vmatpush2.msra.mxu0 %v6244
      %v6246 = vand.u32 %v474, 4294901760
      %6247 = vmatprep.subr.mxu0 %v6246
      %v6248 = vand.u32 %v473, 4294901760
      %6249 = vmatpush2.msra.mxu0 %v6248
      %v6250 = vand.u32 %v470, 4294901760
      %6251 = vmatprep.subr.mxu0 %v6250
      %v6252 = vand.u32 %v469, 4294901760
      %6253 = vmatpush2.msra.mxu0 %v6252
      %v6254 = vand.u32 %v466, 4294901760
      %6255 = vmatprep.subr.mxu0 %v6254
      %v6256 = vand.u32 %v465, 4294901760
      %6257 = vmatpush2.msra.mxu0 %v6256
      %v6258 = vand.u32 %v462, 4294901760
      %6259 = vmatprep.subr.mxu0 %v6258
      %v6260 = vand.u32 %v461, 4294901760
      %6261 = vmatpush2.msra.mxu0 %v6260
      %v6262 = vand.u32 %v458, 4294901760
      %6263 = vmatprep.subr.mxu0 %v6262
      %v6264 = vand.u32 %v457, 4294901760
      %6265 = vmatpush2.msra.mxu0 %v6264
      %v6266 = vand.u32 %v454, 4294901760
      %6267 = vmatprep.subr.mxu0 %v6266
      %v6268 = vand.u32 %v453, 4294901760
      %6269 = vmatpush2.msra.mxu0 %v6268
      %v6270 = vand.u32 %v258, 4294901760
      %v6271 = vsub.f32 %v258, %v6270
      %v6272 = vand.u32 %v6271, 4294901760
      %v6273 = vsub.f32 %v6271, %v6272
      %v6274 = vand.u32 %v6273, 4294901760
      %6275 = vmatprep.mubr.f32.mxu0 %v6274
      %v6276 = vand.u32 %v257, 4294901760
      %v6277 = vsub.f32 %v257, %v6276
      %v6278 = vand.u32 %v6277, 4294901760
      %v6279 = vsub.f32 %v6277, %v6278
      %v6280 = vand.u32 %v6279, 4294901760
      %6281 = vmatmul.mubr.f32.gmra.mxu0 %v6280
      %v6282 = vpop.f32.mrf.mxu0
      %v6283 = vadd.f32 %v6138, %v6282
      %v6284 = vpop.f32.mrf.mxu0
      %v6285 = vadd.f32 %v6140, %v6284
      %6286 = vdwg.mxu0
      %v6287 = vand.u32 %v450, 4294901760
      %v6288 = vsub.f32 %v450, %v6287
      %v6289 = vand.u32 %v6288, 4294901760
      %v6290 = vsub.f32 %v6288, %v6289
      %v6291 = vand.u32 %v6290, 4294901760
      %6292 = vmatprep.subr.mxu0 %v6291
      %v6293 = vand.u32 %v449, 4294901760
      %v6294 = vsub.f32 %v449, %v6293
      %v6295 = vand.u32 %v6294, 4294901760
      %v6296 = vsub.f32 %v6294, %v6295
      %v6297 = vand.u32 %v6296, 4294901760
      %6298 = vmatpush1.msra.mxu0 %v6297
      %v6299 = vand.u32 %v446, 4294901760
      %v6300 = vsub.f32 %v446, %v6299
      %v6301 = vand.u32 %v6300, 4294901760
      %v6302 = vsub.f32 %v6300, %v6301
      %v6303 = vand.u32 %v6302, 4294901760
      %6304 = vmatprep.subr.mxu0 %v6303
      %v6305 = vand.u32 %v445, 4294901760
      %v6306 = vsub.f32 %v445, %v6305
      %v6307 = vand.u32 %v6306, 4294901760
      %v6308 = vsub.f32 %v6306, %v6307
      %v6309 = vand.u32 %v6308, 4294901760
      %6310 = vmatpush1.msra.mxu0 %v6309
      %v6311 = vand.u32 %v442, 4294901760
      %v6312 = vsub.f32 %v442, %v6311
      %v6313 = vand.u32 %v6312, 4294901760
      %v6314 = vsub.f32 %v6312, %v6313
      %v6315 = vand.u32 %v6314, 4294901760
      %6316 = vmatprep.subr.mxu0 %v6315
      %v6317 = vand.u32 %v441, 4294901760
      %v6318 = vsub.f32 %v441, %v6317
      %v6319 = vand.u32 %v6318, 4294901760
      %v6320 = vsub.f32 %v6318, %v6319
      %v6321 = vand.u32 %v6320, 4294901760
      %6322 = vmatpush1.msra.mxu0 %v6321
      %v6323 = vand.u32 %v438, 4294901760
      %v6324 = vsub.f32 %v438, %v6323
      %v6325 = vand.u32 %v6324, 4294901760
      %v6326 = vsub.f32 %v6324, %v6325
      %v6327 = vand.u32 %v6326, 4294901760
      %6328 = vmatprep.subr.mxu0 %v6327
      %v6329 = vand.u32 %v437, 4294901760
      %v6330 = vsub.f32 %v437, %v6329
      %v6331 = vand.u32 %v6330, 4294901760
      %v6332 = vsub.f32 %v6330, %v6331
      %v6333 = vand.u32 %v6332, 4294901760
      %6334 = vmatpush1.msra.mxu0 %v6333
      %v6335 = vand.u32 %v434, 4294901760
      %v6336 = vsub.f32 %v434, %v6335
      %v6337 = vand.u32 %v6336, 4294901760
      %v6338 = vsub.f32 %v6336, %v6337
      %v6339 = vand.u32 %v6338, 4294901760
      %6340 = vmatprep.subr.mxu0 %v6339
      %v6341 = vand.u32 %v433, 4294901760
      %v6342 = vsub.f32 %v433, %v6341
      %v6343 = vand.u32 %v6342, 4294901760
      %v6344 = vsub.f32 %v6342, %v6343
      %v6345 = vand.u32 %v6344, 4294901760
      %6346 = vmatpush1.msra.mxu0 %v6345
      %v6347 = vand.u32 %v430, 4294901760
      %v6348 = vsub.f32 %v430, %v6347
      %v6349 = vand.u32 %v6348, 4294901760
      %v6350 = vsub.f32 %v6348, %v6349
      %v6351 = vand.u32 %v6350, 4294901760
      %6352 = vmatprep.subr.mxu0 %v6351
      %v6353 = vand.u32 %v429, 4294901760
      %v6354 = vsub.f32 %v429, %v6353
      %v6355 = vand.u32 %v6354, 4294901760
      %v6356 = vsub.f32 %v6354, %v6355
      %v6357 = vand.u32 %v6356, 4294901760
      %6358 = vmatpush1.msra.mxu0 %v6357
      %v6359 = vand.u32 %v426, 4294901760
      %v6360 = vsub.f32 %v426, %v6359
      %v6361 = vand.u32 %v6360, 4294901760
      %v6362 = vsub.f32 %v6360, %v6361
      %v6363 = vand.u32 %v6362, 4294901760
      %6364 = vmatprep.subr.mxu0 %v6363
      %v6365 = vand.u32 %v425, 4294901760
      %v6366 = vsub.f32 %v425, %v6365
      %v6367 = vand.u32 %v6366, 4294901760
      %v6368 = vsub.f32 %v6366, %v6367
      %v6369 = vand.u32 %v6368, 4294901760
      %6370 = vmatpush1.msra.mxu0 %v6369
      %v6371 = vand.u32 %v422, 4294901760
      %v6372 = vsub.f32 %v422, %v6371
      %v6373 = vand.u32 %v6372, 4294901760
      %v6374 = vsub.f32 %v6372, %v6373
      %v6375 = vand.u32 %v6374, 4294901760
      %6376 = vmatprep.subr.mxu0 %v6375
      %v6377 = vand.u32 %v421, 4294901760
      %v6378 = vsub.f32 %v421, %v6377
      %v6379 = vand.u32 %v6378, 4294901760
      %v6380 = vsub.f32 %v6378, %v6379
      %v6381 = vand.u32 %v6380, 4294901760
      %6382 = vmatpush1.msra.mxu0 %v6381
      %v6383 = vand.u32 %v418, 4294901760
      %v6384 = vsub.f32 %v418, %v6383
      %v6385 = vand.u32 %v6384, 4294901760
      %v6386 = vsub.f32 %v6384, %v6385
      %v6387 = vand.u32 %v6386, 4294901760
      %6388 = vmatprep.subr.mxu0 %v6387
      %v6389 = vand.u32 %v417, 4294901760
      %v6390 = vsub.f32 %v417, %v6389
      %v6391 = vand.u32 %v6390, 4294901760
      %v6392 = vsub.f32 %v6390, %v6391
      %v6393 = vand.u32 %v6392, 4294901760
      %6394 = vmatpush1.msra.mxu0 %v6393
      %v6395 = vand.u32 %v414, 4294901760
      %v6396 = vsub.f32 %v414, %v6395
      %v6397 = vand.u32 %v6396, 4294901760
      %v6398 = vsub.f32 %v6396, %v6397
      %v6399 = vand.u32 %v6398, 4294901760
      %6400 = vmatprep.subr.mxu0 %v6399
      %v6401 = vand.u32 %v413, 4294901760
      %v6402 = vsub.f32 %v413, %v6401
      %v6403 = vand.u32 %v6402, 4294901760
      %v6404 = vsub.f32 %v6402, %v6403
      %v6405 = vand.u32 %v6404, 4294901760
      %6406 = vmatpush1.msra.mxu0 %v6405
      %v6407 = vand.u32 %v410, 4294901760
      %v6408 = vsub.f32 %v410, %v6407
      %v6409 = vand.u32 %v6408, 4294901760
      %v6410 = vsub.f32 %v6408, %v6409
      %v6411 = vand.u32 %v6410, 4294901760
      %6412 = vmatprep.subr.mxu0 %v6411
      %v6413 = vand.u32 %v409, 4294901760
      %v6414 = vsub.f32 %v409, %v6413
      %v6415 = vand.u32 %v6414, 4294901760
      %v6416 = vsub.f32 %v6414, %v6415
      %v6417 = vand.u32 %v6416, 4294901760
      %6418 = vmatpush1.msra.mxu0 %v6417
      %v6419 = vand.u32 %v406, 4294901760
      %v6420 = vsub.f32 %v406, %v6419
      %v6421 = vand.u32 %v6420, 4294901760
      %v6422 = vsub.f32 %v6420, %v6421
      %v6423 = vand.u32 %v6422, 4294901760
      %6424 = vmatprep.subr.mxu0 %v6423
      %v6425 = vand.u32 %v405, 4294901760
      %v6426 = vsub.f32 %v405, %v6425
      %v6427 = vand.u32 %v6426, 4294901760
      %v6428 = vsub.f32 %v6426, %v6427
      %v6429 = vand.u32 %v6428, 4294901760
      %6430 = vmatpush1.msra.mxu0 %v6429
      %v6431 = vand.u32 %v402, 4294901760
      %v6432 = vsub.f32 %v402, %v6431
      %v6433 = vand.u32 %v6432, 4294901760
      %v6434 = vsub.f32 %v6432, %v6433
      %v6435 = vand.u32 %v6434, 4294901760
      %6436 = vmatprep.subr.mxu0 %v6435
      %v6437 = vand.u32 %v401, 4294901760
      %v6438 = vsub.f32 %v401, %v6437
      %v6439 = vand.u32 %v6438, 4294901760
      %v6440 = vsub.f32 %v6438, %v6439
      %v6441 = vand.u32 %v6440, 4294901760
      %6442 = vmatpush1.msra.mxu0 %v6441
      %v6443 = vand.u32 %v398, 4294901760
      %v6444 = vsub.f32 %v398, %v6443
      %v6445 = vand.u32 %v6444, 4294901760
      %v6446 = vsub.f32 %v6444, %v6445
      %v6447 = vand.u32 %v6446, 4294901760
      %6448 = vmatprep.subr.mxu0 %v6447
      %v6449 = vand.u32 %v397, 4294901760
      %v6450 = vsub.f32 %v397, %v6449
      %v6451 = vand.u32 %v6450, 4294901760
      %v6452 = vsub.f32 %v6450, %v6451
      %v6453 = vand.u32 %v6452, 4294901760
      %6454 = vmatpush1.msra.mxu0 %v6453
      %v6455 = vand.u32 %v394, 4294901760
      %v6456 = vsub.f32 %v394, %v6455
      %v6457 = vand.u32 %v6456, 4294901760
      %v6458 = vsub.f32 %v6456, %v6457
      %v6459 = vand.u32 %v6458, 4294901760
      %6460 = vmatprep.subr.mxu0 %v6459
      %v6461 = vand.u32 %v393, 4294901760
      %v6462 = vsub.f32 %v393, %v6461
      %v6463 = vand.u32 %v6462, 4294901760
      %v6464 = vsub.f32 %v6462, %v6463
      %v6465 = vand.u32 %v6464, 4294901760
      %6466 = vmatpush1.msra.mxu0 %v6465
      %v6467 = vand.u32 %v390, 4294901760
      %v6468 = vsub.f32 %v390, %v6467
      %v6469 = vand.u32 %v6468, 4294901760
      %v6470 = vsub.f32 %v6468, %v6469
      %v6471 = vand.u32 %v6470, 4294901760
      %6472 = vmatprep.subr.mxu0 %v6471
      %v6473 = vand.u32 %v389, 4294901760
      %v6474 = vsub.f32 %v389, %v6473
      %v6475 = vand.u32 %v6474, 4294901760
      %v6476 = vsub.f32 %v6474, %v6475
      %v6477 = vand.u32 %v6476, 4294901760
      %6478 = vmatpush1.msra.mxu0 %v6477
      %v6479 = vand.u32 %v514, 4294901760
      %v6480 = vsub.f32 %v514, %v6479
      %v6481 = vand.u32 %v6480, 4294901760
      %v6482 = vsub.f32 %v6480, %v6481
      %v6483 = vand.u32 %v6482, 4294901760
      %6484 = vmatprep.subr.mxu0 %v6483
      %v6485 = vand.u32 %v513, 4294901760
      %v6486 = vsub.f32 %v513, %v6485
      %v6487 = vand.u32 %v6486, 4294901760
      %v6488 = vsub.f32 %v6486, %v6487
      %v6489 = vand.u32 %v6488, 4294901760
      %6490 = vmatpush2.msra.mxu0 %v6489
      %v6491 = vand.u32 %v510, 4294901760
      %v6492 = vsub.f32 %v510, %v6491
      %v6493 = vand.u32 %v6492, 4294901760
      %v6494 = vsub.f32 %v6492, %v6493
      %v6495 = vand.u32 %v6494, 4294901760
      %6496 = vmatprep.subr.mxu0 %v6495
      %v6497 = vand.u32 %v509, 4294901760
      %v6498 = vsub.f32 %v509, %v6497
      %v6499 = vand.u32 %v6498, 4294901760
      %v6500 = vsub.f32 %v6498, %v6499
      %v6501 = vand.u32 %v6500, 4294901760
      %6502 = vmatpush2.msra.mxu0 %v6501
      %v6503 = vand.u32 %v506, 4294901760
      %v6504 = vsub.f32 %v506, %v6503
      %v6505 = vand.u32 %v6504, 4294901760
      %v6506 = vsub.f32 %v6504, %v6505
      %v6507 = vand.u32 %v6506, 4294901760
      %6508 = vmatprep.subr.mxu0 %v6507
      %v6509 = vand.u32 %v505, 4294901760
      %v6510 = vsub.f32 %v505, %v6509
      %v6511 = vand.u32 %v6510, 4294901760
      %v6512 = vsub.f32 %v6510, %v6511
      %v6513 = vand.u32 %v6512, 4294901760
      %6514 = vmatpush2.msra.mxu0 %v6513
      %v6515 = vand.u32 %v502, 4294901760
      %v6516 = vsub.f32 %v502, %v6515
      %v6517 = vand.u32 %v6516, 4294901760
      %v6518 = vsub.f32 %v6516, %v6517
      %v6519 = vand.u32 %v6518, 4294901760
      %6520 = vmatprep.subr.mxu0 %v6519
      %v6521 = vand.u32 %v501, 4294901760
      %v6522 = vsub.f32 %v501, %v6521
      %v6523 = vand.u32 %v6522, 4294901760
      %v6524 = vsub.f32 %v6522, %v6523
      %v6525 = vand.u32 %v6524, 4294901760
      %6526 = vmatpush2.msra.mxu0 %v6525
      %v6527 = vand.u32 %v498, 4294901760
      %v6528 = vsub.f32 %v498, %v6527
      %v6529 = vand.u32 %v6528, 4294901760
      %v6530 = vsub.f32 %v6528, %v6529
      %v6531 = vand.u32 %v6530, 4294901760
      %6532 = vmatprep.subr.mxu0 %v6531
      %v6533 = vand.u32 %v497, 4294901760
      %v6534 = vsub.f32 %v497, %v6533
      %v6535 = vand.u32 %v6534, 4294901760
      %v6536 = vsub.f32 %v6534, %v6535
      %v6537 = vand.u32 %v6536, 4294901760
      %6538 = vmatpush2.msra.mxu0 %v6537
      %v6539 = vand.u32 %v494, 4294901760
      %v6540 = vsub.f32 %v494, %v6539
      %v6541 = vand.u32 %v6540, 4294901760
      %v6542 = vsub.f32 %v6540, %v6541
      %v6543 = vand.u32 %v6542, 4294901760
      %6544 = vmatprep.subr.mxu0 %v6543
      %v6545 = vand.u32 %v493, 4294901760
      %v6546 = vsub.f32 %v493, %v6545
      %v6547 = vand.u32 %v6546, 4294901760
      %v6548 = vsub.f32 %v6546, %v6547
      %v6549 = vand.u32 %v6548, 4294901760
      %6550 = vmatpush2.msra.mxu0 %v6549
      %v6551 = vand.u32 %v490, 4294901760
      %v6552 = vsub.f32 %v490, %v6551
      %v6553 = vand.u32 %v6552, 4294901760
      %v6554 = vsub.f32 %v6552, %v6553
      %v6555 = vand.u32 %v6554, 4294901760
      %6556 = vmatprep.subr.mxu0 %v6555
      %v6557 = vand.u32 %v489, 4294901760
      %v6558 = vsub.f32 %v489, %v6557
      %v6559 = vand.u32 %v6558, 4294901760
      %v6560 = vsub.f32 %v6558, %v6559
      %v6561 = vand.u32 %v6560, 4294901760
      %6562 = vmatpush2.msra.mxu0 %v6561
      %v6563 = vand.u32 %v486, 4294901760
      %v6564 = vsub.f32 %v486, %v6563
      %v6565 = vand.u32 %v6564, 4294901760
      %v6566 = vsub.f32 %v6564, %v6565
      %v6567 = vand.u32 %v6566, 4294901760
      %6568 = vmatprep.subr.mxu0 %v6567
      %v6569 = vand.u32 %v485, 4294901760
      %v6570 = vsub.f32 %v485, %v6569
      %v6571 = vand.u32 %v6570, 4294901760
      %v6572 = vsub.f32 %v6570, %v6571
      %v6573 = vand.u32 %v6572, 4294901760
      %6574 = vmatpush2.msra.mxu0 %v6573
      %v6575 = vand.u32 %v482, 4294901760
      %v6576 = vsub.f32 %v482, %v6575
      %v6577 = vand.u32 %v6576, 4294901760
      %v6578 = vsub.f32 %v6576, %v6577
      %v6579 = vand.u32 %v6578, 4294901760
      %6580 = vmatprep.subr.mxu0 %v6579
      %v6581 = vand.u32 %v481, 4294901760
      %v6582 = vsub.f32 %v481, %v6581
      %v6583 = vand.u32 %v6582, 4294901760
      %v6584 = vsub.f32 %v6582, %v6583
      %v6585 = vand.u32 %v6584, 4294901760
      %6586 = vmatpush2.msra.mxu0 %v6585
      %v6587 = vand.u32 %v478, 4294901760
      %v6588 = vsub.f32 %v478, %v6587
      %v6589 = vand.u32 %v6588, 4294901760
      %v6590 = vsub.f32 %v6588, %v6589
      %v6591 = vand.u32 %v6590, 4294901760
      %6592 = vmatprep.subr.mxu0 %v6591
      %v6593 = vand.u32 %v477, 4294901760
      %v6594 = vsub.f32 %v477, %v6593
      %v6595 = vand.u32 %v6594, 4294901760
      %v6596 = vsub.f32 %v6594, %v6595
      %v6597 = vand.u32 %v6596, 4294901760
      %6598 = vmatpush2.msra.mxu0 %v6597
      %v6599 = vand.u32 %v474, 4294901760
      %v6600 = vsub.f32 %v474, %v6599
      %v6601 = vand.u32 %v6600, 4294901760
      %v6602 = vsub.f32 %v6600, %v6601
      %v6603 = vand.u32 %v6602, 4294901760
      %6604 = vmatprep.subr.mxu0 %v6603
      %v6605 = vand.u32 %v473, 4294901760
      %v6606 = vsub.f32 %v473, %v6605
      %v6607 = vand.u32 %v6606, 4294901760
      %v6608 = vsub.f32 %v6606, %v6607
      %v6609 = vand.u32 %v6608, 4294901760
      %6610 = vmatpush2.msra.mxu0 %v6609
      %v6611 = vand.u32 %v470, 4294901760
      %v6612 = vsub.f32 %v470, %v6611
      %v6613 = vand.u32 %v6612, 4294901760
      %v6614 = vsub.f32 %v6612, %v6613
      %v6615 = vand.u32 %v6614, 4294901760
      %6616 = vmatprep.subr.mxu0 %v6615
      %v6617 = vand.u32 %v469, 4294901760
      %v6618 = vsub.f32 %v469, %v6617
      %v6619 = vand.u32 %v6618, 4294901760
      %v6620 = vsub.f32 %v6618, %v6619
      %v6621 = vand.u32 %v6620, 4294901760
      %6622 = vmatpush2.msra.mxu0 %v6621
      %v6623 = vand.u32 %v466, 4294901760
      %v6624 = vsub.f32 %v466, %v6623
      %v6625 = vand.u32 %v6624, 4294901760
      %v6626 = vsub.f32 %v6624, %v6625
      %v6627 = vand.u32 %v6626, 4294901760
      %6628 = vmatprep.subr.mxu0 %v6627
      %v6629 = vand.u32 %v465, 4294901760
      %v6630 = vsub.f32 %v465, %v6629
      %v6631 = vand.u32 %v6630, 4294901760
      %v6632 = vsub.f32 %v6630, %v6631
      %v6633 = vand.u32 %v6632, 4294901760
      %6634 = vmatpush2.msra.mxu0 %v6633
      %v6635 = vand.u32 %v462, 4294901760
      %v6636 = vsub.f32 %v462, %v6635
      %v6637 = vand.u32 %v6636, 4294901760
      %v6638 = vsub.f32 %v6636, %v6637
      %v6639 = vand.u32 %v6638, 4294901760
      %6640 = vmatprep.subr.mxu0 %v6639
      %v6641 = vand.u32 %v461, 4294901760
      %v6642 = vsub.f32 %v461, %v6641
      %v6643 = vand.u32 %v6642, 4294901760
      %v6644 = vsub.f32 %v6642, %v6643
      %v6645 = vand.u32 %v6644, 4294901760
      %6646 = vmatpush2.msra.mxu0 %v6645
      %v6647 = vand.u32 %v458, 4294901760
      %v6648 = vsub.f32 %v458, %v6647
      %v6649 = vand.u32 %v6648, 4294901760
      %v6650 = vsub.f32 %v6648, %v6649
      %v6651 = vand.u32 %v6650, 4294901760
      %6652 = vmatprep.subr.mxu0 %v6651
      %v6653 = vand.u32 %v457, 4294901760
      %v6654 = vsub.f32 %v457, %v6653
      %v6655 = vand.u32 %v6654, 4294901760
      %v6656 = vsub.f32 %v6654, %v6655
      %v6657 = vand.u32 %v6656, 4294901760
      %6658 = vmatpush2.msra.mxu0 %v6657
      %v6659 = vand.u32 %v454, 4294901760
      %v6660 = vsub.f32 %v454, %v6659
      %v6661 = vand.u32 %v6660, 4294901760
      %v6662 = vsub.f32 %v6660, %v6661
      %v6663 = vand.u32 %v6662, 4294901760
      %6664 = vmatprep.subr.mxu0 %v6663
      %v6665 = vand.u32 %v453, 4294901760
      %v6666 = vsub.f32 %v453, %v6665
      %v6667 = vand.u32 %v6666, 4294901760
      %v6668 = vsub.f32 %v6666, %v6667
      %v6669 = vand.u32 %v6668, 4294901760
      %6670 = vmatpush2.msra.mxu0 %v6669
      %v6671 = vand.u32 %v258, 4294901760
      %6672 = vmatprep.mubr.f32.mxu0 %v6671
      %v6673 = vand.u32 %v257, 4294901760
      %6674 = vmatmul.mubr.f32.gmra.mxu0 %v6673
      %v6675 = vpop.f32.mrf.mxu0
      %v6676 = vadd.f32 %v6283, %v6675
      %v6677 = vpop.f32.mrf.mxu0
      %v6678 = vadd.f32 %v6285, %v6677
      %6679 = vdwg.mxu0
      %v6680 = vand.u32 %v450, 4294901760
      %v6681 = vsub.f32 %v450, %v6680
      %6682 = vmatprep.subr.mxu0 %v6681
      %v6683 = vand.u32 %v449, 4294901760
      %v6684 = vsub.f32 %v449, %v6683
      %6685 = vmatpush1.msra.mxu0 %v6684
      %v6686 = vand.u32 %v446, 4294901760
      %v6687 = vsub.f32 %v446, %v6686
      %6688 = vmatprep.subr.mxu0 %v6687
      %v6689 = vand.u32 %v445, 4294901760
      %v6690 = vsub.f32 %v445, %v6689
      %6691 = vmatpush1.msra.mxu0 %v6690
      %v6692 = vand.u32 %v442, 4294901760
      %v6693 = vsub.f32 %v442, %v6692
      %6694 = vmatprep.subr.mxu0 %v6693
      %v6695 = vand.u32 %v441, 4294901760
      %v6696 = vsub.f32 %v441, %v6695
      %6697 = vmatpush1.msra.mxu0 %v6696
      %v6698 = vand.u32 %v438, 4294901760
      %v6699 = vsub.f32 %v438, %v6698
      %6700 = vmatprep.subr.mxu0 %v6699
      %v6701 = vand.u32 %v437, 4294901760
      %v6702 = vsub.f32 %v437, %v6701
      %6703 = vmatpush1.msra.mxu0 %v6702
      %v6704 = vand.u32 %v434, 4294901760
      %v6705 = vsub.f32 %v434, %v6704
      %6706 = vmatprep.subr.mxu0 %v6705
      %v6707 = vand.u32 %v433, 4294901760
      %v6708 = vsub.f32 %v433, %v6707
      %6709 = vmatpush1.msra.mxu0 %v6708
      %v6710 = vand.u32 %v430, 4294901760
      %v6711 = vsub.f32 %v430, %v6710
      %6712 = vmatprep.subr.mxu0 %v6711
      %v6713 = vand.u32 %v429, 4294901760
      %v6714 = vsub.f32 %v429, %v6713
      %6715 = vmatpush1.msra.mxu0 %v6714
      %v6716 = vand.u32 %v426, 4294901760
      %v6717 = vsub.f32 %v426, %v6716
      %6718 = vmatprep.subr.mxu0 %v6717
      %v6719 = vand.u32 %v425, 4294901760
      %v6720 = vsub.f32 %v425, %v6719
      %6721 = vmatpush1.msra.mxu0 %v6720
      %v6722 = vand.u32 %v422, 4294901760
      %v6723 = vsub.f32 %v422, %v6722
      %6724 = vmatprep.subr.mxu0 %v6723
      %v6725 = vand.u32 %v421, 4294901760
      %v6726 = vsub.f32 %v421, %v6725
      %6727 = vmatpush1.msra.mxu0 %v6726
      %v6728 = vand.u32 %v418, 4294901760
      %v6729 = vsub.f32 %v418, %v6728
      %6730 = vmatprep.subr.mxu0 %v6729
      %v6731 = vand.u32 %v417, 4294901760
      %v6732 = vsub.f32 %v417, %v6731
      %6733 = vmatpush1.msra.mxu0 %v6732
      %v6734 = vand.u32 %v414, 4294901760
      %v6735 = vsub.f32 %v414, %v6734
      %6736 = vmatprep.subr.mxu0 %v6735
      %v6737 = vand.u32 %v413, 4294901760
      %v6738 = vsub.f32 %v413, %v6737
      %6739 = vmatpush1.msra.mxu0 %v6738
      %v6740 = vand.u32 %v410, 4294901760
      %v6741 = vsub.f32 %v410, %v6740
      %6742 = vmatprep.subr.mxu0 %v6741
      %v6743 = vand.u32 %v409, 4294901760
      %v6744 = vsub.f32 %v409, %v6743
      %6745 = vmatpush1.msra.mxu0 %v6744
      %v6746 = vand.u32 %v406, 4294901760
      %v6747 = vsub.f32 %v406, %v6746
      %6748 = vmatprep.subr.mxu0 %v6747
      %v6749 = vand.u32 %v405, 4294901760
      %v6750 = vsub.f32 %v405, %v6749
      %6751 = vmatpush1.msra.mxu0 %v6750
      %v6752 = vand.u32 %v402, 4294901760
      %v6753 = vsub.f32 %v402, %v6752
      %6754 = vmatprep.subr.mxu0 %v6753
      %v6755 = vand.u32 %v401, 4294901760
      %v6756 = vsub.f32 %v401, %v6755
      %6757 = vmatpush1.msra.mxu0 %v6756
      %v6758 = vand.u32 %v398, 4294901760
      %v6759 = vsub.f32 %v398, %v6758
      %6760 = vmatprep.subr.mxu0 %v6759
      %v6761 = vand.u32 %v397, 4294901760
      %v6762 = vsub.f32 %v397, %v6761
      %6763 = vmatpush1.msra.mxu0 %v6762
      %v6764 = vand.u32 %v394, 4294901760
      %v6765 = vsub.f32 %v394, %v6764
      %6766 = vmatprep.subr.mxu0 %v6765
      %v6767 = vand.u32 %v393, 4294901760
      %v6768 = vsub.f32 %v393, %v6767
      %6769 = vmatpush1.msra.mxu0 %v6768
      %v6770 = vand.u32 %v390, 4294901760
      %v6771 = vsub.f32 %v390, %v6770
      %6772 = vmatprep.subr.mxu0 %v6771
      %v6773 = vand.u32 %v389, 4294901760
      %v6774 = vsub.f32 %v389, %v6773
      %6775 = vmatpush1.msra.mxu0 %v6774
      %v6776 = vand.u32 %v514, 4294901760
      %v6777 = vsub.f32 %v514, %v6776
      %6778 = vmatprep.subr.mxu0 %v6777
      %v6779 = vand.u32 %v513, 4294901760
      %v6780 = vsub.f32 %v513, %v6779
      %6781 = vmatpush2.msra.mxu0 %v6780
      %v6782 = vand.u32 %v510, 4294901760
      %v6783 = vsub.f32 %v510, %v6782
      %6784 = vmatprep.subr.mxu0 %v6783
      %v6785 = vand.u32 %v509, 4294901760
      %v6786 = vsub.f32 %v509, %v6785
      %6787 = vmatpush2.msra.mxu0 %v6786
      %v6788 = vand.u32 %v506, 4294901760
      %v6789 = vsub.f32 %v506, %v6788
      %6790 = vmatprep.subr.mxu0 %v6789
      %v6791 = vand.u32 %v505, 4294901760
      %v6792 = vsub.f32 %v505, %v6791
      %6793 = vmatpush2.msra.mxu0 %v6792
      %v6794 = vand.u32 %v502, 4294901760
      %v6795 = vsub.f32 %v502, %v6794
      %6796 = vmatprep.subr.mxu0 %v6795
      %v6797 = vand.u32 %v501, 4294901760
      %v6798 = vsub.f32 %v501, %v6797
      %6799 = vmatpush2.msra.mxu0 %v6798
      %v6800 = vand.u32 %v498, 4294901760
      %v6801 = vsub.f32 %v498, %v6800
      %6802 = vmatprep.subr.mxu0 %v6801
      %v6803 = vand.u32 %v497, 4294901760
      %v6804 = vsub.f32 %v497, %v6803
      %6805 = vmatpush2.msra.mxu0 %v6804
      %v6806 = vand.u32 %v494, 4294901760
      %v6807 = vsub.f32 %v494, %v6806
      %6808 = vmatprep.subr.mxu0 %v6807
      %v6809 = vand.u32 %v493, 4294901760
      %v6810 = vsub.f32 %v493, %v6809
      %6811 = vmatpush2.msra.mxu0 %v6810
      %v6812 = vand.u32 %v490, 4294901760
      %v6813 = vsub.f32 %v490, %v6812
      %6814 = vmatprep.subr.mxu0 %v6813
      %v6815 = vand.u32 %v489, 4294901760
      %v6816 = vsub.f32 %v489, %v6815
      %6817 = vmatpush2.msra.mxu0 %v6816
      %v6818 = vand.u32 %v486, 4294901760
      %v6819 = vsub.f32 %v486, %v6818
      %6820 = vmatprep.subr.mxu0 %v6819
      %v6821 = vand.u32 %v485, 4294901760
      %v6822 = vsub.f32 %v485, %v6821
      %6823 = vmatpush2.msra.mxu0 %v6822
      %v6824 = vand.u32 %v482, 4294901760
      %v6825 = vsub.f32 %v482, %v6824
      %6826 = vmatprep.subr.mxu0 %v6825
      %v6827 = vand.u32 %v481, 4294901760
      %v6828 = vsub.f32 %v481, %v6827
      %6829 = vmatpush2.msra.mxu0 %v6828
      %v6830 = vand.u32 %v478, 4294901760
      %v6831 = vsub.f32 %v478, %v6830
      %6832 = vmatprep.subr.mxu0 %v6831
      %v6833 = vand.u32 %v477, 4294901760
      %v6834 = vsub.f32 %v477, %v6833
      %6835 = vmatpush2.msra.mxu0 %v6834
      %v6836 = vand.u32 %v474, 4294901760
      %v6837 = vsub.f32 %v474, %v6836
      %6838 = vmatprep.subr.mxu0 %v6837
      %v6839 = vand.u32 %v473, 4294901760
      %v6840 = vsub.f32 %v473, %v6839
      %6841 = vmatpush2.msra.mxu0 %v6840
      %v6842 = vand.u32 %v470, 4294901760
      %v6843 = vsub.f32 %v470, %v6842
      %6844 = vmatprep.subr.mxu0 %v6843
      %v6845 = vand.u32 %v469, 4294901760
      %v6846 = vsub.f32 %v469, %v6845
      %6847 = vmatpush2.msra.mxu0 %v6846
      %v6848 = vand.u32 %v466, 4294901760
      %v6849 = vsub.f32 %v466, %v6848
      %6850 = vmatprep.subr.mxu0 %v6849
      %v6851 = vand.u32 %v465, 4294901760
      %v6852 = vsub.f32 %v465, %v6851
      %6853 = vmatpush2.msra.mxu0 %v6852
      %v6854 = vand.u32 %v462, 4294901760
      %v6855 = vsub.f32 %v462, %v6854
      %6856 = vmatprep.subr.mxu0 %v6855
      %v6857 = vand.u32 %v461, 4294901760
      %v6858 = vsub.f32 %v461, %v6857
      %6859 = vmatpush2.msra.mxu0 %v6858
      %v6860 = vand.u32 %v458, 4294901760
      %v6861 = vsub.f32 %v458, %v6860
      %6862 = vmatprep.subr.mxu0 %v6861
      %v6863 = vand.u32 %v457, 4294901760
      %v6864 = vsub.f32 %v457, %v6863
      %6865 = vmatpush2.msra.mxu0 %v6864
      %v6866 = vand.u32 %v454, 4294901760
      %v6867 = vsub.f32 %v454, %v6866
      %6868 = vmatprep.subr.mxu0 %v6867
      %v6869 = vand.u32 %v453, 4294901760
      %v6870 = vsub.f32 %v453, %v6869
      %6871 = vmatpush2.msra.mxu0 %v6870
      %v6872 = vand.u32 %v258, 4294901760
      %v6873 = vsub.f32 %v258, %v6872
      %6874 = vmatprep.mubr.f32.mxu0 %v6873
      %v6875 = vand.u32 %v257, 4294901760
      %v6876 = vsub.f32 %v257, %v6875
      %6877 = vmatmul.mubr.f32.gmra.mxu0 %v6876
      %v6878 = vpop.f32.mrf.mxu0
      %v6879 = vadd.f32 %v6676, %v6878
      %v6880 = vpop.f32.mrf.mxu0
      %v6881 = vadd.f32 %v6678, %v6880
      %6882 = vdwg.mxu0
      %v6883 = vand.u32 %v450, 4294901760
      %6884 = vmatprep.subr.mxu0 %v6883
      %v6885 = vand.u32 %v449, 4294901760
      %6886 = vmatpush1.msra.mxu0 %v6885
      %v6887 = vand.u32 %v446, 4294901760
      %6888 = vmatprep.subr.mxu0 %v6887
      %v6889 = vand.u32 %v445, 4294901760
      %6890 = vmatpush1.msra.mxu0 %v6889
      %v6891 = vand.u32 %v442, 4294901760
      %6892 = vmatprep.subr.mxu0 %v6891
      %v6893 = vand.u32 %v441, 4294901760
      %6894 = vmatpush1.msra.mxu0 %v6893
      %v6895 = vand.u32 %v438, 4294901760
      %6896 = vmatprep.subr.mxu0 %v6895
      %v6897 = vand.u32 %v437, 4294901760
      %6898 = vmatpush1.msra.mxu0 %v6897
      %v6899 = vand.u32 %v434, 4294901760
      %6900 = vmatprep.subr.mxu0 %v6899
      %v6901 = vand.u32 %v433, 4294901760
      %6902 = vmatpush1.msra.mxu0 %v6901
      %v6903 = vand.u32 %v430, 4294901760
      %6904 = vmatprep.subr.mxu0 %v6903
      %v6905 = vand.u32 %v429, 4294901760
      %6906 = vmatpush1.msra.mxu0 %v6905
      %v6907 = vand.u32 %v426, 4294901760
      %6908 = vmatprep.subr.mxu0 %v6907
      %v6909 = vand.u32 %v425, 4294901760
      %6910 = vmatpush1.msra.mxu0 %v6909
      %v6911 = vand.u32 %v422, 4294901760
      %6912 = vmatprep.subr.mxu0 %v6911
      %v6913 = vand.u32 %v421, 4294901760
      %6914 = vmatpush1.msra.mxu0 %v6913
      %v6915 = vand.u32 %v418, 4294901760
      %6916 = vmatprep.subr.mxu0 %v6915
      %v6917 = vand.u32 %v417, 4294901760
      %6918 = vmatpush1.msra.mxu0 %v6917
      %v6919 = vand.u32 %v414, 4294901760
      %6920 = vmatprep.subr.mxu0 %v6919
      %v6921 = vand.u32 %v413, 4294901760
      %6922 = vmatpush1.msra.mxu0 %v6921
      %v6923 = vand.u32 %v410, 4294901760
      %6924 = vmatprep.subr.mxu0 %v6923
      %v6925 = vand.u32 %v409, 4294901760
      %6926 = vmatpush1.msra.mxu0 %v6925
      %v6927 = vand.u32 %v406, 4294901760
      %6928 = vmatprep.subr.mxu0 %v6927
      %v6929 = vand.u32 %v405, 4294901760
      %6930 = vmatpush1.msra.mxu0 %v6929
      %v6931 = vand.u32 %v402, 4294901760
      %6932 = vmatprep.subr.mxu0 %v6931
      %v6933 = vand.u32 %v401, 4294901760
      %6934 = vmatpush1.msra.mxu0 %v6933
      %v6935 = vand.u32 %v398, 4294901760
      %6936 = vmatprep.subr.mxu0 %v6935
      %v6937 = vand.u32 %v397, 4294901760
      %6938 = vmatpush1.msra.mxu0 %v6937
      %v6939 = vand.u32 %v394, 4294901760
      %6940 = vmatprep.subr.mxu0 %v6939
      %v6941 = vand.u32 %v393, 4294901760
      %6942 = vmatpush1.msra.mxu0 %v6941
      %v6943 = vand.u32 %v390, 4294901760
      %6944 = vmatprep.subr.mxu0 %v6943
      %v6945 = vand.u32 %v389, 4294901760
      %6946 = vmatpush1.msra.mxu0 %v6945
      %v6947 = vand.u32 %v514, 4294901760
      %6948 = vmatprep.subr.mxu0 %v6947
      %v6949 = vand.u32 %v513, 4294901760
      %6950 = vmatpush2.msra.mxu0 %v6949
      %v6951 = vand.u32 %v510, 4294901760
      %6952 = vmatprep.subr.mxu0 %v6951
      %v6953 = vand.u32 %v509, 4294901760
      %6954 = vmatpush2.msra.mxu0 %v6953
      %v6955 = vand.u32 %v506, 4294901760
      %6956 = vmatprep.subr.mxu0 %v6955
      %v6957 = vand.u32 %v505, 4294901760
      %6958 = vmatpush2.msra.mxu0 %v6957
      %v6959 = vand.u32 %v502, 4294901760
      %6960 = vmatprep.subr.mxu0 %v6959
      %v6961 = vand.u32 %v501, 4294901760
      %6962 = vmatpush2.msra.mxu0 %v6961
      %v6963 = vand.u32 %v498, 4294901760
      %6964 = vmatprep.subr.mxu0 %v6963
      %v6965 = vand.u32 %v497, 4294901760
      %6966 = vmatpush2.msra.mxu0 %v6965
      %v6967 = vand.u32 %v494, 4294901760
      %6968 = vmatprep.subr.mxu0 %v6967
      %v6969 = vand.u32 %v493, 4294901760
      %6970 = vmatpush2.msra.mxu0 %v6969
      %v6971 = vand.u32 %v490, 4294901760
      %6972 = vmatprep.subr.mxu0 %v6971
      %v6973 = vand.u32 %v489, 4294901760
      %6974 = vmatpush2.msra.mxu0 %v6973
      %v6975 = vand.u32 %v486, 4294901760
      %6976 = vmatprep.subr.mxu0 %v6975
      %v6977 = vand.u32 %v485, 4294901760
      %6978 = vmatpush2.msra.mxu0 %v6977
      %v6979 = vand.u32 %v482, 4294901760
      %6980 = vmatprep.subr.mxu0 %v6979
      %v6981 = vand.u32 %v481, 4294901760
      %6982 = vmatpush2.msra.mxu0 %v6981
      %v6983 = vand.u32 %v478, 4294901760
      %6984 = vmatprep.subr.mxu0 %v6983
      %v6985 = vand.u32 %v477, 4294901760
      %6986 = vmatpush2.msra.mxu0 %v6985
      %v6987 = vand.u32 %v474, 4294901760
      %6988 = vmatprep.subr.mxu0 %v6987
      %v6989 = vand.u32 %v473, 4294901760
      %6990 = vmatpush2.msra.mxu0 %v6989
      %v6991 = vand.u32 %v470, 4294901760
      %6992 = vmatprep.subr.mxu0 %v6991
      %v6993 = vand.u32 %v469, 4294901760
      %6994 = vmatpush2.msra.mxu0 %v6993
      %v6995 = vand.u32 %v466, 4294901760
      %6996 = vmatprep.subr.mxu0 %v6995
      %v6997 = vand.u32 %v465, 4294901760
      %6998 = vmatpush2.msra.mxu0 %v6997
      %v6999 = vand.u32 %v462, 4294901760
      %7000 = vmatprep.subr.mxu0 %v6999
      %v7001 = vand.u32 %v461, 4294901760
      %7002 = vmatpush2.msra.mxu0 %v7001
      %v7003 = vand.u32 %v458, 4294901760
      %7004 = vmatprep.subr.mxu0 %v7003
      %v7005 = vand.u32 %v457, 4294901760
      %7006 = vmatpush2.msra.mxu0 %v7005
      %v7007 = vand.u32 %v454, 4294901760
      %7008 = vmatprep.subr.mxu0 %v7007
      %v7009 = vand.u32 %v453, 4294901760
      %7010 = vmatpush2.msra.mxu0 %v7009
      %v7011 = vand.u32 %v258, 4294901760
      %v7012 = vsub.f32 %v258, %v7011
      %v7013 = vand.u32 %v7012, 4294901760
      %7014 = vmatprep.mubr.f32.mxu0 %v7013
      %v7015 = vand.u32 %v257, 4294901760
      %v7016 = vsub.f32 %v257, %v7015
      %v7017 = vand.u32 %v7016, 4294901760
      %7018 = vmatmul.mubr.f32.gmra.mxu0 %v7017
      %v7019 = vpop.f32.mrf.mxu0
      %v7020 = vadd.f32 %v6879, %v7019
      %v7021 = vpop.f32.mrf.mxu0
      %v7022 = vadd.f32 %v6881, %v7021
      %7023 = vdwg.mxu0
      %v7024 = vand.u32 %v450, 4294901760
      %v7025 = vsub.f32 %v450, %v7024
      %v7026 = vand.u32 %v7025, 4294901760
      %7027 = vmatprep.subr.mxu0 %v7026
      %v7028 = vand.u32 %v449, 4294901760
      %v7029 = vsub.f32 %v449, %v7028
      %v7030 = vand.u32 %v7029, 4294901760
      %7031 = vmatpush1.msra.mxu0 %v7030
      %v7032 = vand.u32 %v446, 4294901760
      %v7033 = vsub.f32 %v446, %v7032
      %v7034 = vand.u32 %v7033, 4294901760
      %7035 = vmatprep.subr.mxu0 %v7034
      %v7036 = vand.u32 %v445, 4294901760
      %v7037 = vsub.f32 %v445, %v7036
      %v7038 = vand.u32 %v7037, 4294901760
      %7039 = vmatpush1.msra.mxu0 %v7038
      %v7040 = vand.u32 %v442, 4294901760
      %v7041 = vsub.f32 %v442, %v7040
      %v7042 = vand.u32 %v7041, 4294901760
      %7043 = vmatprep.subr.mxu0 %v7042
      %v7044 = vand.u32 %v441, 4294901760
      %v7045 = vsub.f32 %v441, %v7044
      %v7046 = vand.u32 %v7045, 4294901760
      %7047 = vmatpush1.msra.mxu0 %v7046
      %v7048 = vand.u32 %v438, 4294901760
      %v7049 = vsub.f32 %v438, %v7048
      %v7050 = vand.u32 %v7049, 4294901760
      %7051 = vmatprep.subr.mxu0 %v7050
      %v7052 = vand.u32 %v437, 4294901760
      %v7053 = vsub.f32 %v437, %v7052
      %v7054 = vand.u32 %v7053, 4294901760
      %7055 = vmatpush1.msra.mxu0 %v7054
      %v7056 = vand.u32 %v434, 4294901760
      %v7057 = vsub.f32 %v434, %v7056
      %v7058 = vand.u32 %v7057, 4294901760
      %7059 = vmatprep.subr.mxu0 %v7058
      %v7060 = vand.u32 %v433, 4294901760
      %v7061 = vsub.f32 %v433, %v7060
      %v7062 = vand.u32 %v7061, 4294901760
      %7063 = vmatpush1.msra.mxu0 %v7062
      %v7064 = vand.u32 %v430, 4294901760
      %v7065 = vsub.f32 %v430, %v7064
      %v7066 = vand.u32 %v7065, 4294901760
      %7067 = vmatprep.subr.mxu0 %v7066
      %v7068 = vand.u32 %v429, 4294901760
      %v7069 = vsub.f32 %v429, %v7068
      %v7070 = vand.u32 %v7069, 4294901760
      %7071 = vmatpush1.msra.mxu0 %v7070
      %v7072 = vand.u32 %v426, 4294901760
      %v7073 = vsub.f32 %v426, %v7072
      %v7074 = vand.u32 %v7073, 4294901760
      %7075 = vmatprep.subr.mxu0 %v7074
      %v7076 = vand.u32 %v425, 4294901760
      %v7077 = vsub.f32 %v425, %v7076
      %v7078 = vand.u32 %v7077, 4294901760
      %7079 = vmatpush1.msra.mxu0 %v7078
      %v7080 = vand.u32 %v422, 4294901760
      %v7081 = vsub.f32 %v422, %v7080
      %v7082 = vand.u32 %v7081, 4294901760
      %7083 = vmatprep.subr.mxu0 %v7082
      %v7084 = vand.u32 %v421, 4294901760
      %v7085 = vsub.f32 %v421, %v7084
      %v7086 = vand.u32 %v7085, 4294901760
      %7087 = vmatpush1.msra.mxu0 %v7086
      %v7088 = vand.u32 %v418, 4294901760
      %v7089 = vsub.f32 %v418, %v7088
      %v7090 = vand.u32 %v7089, 4294901760
      %7091 = vmatprep.subr.mxu0 %v7090
      %v7092 = vand.u32 %v417, 4294901760
      %v7093 = vsub.f32 %v417, %v7092
      %v7094 = vand.u32 %v7093, 4294901760
      %7095 = vmatpush1.msra.mxu0 %v7094
      %v7096 = vand.u32 %v414, 4294901760
      %v7097 = vsub.f32 %v414, %v7096
      %v7098 = vand.u32 %v7097, 4294901760
      %7099 = vmatprep.subr.mxu0 %v7098
      %v7100 = vand.u32 %v413, 4294901760
      %v7101 = vsub.f32 %v413, %v7100
      %v7102 = vand.u32 %v7101, 4294901760
      %7103 = vmatpush1.msra.mxu0 %v7102
      %v7104 = vand.u32 %v410, 4294901760
      %v7105 = vsub.f32 %v410, %v7104
      %v7106 = vand.u32 %v7105, 4294901760
      %7107 = vmatprep.subr.mxu0 %v7106
      %v7108 = vand.u32 %v409, 4294901760
      %v7109 = vsub.f32 %v409, %v7108
      %v7110 = vand.u32 %v7109, 4294901760
      %7111 = vmatpush1.msra.mxu0 %v7110
      %v7112 = vand.u32 %v406, 4294901760
      %v7113 = vsub.f32 %v406, %v7112
      %v7114 = vand.u32 %v7113, 4294901760
      %7115 = vmatprep.subr.mxu0 %v7114
      %v7116 = vand.u32 %v405, 4294901760
      %v7117 = vsub.f32 %v405, %v7116
      %v7118 = vand.u32 %v7117, 4294901760
      %7119 = vmatpush1.msra.mxu0 %v7118
      %v7120 = vand.u32 %v402, 4294901760
      %v7121 = vsub.f32 %v402, %v7120
      %v7122 = vand.u32 %v7121, 4294901760
      %7123 = vmatprep.subr.mxu0 %v7122
      %v7124 = vand.u32 %v401, 4294901760
      %v7125 = vsub.f32 %v401, %v7124
      %v7126 = vand.u32 %v7125, 4294901760
      %7127 = vmatpush1.msra.mxu0 %v7126
      %v7128 = vand.u32 %v398, 4294901760
      %v7129 = vsub.f32 %v398, %v7128
      %v7130 = vand.u32 %v7129, 4294901760
      %7131 = vmatprep.subr.mxu0 %v7130
      %v7132 = vand.u32 %v397, 4294901760
      %v7133 = vsub.f32 %v397, %v7132
      %v7134 = vand.u32 %v7133, 4294901760
      %7135 = vmatpush1.msra.mxu0 %v7134
      %v7136 = vand.u32 %v394, 4294901760
      %v7137 = vsub.f32 %v394, %v7136
      %v7138 = vand.u32 %v7137, 4294901760
      %7139 = vmatprep.subr.mxu0 %v7138
      %v7140 = vand.u32 %v393, 4294901760
      %v7141 = vsub.f32 %v393, %v7140
      %v7142 = vand.u32 %v7141, 4294901760
      %7143 = vmatpush1.msra.mxu0 %v7142
      %v7144 = vand.u32 %v390, 4294901760
      %v7145 = vsub.f32 %v390, %v7144
      %v7146 = vand.u32 %v7145, 4294901760
      %7147 = vmatprep.subr.mxu0 %v7146
      %v7148 = vand.u32 %v389, 4294901760
      %v7149 = vsub.f32 %v389, %v7148
      %v7150 = vand.u32 %v7149, 4294901760
      %7151 = vmatpush1.msra.mxu0 %v7150
      %v7152 = vand.u32 %v514, 4294901760
      %v7153 = vsub.f32 %v514, %v7152
      %v7154 = vand.u32 %v7153, 4294901760
      %7155 = vmatprep.subr.mxu0 %v7154
      %v7156 = vand.u32 %v513, 4294901760
      %v7157 = vsub.f32 %v513, %v7156
      %v7158 = vand.u32 %v7157, 4294901760
      %7159 = vmatpush2.msra.mxu0 %v7158
      %v7160 = vand.u32 %v510, 4294901760
      %v7161 = vsub.f32 %v510, %v7160
      %v7162 = vand.u32 %v7161, 4294901760
      %7163 = vmatprep.subr.mxu0 %v7162
      %v7164 = vand.u32 %v509, 4294901760
      %v7165 = vsub.f32 %v509, %v7164
      %v7166 = vand.u32 %v7165, 4294901760
      %7167 = vmatpush2.msra.mxu0 %v7166
      %v7168 = vand.u32 %v506, 4294901760
      %v7169 = vsub.f32 %v506, %v7168
      %v7170 = vand.u32 %v7169, 4294901760
      %7171 = vmatprep.subr.mxu0 %v7170
      %v7172 = vand.u32 %v505, 4294901760
      %v7173 = vsub.f32 %v505, %v7172
      %v7174 = vand.u32 %v7173, 4294901760
      %7175 = vmatpush2.msra.mxu0 %v7174
      %v7176 = vand.u32 %v502, 4294901760
      %v7177 = vsub.f32 %v502, %v7176
      %v7178 = vand.u32 %v7177, 4294901760
      %7179 = vmatprep.subr.mxu0 %v7178
      %v7180 = vand.u32 %v501, 4294901760
      %v7181 = vsub.f32 %v501, %v7180
      %v7182 = vand.u32 %v7181, 4294901760
      %7183 = vmatpush2.msra.mxu0 %v7182
      %v7184 = vand.u32 %v498, 4294901760
      %v7185 = vsub.f32 %v498, %v7184
      %v7186 = vand.u32 %v7185, 4294901760
      %7187 = vmatprep.subr.mxu0 %v7186
      %v7188 = vand.u32 %v497, 4294901760
      %v7189 = vsub.f32 %v497, %v7188
      %v7190 = vand.u32 %v7189, 4294901760
      %7191 = vmatpush2.msra.mxu0 %v7190
      %v7192 = vand.u32 %v494, 4294901760
      %v7193 = vsub.f32 %v494, %v7192
      %v7194 = vand.u32 %v7193, 4294901760
      %7195 = vmatprep.subr.mxu0 %v7194
      %v7196 = vand.u32 %v493, 4294901760
      %v7197 = vsub.f32 %v493, %v7196
      %v7198 = vand.u32 %v7197, 4294901760
      %7199 = vmatpush2.msra.mxu0 %v7198
      %v7200 = vand.u32 %v490, 4294901760
      %v7201 = vsub.f32 %v490, %v7200
      %v7202 = vand.u32 %v7201, 4294901760
      %7203 = vmatprep.subr.mxu0 %v7202
      %v7204 = vand.u32 %v489, 4294901760
      %v7205 = vsub.f32 %v489, %v7204
      %v7206 = vand.u32 %v7205, 4294901760
      %7207 = vmatpush2.msra.mxu0 %v7206
      %v7208 = vand.u32 %v486, 4294901760
      %v7209 = vsub.f32 %v486, %v7208
      %v7210 = vand.u32 %v7209, 4294901760
      %7211 = vmatprep.subr.mxu0 %v7210
      %v7212 = vand.u32 %v485, 4294901760
      %v7213 = vsub.f32 %v485, %v7212
      %v7214 = vand.u32 %v7213, 4294901760
      %7215 = vmatpush2.msra.mxu0 %v7214
      %v7216 = vand.u32 %v482, 4294901760
      %v7217 = vsub.f32 %v482, %v7216
      %v7218 = vand.u32 %v7217, 4294901760
      %7219 = vmatprep.subr.mxu0 %v7218
      %v7220 = vand.u32 %v481, 4294901760
      %v7221 = vsub.f32 %v481, %v7220
      %v7222 = vand.u32 %v7221, 4294901760
      %7223 = vmatpush2.msra.mxu0 %v7222
      %v7224 = vand.u32 %v478, 4294901760
      %v7225 = vsub.f32 %v478, %v7224
      %v7226 = vand.u32 %v7225, 4294901760
      %7227 = vmatprep.subr.mxu0 %v7226
      %v7228 = vand.u32 %v477, 4294901760
      %v7229 = vsub.f32 %v477, %v7228
      %v7230 = vand.u32 %v7229, 4294901760
      %7231 = vmatpush2.msra.mxu0 %v7230
      %v7232 = vand.u32 %v474, 4294901760
      %v7233 = vsub.f32 %v474, %v7232
      %v7234 = vand.u32 %v7233, 4294901760
      %7235 = vmatprep.subr.mxu0 %v7234
      %v7236 = vand.u32 %v473, 4294901760
      %v7237 = vsub.f32 %v473, %v7236
      %v7238 = vand.u32 %v7237, 4294901760
      %7239 = vmatpush2.msra.mxu0 %v7238
      %v7240 = vand.u32 %v470, 4294901760
      %v7241 = vsub.f32 %v470, %v7240
      %v7242 = vand.u32 %v7241, 4294901760
      %7243 = vmatprep.subr.mxu0 %v7242
      %v7244 = vand.u32 %v469, 4294901760
      %v7245 = vsub.f32 %v469, %v7244
      %v7246 = vand.u32 %v7245, 4294901760
      %7247 = vmatpush2.msra.mxu0 %v7246
      %v7248 = vand.u32 %v466, 4294901760
      %v7249 = vsub.f32 %v466, %v7248
      %v7250 = vand.u32 %v7249, 4294901760
      %7251 = vmatprep.subr.mxu0 %v7250
      %v7252 = vand.u32 %v465, 4294901760
      %v7253 = vsub.f32 %v465, %v7252
      %v7254 = vand.u32 %v7253, 4294901760
      %7255 = vmatpush2.msra.mxu0 %v7254
      %v7256 = vand.u32 %v462, 4294901760
      %v7257 = vsub.f32 %v462, %v7256
      %v7258 = vand.u32 %v7257, 4294901760
      %7259 = vmatprep.subr.mxu0 %v7258
      %v7260 = vand.u32 %v461, 4294901760
      %v7261 = vsub.f32 %v461, %v7260
      %v7262 = vand.u32 %v7261, 4294901760
      %7263 = vmatpush2.msra.mxu0 %v7262
      %v7264 = vand.u32 %v458, 4294901760
      %v7265 = vsub.f32 %v458, %v7264
      %v7266 = vand.u32 %v7265, 4294901760
      %7267 = vmatprep.subr.mxu0 %v7266
      %v7268 = vand.u32 %v457, 4294901760
      %v7269 = vsub.f32 %v457, %v7268
      %v7270 = vand.u32 %v7269, 4294901760
      %7271 = vmatpush2.msra.mxu0 %v7270
      %v7272 = vand.u32 %v454, 4294901760
      %v7273 = vsub.f32 %v454, %v7272
      %v7274 = vand.u32 %v7273, 4294901760
      %7275 = vmatprep.subr.mxu0 %v7274
      %v7276 = vand.u32 %v453, 4294901760
      %v7277 = vsub.f32 %v453, %v7276
      %v7278 = vand.u32 %v7277, 4294901760
      %7279 = vmatpush2.msra.mxu0 %v7278
      %v7280 = vand.u32 %v258, 4294901760
      %7281 = vmatprep.mubr.f32.mxu0 %v7280
      %v7282 = vand.u32 %v257, 4294901760
      %7283 = vmatmul.mubr.f32.gmra.mxu0 %v7282
      %v7284 = vpop.f32.mrf.mxu0
      %v7285 = vadd.f32 %v7020, %v7284
      %v7286 = vpop.f32.mrf.mxu0
      %v7287 = vadd.f32 %v7022, %v7286
      %7288 = vdwg.mxu0
      %v7289 = vand.u32 %v450, 4294901760
      %7290 = vmatprep.subr.mxu0 %v7289
      %v7291 = vand.u32 %v449, 4294901760
      %7292 = vmatpush1.msra.mxu0 %v7291
      %v7293 = vand.u32 %v446, 4294901760
      %7294 = vmatprep.subr.mxu0 %v7293
      %v7295 = vand.u32 %v445, 4294901760
      %7296 = vmatpush1.msra.mxu0 %v7295
      %v7297 = vand.u32 %v442, 4294901760
      %7298 = vmatprep.subr.mxu0 %v7297
      %v7299 = vand.u32 %v441, 4294901760
      %7300 = vmatpush1.msra.mxu0 %v7299
      %v7301 = vand.u32 %v438, 4294901760
      %7302 = vmatprep.subr.mxu0 %v7301
      %v7303 = vand.u32 %v437, 4294901760
      %7304 = vmatpush1.msra.mxu0 %v7303
      %v7305 = vand.u32 %v434, 4294901760
      %7306 = vmatprep.subr.mxu0 %v7305
      %v7307 = vand.u32 %v433, 4294901760
      %7308 = vmatpush1.msra.mxu0 %v7307
      %v7309 = vand.u32 %v430, 4294901760
      %7310 = vmatprep.subr.mxu0 %v7309
      %v7311 = vand.u32 %v429, 4294901760
      %7312 = vmatpush1.msra.mxu0 %v7311
      %v7313 = vand.u32 %v426, 4294901760
      %7314 = vmatprep.subr.mxu0 %v7313
      %v7315 = vand.u32 %v425, 4294901760
      %7316 = vmatpush1.msra.mxu0 %v7315
      %v7317 = vand.u32 %v422, 4294901760
      %7318 = vmatprep.subr.mxu0 %v7317
      %v7319 = vand.u32 %v421, 4294901760
      %7320 = vmatpush1.msra.mxu0 %v7319
      %v7321 = vand.u32 %v418, 4294901760
      %7322 = vmatprep.subr.mxu0 %v7321
      %v7323 = vand.u32 %v417, 4294901760
      %7324 = vmatpush1.msra.mxu0 %v7323
      %v7325 = vand.u32 %v414, 4294901760
      %7326 = vmatprep.subr.mxu0 %v7325
      %v7327 = vand.u32 %v413, 4294901760
      %7328 = vmatpush1.msra.mxu0 %v7327
      %v7329 = vand.u32 %v410, 4294901760
      %7330 = vmatprep.subr.mxu0 %v7329
      %v7331 = vand.u32 %v409, 4294901760
      %7332 = vmatpush1.msra.mxu0 %v7331
      %v7333 = vand.u32 %v406, 4294901760
      %7334 = vmatprep.subr.mxu0 %v7333
      %v7335 = vand.u32 %v405, 4294901760
      %7336 = vmatpush1.msra.mxu0 %v7335
      %v7337 = vand.u32 %v402, 4294901760
      %7338 = vmatprep.subr.mxu0 %v7337
      %v7339 = vand.u32 %v401, 4294901760
      %7340 = vmatpush1.msra.mxu0 %v7339
      %v7341 = vand.u32 %v398, 4294901760
      %7342 = vmatprep.subr.mxu0 %v7341
      %v7343 = vand.u32 %v397, 4294901760
      %7344 = vmatpush1.msra.mxu0 %v7343
      %v7345 = vand.u32 %v394, 4294901760
      %7346 = vmatprep.subr.mxu0 %v7345
      %v7347 = vand.u32 %v393, 4294901760
      %7348 = vmatpush1.msra.mxu0 %v7347
      %v7349 = vand.u32 %v390, 4294901760
      %7350 = vmatprep.subr.mxu0 %v7349
      %v7351 = vand.u32 %v389, 4294901760
      %7352 = vmatpush1.msra.mxu0 %v7351
      %v7353 = vand.u32 %v514, 4294901760
      %7354 = vmatprep.subr.mxu0 %v7353
      %v7355 = vand.u32 %v513, 4294901760
      %7356 = vmatpush2.msra.mxu0 %v7355
      %v7357 = vand.u32 %v510, 4294901760
      %7358 = vmatprep.subr.mxu0 %v7357
      %v7359 = vand.u32 %v509, 4294901760
      %7360 = vmatpush2.msra.mxu0 %v7359
      %v7361 = vand.u32 %v506, 4294901760
      %7362 = vmatprep.subr.mxu0 %v7361
      %v7363 = vand.u32 %v505, 4294901760
      %7364 = vmatpush2.msra.mxu0 %v7363
      %v7365 = vand.u32 %v502, 4294901760
      %7366 = vmatprep.subr.mxu0 %v7365
      %v7367 = vand.u32 %v501, 4294901760
      %7368 = vmatpush2.msra.mxu0 %v7367
      %v7369 = vand.u32 %v498, 4294901760
      %7370 = vmatprep.subr.mxu0 %v7369
      %v7371 = vand.u32 %v497, 4294901760
      %7372 = vmatpush2.msra.mxu0 %v7371
      %v7373 = vand.u32 %v494, 4294901760
      %7374 = vmatprep.subr.mxu0 %v7373
      %v7375 = vand.u32 %v493, 4294901760
      %7376 = vmatpush2.msra.mxu0 %v7375
      %v7377 = vand.u32 %v490, 4294901760
      %7378 = vmatprep.subr.mxu0 %v7377
      %v7379 = vand.u32 %v489, 4294901760
      %7380 = vmatpush2.msra.mxu0 %v7379
      %v7381 = vand.u32 %v486, 4294901760
      %7382 = vmatprep.subr.mxu0 %v7381
      %v7383 = vand.u32 %v485, 4294901760
      %7384 = vmatpush2.msra.mxu0 %v7383
      %v7385 = vand.u32 %v482, 4294901760
      %7386 = vmatprep.subr.mxu0 %v7385
      %v7387 = vand.u32 %v481, 4294901760
      %7388 = vmatpush2.msra.mxu0 %v7387
      %v7389 = vand.u32 %v478, 4294901760
      %7390 = vmatprep.subr.mxu0 %v7389
      %v7391 = vand.u32 %v477, 4294901760
      %7392 = vmatpush2.msra.mxu0 %v7391
      %v7393 = vand.u32 %v474, 4294901760
      %7394 = vmatprep.subr.mxu0 %v7393
      %v7395 = vand.u32 %v473, 4294901760
      %7396 = vmatpush2.msra.mxu0 %v7395
      %v7397 = vand.u32 %v470, 4294901760
      %7398 = vmatprep.subr.mxu0 %v7397
      %v7399 = vand.u32 %v469, 4294901760
      %7400 = vmatpush2.msra.mxu0 %v7399
      %v7401 = vand.u32 %v466, 4294901760
      %7402 = vmatprep.subr.mxu0 %v7401
      %v7403 = vand.u32 %v465, 4294901760
      %7404 = vmatpush2.msra.mxu0 %v7403
      %v7405 = vand.u32 %v462, 4294901760
      %7406 = vmatprep.subr.mxu0 %v7405
      %v7407 = vand.u32 %v461, 4294901760
      %7408 = vmatpush2.msra.mxu0 %v7407
      %v7409 = vand.u32 %v458, 4294901760
      %7410 = vmatprep.subr.mxu0 %v7409
      %v7411 = vand.u32 %v457, 4294901760
      %7412 = vmatpush2.msra.mxu0 %v7411
      %v7413 = vand.u32 %v454, 4294901760
      %7414 = vmatprep.subr.mxu0 %v7413
      %v7415 = vand.u32 %v453, 4294901760
      %7416 = vmatpush2.msra.mxu0 %v7415
      %v7417 = vand.u32 %v258, 4294901760
      %7418 = vmatprep.mubr.f32.mxu0 %v7417
      %v7419 = vand.u32 %v257, 4294901760
      %7420 = vmatmul.mubr.f32.gmra.mxu0 %v7419
      %v7421 = vpop.f32.mrf.mxu0
      %v7422 = vadd.f32 %v7285, %v7421
      %v7423 = vpop.f32.mrf.mxu0
      %v7424 = vadd.f32 %v7287, %v7423
      %7425 = vdwg.mxu0
      %7426 = vst [vmem:[%s253] sm:$0xff] %v4854
      %7427 = vst [vmem:[%s253 + $0x8] sm:$0xff] %v4856
      %7428 = vst [vmem:[%s253 + $0x10] sm:$0xff] %v7422
      %7429 = vst [vmem:[%s253 + $0x18] sm:$0xff] %v7424
      %s7430 = smul.u32 4, %s19
      %p7431 = scmp.lt.s32.totalorder %s18, 1
      %s7432 = scalar_select %p7431, %s18, 1
      %p7433 = scmp.lt.s32.totalorder %s7430, 7
      %s7434 = scalar_select %p7433, %s7430, 7
      %s7435 = smul.addr %s7432, 8
      %s7436 = sadd.s32 %s7434, %s7435
      %s7437 = smul.addr %s7436, 8
      %s7438 = scalar_lea.vmem %s3, %s7437
      // Predicated region
      $region33: #{interpolated_conv_forward.1} parent=31 // pred_check
        %p7439 = pneg %p127
      $region34: #{interpolated_conv_forward.1} parent=31 // pred_check_branch
        %7441 = sbr.rel (%p7439) target = $region36
      $region35: #{interpolated_conv_forward.1} parent=31 // pred_region
        %s7442 = smul.u32 4, %s19
      $region36: #{interpolated_conv_forward.1} parent=31 // pred_fallthru
        _
    $region32: #{interpolated_conv_forward.1} parent=5 // pred_fallthru
      _
    %p7443 = scmp.le.s32.totalorder 2, %s9
    // Predicated region
    $region37: #{interpolated_conv_forward.1} parent=5 // pred_check
      %p7444 = pneg %p7443
    $region38: #{interpolated_conv_forward.1} parent=5 // pred_check_branch
      %7446 = sbr.rel (%p7444) target = $region40
    $region39: #{interpolated_conv_forward.1} parent=5 // pred_region
      %s7447 = ssub.s32 %s9, 2
      // Predicated region
      $region41: #{interpolated_conv_forward.1} parent=39 // pred_check
        %p7448 = pneg %p133
      $region42: #{interpolated_conv_forward.1} parent=39 // pred_check_branch
        %7450 = sbr.rel (%p7448) target = $region44
      $region43: #{interpolated_conv_forward.1} parent=39 // pred_region
        %s7451 = smul.u32 4, %s21
        %p7452 = scmp.lt.s32.totalorder %s20, 1
        %s7453 = scalar_select %p7452, %s20, 1
        %p7454 = scmp.lt.s32.totalorder %s7451, 7
        %s7455 = scalar_select %p7454, %s7451, 7
        %s7456 = smul.addr %s7453, 8
        %s7457 = sadd.s32 %s7455, %s7456
        %s7458 = smul.addr %s7457, 8
        %s7459 = scalar_lea.vmem %s3, %s7458
      $region44: #{interpolated_conv_forward.1} parent=39 // pred_fallthru
        _
    $region40: #{interpolated_conv_forward.1} parent=5 // pred_fallthru
      _
  $region6: #{interpolated_conv_forward.1} parent=0 // loop_footer
    %s13 = sadd.s32 1, %s9
  $region7: #{interpolated_conv_forward.1} parent=0 // loop_footer_branch
    %8 = sbr.rel target = $region3
  $region8: #{interpolated_conv_forward.1} parent=0 // loop_exit
    _

</llo_original>
